<compile_context>
chip_gen: v7x
topology: tpu7x:2x2x1
jax: 0.10.0
libtpu: 0.0.40
codegen_flags: <defaults>
</compile_context>

<pallas_src>
import math
import functools
import jax
import jax.numpy as jnp
from jax.experimental import pallas as pl
from jax.experimental.pallas import tpu as pltpu

# ----------------------------------------------------------------------------
# Config (scaled-down dinov2_vits14_reg-like backbone)
# ----------------------------------------------------------------------------
EMBED_DIM = 32          # dino.embed_dim (real: 384)
DEPTH = 12
NUM_HEADS = 2
PATCH = 4               # real: 14
IMG_RES = 16            # real: 518
N_REG = 4               # register tokens (dinov2_*_reg)
HOOKS = (2, 5, 8, 11)
MLP_HIDDEN = 4 * EMBED_DIM
N_TOKENS = 1 + N_REG + (IMG_RES // PATCH) ** 2   # cls + registers + patches = 21
N_HOOKS = len(HOOKS) + 1                          # + hook_patch = 5

BN_EPS = 1e-5
LN_EPS = 1e-6
LRELU_SLOPE = 0.2
INV_SQRT2 = 1.0 / math.sqrt(2.0)
CONV_K = 9
GELU_C = math.sqrt(2.0 / math.pi)

# ----------------------------------------------------------------------------
# Pallas kernel 1: tiled matmul + bias (used for the patch-embed projection)
# ----------------------------------------------------------------------------
def _linear_1k_kernel(x_ref, w_ref, b_ref, o_ref):
    # Single-K-block fast path: no scratch accumulator round-trip.
    o_ref[...] = (jnp.dot(x_ref[...].astype(w_ref.dtype), w_ref[...],
                          preferred_element_type=jnp.float32)
                  + b_ref[...]).astype(o_ref.dtype)


def _linear_acc_kernel(x_ref, w_ref, b_ref, o_ref, acc_ref):
    @pl.when(pl.program_id(2) == 0)
    def _():
        acc_ref[...] = jnp.zeros_like(acc_ref)

    acc_ref[...] += jnp.dot(x_ref[...].astype(w_ref.dtype), w_ref[...],
                            preferred_element_type=jnp.float32)

    @pl.when(pl.program_id(2) == pl.num_programs(2) - 1)
    def _():
        # bias only applied (and its block only relevant) at finalize
        o_ref[...] = (acc_ref[...] + b_ref[...]).astype(o_ref.dtype)


def _largest_divisor_le(n, cap):
    t = min(n, cap)
    while n % t:
        t -= 1
    return t


def pallas_linear(x2d, w, b, tm=256, tn=256, tk=512):
    # x2d: (M, K), w: (K, N) [f32 or bf16], b: (N,) f32
    M, K = x2d.shape
    N = w.shape[1]
    tm, tn = min(tm, M), min(tn, N)
    tk = _largest_divisor_le(K, tk)          # bounded K tile, never full-K blowup
    b2 = b.reshape(1, N).astype(jnp.float32)

    if K // tk == 1:
        return pl.pallas_call(
            _linear_1k_kernel,
            out_shape=jax.ShapeDtypeStruct((M, N), jnp.float32),
            grid_spec=pltpu.PrefetchScalarGridSpec(
                num_scalar_prefetch=0,
                grid=(pl.cdiv(M, tm), pl.cdiv(N, tn)),
                in_specs=[pl.BlockSpec((tm, K), lambda i, j: (i, 0)),
                          pl.BlockSpec((K, tn), lambda i, j: (0, j)),
                          pl.BlockSpec((1, tn), lambda i, j: (0, j))],
                out_specs=pl.BlockSpec((tm, tn), lambda i, j: (i, j))),
            compiler_params=pltpu.CompilerParams(
                dimension_semantics=("parallel", "parallel")),
        )(x2d, w, b2)

    return pl.pallas_call(
        _linear_acc_kernel,
        out_shape=jax.ShapeDtypeStruct((M, N), jnp.float32),
        grid_spec=pltpu.PrefetchScalarGridSpec(
            num_scalar_prefetch=0,
            grid=(pl.cdiv(M, tm), pl.cdiv(N, tn), K // tk),
            in_specs=[pl.BlockSpec((tm, tk), lambda i, j, k: (i, k)),
                      pl.BlockSpec((tk, tn), lambda i, j, k: (k, j)),
                      pl.BlockSpec((1, tn), lambda i, j, k: (0, j))],
            out_specs=pl.BlockSpec((tm, tn), lambda i, j, k: (i, j)),
            scratch_shapes=[pltpu.VMEM((tm, tn), jnp.float32)]),
        compiler_params=pltpu.CompilerParams(
            dimension_semantics=("parallel", "parallel", "arbitrary")),
    )(x2d, w, b2)


# ----------------------------------------------------------------------------
# Pallas kernel 2: fused DINOv2 transformer stack (one call, grid over blocks)
# ----------------------------------------------------------------------------
def _ln(x, g, b):
    mu = jnp.mean(x, axis=-1, keepdims=True)
    var = jnp.mean(jnp.square(x - mu), axis=-1, keepdims=True)
    return (x - mu) * jax.lax.rsqrt(var + LN_EPS) * g + b


def _backbone_kernel(tok_ref, ln1g_ref, ln1b_ref, qkvw_ref, qkvb_ref,
                     projw_ref, projb_ref, ls1_ref, ln2g_ref, ln2b_ref,
                     fc1w_ref, fc1b_ref, fc2w_ref, fc2b_ref, ls2_ref,
                     feat_ref, x_ref, *, B, T, D, H):
    # Token state persists in VMEM scratch across the DEPTH grid steps.
    @pl.when(pl.program_id(0) == 0)
    def _():
        x_ref[...] = tok_ref[...]

    x = x_ref[...]                                              # (B*T, D) f32
    hd = D // H
    scale = hd ** -0.5

    # ---- attention branch: LN -> QKV -> per-(batch,head) SDPA -> proj ----
    xn = _ln(x, ln1g_ref[0], ln1b_ref[0])
    qkv = jnp.dot(xn.astype(qkvw_ref.dtype), qkvw_ref[0],
                  preferred_element_type=jnp.float32) + qkvb_ref[0]   # (BT,3D)
    # Static unroll over (batch, head): only 2-D MXU dots / 2-D softmax inside
    # the kernel (no batched dot_general or >2-D transposes).
    # TODO(synk): replace with a flash-style fused attention at real scale.
    batch_outs = []
    for b in range(B):
        qkv_b = qkv[b * T:(b + 1) * T, :]                       # (T, 3D)
        head_outs = []
        for h in range(H):
            q = qkv_b[:, h * hd:(h + 1) * hd] * scale
            k = qkv_b[:, D + h * hd:D + (h + 1) * hd]
            v = qkv_b[:, 2 * D + h * hd:2 * D + (h + 1) * hd]
            s = jnp.einsum('qd,kd->qk', q, k,
                           preferred_element_type=jnp.float32)   # (T, T)
            s = s - jnp.max(s, axis=-1, keepdims=True)
            p = jnp.exp(s)
            p = p / jnp.sum(p, axis=-1, keepdims=True)
            head_outs.append(jnp.dot(p, v, preferred_element_type=jnp.float32))
        batch_outs.append(jnp.concatenate(head_outs, axis=-1))   # (T, D)
    attn = jnp.concatenate(batch_outs, axis=0)                   # (BT, D)
    attn = jnp.dot(attn.astype(projw_ref.dtype), projw_ref[0],
                   preferred_element_type=jnp.float32) + projb_ref[0]
    x = x + ls1_ref[0] * attn                                    # LayerScale

    # ---- MLP branch: LN -> fc1 -> GELU -> fc2 ----
    xn = _ln(x, ln2g_ref[0], ln2b_ref[0])
    h1 = jnp.dot(xn.astype(fc1w_ref.dtype), fc1w_ref[0],
                 preferred_element_type=jnp.float32) + fc1b_ref[0]
    # TODO(synk): nn.GELU() is exact-erf; tanh approximation used in-kernel.
    h1 = 0.5 * h1 * (1.0 + jnp.tanh(GELU_C * (h1 + 0.044715 * h1 * h1 * h1)))
    h2 = jnp.dot(h1.astype(fc2w_ref.dtype), fc2w_ref[0],
                 preferred_element_type=jnp.float32) + fc2b_ref[0]
    x = x + ls2_ref[0] * h2

    x_ref[...] = x
    # Hooked features are stored bf16 (halves backbone-out + head-in DMA).
    feat_ref[...] = x[None].astype(feat_ref.dtype)


def backbone_forward(tok_flat, sp, B, T):
    BT, D = tok_flat.shape
    kernel = functools.partial(_backbone_kernel, B=B, T=T, D=D, H=NUM_HEADS)

    def vec_spec(dim):
        return pl.BlockSpec((1, 1, dim), lambda d: (d, 0, 0))

    def mat_spec(rows, cols):
        return pl.BlockSpec((1, rows, cols), lambda d: (d, 0, 0))

    def hook_slot(d):
        # slot = number of hooks strictly below d; final write into slot j is
        # block HOOKS[j] (writes are deferred while the slot index repeats).
        s = 0
        for hk in HOOKS:
            s = s + jnp.where(d > hk, 1, 0)
        return s

    return pl.pallas_call(
        kernel,
        out_shape=jax.ShapeDtypeStruct((len(HOOKS), BT, D), jnp.bfloat16),
        grid_spec=pltpu.PrefetchScalarGridSpec(
            num_scalar_prefetch=0,
            grid=(DEPTH,),
            in_specs=[
                pl.BlockSpec((BT, D), lambda d: (0, 0)),          # initial tokens
                vec_spec(D), vec_spec(D),                         # ln1 g, b
                mat_spec(D, 3 * D), vec_spec(3 * D),              # qkv w, b
                mat_spec(D, D), vec_spec(D),                      # proj w, b
                vec_spec(D),                                      # ls1
                vec_spec(D), vec_spec(D),                         # ln2 g, b
                mat_spec(D, MLP_HIDDEN), vec_spec(MLP_HIDDEN),    # fc1 w, b
                mat_spec(MLP_HIDDEN, D), vec_spec(D),             # fc2 w, b
                vec_spec(D),                                      # ls2
            ],
            out_specs=pl.BlockSpec((1, BT, D), lambda d: (hook_slot(d), 0, 0)),
            scratch_shapes=[pltpu.VMEM((BT, D), jnp.float32)],
        ),
        compiler_params=pltpu.CompilerParams(
            dimension_semantics=("arbitrary",)),   # sequential state carry
    )(tok_flat,
      sp['ln1_g'], sp['ln1_b'], sp['qkv_w'], sp['qkv_b'],
      sp['proj_w'], sp['proj_b'], sp['ls1'],
      sp['ln2_g'], sp['ln2_b'], sp['fc1_w'], sp['fc1_b'],
      sp['fc2_w'], sp['fc2_b'], sp['ls2'])


# ----------------------------------------------------------------------------
# Pallas kernel 3: fused DiscHeads (all 5 heads, one grid axis over heads)
#
# Per head:  conv1d(k=1) -> BatchNorm1d(train batch stats) -> LeakyReLU(0.2)
#            -> [conv1d(k=9, circular pad 4) -> BN -> LeakyReLU] residual /sqrt(2)
#            -> conv1d(channels -> 1, k=1)
#
# Feature layout inside the kernel: (B*T, C) channels-last (the transpose of
# PyTorch's (B, C, T) conv1d input).
# TODO(synk): v7x at real scale: add a token-tile grid axis with a two-pass
# BatchNorm and raise vmem_limit_bytes (64 MiB VMEM); also gives a second
# parallel axis so the 5-head grid splits evenly across the two TensorCores.
# ----------------------------------------------------------------------------
def _disc_heads_kernel(x_ref, w1_ref, b1_ref, g1_ref, be1_ref,
                       w9m_ref, b2_ref, g2_ref, be2_ref, wc_ref, bc_ref,
                       o_ref, *, B, T):
    C = w1_ref.shape[-1]
    x2 = x_ref[0]                                                  # (B*T, C) bf16

    # --- make_block(k=1): pointwise conv (MXU, f32 acc) + BN(train) + LReLU ---
    y = jnp.dot(x2, w1_ref[0], preferred_element_type=jnp.float32) + b1_ref[0]
    mu = jnp.mean(y, axis=0, keepdims=True)
    var = jnp.mean(jnp.square(y - mu), axis=0, keepdims=True)      # biased var
    y = (y - mu) * jax.lax.rsqrt(var + BN_EPS) * g1_ref[0] + be1_ref[0]
    y = jnp.where(y >= 0, y, LRELU_SLOPE * y)
    # TODO(synk): at real BT, compute BN stats via a ones-row MXU matmul
    # instead of cross-sublane jnp.mean reductions.

    # --- ResidualBlock(make_block(k=9, circular padding)) ---
    # Circular conv as halo-pad + im2col: one (BT, 9C) x (9C, C) MXU
    # contraction (keeps the 9-tap reduction inside the MXU K pipeline).
    pad = CONV_K // 2
    y3 = y.reshape(B, T, C)
    halo = jnp.concatenate([y3[:, T - pad:, :], y3, y3[:, :pad, :]], axis=1)
    cols = jnp.concatenate([halo[:, t:t + T, :] for t in range(CONV_K)],
                           axis=-1)                                # (B, T, 9C)
    cols2 = cols.reshape(B * T, CONV_K * C).astype(w9m_ref.dtype)
    z = jnp.dot(cols2, w9m_ref[0], preferred_element_type=jnp.float32) + b2_ref[0]
    mu2 = jnp.mean(z, axis=0, keepdims=True)
    var2 = jnp.mean(jnp.square(z - mu2), axis=0, keepdims=True)
    z = (z - mu2) * jax.lax.rsqrt(var2 + BN_EPS) * g2_ref[0] + be2_ref[0]
    z = jnp.where(z >= 0, z, LRELU_SLOPE * z)
    h = (z + y) * jnp.float32(INV_SQRT2)

    # --- cls: conv1d(channels -> 1, k=1) ---
    # TODO(synk): at real C/BT, route this through the MXU with a 128-padded
    # lane-dense output slab (pad T to a multiple of 128).
    h3 = h.reshape(B, T, C)
    out = jnp.sum(h3 * wc_ref[0], axis=-1) + bc_ref[0]             # (B, T)
    o_ref[...] = out[None].astype(o_ref.dtype)


def disc_heads_forward(feats_flat, hp, B, T):
    # feats_flat: (N_HOOKS, B*T, C) stacked hooked features (bf16, channels-last)
    NH, BT, C = feats_flat.shape
    kernel = functools.partial(_disc_heads_kernel, B=B, T=T)

    def vec(dim):
        return pl.BlockSpec((1, 1, dim), lambda h: (h, 0, 0))

    return pl.pallas_call(
        kernel,
        out_shape=jax.ShapeDtypeStruct((NH, B, T), jnp.float32),
        grid_spec=pltpu.PrefetchScalarGridSpec(
            num_scalar_prefetch=0,
            grid=(NH,),                                    # one step per head
            in_specs=[
                pl.BlockSpec((1, BT, C), lambda h: (h, 0, 0)),           # feats
                pl.BlockSpec((1, C, C), lambda h: (h, 0, 0)),            # w1
                vec(C), vec(C), vec(C),                                  # b1,g1,be1
                pl.BlockSpec((1, CONV_K * C, C), lambda h: (h, 0, 0)),   # w9 (im2col)
                vec(C), vec(C), vec(C),                                  # b2,g2,be2
                vec(C),                                                  # wc
                pl.BlockSpec((1, 1, 1), lambda h: (h, 0, 0)),            # bc
            ],
            out_specs=pl.BlockSpec((1, B, T), lambda h: (h, 0, 0)),
        ),
        compiler_params=pltpu.CompilerParams(
            dimension_semantics=("parallel",)),              # megacore on v7x
    )(feats_flat, hp['w1'], hp['b1'], hp['g1'], hp['be1'],
      hp['w9m'], hp['b2'], hp['g2'], hp['be2'], hp['wc'], hp['bc'])


# ----------------------------------------------------------------------------
# DINO backbone wrapper (image prep + patch embed + token prep in plain JAX,
# transformer stack in the fused Pallas kernel above).
# ----------------------------------------------------------------------------
def dino_forward(x_img, dp):
    # layout: image input is NCHW (B, 3, H, W), matching the PyTorch module.
    B = x_img.shape[0]
    H, W = x_img.shape[2], x_img.shape[3]
    # F.interpolate(mode='area') to img_resolution.
    # TODO(synk): only integer downscale factors handled (exact for them).
    if (H, W) != (IMG_RES, IMG_RES):
        fh, fw = H // IMG_RES, W // IMG_RES
        x_img = x_img.reshape(B, 3, IMG_RES, fh, IMG_RES, fw).mean(axis=(3, 5))
    mean = jnp.array([0.485, 0.456, 0.406], jnp.float32).reshape(1, 3, 1, 1)
    std = jnp.array([0.229, 0.224, 0.225], jnp.float32).reshape(1, 3, 1, 1)
    x_img = (x_img - mean) / std

    # patch embed: conv(k=PATCH, stride=PATCH) as a matmul over flattened
    # patches; patch flattening order is (c, kh, kw), patches row-major.
    nh = nw = IMG_RES // PATCH
    xp = (x_img.reshape(B, 3, nh, PATCH, nw, PATCH)
               .transpose(0, 2, 4, 1, 3, 5)
               .reshape(B * nh * nw, 3 * PATCH * PATCH))
    tok = pallas_linear(xp, dp['patch_w'], dp['patch_b'])
    tok = tok.reshape(B, nh * nw, EMBED_DIM)

    # prepare_tokens_with_masks: cls + pos_embed, then insert register tokens.
    cls = jnp.broadcast_to(dp['cls_token'], (B, 1, EMBED_DIM))
    tok = jnp.concatenate([cls, tok], axis=1) + dp['pos_embed']
    reg = jnp.broadcast_to(dp['reg_tokens'], (B, N_REG, EMBED_DIM))
    tok = jnp.concatenate([tok[:, :1], reg, tok[:, 1:]], axis=1)    # (B, T, D)

    T = tok.shape[1]
    tok_flat = tok.reshape(B * T, EMBED_DIM)
    hooks = backbone_forward(tok_flat, dp['stack'], B, T)           # (4, BT, D) bf16
    feats = jnp.concatenate(
        [tok_flat.astype(jnp.bfloat16)[None], hooks], axis=0)       # hook_patch first
    return feats, B, T


# ----------------------------------------------------------------------------
# ProjectedDiscriminator forward
# ----------------------------------------------------------------------------
def projected_discriminator_forward(x, params):
    feats, B, T = dino_forward(x, params['dino'])          # (N_HOOKS, B*T, C)
    logits_hbt = disc_heads_forward(feats, params['heads'], B, T)   # (NH, B, T)
    # PyTorch: cat([head_i(feat_i).view(B, -1)], dim=1) -> (B, N_HOOKS * T)
    return logits_hbt.transpose(1, 0, 2).reshape(B, N_HOOKS * T)


# ----------------------------------------------------------------------------
# Deterministic parameter init (synthetic weights)
# ----------------------------------------------------------------------------
def _normal(key, shape, scale=0.05):
    return scale * jax.random.normal(key, shape, dtype=jnp.float32)


def init_params(key):
    keys = iter(jax.random.split(key, 512))
    nk = lambda: next(keys)

    blocks = []
    for _ in range(DEPTH):
        blocks.append(dict(
            ln1_g=jnp.ones((EMBED_DIM,), jnp.float32),
            ln1_b=jnp.zeros((EMBED_DIM,), jnp.float32),
            qkv_w=_normal(nk(), (EMBED_DIM, 3 * EMBED_DIM)),
            qkv_b=_normal(nk(), (3 * EMBED_DIM,)),
            proj_w=_normal(nk(), (EMBED_DIM, EMBED_DIM)),
            proj_b=_normal(nk(), (EMBED_DIM,)),
            ls1=jnp.ones((EMBED_DIM,), jnp.float32),     # LayerScale (init 1.0)
            ln2_g=jnp.ones((EMBED_DIM,), jnp.float32),
            ln2_b=jnp.zeros((EMBED_DIM,), jnp.float32),
            fc1_w=_normal(nk(), (EMBED_DIM, MLP_HIDDEN)),
            fc1_b=_normal(nk(), (MLP_HIDDEN,)),
            fc2_w=_normal(nk(), (MLP_HIDDEN, EMBED_DIM)),
            fc2_b=_normal(nk(), (EMBED_DIM,)),
            ls2=jnp.ones((EMBED_DIM,), jnp.float32),
        ))
    # Stack per-block params on a leading DEPTH axis for the fused backbone
    # kernel; frozen matmul weights stored bf16, everything else f32.
    stack = {}
    for name in ('ln1_g', 'ln1_b', 'qkv_b', 'proj_b', 'ls1',
                 'ln2_g', 'ln2_b', 'fc1_b', 'fc2_b', 'ls2'):
        stack[name] = jnp.stack([blk[name] for blk in blocks])[:, None, :]
    for name in ('qkv_w', 'proj_w', 'fc1_w', 'fc2_w'):
        stack[name] = jnp.stack([blk[name] for blk in blocks]).astype(jnp.bfloat16)

    dino = dict(
        patch_w=_normal(nk(), (3 * PATCH * PATCH, EMBED_DIM)).astype(jnp.bfloat16),
        patch_b=_normal(nk(), (EMBED_DIM,)),
        cls_token=_normal(nk(), (1, 1, EMBED_DIM)),
        pos_embed=_normal(nk(), (1, 1 + (IMG_RES // PATCH) ** 2, EMBED_DIM)),
        reg_tokens=_normal(nk(), (1, N_REG, EMBED_DIM)),
        stack=stack,
    )

    heads_list = []
    for _ in range(N_HOOKS):
        heads_list.append(dict(
            # w1[ci, co] == conv1d weight[co, ci, 0]
            w1=_normal(nk(), (EMBED_DIM, EMBED_DIM)).astype(jnp.bfloat16),
            b1=_normal(nk(), (1, EMBED_DIM)),
            g1=jnp.ones((1, EMBED_DIM), jnp.float32),    # BN default init
            be1=jnp.zeros((1, EMBED_DIM), jnp.float32),
            # w9m[t*C + ci, co] == conv1d weight[co, ci, t] (im2col layout)
            w9m=_normal(nk(), (CONV_K, EMBED_DIM, EMBED_DIM))
                .reshape(CONV_K * EMBED_DIM, EMBED_DIM).astype(jnp.bfloat16),
            b2=_normal(nk(), (1, EMBED_DIM)),
            g2=jnp.ones((1, EMBED_DIM), jnp.float32),
            be2=jnp.zeros((1, EMBED_DIM), jnp.float32),
            # wc[0, ci] == conv1d weight[0, ci, 0]
            wc=_normal(nk(), (1, EMBED_DIM)),
            bc=_normal(nk(), (1, 1)),
        ))
    # Stack all 5 heads along a leading axis so one fused pallas_call with a
    # parallel grid axis over heads handles them.
    heads = {k: jnp.stack([h[k] for h in heads_list], axis=0)
             for k in heads_list[0]}
    return dict(dino=dino, heads=heads)


# ----------------------------------------------------------------------------
if __name__ == "__main__":
    key = jax.random.PRNGKey(0)
    pkey, xkey = jax.random.split(key)
    B = 2
    params = init_params(pkey)
    # layout: NCHW image, as in the PyTorch module's forward(x).
    x = jax.random.uniform(xkey, (B, 3, 32, 32), dtype=jnp.float32)
    fwd = jax.jit(projected_discriminator_forward)
    logits = jax.block_until_ready(fwd(x, params))
    assert logits.shape == (B, N_HOOKS * N_TOKENS), logits.shape
    assert bool(jnp.all(jnp.isfinite(logits)))
    print("KERNEL_OK")
</pallas_src>

<mosaic_0001>
module attributes {stable_mosaic.version = 11 : i64} {
  func.func @_linear_1k_kernel(%arg0: i32, %arg1: i32, %arg2: memref<32x48xf32, #tpu.memory_space<vmem>>, %arg3: memref<48x32xbf16, #tpu.memory_space<vmem>>, %arg4: memref<1x32xf32, #tpu.memory_space<vmem>>, %arg5: memref<32x32xf32, #tpu.memory_space<vmem>>) attributes {dimension_semantics = [#tpu.dimension_semantics<parallel>, #tpu.dimension_semantics<parallel>], iteration_bounds = array<i64: 1, 1>, scalar_prefetch = 0 : i64, scratch_operands = 0 : i64, tpu.core_type = #tpu.core_type<tc>, window_params = [{transform_indices = @transform_0, window_bounds = array<i64: 32, 48>}, {transform_indices = @transform_1, window_bounds = array<i64: 48, 32>}, {transform_indices = @transform_2, window_bounds = array<i64: 1, 32>}, {transform_indices = @transform_3, window_bounds = array<i64: 32, 32>}]} {
    %c0 = arith.constant 0 : index
    %c0_0 = arith.constant 0 : index
    %0 = vector.load %arg2[%c0, %c0_0] : memref<32x48xf32, #tpu.memory_space<vmem>>, vector<32x48xf32>
    %1 = arith.truncf %0 : vector<32x48xf32> to vector<32x48xbf16>
    %c0_1 = arith.constant 0 : index
    %c0_2 = arith.constant 0 : index
    %2 = vector.load %arg3[%c0_1, %c0_2] : memref<48x32xbf16, #tpu.memory_space<vmem>>, vector<48x32xbf16>
    %cst = arith.constant dense<0.000000e+00> : vector<32x32xf32>
    %3 = tpu.matmul %1, %2, %cst {dimension_numbers = #tpu.dot_dimension_numbers<[1], [0], [0], [1], [0, 0, 1, 1], [], []>} : vector<32x48xbf16>, vector<48x32xbf16>, vector<32x32xf32> -> vector<32x32xf32>
    %c0_3 = arith.constant 0 : index
    %c0_4 = arith.constant 0 : index
    %4 = vector.load %arg4[%c0_3, %c0_4] : memref<1x32xf32, #tpu.memory_space<vmem>>, vector<1x32xf32>
    %5 = vector.broadcast %4 : vector<1x32xf32> to vector<32x32xf32>
    %6 = arith.addf %3, %5 : vector<32x32xf32>
    %c0_5 = arith.constant 0 : index
    %c0_6 = arith.constant 0 : index
    %7 = vector.load %arg5[%c0_5, %c0_6] : memref<32x32xf32, #tpu.memory_space<vmem>>, vector<32x32xf32>
    tpu.vector_store %arg5[%c0_5, %c0_6], %6 {strides = array<i32>} : memref<32x32xf32, #tpu.memory_space<vmem>>, vector<32x32xf32>,
    return
  }
  func.func @transform_0(%arg0: i32, %arg1: i32) -> (i32, i32) {
    %c0_i32 = arith.constant 0 : i32
    %c0_i32_0 = arith.constant 0 : i32
    return %arg0, %c0_i32 : i32, i32
  }
  func.func @transform_1(%arg0: i32, %arg1: i32) -> (i32, i32) {
    %c0_i32 = arith.constant 0 : i32
    %c0_i32_0 = arith.constant 0 : i32
    return %c0_i32, %arg1 : i32, i32
  }
  func.func @transform_2(%arg0: i32, %arg1: i32) -> (i32, i32) {
    %c0_i32 = arith.constant 0 : i32
    %c0_i32_0 = arith.constant 0 : i32
    return %c0_i32, %arg1 : i32, i32
  }
  func.func @transform_3(%arg0: i32, %arg1: i32) -> (i32, i32) {
    %c0_i32 = arith.constant 0 : i32
    return %arg0, %arg1 : i32, i32
  }
}

module attributes {stable_mosaic.version = 11 : i64} {
  func.func @_backbone_kernel(%arg0: i32, %arg1: memref<42x32xf32, #tpu.memory_space<vmem>>, %arg2: memref<1x1x32xf32, #tpu.memory_space<vmem>>, %arg3: memref<1x1x32xf32, #tpu.memory_space<vmem>>, %arg4: memref<1x32x96xbf16, #tpu.memory_space<vmem>>, %arg5: memref<1x1x96xf32, #tpu.memory_space<vmem>>, %arg6: memref<1x32x32xbf16, #tpu.memory_space<vmem>>, %arg7: memref<1x1x32xf32, #tpu.memory_space<vmem>>, %arg8: memref<1x1x32xf32, #tpu.memory_space<vmem>>, %arg9: memref<1x1x32xf32, #tpu.memory_space<vmem>>, %arg10: memref<1x1x32xf32, #tpu.memory_space<vmem>>, %arg11: memref<1x32x128xbf16, #tpu.memory_space<vmem>>, %arg12: memref<1x1x128xf32, #tpu.memory_space<vmem>>, %arg13: memref<1x128x32xbf16, #tpu.memory_space<vmem>>, %arg14: memref<1x1x32xf32, #tpu.memory_space<vmem>>, %arg15: memref<1x1x32xf32, #tpu.memory_space<vmem>>, %arg16: memref<1x42x32xbf16, #tpu.memory_space<vmem>>, %arg17: memref<42x32xf32, #tpu.memory_space<vmem>>) attributes {dimension_semantics = [#tpu.dimension_semantics<arbitrary>], iteration_bounds = array<i64: 12>, scalar_prefetch = 0 : i64, scratch_operands = 1 : i64, tpu.core_type = #tpu.core_type<tc>, window_params = [{pipeline_mode = #tpu.pipeline_mode<synchronous>, transform_indices = @transform_0, window_bounds = array<i64: 42, 32>}, {transform_indices = @transform_1, window_bounds = array<i64: 1, 1, 32>}, {transform_indices = @transform_2, window_bounds = array<i64: 1, 1, 32>}, {transform_indices = @transform_3, window_bounds = array<i64: 1, 32, 96>}, {transform_indices = @transform_4, window_bounds = array<i64: 1, 1, 96>}, {transform_indices = @transform_5, window_bounds = array<i64: 1, 32, 32>}, {transform_indices = @transform_6, window_bounds = array<i64: 1, 1, 32>}, {transform_indices = @transform_7, window_bounds = array<i64: 1, 1, 32>}, {transform_indices = @transform_8, window_bounds = array<i64: 1, 1, 32>}, {transform_indices = @transform_9, window_bounds = array<i64: 1, 1, 32>}, {transform_indices = @transform_10, window_bounds = array<i64: 1, 32, 128>}, {transform_indices = @transform_11, window_bounds = array<i64: 1, 1, 128>}, {transform_indices = @transform_12, window_bounds = array<i64: 1, 128, 32>}, {transform_indices = @transform_13, window_bounds = array<i64: 1, 1, 32>}, {transform_indices = @transform_14, window_bounds = array<i64: 1, 1, 32>}, {transform_indices = @transform_15, window_bounds = array<i64: 1, 42, 32>}]} {
    %c0_i32 = arith.constant 0 : i32
    %0 = arith.cmpi eq, %arg0, %c0_i32 : i32
    %1 = arith.extui %0 : i1 to i32
    %c0_i32_0 = arith.constant 0 : i32
    %2 = arith.cmpi ne, %1, %c0_i32_0 : i32
    scf.if %2 {
      %c0_86 = arith.constant 0 : index
      %c0_87 = arith.constant 0 : index
      %184 = vector.load %arg1[%c0_86, %c0_87] : memref<42x32xf32, #tpu.memory_space<vmem>>, vector<42x32xf32>
      %c0_88 = arith.constant 0 : index
      %c0_89 = arith.constant 0 : index
      %185 = vector.load %arg17[%c0_88, %c0_89] : memref<42x32xf32, #tpu.memory_space<vmem>>, vector<42x32xf32>
      tpu.vector_store %arg17[%c0_88, %c0_89], %184 {strides = array<i32>} : memref<42x32xf32, #tpu.memory_space<vmem>>, vector<42x32xf32>,
    } else {
    }
    %c0 = arith.constant 0 : index
    %c0_1 = arith.constant 0 : index
    %3 = vector.load %arg17[%c0, %c0_1] : memref<42x32xf32, #tpu.memory_space<vmem>>, vector<42x32xf32>
    %c0_2 = arith.constant 0 : index
    %c0_3 = arith.constant 0 : index
    %c0_4 = arith.constant 0 : index
    %4 = vector.load %arg2[%c0_2, %c0_3, %c0_4] : memref<1x1x32xf32, #tpu.memory_space<vmem>>, vector<1x1x32xf32>
    %5 = vector.shape_cast %4 : vector<1x1x32xf32> to vector<1x32xf32>
    %c0_5 = arith.constant 0 : index
    %c0_6 = arith.constant 0 : index
    %c0_7 = arith.constant 0 : index
    %6 = vector.load %arg3[%c0_5, %c0_6, %c0_7] : memref<1x1x32xf32, #tpu.memory_space<vmem>>, vector<1x1x32xf32>
    %7 = vector.shape_cast %6 : vector<1x1x32xf32> to vector<1x32xf32>
    %cst = arith.constant dense<0.000000e+00> : vector<42xf32>
    %8 = vector.multi_reduction <add>, %3, %cst [1] : vector<42x32xf32> to vector<42xf32>
    %9 = vector.shape_cast %8 : vector<42xf32> to vector<42x1xf32>
    %cst_8 = arith.constant 3.200000e+01 : f32
    %10 = vector.broadcast %cst_8 : f32 to vector<42x1xf32>
    %11 = arith.divf %9, %10 : vector<42x1xf32>
    %12 = vector.broadcast %11 : vector<42x1xf32> to vector<42x32xf32>
    %13 = arith.subf %3, %12 : vector<42x32xf32>
    %14 = arith.mulf %13, %13 : vector<42x32xf32>
    %cst_9 = arith.constant dense<0.000000e+00> : vector<42xf32>
    %15 = vector.multi_reduction <add>, %14, %cst_9 [1] : vector<42x32xf32> to vector<42xf32>
    %16 = vector.shape_cast %15 : vector<42xf32> to vector<42x1xf32>
    %cst_10 = arith.constant 3.200000e+01 : f32
    %17 = vector.broadcast %cst_10 : f32 to vector<42x1xf32>
    %18 = arith.divf %16, %17 : vector<42x1xf32>
    %19 = vector.broadcast %11 : vector<42x1xf32> to vector<42x32xf32>
    %20 = arith.subf %3, %19 : vector<42x32xf32>
    %cst_11 = arith.constant 9.99999997E-7 : f32
    %21 = vector.broadcast %cst_11 : f32 to vector<42x1xf32>
    %22 = arith.addf %18, %21 : vector<42x1xf32>
    %23 = math.rsqrt %22 : vector<42x1xf32>
    %24 = vector.broadcast %23 : vector<42x1xf32> to vector<42x32xf32>
    %25 = arith.mulf %20, %24 : vector<42x32xf32>
    %26 = vector.broadcast %5 : vector<1x32xf32> to vector<42x32xf32>
    %27 = arith.mulf %25, %26 : vector<42x32xf32>
    %28 = vector.broadcast %7 : vector<1x32xf32> to vector<42x32xf32>
    %29 = arith.addf %27, %28 : vector<42x32xf32>
    %30 = arith.truncf %29 : vector<42x32xf32> to vector<42x32xbf16>
    %c0_12 = arith.constant 0 : index
    %c0_13 = arith.constant 0 : index
    %c0_14 = arith.constant 0 : index
    %31 = vector.load %arg4[%c0_12, %c0_13, %c0_14] : memref<1x32x96xbf16, #tpu.memory_space<vmem>>, vector<1x32x96xbf16>
    %32 = vector.shape_cast %31 : vector<1x32x96xbf16> to vector<32x96xbf16>
    %cst_15 = arith.constant dense<0.000000e+00> : vector<42x96xf32>
    %33 = tpu.matmul %30, %32, %cst_15 {dimension_numbers = #tpu.dot_dimension_numbers<[1], [0], [0], [1], [0, 0, 1, 1], [], []>} : vector<42x32xbf16>, vector<32x96xbf16>, vector<42x96xf32> -> vector<42x96xf32>
    %c0_16 = arith.constant 0 : index
    %c0_17 = arith.constant 0 : index
    %c0_18 = arith.constant 0 : index
    %34 = vector.load %arg5[%c0_16, %c0_17, %c0_18] : memref<1x1x96xf32, #tpu.memory_space<vmem>>, vector<1x1x96xf32>
    %35 = vector.shape_cast %34 : vector<1x1x96xf32> to vector<1x96xf32>
    %36 = vector.broadcast %35 : vector<1x96xf32> to vector<42x96xf32>
    %37 = arith.addf %33, %36 : vector<42x96xf32>
    %38 = vector.extract_strided_slice %37 {offsets = [0, 0], sizes = [21, 96], strides = [1, 1]} : vector<42x96xf32> to vector<21x96xf32>
    %39 = vector.extract_strided_slice %38 {offsets = [0, 0], sizes = [21, 16], strides = [1, 1]} : vector<21x96xf32> to vector<21x16xf32>
    %cst_19 = arith.constant 2.500000e-01 : f32
    %40 = vector.broadcast %cst_19 : f32 to vector<21x16xf32>
    %41 = arith.mulf %39, %40 : vector<21x16xf32>
    %42 = vector.extract_strided_slice %38 {offsets = [0, 32], sizes = [21, 16], strides = [1, 1]} : vector<21x96xf32> to vector<21x16xf32>
    %43 = vector.extract_strided_slice %38 {offsets = [0, 64], sizes = [21, 16], strides = [1, 1]} : vector<21x96xf32> to vector<21x16xf32>
    "tpu.trace_start"() <{level = 10 : i32, message = "qd,kd->qk"}> : () -> ()
    %cst_20 = arith.constant dense<0.000000e+00> : vector<21x21xf32>
    %44 = tpu.matmul %41, %42, %cst_20 {dimension_numbers = #tpu.dot_dimension_numbers<[1], [1], [0], [0], [0, 0, 1, 0], [], []>} : vector<21x16xf32>, vector<21x16xf32>, vector<21x21xf32> -> vector<21x21xf32>
    "tpu.trace_stop"() : () -> ()
    %cst_21 = arith.constant dense<0xFF800000> : vector<21xf32>
    %45 = vector.multi_reduction <maximumf>, %44, %cst_21 [1] : vector<21x21xf32> to vector<21xf32>
    %46 = vector.shape_cast %45 : vector<21xf32> to vector<21x1xf32>
    %47 = vector.broadcast %46 : vector<21x1xf32> to vector<21x21xf32>
    %48 = arith.subf %44, %47 : vector<21x21xf32>
    %49 = math.exp %48 : vector<21x21xf32>
    %cst_22 = arith.constant dense<0.000000e+00> : vector<21xf32>
    %50 = vector.multi_reduction <add>, %49, %cst_22 [1] : vector<21x21xf32> to vector<21xf32>
    %51 = vector.shape_cast %50 : vector<21xf32> to vector<21x1xf32>
    %52 = vector.broadcast %51 : vector<21x1xf32> to vector<21x21xf32>
    %53 = arith.divf %49, %52 : vector<21x21xf32>
    %cst_23 = arith.constant dense<0.000000e+00> : vector<21x16xf32>
    %54 = tpu.matmul %53, %43, %cst_23 {dimension_numbers = #tpu.dot_dimension_numbers<[1], [0], [0], [1], [0, 0, 1, 1], [], []>} : vector<21x21xf32>, vector<21x16xf32>, vector<21x16xf32> -> vector<21x16xf32>
    %55 = vector.extract_strided_slice %38 {offsets = [0, 16], sizes = [21, 16], strides = [1, 1]} : vector<21x96xf32> to vector<21x16xf32>
    %cst_24 = arith.constant 2.500000e-01 : f32
    %56 = vector.broadcast %cst_24 : f32 to vector<21x16xf32>
    %57 = arith.mulf %55, %56 : vector<21x16xf32>
    %58 = vector.extract_strided_slice %38 {offsets = [0, 48], sizes = [21, 16], strides = [1, 1]} : vector<21x96xf32> to vector<21x16xf32>
    %59 = vector.extract_strided_slice %38 {offsets = [0, 80], sizes = [21, 16], strides = [1, 1]} : vector<21x96xf32> to vector<21x16xf32>
    "tpu.trace_start"() <{level = 10 : i32, message = "qd,kd->qk"}> : () -> ()
    %cst_25 = arith.constant dense<0.000000e+00> : vector<21x21xf32>
    %60 = tpu.matmul %57, %58, %cst_25 {dimension_numbers = #tpu.dot_dimension_numbers<[1], [1], [0], [0], [0, 0, 1, 0], [], []>} : vector<21x16xf32>, vector<21x16xf32>, vector<21x21xf32> -> vector<21x21xf32>
    "tpu.trace_stop"() : () -> ()
    %cst_26 = arith.constant dense<0xFF800000> : vector<21xf32>
    %61 = vector.multi_reduction <maximumf>, %60, %cst_26 [1] : vector<21x21xf32> to vector<21xf32>
    %62 = vector.shape_cast %61 : vector<21xf32> to vector<21x1xf32>
    %63 = vector.broadcast %62 : vector<21x1xf32> to vector<21x21xf32>
    %64 = arith.subf %60, %63 : vector<21x21xf32>
    %65 = math.exp %64 : vector<21x21xf32>
    %cst_27 = arith.constant dense<0.000000e+00> : vector<21xf32>
    %66 = vector.multi_reduction <add>, %65, %cst_27 [1] : vector<21x21xf32> to vector<21xf32>
    %67 = vector.shape_cast %66 : vector<21xf32> to vector<21x1xf32>
    %68 = vector.broadcast %67 : vector<21x1xf32> to vector<21x21xf32>
    %69 = arith.divf %65, %68 : vector<21x21xf32>
    %cst_28 = arith.constant dense<0.000000e+00> : vector<21x16xf32>
    %70 = tpu.matmul %69, %59, %cst_28 {dimension_numbers = #tpu.dot_dimension_numbers<[1], [0], [0], [1], [0, 0, 1, 1], [], []>} : vector<21x21xf32>, vector<21x16xf32>, vector<21x16xf32> -> vector<21x16xf32>
    %71 = tpu.concatenate %54, %70 in 1 : vector<21x16xf32>, vector<21x16xf32> -> vector<21x32xf32>
    %72 = vector.extract_strided_slice %37 {offsets = [21, 0], sizes = [21, 96], strides = [1, 1]} : vector<42x96xf32> to vector<21x96xf32>
    %73 = vector.extract_strided_slice %72 {offsets = [0, 0], sizes = [21, 16], strides = [1, 1]} : vector<21x96xf32> to vector<21x16xf32>
    %cst_29 = arith.constant 2.500000e-01 : f32
    %74 = vector.broadcast %cst_29 : f32 to vector<21x16xf32>
    %75 = arith.mulf %73, %74 : vector<21x16xf32>
    %76 = vector.extract_strided_slice %72 {offsets = [0, 32], sizes = [21, 16], strides = [1, 1]} : vector<21x96xf32> to vector<21x16xf32>
    %77 = vector.extract_strided_slice %72 {offsets = [0, 64], sizes = [21, 16], strides = [1, 1]} : vector<21x96xf32> to vector<21x16xf32>
    "tpu.trace_start"() <{level = 10 : i32, message = "qd,kd->qk"}> : () -> ()
    %cst_30 = arith.constant dense<0.000000e+00> : vector<21x21xf32>
    %78 = tpu.matmul %75, %76, %cst_30 {dimension_numbers = #tpu.dot_dimension_numbers<[1], [1], [0], [0], [0, 0, 1, 0], [], []>} : vector<21x16xf32>, vector<21x16xf32>, vector<21x21xf32> -> vector<21x21xf32>
    "tpu.trace_stop"() : () -> ()
    %cst_31 = arith.constant dense<0xFF800000> : vector<21xf32>
    %79 = vector.multi_reduction <maximumf>, %78, %cst_31 [1] : vector<21x21xf32> to vector<21xf32>
    %80 = vector.shape_cast %79 : vector<21xf32> to vector<21x1xf32>
    %81 = vector.broadcast %80 : vector<21x1xf32> to vector<21x21xf32>
    %82 = arith.subf %78, %81 : vector<21x21xf32>
    %83 = math.exp %82 : vector<21x21xf32>
    %cst_32 = arith.constant dense<0.000000e+00> : vector<21xf32>
    %84 = vector.multi_reduction <add>, %83, %cst_32 [1] : vector<21x21xf32> to vector<21xf32>
    %85 = vector.shape_cast %84 : vector<21xf32> to vector<21x1xf32>
    %86 = vector.broadcast %85 : vector<21x1xf32> to vector<21x21xf32>
    %87 = arith.divf %83, %86 : vector<21x21xf32>
    %cst_33 = arith.constant dense<0.000000e+00> : vector<21x16xf32>
    %88 = tpu.matmul %87, %77, %cst_33 {dimension_numbers = #tpu.dot_dimension_numbers<[1], [0], [0], [1], [0, 0, 1, 1], [], []>} : vector<21x21xf32>, vector<21x16xf32>, vector<21x16xf32> -> vector<21x16xf32>
    %89 = vector.extract_strided_slice %72 {offsets = [0, 16], sizes = [21, 16], strides = [1, 1]} : vector<21x96xf32> to vector<21x16xf32>
    %cst_34 = arith.constant 2.500000e-01 : f32
    %90 = vector.broadcast %cst_34 : f32 to vector<21x16xf32>
    %91 = arith.mulf %89, %90 : vector<21x16xf32>
    %92 = vector.extract_strided_slice %72 {offsets = [0, 48], sizes = [21, 16], strides = [1, 1]} : vector<21x96xf32> to vector<21x16xf32>
    %93 = vector.extract_strided_slice %72 {offsets = [0, 80], sizes = [21, 16], strides = [1, 1]} : vector<21x96xf32> to vector<21x16xf32>
    "tpu.trace_start"() <{level = 10 : i32, message = "qd,kd->qk"}> : () -> ()
    %cst_35 = arith.constant dense<0.000000e+00> : vector<21x21xf32>
    %94 = tpu.matmul %91, %92, %cst_35 {dimension_numbers = #tpu.dot_dimension_numbers<[1], [1], [0], [0], [0, 0, 1, 0], [], []>} : vector<21x16xf32>, vector<21x16xf32>, vector<21x21xf32> -> vector<21x21xf32>
    "tpu.trace_stop"() : () -> ()
    %cst_36 = arith.constant dense<0xFF800000> : vector<21xf32>
    %95 = vector.multi_reduction <maximumf>, %94, %cst_36 [1] : vector<21x21xf32> to vector<21xf32>
    %96 = vector.shape_cast %95 : vector<21xf32> to vector<21x1xf32>
    %97 = vector.broadcast %96 : vector<21x1xf32> to vector<21x21xf32>
    %98 = arith.subf %94, %97 : vector<21x21xf32>
    %99 = math.exp %98 : vector<21x21xf32>
    %cst_37 = arith.constant dense<0.000000e+00> : vector<21xf32>
    %100 = vector.multi_reduction <add>, %99, %cst_37 [1] : vector<21x21xf32> to vector<21xf32>
    %101 = vector.shape_cast %100 : vector<21xf32> to vector<21x1xf32>
    %102 = vector.broadcast %101 : vector<21x1xf32> to vector<21x21xf32>
    %103 = arith.divf %99, %102 : vector<21x21xf32>
    %cst_38 = arith.constant dense<0.000000e+00> : vector<21x16xf32>
    %104 = tpu.matmul %103, %93, %cst_38 {dimension_numbers = #tpu.dot_dimension_numbers<[1], [0], [0], [1], [0, 0, 1, 1], [], []>} : vector<21x21xf32>, vector<21x16xf32>, vector<21x16xf32> -> vector<21x16xf32>
    %105 = tpu.concatenate %88, %104 in 1 : vector<21x16xf32>, vector<21x16xf32> -> vector<21x32xf32>
    %106 = tpu.concatenate %71, %105 in 0 : vector<21x32xf32>, vector<21x32xf32> -> vector<42x32xf32>
    %107 = arith.truncf %106 : vector<42x32xf32> to vector<42x32xbf16>
    %c0_39 = arith.constant 0 : index
    %c0_40 = arith.constant 0 : index
    %c0_41 = arith.constant 0 : index
    %108 = vector.load %arg6[%c0_39, %c0_40, %c0_41] : memref<1x32x32xbf16, #tpu.memory_space<vmem>>, vector<1x32x32xbf16>
    %109 = vector.shape_cast %108 : vector<1x32x32xbf16> to vector<32x32xbf16>
    %cst_42 = arith.constant dense<0.000000e+00> : vector<42x32xf32>
    %110 = tpu.matmul %107, %109, %cst_42 {dimension_numbers = #tpu.dot_dimension_numbers<[1], [0], [0], [1], [0, 0, 1, 1], [], []>} : vector<42x32xbf16>, vector<32x32xbf16>, vector<42x32xf32> -> vector<42x32xf32>
    %c0_43 = arith.constant 0 : index
    %c0_44 = arith.constant 0 : index
    %c0_45 = arith.constant 0 : index
    %111 = vector.load %arg7[%c0_43, %c0_44, %c0_45] : memref<1x1x32xf32, #tpu.memory_space<vmem>>, vector<1x1x32xf32>
    %112 = vector.shape_cast %111 : vector<1x1x32xf32> to vector<1x32xf32>
    %113 = vector.broadcast %112 : vector<1x32xf32> to vector<42x32xf32>
    %114 = arith.addf %110, %113 : vector<42x32xf32>
    %c0_46 = arith.constant 0 : index
    %c0_47 = arith.constant 0 : index
    %c0_48 = arith.constant 0 : index
    %115 = vector.load %arg8[%c0_46, %c0_47, %c0_48] : memref<1x1x32xf32, #tpu.memory_space<vmem>>, vector<1x1x32xf32>
    %116 = vector.shape_cast %115 : vector<1x1x32xf32> to vector<1x32xf32>
    %117 = vector.broadcast %116 : vector<1x32xf32> to vector<42x32xf32>
    %118 = arith.mulf %117, %114 : vector<42x32xf32>
    %119 = arith.addf %3, %118 : vector<42x32xf32>
    %c0_49 = arith.constant 0 : index
    %c0_50 = arith.constant 0 : index
    %c0_51 = arith.constant 0 : index
    %120 = vector.load %arg9[%c0_49, %c0_50, %c0_51] : memref<1x1x32xf32, #tpu.memory_space<vmem>>, vector<1x1x32xf32>
    %121 = vector.shape_cast %120 : vector<1x1x32xf32> to vector<1x32xf32>
    %c0_52 = arith.constant 0 : index
    %c0_53 = arith.constant 0 : index
    %c0_54 = arith.constant 0 : index
    %122 = vector.load %arg10[%c0_52, %c0_53, %c0_54] : memref<1x1x32xf32, #tpu.memory_space<vmem>>, vector<1x1x32xf32>
    %123 = vector.shape_cast %122 : vector<1x1x32xf32> to vector<1x32xf32>
    %cst_55 = arith.constant dense<0.000000e+00> : vector<42xf32>
    %124 = vector.multi_reduction <add>, %119, %cst_55 [1] : vector<42x32xf32> to vector<42xf32>
    %125 = vector.shape_cast %124 : vector<42xf32> to vector<42x1xf32>
    %cst_56 = arith.constant 3.200000e+01 : f32
    %126 = vector.broadcast %cst_56 : f32 to vector<42x1xf32>
    %127 = arith.divf %125, %126 : vector<42x1xf32>
    %128 = vector.broadcast %127 : vector<42x1xf32> to vector<42x32xf32>
    %129 = arith.subf %119, %128 : vector<42x32xf32>
    %130 = arith.mulf %129, %129 : vector<42x32xf32>
    %cst_57 = arith.constant dense<0.000000e+00> : vector<42xf32>
    %131 = vector.multi_reduction <add>, %130, %cst_57 [1] : vector<42x32xf32> to vector<42xf32>
    %132 = vector.shape_cast %131 : vector<42xf32> to vector<42x1xf32>
    %cst_58 = arith.constant 3.200000e+01 : f32
    %133 = vector.broadcast %cst_58 : f32 to vector<42x1xf32>
    %134 = arith.divf %132, %133 : vector<42x1xf32>
    %135 = vector.broadcast %127 : vector<42x1xf32> to vector<42x32xf32>
    %136 = arith.subf %119, %135 : vector<42x32xf32>
    %cst_59 = arith.constant 9.99999997E-7 : f32
    %137 = vector.broadcast %cst_59 : f32 to vector<42x1xf32>
    %138 = arith.addf %134, %137 : vector<42x1xf32>
    %139 = math.rsqrt %138 : vector<42x1xf32>
    %140 = vector.broadcast %139 : vector<42x1xf32> to vector<42x32xf32>
    %141 = arith.mulf %136, %140 : vector<42x32xf32>
    %142 = vector.broadcast %121 : vector<1x32xf32> to vector<42x32xf32>
    %143 = arith.mulf %141, %142 : vector<42x32xf32>
    %144 = vector.broadcast %123 : vector<1x32xf32> to vector<42x32xf32>
    %145 = arith.addf %143, %144 : vector<42x32xf32>
    %146 = arith.truncf %145 : vector<42x32xf32> to vector<42x32xbf16>
    %c0_60 = arith.constant 0 : index
    %c0_61 = arith.constant 0 : index
    %c0_62 = arith.constant 0 : index
    %147 = vector.load %arg11[%c0_60, %c0_61, %c0_62] : memref<1x32x128xbf16, #tpu.memory_space<vmem>>, vector<1x32x128xbf16>
    %148 = vector.shape_cast %147 : vector<1x32x128xbf16> to vector<32x128xbf16>
    %cst_63 = arith.constant dense<0.000000e+00> : vector<42x128xf32>
    %149 = tpu.matmul %146, %148, %cst_63 {dimension_numbers = #tpu.dot_dimension_numbers<[1], [0], [0], [1], [0, 0, 1, 1], [], []>} : vector<42x32xbf16>, vector<32x128xbf16>, vector<42x128xf32> -> vector<42x128xf32>
    %c0_64 = arith.constant 0 : index
    %c0_65 = arith.constant 0 : index
    %c0_66 = arith.constant 0 : index
    %150 = vector.load %arg12[%c0_64, %c0_65, %c0_66] : memref<1x1x128xf32, #tpu.memory_space<vmem>>, vector<1x1x128xf32>
    %151 = vector.shape_cast %150 : vector<1x1x128xf32> to vector<1x128xf32>
    %152 = vector.broadcast %151 : vector<1x128xf32> to vector<42x128xf32>
    %153 = arith.addf %149, %152 : vector<42x128xf32>
    %cst_67 = arith.constant 5.000000e-01 : f32
    %154 = vector.broadcast %cst_67 : f32 to vector<42x128xf32>
    %155 = arith.mulf %154, %153 : vector<42x128xf32>
    %cst_68 = arith.constant 4.471500e-02 : f32
    %156 = vector.broadcast %cst_68 : f32 to vector<42x128xf32>
    %157 = arith.mulf %156, %153 : vector<42x128xf32>
    %158 = arith.mulf %157, %153 : vector<42x128xf32>
    %159 = arith.mulf %158, %153 : vector<42x128xf32>
    %160 = arith.addf %153, %159 : vector<42x128xf32>
    %cst_69 = arith.constant 0.797884583 : f32
    %161 = vector.broadcast %cst_69 : f32 to vector<42x128xf32>
    %162 = arith.mulf %161, %160 : vector<42x128xf32>
    %163 = math.tanh %162 : vector<42x128xf32>
    %cst_70 = arith.constant 1.000000e+00 : f32
    %164 = vector.broadcast %cst_70 : f32 to vector<42x128xf32>
    %165 = arith.addf %164, %163 : vector<42x128xf32>
    %166 = arith.mulf %155, %165 : vector<42x128xf32>
    %167 = arith.truncf %166 : vector<42x128xf32> to vector<42x128xbf16>
    %c0_71 = arith.constant 0 : index
    %c0_72 = arith.constant 0 : index
    %c0_73 = arith.constant 0 : index
    %168 = vector.load %arg13[%c0_71, %c0_72, %c0_73] : memref<1x128x32xbf16, #tpu.memory_space<vmem>>, vector<1x128x32xbf16>
    %169 = vector.shape_cast %168 : vector<1x128x32xbf16> to vector<128x32xbf16>
    %cst_74 = arith.constant dense<0.000000e+00> : vector<42x32xf32>
    %170 = tpu.matmul %167, %169, %cst_74 {dimension_numbers = #tpu.dot_dimension_numbers<[1], [0], [0], [1], [0, 0, 1, 1], [], []>} : vector<42x128xbf16>, vector<128x32xbf16>, vector<42x32xf32> -> vector<42x32xf32>
    %c0_75 = arith.constant 0 : index
    %c0_76 = arith.constant 0 : index
    %c0_77 = arith.constant 0 : index
    %171 = vector.load %arg14[%c0_75, %c0_76, %c0_77] : memref<1x1x32xf32, #tpu.memory_space<vmem>>, vector<1x1x32xf32>
    %172 = vector.shape_cast %171 : vector<1x1x32xf32> to vector<1x32xf32>
    %173 = vector.broadcast %172 : vector<1x32xf32> to vector<42x32xf32>
    %174 = arith.addf %170, %173 : vector<42x32xf32>
    %c0_78 = arith.constant 0 : index
    %c0_79 = arith.constant 0 : index
    %c0_80 = arith.constant 0 : index
    %175 = vector.load %arg15[%c0_78, %c0_79, %c0_80] : memref<1x1x32xf32, #tpu.memory_space<vmem>>, vector<1x1x32xf32>
    %176 = vector.shape_cast %175 : vector<1x1x32xf32> to vector<1x32xf32>
    %177 = vector.broadcast %176 : vector<1x32xf32> to vector<42x32xf32>
    %178 = arith.mulf %177, %174 : vector<42x32xf32>
    %179 = arith.addf %119, %178 : vector<42x32xf32>
    %c0_81 = arith.constant 0 : index
    %c0_82 = arith.constant 0 : index
    %180 = vector.load %arg17[%c0_81, %c0_82] : memref<42x32xf32, #tpu.memory_space<vmem>>, vector<42x32xf32>
    tpu.vector_store %arg17[%c0_81, %c0_82], %179 {strides = array<i32>} : memref<42x32xf32, #tpu.memory_space<vmem>>, vector<42x32xf32>,
    %181 = vector.shape_cast %179 : vector<42x32xf32> to vector<1x42x32xf32>
    %182 = arith.truncf %181 : vector<1x42x32xf32> to vector<1x42x32xbf16>
    %c0_83 = arith.constant 0 : index
    %c0_84 = arith.constant 0 : index
    %c0_85 = arith.constant 0 : index
    %183 = vector.load %arg16[%c0_83, %c0_84, %c0_85] : memref<1x42x32xbf16, #tpu.memory_space<vmem>>, vector<1x42x32xbf16>
    tpu.vector_store %arg16[%c0_83, %c0_84, %c0_85], %182 {strides = array<i32>} : memref<1x42x32xbf16, #tpu.memory_space<vmem>>, vector<1x42x32xbf16>,
    return
  }
  func.func @transform_0(%arg0: i32) -> (i32, i32) {
    %c0_i32 = arith.constant 0 : i32
    %c0_i32_0 = arith.constant 0 : i32
    %c0_i32_1 = arith.constant 0 : i32
    return %c0_i32, %c0_i32_0 : i32, i32
  }
  func.func @transform_1(%arg0: i32) -> (i32, i32, i32) {
    %c0_i32 = arith.constant 0 : i32
    %c0_i32_0 = arith.constant 0 : i32
    %c0_i32_1 = arith.constant 0 : i32
    return %arg0, %c0_i32, %c0_i32_0 : i32, i32, i32
  }
  func.func @transform_2(%arg0: i32) -> (i32, i32, i32) {
    %c0_i32 = arith.constant 0 : i32
    %c0_i32_0 = arith.constant 0 : i32
    %c0_i32_1 = arith.constant 0 : i32
    return %arg0, %c0_i32, %c0_i32_0 : i32, i32, i32
  }
  func.func @transform_3(%arg0: i32) -> (i32, i32, i32) {
    %c0_i32 = arith.constant 0 : i32
    %c0_i32_0 = arith.constant 0 : i32
    %c0_i32_1 = arith.constant 0 : i32
    return %arg0, %c0_i32, %c0_i32_0 : i32, i32, i32
  }
  func.func @transform_4(%arg0: i32) -> (i32, i32, i32) {
    %c0_i32 = arith.constant 0 : i32
    %c0_i32_0 = arith.constant 0 : i32
    %c0_i32_1 = arith.constant 0 : i32
    return %arg0, %c0_i32, %c0_i32_0 : i32, i32, i32
  }
  func.func @transform_5(%arg0: i32) -> (i32, i32, i32) {
    %c0_i32 = arith.constant 0 : i32
    %c0_i32_0 = arith.constant 0 : i32
    %c0_i32_1 = arith.constant 0 : i32
    return %arg0, %c0_i32, %c0_i32_0 : i32, i32, i32
  }
  func.func @transform_6(%arg0: i32) -> (i32, i32, i32) {
    %c0_i32 = arith.constant 0 : i32
    %c0_i32_0 = arith.constant 0 : i32
    %c0_i32_1 = arith.constant 0 : i32
    return %arg0, %c0_i32, %c0_i32_0 : i32, i32, i32
  }
  func.func @transform_7(%arg0: i32) -> (i32, i32, i32) {
    %c0_i32 = arith.constant 0 : i32
    %c0_i32_0 = arith.constant 0 : i32
    %c0_i32_1 = arith.constant 0 : i32
    return %arg0, %c0_i32, %c0_i32_0 : i32, i32, i32
  }
  func.func @transform_8(%arg0: i32) -> (i32, i32, i32) {
    %c0_i32 = arith.constant 0 : i32
    %c0_i32_0 = arith.constant 0 : i32
    %c0_i32_1 = arith.constant 0 : i32
    return %arg0, %c0_i32, %c0_i32_0 : i32, i32, i32
  }
  func.func @transform_9(%arg0: i32) -> (i32, i32, i32) {
    %c0_i32 = arith.constant 0 : i32
    %c0_i32_0 = arith.constant 0 : i32
    %c0_i32_1 = arith.constant 0 : i32
    return %arg0, %c0_i32, %c0_i32_0 : i32, i32, i32
  }
  func.func @transform_10(%arg0: i32) -> (i32, i32, i32) {
    %c0_i32 = arith.constant 0 : i32
    %c0_i32_0 = arith.constant 0 : i32
    %c0_i32_1 = arith.constant 0 : i32
    return %arg0, %c0_i32, %c0_i32_0 : i32, i32, i32
  }
  func.func @transform_11(%arg0: i32) -> (i32, i32, i32) {
    %c0_i32 = arith.constant 0 : i32
    %c0_i32_0 = arith.constant 0 : i32
    %c0_i32_1 = arith.constant 0 : i32
    return %arg0, %c0_i32, %c0_i32_0 : i32, i32, i32
  }
  func.func @transform_12(%arg0: i32) -> (i32, i32, i32) {
    %c0_i32 = arith.constant 0 : i32
    %c0_i32_0 = arith.constant 0 : i32
    %c0_i32_1 = arith.constant 0 : i32
    return %arg0, %c0_i32, %c0_i32_0 : i32, i32, i32
  }
  func.func @transform_13(%arg0: i32) -> (i32, i32, i32) {
    %c0_i32 = arith.constant 0 : i32
    %c0_i32_0 = arith.constant 0 : i32
    %c0_i32_1 = arith.constant 0 : i32
    return %arg0, %c0_i32, %c0_i32_0 : i32, i32, i32
  }
  func.func @transform_14(%arg0: i32) -> (i32, i32, i32) {
    %c0_i32 = arith.constant 0 : i32
    %c0_i32_0 = arith.constant 0 : i32
    %c0_i32_1 = arith.constant 0 : i32
    return %arg0, %c0_i32, %c0_i32_0 : i32, i32, i32
  }
  func.func @transform_15(%arg0: i32) -> (i32, i32, i32) {
    %c2_i32 = arith.constant 2 : i32
    %0 = arith.cmpi sgt, %arg0, %c2_i32 : i32
    %c1_i32 = arith.constant 1 : i32
    %c0_i32 = arith.constant 0 : i32
    %1 = arith.select %0, %c1_i32, %c0_i32 : i32
    %c0_i32_0 = arith.constant 0 : i32
    %2 = arith.addi %c0_i32_0, %1 : i32
    %c5_i32 = arith.constant 5 : i32
    %3 = arith.cmpi sgt, %arg0, %c5_i32 : i32
    %c1_i32_1 = arith.constant 1 : i32
    %c0_i32_2 = arith.constant 0 : i32
    %4 = arith.select %3, %c1_i32_1, %c0_i32_2 : i32
    %5 = arith.addi %2, %4 : i32
    %c8_i32 = arith.constant 8 : i32
    %6 = arith.cmpi sgt, %arg0, %c8_i32 : i32
    %c1_i32_3 = arith.constant 1 : i32
    %c0_i32_4 = arith.constant 0 : i32
    %7 = arith.select %6, %c1_i32_3, %c0_i32_4 : i32
    %8 = arith.addi %5, %7 : i32
    %c11_i32 = arith.constant 11 : i32
    %9 = arith.cmpi sgt, %arg0, %c11_i32 : i32
    %c1_i32_5 = arith.constant 1 : i32
    %c0_i32_6 = arith.constant 0 : i32
    %10 = arith.select %9, %c1_i32_5, %c0_i32_6 : i32
    %11 = arith.addi %8, %10 : i32
    %c0_i32_7 = arith.constant 0 : i32
    %c0_i32_8 = arith.constant 0 : i32
    %c0_i32_9 = arith.constant 0 : i32
    return %11, %c0_i32_7, %c0_i32_8 : i32, i32, i32
  }
}

module attributes {stable_mosaic.version = 11 : i64} {
  func.func @_disc_heads_kernel(%arg0: i32, %arg1: memref<1x42x32xbf16, #tpu.memory_space<vmem>>, %arg2: memref<1x32x32xbf16, #tpu.memory_space<vmem>>, %arg3: memref<1x1x32xf32, #tpu.memory_space<vmem>>, %arg4: memref<1x1x32xf32, #tpu.memory_space<vmem>>, %arg5: memref<1x1x32xf32, #tpu.memory_space<vmem>>, %arg6: memref<1x288x32xbf16, #tpu.memory_space<vmem>>, %arg7: memref<1x1x32xf32, #tpu.memory_space<vmem>>, %arg8: memref<1x1x32xf32, #tpu.memory_space<vmem>>, %arg9: memref<1x1x32xf32, #tpu.memory_space<vmem>>, %arg10: memref<1x1x32xf32, #tpu.memory_space<vmem>>, %arg11: memref<1x1x1xf32, #tpu.memory_space<vmem>>, %arg12: memref<1x2x21xf32, #tpu.memory_space<vmem>>) attributes {dimension_semantics = [#tpu.dimension_semantics<parallel>], iteration_bounds = array<i64: 5>, scalar_prefetch = 0 : i64, scratch_operands = 0 : i64, tpu.core_type = #tpu.core_type<tc>, window_params = [{transform_indices = @transform_0, window_bounds = array<i64: 1, 42, 32>}, {transform_indices = @transform_1, window_bounds = array<i64: 1, 32, 32>}, {transform_indices = @transform_2, window_bounds = array<i64: 1, 1, 32>}, {transform_indices = @transform_3, window_bounds = array<i64: 1, 1, 32>}, {transform_indices = @transform_4, window_bounds = array<i64: 1, 1, 32>}, {transform_indices = @transform_5, window_bounds = array<i64: 1, 288, 32>}, {transform_indices = @transform_6, window_bounds = array<i64: 1, 1, 32>}, {transform_indices = @transform_7, window_bounds = array<i64: 1, 1, 32>}, {transform_indices = @transform_8, window_bounds = array<i64: 1, 1, 32>}, {transform_indices = @transform_9, window_bounds = array<i64: 1, 1, 32>}, {transform_indices = @transform_10, window_bounds = array<i64: 1, 1, 1>}, {transform_indices = @transform_11, window_bounds = array<i64: 1, 2, 21>}]} {
    %c0 = arith.constant 0 : index
    %c0_0 = arith.constant 0 : index
    %c0_1 = arith.constant 0 : index
    %0 = vector.load %arg1[%c0, %c0_0, %c0_1] : memref<1x42x32xbf16, #tpu.memory_space<vmem>>, vector<1x42x32xbf16>
    %1 = vector.shape_cast %0 : vector<1x42x32xbf16> to vector<42x32xbf16>
    %c0_2 = arith.constant 0 : index
    %c0_3 = arith.constant 0 : index
    %c0_4 = arith.constant 0 : index
    %2 = vector.load %arg2[%c0_2, %c0_3, %c0_4] : memref<1x32x32xbf16, #tpu.memory_space<vmem>>, vector<1x32x32xbf16>
    %3 = vector.shape_cast %2 : vector<1x32x32xbf16> to vector<32x32xbf16>
    %cst = arith.constant dense<0.000000e+00> : vector<42x32xf32>
    %4 = tpu.matmul %1, %3, %cst {dimension_numbers = #tpu.dot_dimension_numbers<[1], [0], [0], [1], [0, 0, 1, 1], [], []>} : vector<42x32xbf16>, vector<32x32xbf16>, vector<42x32xf32> -> vector<42x32xf32>
    %c0_5 = arith.constant 0 : index
    %c0_6 = arith.constant 0 : index
    %c0_7 = arith.constant 0 : index
    %5 = vector.load %arg3[%c0_5, %c0_6, %c0_7] : memref<1x1x32xf32, #tpu.memory_space<vmem>>, vector<1x1x32xf32>
    %6 = vector.shape_cast %5 : vector<1x1x32xf32> to vector<1x32xf32>
    %7 = vector.broadcast %6 : vector<1x32xf32> to vector<42x32xf32>
    %8 = arith.addf %4, %7 : vector<42x32xf32>
    %cst_8 = arith.constant dense<0.000000e+00> : vector<32xf32>
    %9 = vector.multi_reduction <add>, %8, %cst_8 [0] : vector<42x32xf32> to vector<32xf32>
    %10 = vector.shape_cast %9 : vector<32xf32> to vector<1x32xf32>
    %cst_9 = arith.constant 4.200000e+01 : f32
    %11 = vector.broadcast %cst_9 : f32 to vector<1x32xf32>
    %12 = arith.divf %10, %11 : vector<1x32xf32>
    %13 = vector.broadcast %12 : vector<1x32xf32> to vector<42x32xf32>
    %14 = arith.subf %8, %13 : vector<42x32xf32>
    %15 = arith.mulf %14, %14 : vector<42x32xf32>
    %cst_10 = arith.constant dense<0.000000e+00> : vector<32xf32>
    %16 = vector.multi_reduction <add>, %15, %cst_10 [0] : vector<42x32xf32> to vector<32xf32>
    %17 = vector.shape_cast %16 : vector<32xf32> to vector<1x32xf32>
    %cst_11 = arith.constant 4.200000e+01 : f32
    %18 = vector.broadcast %cst_11 : f32 to vector<1x32xf32>
    %19 = arith.divf %17, %18 : vector<1x32xf32>
    %20 = vector.broadcast %12 : vector<1x32xf32> to vector<42x32xf32>
    %21 = arith.subf %8, %20 : vector<42x32xf32>
    %cst_12 = arith.constant 9.99999974E-6 : f32
    %22 = vector.broadcast %cst_12 : f32 to vector<1x32xf32>
    %23 = arith.addf %19, %22 : vector<1x32xf32>
    %24 = math.rsqrt %23 : vector<1x32xf32>
    %25 = vector.broadcast %24 : vector<1x32xf32> to vector<42x32xf32>
    %26 = arith.mulf %21, %25 : vector<42x32xf32>
    %c0_13 = arith.constant 0 : index
    %c0_14 = arith.constant 0 : index
    %c0_15 = arith.constant 0 : index
    %27 = vector.load %arg4[%c0_13, %c0_14, %c0_15] : memref<1x1x32xf32, #tpu.memory_space<vmem>>, vector<1x1x32xf32>
    %28 = vector.shape_cast %27 : vector<1x1x32xf32> to vector<1x32xf32>
    %29 = vector.broadcast %28 : vector<1x32xf32> to vector<42x32xf32>
    %30 = arith.mulf %26, %29 : vector<42x32xf32>
    %c0_16 = arith.constant 0 : index
    %c0_17 = arith.constant 0 : index
    %c0_18 = arith.constant 0 : index
    %31 = vector.load %arg5[%c0_16, %c0_17, %c0_18] : memref<1x1x32xf32, #tpu.memory_space<vmem>>, vector<1x1x32xf32>
    %32 = vector.shape_cast %31 : vector<1x1x32xf32> to vector<1x32xf32>
    %33 = vector.broadcast %32 : vector<1x32xf32> to vector<42x32xf32>
    %34 = arith.addf %30, %33 : vector<42x32xf32>
    %cst_19 = arith.constant 0.000000e+00 : f32
    %35 = vector.broadcast %cst_19 : f32 to vector<42x32xf32>
    %36 = arith.cmpf oge, %34, %35 : vector<42x32xf32>
    %cst_20 = arith.constant 2.000000e-01 : f32
    %37 = vector.broadcast %cst_20 : f32 to vector<42x32xf32>
    %38 = arith.mulf %37, %34 : vector<42x32xf32>
    %39 = arith.select %36, %34, %38 : vector<42x32xi1>, vector<42x32xf32>
    %40 = vector.shape_cast %39 : vector<42x32xf32> to vector<2x21x32xf32>
    %41 = vector.extract_strided_slice %40 {offsets = [0, 17, 0], sizes = [2, 4, 32], strides = [1, 1, 1]} : vector<2x21x32xf32> to vector<2x4x32xf32>
    %42 = vector.extract_strided_slice %40 {offsets = [0, 0, 0], sizes = [2, 4, 32], strides = [1, 1, 1]} : vector<2x21x32xf32> to vector<2x4x32xf32>
    %43 = tpu.concatenate %41, %40, %42 in 1 : vector<2x4x32xf32>, vector<2x21x32xf32>, vector<2x4x32xf32> -> vector<2x29x32xf32>
    %44 = vector.extract_strided_slice %43 {offsets = [0, 0, 0], sizes = [2, 21, 32], strides = [1, 1, 1]} : vector<2x29x32xf32> to vector<2x21x32xf32>
    %45 = vector.extract_strided_slice %43 {offsets = [0, 1, 0], sizes = [2, 21, 32], strides = [1, 1, 1]} : vector<2x29x32xf32> to vector<2x21x32xf32>
    %46 = vector.extract_strided_slice %43 {offsets = [0, 2, 0], sizes = [2, 21, 32], strides = [1, 1, 1]} : vector<2x29x32xf32> to vector<2x21x32xf32>
    %47 = vector.extract_strided_slice %43 {offsets = [0, 3, 0], sizes = [2, 21, 32], strides = [1, 1, 1]} : vector<2x29x32xf32> to vector<2x21x32xf32>
    %48 = vector.extract_strided_slice %43 {offsets = [0, 4, 0], sizes = [2, 21, 32], strides = [1, 1, 1]} : vector<2x29x32xf32> to vector<2x21x32xf32>
    %49 = vector.extract_strided_slice %43 {offsets = [0, 5, 0], sizes = [2, 21, 32], strides = [1, 1, 1]} : vector<2x29x32xf32> to vector<2x21x32xf32>
    %50 = vector.extract_strided_slice %43 {offsets = [0, 6, 0], sizes = [2, 21, 32], strides = [1, 1, 1]} : vector<2x29x32xf32> to vector<2x21x32xf32>
    %51 = vector.extract_strided_slice %43 {offsets = [0, 7, 0], sizes = [2, 21, 32], strides = [1, 1, 1]} : vector<2x29x32xf32> to vector<2x21x32xf32>
    %52 = vector.extract_strided_slice %43 {offsets = [0, 8, 0], sizes = [2, 21, 32], strides = [1, 1, 1]} : vector<2x29x32xf32> to vector<2x21x32xf32>
    %53 = tpu.concatenate %44, %45, %46, %47, %48, %49, %50, %51, %52 in 2 : vector<2x21x32xf32>, vector<2x21x32xf32>, vector<2x21x32xf32>, vector<2x21x32xf32>, vector<2x21x32xf32>, vector<2x21x32xf32>, vector<2x21x32xf32>, vector<2x21x32xf32>, vector<2x21x32xf32> -> vector<2x21x288xf32>
    %54 = vector.shape_cast %53 : vector<2x21x288xf32> to vector<42x288xf32>
    %55 = arith.truncf %54 : vector<42x288xf32> to vector<42x288xbf16>
    %c0_21 = arith.constant 0 : index
    %c0_22 = arith.constant 0 : index
    %c0_23 = arith.constant 0 : index
    %56 = vector.load %arg6[%c0_21, %c0_22, %c0_23] : memref<1x288x32xbf16, #tpu.memory_space<vmem>>, vector<1x288x32xbf16>
    %57 = vector.shape_cast %56 : vector<1x288x32xbf16> to vector<288x32xbf16>
    %cst_24 = arith.constant dense<0.000000e+00> : vector<42x32xf32>
    %58 = tpu.matmul %55, %57, %cst_24 {dimension_numbers = #tpu.dot_dimension_numbers<[1], [0], [0], [1], [0, 0, 1, 1], [], []>} : vector<42x288xbf16>, vector<288x32xbf16>, vector<42x32xf32> -> vector<42x32xf32>
    %c0_25 = arith.constant 0 : index
    %c0_26 = arith.constant 0 : index
    %c0_27 = arith.constant 0 : index
    %59 = vector.load %arg7[%c0_25, %c0_26, %c0_27] : memref<1x1x32xf32, #tpu.memory_space<vmem>>, vector<1x1x32xf32>
    %60 = vector.shape_cast %59 : vector<1x1x32xf32> to vector<1x32xf32>
    %61 = vector.broadcast %60 : vector<1x32xf32> to vector<42x32xf32>
    %62 = arith.addf %58, %61 : vector<42x32xf32>
    %cst_28 = arith.constant dense<0.000000e+00> : vector<32xf32>
    %63 = vector.multi_reduction <add>, %62, %cst_28 [0] : vector<42x32xf32> to vector<32xf32>
    %64 = vector.shape_cast %63 : vector<32xf32> to vector<1x32xf32>
    %cst_29 = arith.constant 4.200000e+01 : f32
    %65 = vector.broadcast %cst_29 : f32 to vector<1x32xf32>
    %66 = arith.divf %64, %65 : vector<1x32xf32>
    %67 = vector.broadcast %66 : vector<1x32xf32> to vector<42x32xf32>
    %68 = arith.subf %62, %67 : vector<42x32xf32>
    %69 = arith.mulf %68, %68 : vector<42x32xf32>
    %cst_30 = arith.constant dense<0.000000e+00> : vector<32xf32>
    %70 = vector.multi_reduction <add>, %69, %cst_30 [0] : vector<42x32xf32> to vector<32xf32>
    %71 = vector.shape_cast %70 : vector<32xf32> to vector<1x32xf32>
    %cst_31 = arith.constant 4.200000e+01 : f32
    %72 = vector.broadcast %cst_31 : f32 to vector<1x32xf32>
    %73 = arith.divf %71, %72 : vector<1x32xf32>
    %74 = vector.broadcast %66 : vector<1x32xf32> to vector<42x32xf32>
    %75 = arith.subf %62, %74 : vector<42x32xf32>
    %cst_32 = arith.constant 9.99999974E-6 : f32
    %76 = vector.broadcast %cst_32 : f32 to vector<1x32xf32>
    %77 = arith.addf %73, %76 : vector<1x32xf32>
    %78 = math.rsqrt %77 : vector<1x32xf32>
    %79 = vector.broadcast %78 : vector<1x32xf32> to vector<42x32xf32>
    %80 = arith.mulf %75, %79 : vector<42x32xf32>
    %c0_33 = arith.constant 0 : index
    %c0_34 = arith.constant 0 : index
    %c0_35 = arith.constant 0 : index
    %81 = vector.load %arg8[%c0_33, %c0_34, %c0_35] : memref<1x1x32xf32, #tpu.memory_space<vmem>>, vector<1x1x32xf32>
    %82 = vector.shape_cast %81 : vector<1x1x32xf32> to vector<1x32xf32>
    %83 = vector.broadcast %82 : vector<1x32xf32> to vector<42x32xf32>
    %84 = arith.mulf %80, %83 : vector<42x32xf32>
    %c0_36 = arith.constant 0 : index
    %c0_37 = arith.constant 0 : index
    %c0_38 = arith.constant 0 : index
    %85 = vector.load %arg9[%c0_36, %c0_37, %c0_38] : memref<1x1x32xf32, #tpu.memory_space<vmem>>, vector<1x1x32xf32>
    %86 = vector.shape_cast %85 : vector<1x1x32xf32> to vector<1x32xf32>
    %87 = vector.broadcast %86 : vector<1x32xf32> to vector<42x32xf32>
    %88 = arith.addf %84, %87 : vector<42x32xf32>
    %cst_39 = arith.constant 0.000000e+00 : f32
    %89 = vector.broadcast %cst_39 : f32 to vector<42x32xf32>
    %90 = arith.cmpf oge, %88, %89 : vector<42x32xf32>
    %cst_40 = arith.constant 2.000000e-01 : f32
    %91 = vector.broadcast %cst_40 : f32 to vector<42x32xf32>
    %92 = arith.mulf %91, %88 : vector<42x32xf32>
    %93 = arith.select %90, %88, %92 : vector<42x32xi1>, vector<42x32xf32>
    %94 = arith.addf %93, %39 : vector<42x32xf32>
    %cst_41 = arith.constant 0.707106769 : f32
    %95 = vector.broadcast %cst_41 : f32 to vector<42x32xf32>
    %96 = arith.mulf %94, %95 : vector<42x32xf32>
    %97 = vector.shape_cast %96 : vector<42x32xf32> to vector<2x21x32xf32>
    %c0_42 = arith.constant 0 : index
    %c0_43 = arith.constant 0 : index
    %c0_44 = arith.constant 0 : index
    %98 = vector.load %arg10[%c0_42, %c0_43, %c0_44] : memref<1x1x32xf32, #tpu.memory_space<vmem>>, vector<1x1x32xf32>
    %99 = vector.shape_cast %98 : vector<1x1x32xf32> to vector<1x32xf32>
    %100 = vector.shape_cast %99 : vector<1x32xf32> to vector<1x1x32xf32>
    %101 = vector.broadcast %100 : vector<1x1x32xf32> to vector<2x21x32xf32>
    %102 = arith.mulf %97, %101 : vector<2x21x32xf32>
    %cst_45 = arith.constant dense<0.000000e+00> : vector<2x21xf32>
    %103 = vector.multi_reduction <add>, %102, %cst_45 [2] : vector<2x21x32xf32> to vector<2x21xf32>
    %c0_46 = arith.constant 0 : index
    %c0_47 = arith.constant 0 : index
    %c0_48 = arith.constant 0 : index
    %104 = vector.load %arg11[%c0_46, %c0_47, %c0_48] : memref<1x1x1xf32, #tpu.memory_space<vmem>>, vector<1x1x1xf32>
    %105 = vector.shape_cast %104 : vector<1x1x1xf32> to vector<1x1xf32>
    %106 = vector.broadcast %105 : vector<1x1xf32> to vector<2x21xf32>
    %107 = arith.addf %103, %106 : vector<2x21xf32>
    %108 = vector.shape_cast %107 : vector<2x21xf32> to vector<1x2x21xf32>
    %c0_49 = arith.constant 0 : index
    %c0_50 = arith.constant 0 : index
    %c0_51 = arith.constant 0 : index
    %109 = vector.load %arg12[%c0_49, %c0_50, %c0_51] : memref<1x2x21xf32, #tpu.memory_space<vmem>>, vector<1x2x21xf32>
    tpu.vector_store %arg12[%c0_49, %c0_50, %c0_51], %108 {strides = array<i32>} : memref<1x2x21xf32, #tpu.memory_space<vmem>>, vector<1x2x21xf32>,
    return
  }
  func.func @transform_0(%arg0: i32) -> (i32, i32, i32) {
    %c0_i32 = arith.constant 0 : i32
    %c0_i32_0 = arith.constant 0 : i32
    %c0_i32_1 = arith.constant 0 : i32
    return %arg0, %c0_i32, %c0_i32_0 : i32, i32, i32
  }
  func.func @transform_1(%arg0: i32) -> (i32, i32, i32) {
    %c0_i32 = arith.constant 0 : i32
    %c0_i32_0 = arith.constant 0 : i32
    %c0_i32_1 = arith.constant 0 : i32
    return %arg0, %c0_i32, %c0_i32_0 : i32, i32, i32
  }
  func.func @transform_2(%arg0: i32) -> (i32, i32, i32) {
    %c0_i32 = arith.constant 0 : i32
    %c0_i32_0 = arith.constant 0 : i32
    %c0_i32_1 = arith.constant 0 : i32
    return %arg0, %c0_i32, %c0_i32_0 : i32, i32, i32
  }
  func.func @transform_3(%arg0: i32) -> (i32, i32, i32) {
    %c0_i32 = arith.constant 0 : i32
    %c0_i32_0 = arith.constant 0 : i32
    %c0_i32_1 = arith.constant 0 : i32
    return %arg0, %c0_i32, %c0_i32_0 : i32, i32, i32
  }
  func.func @transform_4(%arg0: i32) -> (i32, i32, i32) {
    %c0_i32 = arith.constant 0 : i32
    %c0_i32_0 = arith.constant 0 : i32
    %c0_i32_1 = arith.constant 0 : i32
    return %arg0, %c0_i32, %c0_i32_0 : i32, i32, i32
  }
  func.func @transform_5(%arg0: i32) -> (i32, i32, i32) {
    %c0_i32 = arith.constant 0 : i32
    %c0_i32_0 = arith.constant 0 : i32
    %c0_i32_1 = arith.constant 0 : i32
    return %arg0, %c0_i32, %c0_i32_0 : i32, i32, i32
  }
  func.func @transform_6(%arg0: i32) -> (i32, i32, i32) {
    %c0_i32 = arith.constant 0 : i32
    %c0_i32_0 = arith.constant 0 : i32
    %c0_i32_1 = arith.constant 0 : i32
    return %arg0, %c0_i32, %c0_i32_0 : i32, i32, i32
  }
  func.func @transform_7(%arg0: i32) -> (i32, i32, i32) {
    %c0_i32 = arith.constant 0 : i32
    %c0_i32_0 = arith.constant 0 : i32
    %c0_i32_1 = arith.constant 0 : i32
    return %arg0, %c0_i32, %c0_i32_0 : i32, i32, i32
  }
  func.func @transform_8(%arg0: i32) -> (i32, i32, i32) {
    %c0_i32 = arith.constant 0 : i32
    %c0_i32_0 = arith.constant 0 : i32
    %c0_i32_1 = arith.constant 0 : i32
    return %arg0, %c0_i32, %c0_i32_0 : i32, i32, i32
  }
  func.func @transform_9(%arg0: i32) -> (i32, i32, i32) {
    %c0_i32 = arith.constant 0 : i32
    %c0_i32_0 = arith.constant 0 : i32
    %c0_i32_1 = arith.constant 0 : i32
    return %arg0, %c0_i32, %c0_i32_0 : i32, i32, i32
  }
  func.func @transform_10(%arg0: i32) -> (i32, i32, i32) {
    %c0_i32 = arith.constant 0 : i32
    %c0_i32_0 = arith.constant 0 : i32
    %c0_i32_1 = arith.constant 0 : i32
    return %arg0, %c0_i32, %c0_i32_0 : i32, i32, i32
  }
  func.func @transform_11(%arg0: i32) -> (i32, i32, i32) {
    %c0_i32 = arith.constant 0 : i32
    %c0_i32_0 = arith.constant 0 : i32
    %c0_i32_1 = arith.constant 0 : i32
    return %arg0, %c0_i32, %c0_i32_0 : i32, i32, i32
  }
}

</mosaic_0001>

<llo_original>
// kernel: projected_discriminator_forward.3
$region0: #{projected_discriminator_forward.3}
  #allocation0 [shape = 'u32[]', space=smem, size = 0x4, offset = 0x4, fixed_abs, tag = 'smem constant byte address 0x4 - core index']
  #allocation1 [shape = 'u32[144,128]{1,0:T(1,128)}', space=vmem, size = 0x12000, scoped, tag = 'internal scratch']
  %s0 = inlined_call_operand.vmem [shape: f32[32,48], index: 0, kind: input, shape index: {}]
  %s1 = inlined_call_operand.vmem [shape: bf16[48,32], index: 1, kind: input, shape index: {}]
  %s2 = inlined_call_operand.vmem [shape: f32[1,32], index: 2, kind: input, shape index: {}]
  %s3 = inlined_call_operand.vmem [shape: f32[32,32], index: 3, kind: output, shape index: {}]
  %s4 = sld [smem:[#allocation0]]
  $region22: #{projected_discriminator_forward.3} parent=0
    _
  %s6 = ssub.s32 1, %s4
  %s7 = scalar_select 0, %s6, %s4
  // Predicated region
  $region2: #{projected_discriminator_forward.3} parent=0 // pred_check
    _
  $region3: #{projected_discriminator_forward.3} parent=0 // pred_check_branch
    %9 = sbr.rel (0) target = $region5
  $region4: #{projected_discriminator_forward.3} parent=0 // pred_region
    _
  $region5: #{projected_discriminator_forward.3} parent=0 // pred_fallthru
    _
  // Predicated region
  $region6: #{projected_discriminator_forward.3} parent=0 // pred_check
    _
  $region7: #{projected_discriminator_forward.3} parent=0 // pred_check_branch
    %11 = sbr.rel (0) target = $region9
  $region8: #{projected_discriminator_forward.3} parent=0 // pred_region
    _
  $region9: #{projected_discriminator_forward.3} parent=0 // pred_fallthru
    _
  // Predicated region
  $region10: #{projected_discriminator_forward.3} parent=0 // pred_check
    _
  $region11: #{projected_discriminator_forward.3} parent=0 // pred_check_branch
    %13 = sbr.rel (0) target = $region13
  $region12: #{projected_discriminator_forward.3} parent=0 // pred_region
    _
  $region13: #{projected_discriminator_forward.3} parent=0 // pred_fallthru
    _
  %v15 = vld [vmem:[%s0] sm:$0xff]
  %v16 = vld [vmem:[%s0 + $0x8] sm:$0xff]
  %v17 = vld [vmem:[%s0 + $0x10] sm:$0xff]
  %v18 = vld [vmem:[%s0 + $0x18] sm:$0xff]
  %v19 = vpack.c.bf16 %v16, %v15
  %v20 = vpack.c.bf16 %v18, %v17
  %v21 = vld [vmem:[%s1] sm:$0xf]
  %v22 = vld [vmem:[%s1 + $0x4] sm:$0xf]
  %v23 = vld [vmem:[%s1 + $0x8] sm:$0xf]
  %v24 = vld [vmem:[%s1 + $0xc] sm:$0xf]
  %v25 = vld [vmem:[%s1 + $0x10] sm:$0xf]
  %v26 = vld [vmem:[%s1 + $0x14] sm:$0xf]
  %v27 = vld [vmem:[%s2] sm:$0x1]
  %v29 = vlaneseq
  %v30 = vshrl.u32 %v29, 7
  %v31 = vsub.s32 0, %v30
  %v32 = vrot.slane %v27, %v31
  %v40 = vunpack.c.l.b16 %v21
  %v41 = vunpack.c.l.b16 %v22
  %v42 = vunpack.c.l.b16 %v23
  %v43 = vunpack.c.l.b16 %v24
  %v44 = vunpack.c.l.b16 %v25
  %v45 = vunpack.c.l.b16 %v26
  %v46 = vpack.c.b16 %v41, %v40
  %v47 = vpack.c.b16 %v43, %v42
  %v48 = vpack.c.b16 %v45, %v44
  %vm52 = vcmask 392192
  %v54 = vsel %vm52, %v19, 0
  %v57 = vsel %vm52, %v20, 0
  %59 = vmatprep.subr.bf16.mxu0 0
  %60 = vmatpush1.bf16.msra.mxu0 %v46
  %61 = vmatprep.subr.bf16.mxu0 0
  %62 = vmatpush1.bf16.msra.mxu0 %v47
  %63 = vmatprep.subr.bf16.mxu0 0
  %64 = vmatpush1.bf16.msra.mxu0 %v48
  %65 = vmatprep.subr.bf16.mxu0 0
  %66 = vmatpush1.bf16.msra.mxu0 0
  %67 = vmatprep.subr.bf16.mxu0 0
  %68 = vmatpush1.bf16.msra.mxu0 0
  %69 = vmatprep.subr.bf16.mxu0 0
  %70 = vmatpush1.bf16.msra.mxu0 0
  %71 = vmatprep.subr.bf16.mxu0 0
  %72 = vmatpush1.bf16.msra.mxu0 0
  %73 = vmatprep.subr.bf16.mxu0 0
  %74 = vmatpush1.bf16.msra.mxu0 0
  %75 = vmatprep.subr.bf16.mxu0 0
  %76 = vmatpush1.bf16.msra.mxu0 0
  %77 = vmatprep.subr.bf16.mxu0 0
  %78 = vmatpush1.bf16.msra.mxu0 0
  %79 = vmatprep.subr.bf16.mxu0 0
  %80 = vmatpush1.bf16.msra.mxu0 0
  %81 = vmatprep.subr.bf16.mxu0 0
  %82 = vmatpush1.bf16.msra.mxu0 0
  %83 = vmatprep.subr.bf16.mxu0 0
  %84 = vmatpush1.bf16.msra.mxu0 0
  %85 = vmatprep.subr.bf16.mxu0 0
  %86 = vmatpush1.bf16.msra.mxu0 0
  %87 = vmatprep.subr.bf16.mxu0 0
  %88 = vmatpush1.bf16.msra.mxu0 0
  %89 = vmatprep.subr.bf16.mxu0 0
  %90 = vmatpush1.bf16.msra.mxu0 0
  %91 = vmatprep.mubr.bf16.mxu0 0
  %92 = vmatmul.mubr.bf16.gmra.mrb[0].mxu0 %v54
  %v93 = vpop.f32.mrb[0].mxu0
  %v94 = vadd.f32 %v32, %v93
  %v95 = vpop.f32.mrb[0].mxu0
  %v96 = vpop.f32.mrb[0].mxu0
  %v97 = vadd.f32 %v32, %v96
  %v98 = vpop.f32.mrb[0].mxu0
  %99 = vmatprep.mubr.bf16.mxu0 0
  %100 = vmatmul.mubr.bf16.gmra.mrb[0].mxu0 %v57
  %v101 = vpop.f32.mrb[0].mxu0
  %v102 = vadd.f32 %v32, %v101
  %v103 = vpop.f32.mrb[0].mxu0
  %v104 = vpop.f32.mrb[0].mxu0
  %v105 = vadd.f32 %v32, %v104
  %v106 = vpop.f32.mrb[0].mxu0
  %107 = vdwg.mxu0
  %vm108 = vcmask 261120
  %109 = vst.msk [vmem:[%s3] sm:$0xff] %vm108, %v94
  %110 = vst.msk [vmem:[%s3 + $0x8] sm:$0xff] %vm108, %v97
  %111 = vst.msk [vmem:[%s3 + $0x10] sm:$0xff] %vm108, %v102
  %112 = vst.msk [vmem:[%s3 + $0x18] sm:$0xff] %vm108, %v105
  // Predicated region
  $region14: #{projected_discriminator_forward.3} parent=0 // pred_check
    _
  $region15: #{projected_discriminator_forward.3} parent=0 // pred_check_branch
    %114 = sbr.rel (0) target = $region17
  $region16: #{projected_discriminator_forward.3} parent=0 // pred_region
    _
  $region17: #{projected_discriminator_forward.3} parent=0 // pred_fallthru
    _
  // Predicated region
  $region18: #{projected_discriminator_forward.3} parent=0 // pred_check
    _
  $region19: #{projected_discriminator_forward.3} parent=0 // pred_check_branch
    %116 = sbr.rel (0) target = $region21
  $region20: #{projected_discriminator_forward.3} parent=0 // pred_region
    _
  $region21: #{projected_discriminator_forward.3} parent=0 // pred_fallthru
    _

// kernel: projected_discriminator_forward.4
$region0: #{projected_discriminator_forward.4}
  #allocation0 [shape = 'u32[]', space=smem, size = 0x4, offset = 0x4, fixed_abs, tag = 'smem constant byte address 0x4 - core index']
  #allocation1 [shape = 'u32[144,128]{1,0:T(1,128)}', space=vmem, size = 0x12000, scoped, tag = 'internal scratch']
  #allocation2 [shape = 'f32[42,32]{1,0:T(8,128)}', space=vmem, size = 0x6000, scoped, tag = 'scratch operand']
  %s0 = inlined_call_operand.vmem [shape: f32[42,32], index: 0, kind: input, shape index: {}]
  %s1 = inlined_call_operand.vmem [shape: f32[12,1,32], index: 1, kind: input, shape index: {}]
  %s2 = inlined_call_operand.vmem [shape: f32[12,1,32], index: 2, kind: input, shape index: {}]
  %s3 = inlined_call_operand.vmem [shape: bf16[12,32,96], index: 3, kind: input, shape index: {}]
  %s4 = inlined_call_operand.vmem [shape: f32[12,1,96], index: 4, kind: input, shape index: {}]
  %s5 = inlined_call_operand.vmem [shape: bf16[12,32,32], index: 5, kind: input, shape index: {}]
  %s6 = inlined_call_operand.vmem [shape: f32[12,1,32], index: 6, kind: input, shape index: {}]
  %s7 = inlined_call_operand.vmem [shape: f32[12,1,32], index: 7, kind: input, shape index: {}]
  %s8 = inlined_call_operand.vmem [shape: f32[12,1,32], index: 8, kind: input, shape index: {}]
  %s9 = inlined_call_operand.vmem [shape: f32[12,1,32], index: 9, kind: input, shape index: {}]
  %s10 = inlined_call_operand.vmem [shape: bf16[12,32,128], index: 10, kind: input, shape index: {}]
  %s11 = inlined_call_operand.vmem [shape: f32[12,1,128], index: 11, kind: input, shape index: {}]
  %s12 = inlined_call_operand.vmem [shape: bf16[12,128,32], index: 12, kind: input, shape index: {}]
  %s13 = inlined_call_operand.vmem [shape: f32[12,1,32], index: 13, kind: input, shape index: {}]
  %s14 = inlined_call_operand.vmem [shape: f32[12,1,32], index: 14, kind: input, shape index: {}]
  %s15 = inlined_call_operand.vmem [shape: bf16[4,42,32], index: 15, kind: output, shape index: {}]
  %s16 = sld [smem:[#allocation0]]
  $region97: #{projected_discriminator_forward.4} parent=0
    _
  %s18 = ssub.s32 1, %s16
  %s19 = scalar_select 0, %s18, %s16
  loop: start=0, step=1, limit=14
  $region2: #{projected_discriminator_forward.4} parent=0 // loop_pre_header
    _
  $region3: #{projected_discriminator_forward.4} parent=0 // loop_header
    %s21 = sphi 0, %s25
    %p22 = scmp.ge.s32.totalorder %s21, 14
    %s29 = sphi 0, %s29
    %s31 = sphi 0, %s29
    %s32 = sphi 0, %s31
    %s46 = sphi 0, %s32
    %s52 = sphi 0, %s54
    %s55 = sphi 0, %s52
    %s56 = sphi 0, %s55
    %s72 = sphi 0, %s56
    %s78 = sphi 0, %s80
    %s81 = sphi 0, %s78
    %s82 = sphi 0, %s81
    %s98 = sphi 0, %s82
    %s104 = sphi 0, %s106
    %s107 = sphi 0, %s104
    %s108 = sphi 0, %s107
    %s124 = sphi 0, %s108
    %s130 = sphi 0, %s132
    %s133 = sphi 0, %s130
    %s134 = sphi 0, %s133
    %s150 = sphi 0, %s134
    %s156 = sphi 0, %s158
    %s159 = sphi 0, %s156
    %s160 = sphi 0, %s159
    %s176 = sphi 0, %s160
    %s182 = sphi 0, %s184
    %s185 = sphi 0, %s182
    %s186 = sphi 0, %s185
    %s202 = sphi 0, %s186
    %s208 = sphi 0, %s210
    %s211 = sphi 0, %s208
    %s212 = sphi 0, %s211
    %s228 = sphi 0, %s212
    %s234 = sphi 0, %s236
    %s237 = sphi 0, %s234
    %s238 = sphi 0, %s237
    %s254 = sphi 0, %s238
    %s260 = sphi 0, %s262
    %s263 = sphi 0, %s260
    %s264 = sphi 0, %s263
    %s280 = sphi 0, %s264
    %s286 = sphi 0, %s288
    %s289 = sphi 0, %s286
    %s290 = sphi 0, %s289
    %s306 = sphi 0, %s290
    %s312 = sphi 0, %s314
    %s315 = sphi 0, %s312
    %s316 = sphi 0, %s315
    %s332 = sphi 0, %s316
    %s338 = sphi 0, %s340
    %s341 = sphi 0, %s338
    %s342 = sphi 0, %s341
    %s358 = sphi 0, %s342
    %s364 = sphi 0, %s366
    %s367 = sphi 0, %s364
    %s368 = sphi 0, %s367
    %s384 = sphi 0, %s368
    %s390 = sphi 0, %s392
    %s393 = sphi 0, %s390
    %s394 = sphi 0, %s393
    %s410 = sphi 0, %s394
    %s438 = sphi 0, %s440
    %s441 = sphi 0, %s438
    %s442 = sphi 0, %s441
    %s458 = sphi 0, %s442
  $region4: #{projected_discriminator_forward.4} parent=0 // loop_header_branch
    %24 = sbr.rel (%p22) target = $region8
  $region5: #{projected_discriminator_forward.4} parent=0 // loop_body
    %s26 = ssub.s32 %s21, 1
    %s27 = ssub.s32 %s21, 2
    %s28 = sadd.s32 %s21, 1
    %s30 = sadd.s32 %s29, 1
    %p33 = scmp.eq.s32.totalorder %s21, 11
    %p34 = scmp.ne.s32.totalorder %s29, %s31
    %p35 = scmp.eq.s32.totalorder %s21, 0
    %p36 = por %p34, %p35
    %p37 = scmp.ne.s32.totalorder %s29, %s31
    %p38 = scmp.eq.s32.totalorder %s26, 11
    %p39 = por %p37, %p38
    %p40 = scmp.ne.s32.totalorder %s31, %s32
    %p41 = scmp.eq.s32.totalorder %s26, 0
    %p42 = por %p40, %p41
    %p43 = scmp.ne.s32.totalorder %s31, %s32
    %p44 = scmp.eq.s32.totalorder %s27, 11
    %p45 = por %p43, %p44
    %p47 = scmp.ne.s32.totalorder %s32, %s46
    %p48 = scmp.eq.s32.totalorder %s27, 0
    %p49 = por %p47, %p48
    %s50 = ssub.s32 %s21, %s28
    %p51 = scmp.eq.s32.totalorder %s50, 0
    %s53 = sadd.s32 %s52, 1
    %s54 = scalar_select %p51, %s52, %s53
    %p57 = pneg %p51
    %p58 = scmp.eq.s32.totalorder %s21, 11
    %p59 = por %p57, %p58
    %p60 = scmp.ne.s32.totalorder %s52, %s55
    %p61 = scmp.eq.s32.totalorder %s21, 0
    %p62 = por %p60, %p61
    %p63 = scmp.ne.s32.totalorder %s52, %s55
    %p64 = scmp.eq.s32.totalorder %s26, 11
    %p65 = por %p63, %p64
    %p66 = scmp.ne.s32.totalorder %s55, %s56
    %p67 = scmp.eq.s32.totalorder %s26, 0
    %p68 = por %p66, %p67
    %p69 = scmp.ne.s32.totalorder %s55, %s56
    %p70 = scmp.eq.s32.totalorder %s27, 11
    %p71 = por %p69, %p70
    %p73 = scmp.ne.s32.totalorder %s56, %s72
    %p74 = scmp.eq.s32.totalorder %s27, 0
    %p75 = por %p73, %p74
    %s76 = ssub.s32 %s21, %s28
    %p77 = scmp.eq.s32.totalorder %s76, 0
    %s79 = sadd.s32 %s78, 1
    %s80 = scalar_select %p77, %s78, %s79
    %p83 = pneg %p77
    %p84 = scmp.eq.s32.totalorder %s21, 11
    %p85 = por %p83, %p84
    %p86 = scmp.ne.s32.totalorder %s78, %s81
    %p87 = scmp.eq.s32.totalorder %s21, 0
    %p88 = por %p86, %p87
    %p89 = scmp.ne.s32.totalorder %s78, %s81
    %p90 = scmp.eq.s32.totalorder %s26, 11
    %p91 = por %p89, %p90
    %p92 = scmp.ne.s32.totalorder %s81, %s82
    %p93 = scmp.eq.s32.totalorder %s26, 0
    %p94 = por %p92, %p93
    %p95 = scmp.ne.s32.totalorder %s81, %s82
    %p96 = scmp.eq.s32.totalorder %s27, 11
    %p97 = por %p95, %p96
    %p99 = scmp.ne.s32.totalorder %s82, %s98
    %p100 = scmp.eq.s32.totalorder %s27, 0
    %p101 = por %p99, %p100
    %s102 = ssub.s32 %s21, %s28
    %p103 = scmp.eq.s32.totalorder %s102, 0
    %s105 = sadd.s32 %s104, 1
    %s106 = scalar_select %p103, %s104, %s105
    %p109 = pneg %p103
    %p110 = scmp.eq.s32.totalorder %s21, 11
    %p111 = por %p109, %p110
    %p112 = scmp.ne.s32.totalorder %s104, %s107
    %p113 = scmp.eq.s32.totalorder %s21, 0
    %p114 = por %p112, %p113
    %p115 = scmp.ne.s32.totalorder %s104, %s107
    %p116 = scmp.eq.s32.totalorder %s26, 11
    %p117 = por %p115, %p116
    %p118 = scmp.ne.s32.totalorder %s107, %s108
    %p119 = scmp.eq.s32.totalorder %s26, 0
    %p120 = por %p118, %p119
    %p121 = scmp.ne.s32.totalorder %s107, %s108
    %p122 = scmp.eq.s32.totalorder %s27, 11
    %p123 = por %p121, %p122
    %p125 = scmp.ne.s32.totalorder %s108, %s124
    %p126 = scmp.eq.s32.totalorder %s27, 0
    %p127 = por %p125, %p126
    %s128 = ssub.s32 %s21, %s28
    %p129 = scmp.eq.s32.totalorder %s128, 0
    %s131 = sadd.s32 %s130, 1
    %s132 = scalar_select %p129, %s130, %s131
    %p135 = pneg %p129
    %p136 = scmp.eq.s32.totalorder %s21, 11
    %p137 = por %p135, %p136
    %p138 = scmp.ne.s32.totalorder %s130, %s133
    %p139 = scmp.eq.s32.totalorder %s21, 0
    %p140 = por %p138, %p139
    %p141 = scmp.ne.s32.totalorder %s130, %s133
    %p142 = scmp.eq.s32.totalorder %s26, 11
    %p143 = por %p141, %p142
    %p144 = scmp.ne.s32.totalorder %s133, %s134
    %p145 = scmp.eq.s32.totalorder %s26, 0
    %p146 = por %p144, %p145
    %p147 = scmp.ne.s32.totalorder %s133, %s134
    %p148 = scmp.eq.s32.totalorder %s27, 11
    %p149 = por %p147, %p148
    %p151 = scmp.ne.s32.totalorder %s134, %s150
    %p152 = scmp.eq.s32.totalorder %s27, 0
    %p153 = por %p151, %p152
    %s154 = ssub.s32 %s21, %s28
    %p155 = scmp.eq.s32.totalorder %s154, 0
    %s157 = sadd.s32 %s156, 1
    %s158 = scalar_select %p155, %s156, %s157
    %p161 = pneg %p155
    %p162 = scmp.eq.s32.totalorder %s21, 11
    %p163 = por %p161, %p162
    %p164 = scmp.ne.s32.totalorder %s156, %s159
    %p165 = scmp.eq.s32.totalorder %s21, 0
    %p166 = por %p164, %p165
    %p167 = scmp.ne.s32.totalorder %s156, %s159
    %p168 = scmp.eq.s32.totalorder %s26, 11
    %p169 = por %p167, %p168
    %p170 = scmp.ne.s32.totalorder %s159, %s160
    %p171 = scmp.eq.s32.totalorder %s26, 0
    %p172 = por %p170, %p171
    %p173 = scmp.ne.s32.totalorder %s159, %s160
    %p174 = scmp.eq.s32.totalorder %s27, 11
    %p175 = por %p173, %p174
    %p177 = scmp.ne.s32.totalorder %s160, %s176
    %p178 = scmp.eq.s32.totalorder %s27, 0
    %p179 = por %p177, %p178
    %s180 = ssub.s32 %s21, %s28
    %p181 = scmp.eq.s32.totalorder %s180, 0
    %s183 = sadd.s32 %s182, 1
    %s184 = scalar_select %p181, %s182, %s183
    %p187 = pneg %p181
    %p188 = scmp.eq.s32.totalorder %s21, 11
    %p189 = por %p187, %p188
    %p190 = scmp.ne.s32.totalorder %s182, %s185
    %p191 = scmp.eq.s32.totalorder %s21, 0
    %p192 = por %p190, %p191
    %p193 = scmp.ne.s32.totalorder %s182, %s185
    %p194 = scmp.eq.s32.totalorder %s26, 11
    %p195 = por %p193, %p194
    %p196 = scmp.ne.s32.totalorder %s185, %s186
    %p197 = scmp.eq.s32.totalorder %s26, 0
    %p198 = por %p196, %p197
    %p199 = scmp.ne.s32.totalorder %s185, %s186
    %p200 = scmp.eq.s32.totalorder %s27, 11
    %p201 = por %p199, %p200
    %p203 = scmp.ne.s32.totalorder %s186, %s202
    %p204 = scmp.eq.s32.totalorder %s27, 0
    %p205 = por %p203, %p204
    %s206 = ssub.s32 %s21, %s28
    %p207 = scmp.eq.s32.totalorder %s206, 0
    %s209 = sadd.s32 %s208, 1
    %s210 = scalar_select %p207, %s208, %s209
    %p213 = pneg %p207
    %p214 = scmp.eq.s32.totalorder %s21, 11
    %p215 = por %p213, %p214
    %p216 = scmp.ne.s32.totalorder %s208, %s211
    %p217 = scmp.eq.s32.totalorder %s21, 0
    %p218 = por %p216, %p217
    %p219 = scmp.ne.s32.totalorder %s208, %s211
    %p220 = scmp.eq.s32.totalorder %s26, 11
    %p221 = por %p219, %p220
    %p222 = scmp.ne.s32.totalorder %s211, %s212
    %p223 = scmp.eq.s32.totalorder %s26, 0
    %p224 = por %p222, %p223
    %p225 = scmp.ne.s32.totalorder %s211, %s212
    %p226 = scmp.eq.s32.totalorder %s27, 11
    %p227 = por %p225, %p226
    %p229 = scmp.ne.s32.totalorder %s212, %s228
    %p230 = scmp.eq.s32.totalorder %s27, 0
    %p231 = por %p229, %p230
    %s232 = ssub.s32 %s21, %s28
    %p233 = scmp.eq.s32.totalorder %s232, 0
    %s235 = sadd.s32 %s234, 1
    %s236 = scalar_select %p233, %s234, %s235
    %p239 = pneg %p233
    %p240 = scmp.eq.s32.totalorder %s21, 11
    %p241 = por %p239, %p240
    %p242 = scmp.ne.s32.totalorder %s234, %s237
    %p243 = scmp.eq.s32.totalorder %s21, 0
    %p244 = por %p242, %p243
    %p245 = scmp.ne.s32.totalorder %s234, %s237
    %p246 = scmp.eq.s32.totalorder %s26, 11
    %p247 = por %p245, %p246
    %p248 = scmp.ne.s32.totalorder %s237, %s238
    %p249 = scmp.eq.s32.totalorder %s26, 0
    %p250 = por %p248, %p249
    %p251 = scmp.ne.s32.totalorder %s237, %s238
    %p252 = scmp.eq.s32.totalorder %s27, 11
    %p253 = por %p251, %p252
    %p255 = scmp.ne.s32.totalorder %s238, %s254
    %p256 = scmp.eq.s32.totalorder %s27, 0
    %p257 = por %p255, %p256
    %s258 = ssub.s32 %s21, %s28
    %p259 = scmp.eq.s32.totalorder %s258, 0
    %s261 = sadd.s32 %s260, 1
    %s262 = scalar_select %p259, %s260, %s261
    %p265 = pneg %p259
    %p266 = scmp.eq.s32.totalorder %s21, 11
    %p267 = por %p265, %p266
    %p268 = scmp.ne.s32.totalorder %s260, %s263
    %p269 = scmp.eq.s32.totalorder %s21, 0
    %p270 = por %p268, %p269
    %p271 = scmp.ne.s32.totalorder %s260, %s263
    %p272 = scmp.eq.s32.totalorder %s26, 11
    %p273 = por %p271, %p272
    %p274 = scmp.ne.s32.totalorder %s263, %s264
    %p275 = scmp.eq.s32.totalorder %s26, 0
    %p276 = por %p274, %p275
    %p277 = scmp.ne.s32.totalorder %s263, %s264
    %p278 = scmp.eq.s32.totalorder %s27, 11
    %p279 = por %p277, %p278
    %p281 = scmp.ne.s32.totalorder %s264, %s280
    %p282 = scmp.eq.s32.totalorder %s27, 0
    %p283 = por %p281, %p282
    %s284 = ssub.s32 %s21, %s28
    %p285 = scmp.eq.s32.totalorder %s284, 0
    %s287 = sadd.s32 %s286, 1
    %s288 = scalar_select %p285, %s286, %s287
    %p291 = pneg %p285
    %p292 = scmp.eq.s32.totalorder %s21, 11
    %p293 = por %p291, %p292
    %p294 = scmp.ne.s32.totalorder %s286, %s289
    %p295 = scmp.eq.s32.totalorder %s21, 0
    %p296 = por %p294, %p295
    %p297 = scmp.ne.s32.totalorder %s286, %s289
    %p298 = scmp.eq.s32.totalorder %s26, 11
    %p299 = por %p297, %p298
    %p300 = scmp.ne.s32.totalorder %s289, %s290
    %p301 = scmp.eq.s32.totalorder %s26, 0
    %p302 = por %p300, %p301
    %p303 = scmp.ne.s32.totalorder %s289, %s290
    %p304 = scmp.eq.s32.totalorder %s27, 11
    %p305 = por %p303, %p304
    %p307 = scmp.ne.s32.totalorder %s290, %s306
    %p308 = scmp.eq.s32.totalorder %s27, 0
    %p309 = por %p307, %p308
    %s310 = ssub.s32 %s21, %s28
    %p311 = scmp.eq.s32.totalorder %s310, 0
    %s313 = sadd.s32 %s312, 1
    %s314 = scalar_select %p311, %s312, %s313
    %p317 = pneg %p311
    %p318 = scmp.eq.s32.totalorder %s21, 11
    %p319 = por %p317, %p318
    %p320 = scmp.ne.s32.totalorder %s312, %s315
    %p321 = scmp.eq.s32.totalorder %s21, 0
    %p322 = por %p320, %p321
    %p323 = scmp.ne.s32.totalorder %s312, %s315
    %p324 = scmp.eq.s32.totalorder %s26, 11
    %p325 = por %p323, %p324
    %p326 = scmp.ne.s32.totalorder %s315, %s316
    %p327 = scmp.eq.s32.totalorder %s26, 0
    %p328 = por %p326, %p327
    %p329 = scmp.ne.s32.totalorder %s315, %s316
    %p330 = scmp.eq.s32.totalorder %s27, 11
    %p331 = por %p329, %p330
    %p333 = scmp.ne.s32.totalorder %s316, %s332
    %p334 = scmp.eq.s32.totalorder %s27, 0
    %p335 = por %p333, %p334
    %s336 = ssub.s32 %s21, %s28
    %p337 = scmp.eq.s32.totalorder %s336, 0
    %s339 = sadd.s32 %s338, 1
    %s340 = scalar_select %p337, %s338, %s339
    %p343 = pneg %p337
    %p344 = scmp.eq.s32.totalorder %s21, 11
    %p345 = por %p343, %p344
    %p346 = scmp.ne.s32.totalorder %s338, %s341
    %p347 = scmp.eq.s32.totalorder %s21, 0
    %p348 = por %p346, %p347
    %p349 = scmp.ne.s32.totalorder %s338, %s341
    %p350 = scmp.eq.s32.totalorder %s26, 11
    %p351 = por %p349, %p350
    %p352 = scmp.ne.s32.totalorder %s341, %s342
    %p353 = scmp.eq.s32.totalorder %s26, 0
    %p354 = por %p352, %p353
    %p355 = scmp.ne.s32.totalorder %s341, %s342
    %p356 = scmp.eq.s32.totalorder %s27, 11
    %p357 = por %p355, %p356
    %p359 = scmp.ne.s32.totalorder %s342, %s358
    %p360 = scmp.eq.s32.totalorder %s27, 0
    %p361 = por %p359, %p360
    %s362 = ssub.s32 %s21, %s28
    %p363 = scmp.eq.s32.totalorder %s362, 0
    %s365 = sadd.s32 %s364, 1
    %s366 = scalar_select %p363, %s364, %s365
    %p369 = pneg %p363
    %p370 = scmp.eq.s32.totalorder %s21, 11
    %p371 = por %p369, %p370
    %p372 = scmp.ne.s32.totalorder %s364, %s367
    %p373 = scmp.eq.s32.totalorder %s21, 0
    %p374 = por %p372, %p373
    %p375 = scmp.ne.s32.totalorder %s364, %s367
    %p376 = scmp.eq.s32.totalorder %s26, 11
    %p377 = por %p375, %p376
    %p378 = scmp.ne.s32.totalorder %s367, %s368
    %p379 = scmp.eq.s32.totalorder %s26, 0
    %p380 = por %p378, %p379
    %p381 = scmp.ne.s32.totalorder %s367, %s368
    %p382 = scmp.eq.s32.totalorder %s27, 11
    %p383 = por %p381, %p382
    %p385 = scmp.ne.s32.totalorder %s368, %s384
    %p386 = scmp.eq.s32.totalorder %s27, 0
    %p387 = por %p385, %p386
    %s388 = ssub.s32 %s21, %s28
    %p389 = scmp.eq.s32.totalorder %s388, 0
    %s391 = sadd.s32 %s390, 1
    %s392 = scalar_select %p389, %s390, %s391
    %p395 = pneg %p389
    %p396 = scmp.eq.s32.totalorder %s21, 11
    %p397 = por %p395, %p396
    %p398 = scmp.ne.s32.totalorder %s390, %s393
    %p399 = scmp.eq.s32.totalorder %s21, 0
    %p400 = por %p398, %p399
    %p401 = scmp.ne.s32.totalorder %s390, %s393
    %p402 = scmp.eq.s32.totalorder %s26, 11
    %p403 = por %p401, %p402
    %p404 = scmp.ne.s32.totalorder %s393, %s394
    %p405 = scmp.eq.s32.totalorder %s26, 0
    %p406 = por %p404, %p405
    %p407 = scmp.ne.s32.totalorder %s393, %s394
    %p408 = scmp.eq.s32.totalorder %s27, 11
    %p409 = por %p407, %p408
    %p411 = scmp.ne.s32.totalorder %s394, %s410
    %p412 = scmp.eq.s32.totalorder %s27, 0
    %p413 = por %p411, %p412
    %p414 = scmp.gt.s32.totalorder %s21, 2
    %s415 = scalar_select %p414, 1, 0
    %p416 = scmp.gt.s32.totalorder %s21, 5
    %s417 = scalar_select %p416, 1, 0
    %s418 = sadd.s32 %s415, %s417
    %p419 = scmp.gt.s32.totalorder %s21, 8
    %s420 = scalar_select %p419, 1, 0
    %s421 = sadd.s32 %s418, %s420
    %p422 = scmp.gt.s32.totalorder %s21, 11
    %s423 = scalar_select %p422, 1, 0
    %s424 = sadd.s32 %s421, %s423
    %p425 = scmp.gt.s32.totalorder %s28, 2
    %s426 = scalar_select %p425, 1, 0
    %p427 = scmp.gt.s32.totalorder %s28, 5
    %s428 = scalar_select %p427, 1, 0
    %s429 = sadd.s32 %s426, %s428
    %p430 = scmp.gt.s32.totalorder %s28, 8
    %s431 = scalar_select %p430, 1, 0
    %s432 = sadd.s32 %s429, %s431
    %p433 = scmp.gt.s32.totalorder %s28, 11
    %s434 = scalar_select %p433, 1, 0
    %s435 = sadd.s32 %s432, %s434
    %s436 = ssub.s32 %s424, %s435
    %p437 = scmp.eq.s32.totalorder %s436, 0
    %s439 = sadd.s32 %s438, 1
    %s440 = scalar_select %p437, %s438, %s439
    %p443 = pneg %p437
    %p444 = scmp.eq.s32.totalorder %s21, 11
    %p445 = por %p443, %p444
    %p446 = scmp.ne.s32.totalorder %s438, %s441
    %p447 = scmp.eq.s32.totalorder %s21, 0
    %p448 = por %p446, %p447
    %p449 = scmp.ne.s32.totalorder %s438, %s441
    %p450 = scmp.eq.s32.totalorder %s26, 11
    %p451 = por %p449, %p450
    %p452 = scmp.ne.s32.totalorder %s441, %s442
    %p453 = scmp.eq.s32.totalorder %s26, 0
    %p454 = por %p452, %p453
    %p455 = scmp.ne.s32.totalorder %s441, %s442
    %p456 = scmp.eq.s32.totalorder %s27, 11
    %p457 = por %p455, %p456
    %p459 = scmp.ne.s32.totalorder %s442, %s458
    %p460 = scmp.eq.s32.totalorder %s27, 0
    %p461 = por %p459, %p460
    %p462 = scmp.le.s32.totalorder 1, %s21
    %p463 = scmp.lt.s32.totalorder %s21, 13
    %p464 = pnand %p462, %p463
    %p465 = pneg %p464
    // Predicated region
    $region9: #{projected_discriminator_forward.4} parent=5 // pred_check
      _
    $region10: #{projected_discriminator_forward.4} parent=5 // pred_check_branch
      %467 = sbr.rel (%p464) target = $region12
    $region11: #{projected_discriminator_forward.4} parent=5 // pred_region
      %s468 = ssub.s32 %s21, 1
      // Predicated region
      $region13: #{projected_discriminator_forward.4} parent=11 // pred_check
        %p469 = pneg %p42
      $region14: #{projected_discriminator_forward.4} parent=11 // pred_check_branch
        %471 = sbr.rel (%p469) target = $region16
      $region15: #{projected_discriminator_forward.4} parent=11 // pred_region
        _
      $region16: #{projected_discriminator_forward.4} parent=11 // pred_fallthru
        _
    $region12: #{projected_discriminator_forward.4} parent=5 // pred_fallthru
      _
    %p472 = scmp.lt.s32.totalorder %s21, 12
    // Predicated region
    $region17: #{projected_discriminator_forward.4} parent=5 // pred_check
      %p473 = pneg %p472
    $region18: #{projected_discriminator_forward.4} parent=5 // pred_check_branch
      %475 = sbr.rel (%p473) target = $region20
    $region19: #{projected_discriminator_forward.4} parent=5 // pred_region
      // Predicated region
      $region21: #{projected_discriminator_forward.4} parent=19 // pred_check
        %p476 = pneg %p62
      $region22: #{projected_discriminator_forward.4} parent=19 // pred_check_branch
        %478 = sbr.rel (%p476) target = $region24
      $region23: #{projected_discriminator_forward.4} parent=19 // pred_region
        %p479 = scmp.lt.s32.totalorder %s21, 11
        %s480 = scalar_select %p479, %s21, 11
        %s481 = scalar_lea.vmem %s1, %s480
      $region24: #{projected_discriminator_forward.4} parent=19 // pred_fallthru
        _
      // Predicated region
      $region25: #{projected_discriminator_forward.4} parent=19 // pred_check
        %p482 = pneg %p88
      $region26: #{projected_discriminator_forward.4} parent=19 // pred_check_branch
        %484 = sbr.rel (%p482) target = $region28
      $region27: #{projected_discriminator_forward.4} parent=19 // pred_region
        %p485 = scmp.lt.s32.totalorder %s21, 11
        %s486 = scalar_select %p485, %s21, 11
        %s487 = scalar_lea.vmem %s2, %s486
      $region28: #{projected_discriminator_forward.4} parent=19 // pred_fallthru
        _
      // Predicated region
      $region29: #{projected_discriminator_forward.4} parent=19 // pred_check
        %p488 = pneg %p114
      $region30: #{projected_discriminator_forward.4} parent=19 // pred_check_branch
        %490 = sbr.rel (%p488) target = $region32
      $region31: #{projected_discriminator_forward.4} parent=19 // pred_region
        %p491 = scmp.lt.s32.totalorder %s21, 11
        %s492 = scalar_select %p491, %s21, 11
        %s493 = smul.addr %s492, 4
        %s494 = smul.addr %s493, 4
        %s495 = scalar_lea.vmem %s3, %s494
      $region32: #{projected_discriminator_forward.4} parent=19 // pred_fallthru
        _
      // Predicated region
      $region33: #{projected_discriminator_forward.4} parent=19 // pred_check
        %p496 = pneg %p140
      $region34: #{projected_discriminator_forward.4} parent=19 // pred_check_branch
        %498 = sbr.rel (%p496) target = $region36
      $region35: #{projected_discriminator_forward.4} parent=19 // pred_region
        %p499 = scmp.lt.s32.totalorder %s21, 11
        %s500 = scalar_select %p499, %s21, 11
        %s501 = scalar_lea.vmem %s4, %s500
      $region36: #{projected_discriminator_forward.4} parent=19 // pred_fallthru
        _
      // Predicated region
      $region37: #{projected_discriminator_forward.4} parent=19 // pred_check
        %p502 = pneg %p166
      $region38: #{projected_discriminator_forward.4} parent=19 // pred_check_branch
        %504 = sbr.rel (%p502) target = $region40
      $region39: #{projected_discriminator_forward.4} parent=19 // pred_region
        %p505 = scmp.lt.s32.totalorder %s21, 11
        %s506 = scalar_select %p505, %s21, 11
        %s507 = smul.addr %s506, 4
        %s508 = smul.addr %s507, 4
        %s509 = scalar_lea.vmem %s5, %s508
      $region40: #{projected_discriminator_forward.4} parent=19 // pred_fallthru
        _
      // Predicated region
      $region41: #{projected_discriminator_forward.4} parent=19 // pred_check
        %p510 = pneg %p192
      $region42: #{projected_discriminator_forward.4} parent=19 // pred_check_branch
        %512 = sbr.rel (%p510) target = $region44
      $region43: #{projected_discriminator_forward.4} parent=19 // pred_region
        %p513 = scmp.lt.s32.totalorder %s21, 11
        %s514 = scalar_select %p513, %s21, 11
        %s515 = scalar_lea.vmem %s6, %s514
      $region44: #{projected_discriminator_forward.4} parent=19 // pred_fallthru
        _
      // Predicated region
      $region45: #{projected_discriminator_forward.4} parent=19 // pred_check
        %p516 = pneg %p218
      $region46: #{projected_discriminator_forward.4} parent=19 // pred_check_branch
        %518 = sbr.rel (%p516) target = $region48
      $region47: #{projected_discriminator_forward.4} parent=19 // pred_region
        %p519 = scmp.lt.s32.totalorder %s21, 11
        %s520 = scalar_select %p519, %s21, 11
        %s521 = scalar_lea.vmem %s7, %s520
      $region48: #{projected_discriminator_forward.4} parent=19 // pred_fallthru
        _
      // Predicated region
      $region49: #{projected_discriminator_forward.4} parent=19 // pred_check
        %p522 = pneg %p244
      $region50: #{projected_discriminator_forward.4} parent=19 // pred_check_branch
        %524 = sbr.rel (%p522) target = $region52
      $region51: #{projected_discriminator_forward.4} parent=19 // pred_region
        %p525 = scmp.lt.s32.totalorder %s21, 11
        %s526 = scalar_select %p525, %s21, 11
        %s527 = scalar_lea.vmem %s8, %s526
      $region52: #{projected_discriminator_forward.4} parent=19 // pred_fallthru
        _
      // Predicated region
      $region53: #{projected_discriminator_forward.4} parent=19 // pred_check
        %p528 = pneg %p270
      $region54: #{projected_discriminator_forward.4} parent=19 // pred_check_branch
        %530 = sbr.rel (%p528) target = $region56
      $region55: #{projected_discriminator_forward.4} parent=19 // pred_region
        %p531 = scmp.lt.s32.totalorder %s21, 11
        %s532 = scalar_select %p531, %s21, 11
        %s533 = scalar_lea.vmem %s9, %s532
      $region56: #{projected_discriminator_forward.4} parent=19 // pred_fallthru
        _
      // Predicated region
      $region57: #{projected_discriminator_forward.4} parent=19 // pred_check
        %p534 = pneg %p296
      $region58: #{projected_discriminator_forward.4} parent=19 // pred_check_branch
        %536 = sbr.rel (%p534) target = $region60
      $region59: #{projected_discriminator_forward.4} parent=19 // pred_region
        %p537 = scmp.lt.s32.totalorder %s21, 11
        %s538 = scalar_select %p537, %s21, 11
        %s539 = smul.addr %s538, 4
        %s540 = smul.addr %s539, 4
        %s541 = scalar_lea.vmem %s10, %s540
      $region60: #{projected_discriminator_forward.4} parent=19 // pred_fallthru
        _
      // Predicated region
      $region61: #{projected_discriminator_forward.4} parent=19 // pred_check
        %p542 = pneg %p322
      $region62: #{projected_discriminator_forward.4} parent=19 // pred_check_branch
        %544 = sbr.rel (%p542) target = $region64
      $region63: #{projected_discriminator_forward.4} parent=19 // pred_region
        %p545 = scmp.lt.s32.totalorder %s21, 11
        %s546 = scalar_select %p545, %s21, 11
        %s547 = scalar_lea.vmem %s11, %s546
      $region64: #{projected_discriminator_forward.4} parent=19 // pred_fallthru
        _
      // Predicated region
      $region65: #{projected_discriminator_forward.4} parent=19 // pred_check
        %p548 = pneg %p348
      $region66: #{projected_discriminator_forward.4} parent=19 // pred_check_branch
        %550 = sbr.rel (%p548) target = $region68
      $region67: #{projected_discriminator_forward.4} parent=19 // pred_region
        %p551 = scmp.lt.s32.totalorder %s21, 11
        %s552 = scalar_select %p551, %s21, 11
        %s553 = smul.addr %s552, 16
        %s554 = smul.addr %s553, 4
        %s555 = scalar_lea.vmem %s12, %s554
      $region68: #{projected_discriminator_forward.4} parent=19 // pred_fallthru
        _
      // Predicated region
      $region69: #{projected_discriminator_forward.4} parent=19 // pred_check
        %p556 = pneg %p374
      $region70: #{projected_discriminator_forward.4} parent=19 // pred_check_branch
        %558 = sbr.rel (%p556) target = $region72
      $region71: #{projected_discriminator_forward.4} parent=19 // pred_region
        %p559 = scmp.lt.s32.totalorder %s21, 11
        %s560 = scalar_select %p559, %s21, 11
        %s561 = scalar_lea.vmem %s13, %s560
      $region72: #{projected_discriminator_forward.4} parent=19 // pred_fallthru
        _
      // Predicated region
      $region73: #{projected_discriminator_forward.4} parent=19 // pred_check
        %p562 = pneg %p400
      $region74: #{projected_discriminator_forward.4} parent=19 // pred_check_branch
        %564 = sbr.rel (%p562) target = $region76
      $region75: #{projected_discriminator_forward.4} parent=19 // pred_region
        %p565 = scmp.lt.s32.totalorder %s21, 11
        %s566 = scalar_select %p565, %s21, 11
        %s567 = scalar_lea.vmem %s14, %s566
      $region76: #{projected_discriminator_forward.4} parent=19 // pred_fallthru
        _
    $region20: #{projected_discriminator_forward.4} parent=5 // pred_fallthru
      _
    %p568 = scmp.le.s32.totalorder 1, %s21
    %p569 = scmp.lt.s32.totalorder %s21, 13
    %p570 = pnand %p568, %p569
    %p571 = pneg %p570
    // Predicated region
    $region77: #{projected_discriminator_forward.4} parent=5 // pred_check
      _
    $region78: #{projected_discriminator_forward.4} parent=5 // pred_check_branch
      %573 = sbr.rel (%p570) target = $region80
    $region79: #{projected_discriminator_forward.4} parent=5 // pred_region
      %s574 = ssub.s32 %s21, 1
      %p575 = pneg %p42
      %p576 = pneg %p39
      %p577 = scmp.lt.s32.totalorder %s26, 11
      %s578 = scalar_select %p577, %s26, 11
      %s579 = scalar_lea.vmem %s1, %s578
      %p580 = pneg %p68
      %p581 = pneg %p65
      %p582 = scmp.lt.s32.totalorder %s26, 11
      %s583 = scalar_select %p582, %s26, 11
      %s584 = scalar_lea.vmem %s2, %s583
      %p585 = pneg %p94
      %p586 = pneg %p91
      %p587 = scmp.lt.s32.totalorder %s26, 11
      %s588 = scalar_select %p587, %s26, 11
      %s589 = smul.addr %s588, 4
      %s590 = smul.addr %s589, 4
      %s591 = scalar_lea.vmem %s3, %s590
      %p592 = pneg %p120
      %p593 = pneg %p117
      %p594 = scmp.lt.s32.totalorder %s26, 11
      %s595 = scalar_select %p594, %s26, 11
      %s596 = scalar_lea.vmem %s4, %s595
      %p597 = pneg %p146
      %p598 = pneg %p143
      %p599 = scmp.lt.s32.totalorder %s26, 11
      %s600 = scalar_select %p599, %s26, 11
      %s601 = smul.addr %s600, 4
      %s602 = smul.addr %s601, 4
      %s603 = scalar_lea.vmem %s5, %s602
      %p604 = pneg %p172
      %p605 = pneg %p169
      %p606 = scmp.lt.s32.totalorder %s26, 11
      %s607 = scalar_select %p606, %s26, 11
      %s608 = scalar_lea.vmem %s6, %s607
      %p609 = pneg %p198
      %p610 = pneg %p195
      %p611 = scmp.lt.s32.totalorder %s26, 11
      %s612 = scalar_select %p611, %s26, 11
      %s613 = scalar_lea.vmem %s7, %s612
      %p614 = pneg %p224
      %p615 = pneg %p221
      %p616 = scmp.lt.s32.totalorder %s26, 11
      %s617 = scalar_select %p616, %s26, 11
      %s618 = scalar_lea.vmem %s8, %s617
      %p619 = pneg %p250
      %p620 = pneg %p247
      %p621 = scmp.lt.s32.totalorder %s26, 11
      %s622 = scalar_select %p621, %s26, 11
      %s623 = scalar_lea.vmem %s9, %s622
      %p624 = pneg %p276
      %p625 = pneg %p273
      %p626 = scmp.lt.s32.totalorder %s26, 11
      %s627 = scalar_select %p626, %s26, 11
      %s628 = smul.addr %s627, 4
      %s629 = smul.addr %s628, 4
      %s630 = scalar_lea.vmem %s10, %s629
      %p631 = pneg %p302
      %p632 = pneg %p299
      %p633 = scmp.lt.s32.totalorder %s26, 11
      %s634 = scalar_select %p633, %s26, 11
      %s635 = scalar_lea.vmem %s11, %s634
      %p636 = pneg %p328
      %p637 = pneg %p325
      %p638 = scmp.lt.s32.totalorder %s26, 11
      %s639 = scalar_select %p638, %s26, 11
      %s640 = smul.addr %s639, 16
      %s641 = smul.addr %s640, 4
      %s642 = scalar_lea.vmem %s12, %s641
      %p643 = pneg %p354
      %p644 = pneg %p351
      %p645 = scmp.lt.s32.totalorder %s26, 11
      %s646 = scalar_select %p645, %s26, 11
      %s647 = scalar_lea.vmem %s13, %s646
      %p648 = pneg %p380
      %p649 = pneg %p377
      %p650 = scmp.lt.s32.totalorder %s26, 11
      %s651 = scalar_select %p650, %s26, 11
      %s652 = scalar_lea.vmem %s14, %s651
      %p653 = pneg %p406
      %p654 = pneg %p403
      %p655 = pneg %p454
      %p656 = pneg %p451
      %p657 = scmp.gt.s32.totalorder %s26, 2
      %s658 = scalar_select %p657, 1, 0
      %p659 = scmp.gt.s32.totalorder %s26, 5
      %s660 = scalar_select %p659, 1, 0
      %s661 = sadd.s32 %s658, %s660
      %p662 = scmp.gt.s32.totalorder %s26, 8
      %s663 = scalar_select %p662, 1, 0
      %s664 = sadd.s32 %s661, %s663
      %p665 = scmp.gt.s32.totalorder %s26, 11
      %s666 = scalar_select %p665, 1, 0
      %s667 = sadd.s32 %s664, %s666
      %p668 = scmp.lt.s32.totalorder %s667, 3
      %s669 = scalar_select %p668, %s667, 3
      %s670 = smul.addr %s669, 6
      %s671 = smul.addr %s670, 4
      %s672 = scalar_lea.vmem %s15, %s671
      %p673 = scmp.lt.s32.totalorder %s26, 11
      %s674 = scalar_select %p673, %s26, 11
      %s675 = scalar_lea.vmem %s1, %s674
      %p676 = scmp.lt.s32.totalorder %s26, 11
      %s677 = scalar_select %p676, %s26, 11
      %s678 = scalar_lea.vmem %s2, %s677
      %p679 = scmp.lt.s32.totalorder %s26, 11
      %s680 = scalar_select %p679, %s26, 11
      %s681 = smul.addr %s680, 4
      %s682 = smul.addr %s681, 4
      %s683 = scalar_lea.vmem %s3, %s682
      %p684 = scmp.lt.s32.totalorder %s26, 11
      %s685 = scalar_select %p684, %s26, 11
      %s686 = scalar_lea.vmem %s4, %s685
      %p687 = scmp.lt.s32.totalorder %s26, 11
      %s688 = scalar_select %p687, %s26, 11
      %s689 = smul.addr %s688, 4
      %s690 = smul.addr %s689, 4
      %s691 = scalar_lea.vmem %s5, %s690
      %p692 = scmp.lt.s32.totalorder %s26, 11
      %s693 = scalar_select %p692, %s26, 11
      %s694 = scalar_lea.vmem %s6, %s693
      %p695 = scmp.lt.s32.totalorder %s26, 11
      %s696 = scalar_select %p695, %s26, 11
      %s697 = scalar_lea.vmem %s7, %s696
      %p698 = scmp.lt.s32.totalorder %s26, 11
      %s699 = scalar_select %p698, %s26, 11
      %s700 = scalar_lea.vmem %s8, %s699
      %p701 = scmp.lt.s32.totalorder %s26, 11
      %s702 = scalar_select %p701, %s26, 11
      %s703 = scalar_lea.vmem %s9, %s702
      %p704 = scmp.lt.s32.totalorder %s26, 11
      %s705 = scalar_select %p704, %s26, 11
      %s706 = smul.addr %s705, 4
      %s707 = smul.addr %s706, 4
      %s708 = scalar_lea.vmem %s10, %s707
      %p709 = scmp.lt.s32.totalorder %s26, 11
      %s710 = scalar_select %p709, %s26, 11
      %s711 = scalar_lea.vmem %s11, %s710
      %p712 = scmp.lt.s32.totalorder %s26, 11
      %s713 = scalar_select %p712, %s26, 11
      %s714 = smul.addr %s713, 16
      %s715 = smul.addr %s714, 4
      %s716 = scalar_lea.vmem %s12, %s715
      %p717 = scmp.lt.s32.totalorder %s26, 11
      %s718 = scalar_select %p717, %s26, 11
      %s719 = scalar_lea.vmem %s13, %s718
      %p720 = scmp.lt.s32.totalorder %s26, 11
      %s721 = scalar_select %p720, %s26, 11
      %s722 = scalar_lea.vmem %s14, %s721
      %p723 = scmp.gt.s32.totalorder %s26, 2
      %s724 = scalar_select %p723, 1, 0
      %p725 = scmp.gt.s32.totalorder %s26, 5
      %s726 = scalar_select %p725, 1, 0
      %s727 = sadd.s32 %s724, %s726
      %p728 = scmp.gt.s32.totalorder %s26, 8
      %s729 = scalar_select %p728, 1, 0
      %s730 = sadd.s32 %s727, %s729
      %p731 = scmp.gt.s32.totalorder %s26, 11
      %s732 = scalar_select %p731, 1, 0
      %s733 = sadd.s32 %s730, %s732
      %p734 = scmp.lt.s32.totalorder %s733, 3
      %s735 = scalar_select %p734, %s733, 3
      %s736 = smul.addr %s735, 6
      %s737 = smul.addr %s736, 4
      %s738 = scalar_lea.vmem %s15, %s737
      %p739 = scmp.gt.s32.totalorder %s26, 2
      %s740 = scalar_select %p739, 1, 0
      %p741 = scmp.gt.s32.totalorder %s26, 5
      %s742 = scalar_select %p741, 1, 0
      %s743 = sadd.s32 %s740, %s742
      %p744 = scmp.gt.s32.totalorder %s26, 8
      %s745 = scalar_select %p744, 1, 0
      %s746 = sadd.s32 %s743, %s745
      %p747 = scmp.gt.s32.totalorder %s26, 11
      %s748 = scalar_select %p747, 1, 0
      %s749 = sadd.s32 %s746, %s748
      %p751 = scmp.eq.s32.totalorder %s26, 0
      // Predicated region
      $region81: #{projected_discriminator_forward.4} parent=79 // pred_check
        %p752 = pneg %p751
      $region82: #{projected_discriminator_forward.4} parent=79 // pred_check_branch
        %754 = sbr.rel (%p752) target = $region84
      $region83: #{projected_discriminator_forward.4} parent=79 // pred_region
        %v755 = vld [vmem:[%s0] sm:$0xff]
        %v756 = vld [vmem:[%s0 + $0x8] sm:$0xff]
        %v757 = vld [vmem:[%s0 + $0x10] sm:$0xff]
        %v758 = vld [vmem:[%s0 + $0x18] sm:$0xff]
        %v759 = vld [vmem:[%s0 + $0x20] sm:$0xff]
        %v760 = vld [vmem:[%s0 + $0x28] sm:$0x3]
        %vm761 = vcmask 261120
        %762 = vst.msk [vmem:[#allocation2] sm:$0xff] %vm761, %v755
        %763 = vst.msk [vmem:[#allocation2 + $0x8] sm:$0xff] %vm761, %v756
        %764 = vst.msk [vmem:[#allocation2 + $0x10] sm:$0xff] %vm761, %v757
        %765 = vst.msk [vmem:[#allocation2 + $0x18] sm:$0xff] %vm761, %v758
        %766 = vst.msk [vmem:[#allocation2 + $0x20] sm:$0xff] %vm761, %v759
        %vm767 = vcmask 254976
        %768 = vst.msk [vmem:[#allocation2 + $0x28] sm:$0x3] %vm767, %v760
      $region84: #{projected_discriminator_forward.4} parent=79 // pred_fallthru
        _
      %v769 = vld [vmem:[#allocation2] sm:$0xff]
      %v770 = vld [vmem:[#allocation2 + $0x8] sm:$0xff]
      %v771 = vld [vmem:[#allocation2 + $0x10] sm:$0xff]
      %v772 = vld [vmem:[#allocation2 + $0x18] sm:$0xff]
      %v773 = vld [vmem:[#allocation2 + $0x20] sm:$0xff]
      %v774 = vld [vmem:[#allocation2 + $0x28] sm:$0x3]
      %v775 = vld [vmem:[%s675] sm:$0x1]
      %v776 = vld [vmem:[%s678] sm:$0x1]
      %vm777 = vcmask 261120
      %v778 = vsel %vm777, %v769, 0.0
      %779 = vadd.xlane.f32.xlu0 %v778
      %v780 = vpop.xlane.xlu0 %779
      %v781 = vsel %vm777, %v770, 0.0
      %782 = vadd.xlane.f32.xlu0 %v781
      %v783 = vpop.xlane.xlu0 %782
      %v784 = vsel %vm777, %v771, 0.0
      %785 = vadd.xlane.f32.xlu0 %v784
      %v786 = vpop.xlane.xlu0 %785
      %v787 = vsel %vm777, %v772, 0.0
      %788 = vadd.xlane.f32.xlu0 %v787
      %v789 = vpop.xlane.xlu0 %788
      %v790 = vsel %vm777, %v773, 0.0
      %791 = vadd.xlane.f32.xlu0 %v790
      %v792 = vpop.xlane.xlu0 %791
      %vm793 = vcmask 254976
      %v794 = vsel %vm793, %v774, 0.0
      %795 = vadd.xlane.f32.xlu0 %v794
      %v796 = vpop.xlane.xlu0 %795
      %v797 = vrcp.pop 32.0
      %v798 = vmul.f32 %v780, %v797
      %v799 = vmul.f32 %v783, %v797
      %v800 = vmul.f32 %v786, %v797
      %v801 = vmul.f32 %v789, %v797
      %v802 = vmul.f32 %v792, %v797
      %v803 = vmul.f32 %v796, %v797
      %v804 = vsub.f32 %v769, %v798
      %v805 = vsub.f32 %v770, %v799
      %v806 = vsub.f32 %v771, %v800
      %v807 = vsub.f32 %v772, %v801
      %v808 = vsub.f32 %v773, %v802
      %v809 = vsub.f32 %v774, %v803
      %v810 = vmul.f32 %v804, %v804
      %v811 = vmul.f32 %v805, %v805
      %v812 = vmul.f32 %v806, %v806
      %v813 = vmul.f32 %v807, %v807
      %v814 = vmul.f32 %v808, %v808
      %v815 = vmul.f32 %v809, %v809
      %v816 = vsel %vm777, %v810, 0.0
      %817 = vadd.xlane.f32.xlu0 %v816
      %v818 = vpop.xlane.xlu0 %817
      %v819 = vsel %vm777, %v811, 0.0
      %820 = vadd.xlane.f32.xlu0 %v819
      %v821 = vpop.xlane.xlu0 %820
      %v822 = vsel %vm777, %v812, 0.0
      %823 = vadd.xlane.f32.xlu0 %v822
      %v824 = vpop.xlane.xlu0 %823
      %v825 = vsel %vm777, %v813, 0.0
      %826 = vadd.xlane.f32.xlu0 %v825
      %v827 = vpop.xlane.xlu0 %826
      %v828 = vsel %vm777, %v814, 0.0
      %829 = vadd.xlane.f32.xlu0 %v828
      %v830 = vpop.xlane.xlu0 %829
      %v831 = vsel %vm793, %v815, 0.0
      %832 = vadd.xlane.f32.xlu0 %v831
      %v833 = vpop.xlane.xlu0 %832
      %v834 = vmul.f32 %v818, %v797
      %v835 = vmul.f32 %v821, %v797
      %v836 = vmul.f32 %v824, %v797
      %v837 = vmul.f32 %v827, %v797
      %v838 = vmul.f32 %v830, %v797
      %v839 = vmul.f32 %v833, %v797
      %v840 = vadd.f32 %v834, 1e-06
      %v841 = vadd.f32 %v835, 1e-06
      %v842 = vadd.f32 %v836, 1e-06
      %v843 = vadd.f32 %v837, 1e-06
      %v844 = vadd.f32 %v838, 1e-06
      %v845 = vadd.f32 %v839, 1e-06
      %v846 = vrsqrt.pop %v840
      %v847 = vrsqrt.pop %v841
      %v848 = vrsqrt.pop %v842
      %v849 = vrsqrt.pop %v843
      %v850 = vrsqrt.pop %v844
      %v851 = vrsqrt.pop %v845
      %v852 = vmul.f32 %v804, %v846
      %v853 = vmul.f32 %v805, %v847
      %v854 = vmul.f32 %v806, %v848
      %v855 = vmul.f32 %v807, %v849
      %v856 = vmul.f32 %v808, %v850
      %v857 = vmul.f32 %v809, %v851
      %v859 = vlaneseq
      %v860 = vshrl.u32 %v859, 7
      %v861 = vsub.s32 0, %v860
      %v862 = vrot.slane %v775, %v861
      %v864 = vmul.f32 %v852, %v862
      %v865 = vmul.f32 %v853, %v862
      %v866 = vmul.f32 %v854, %v862
      %v867 = vmul.f32 %v855, %v862
      %v868 = vmul.f32 %v856, %v862
      %v869 = vmul.f32 %v857, %v862
      %v871 = vlaneseq
      %v872 = vshrl.u32 %v871, 7
      %v873 = vsub.s32 0, %v872
      %v874 = vrot.slane %v776, %v873
      %v876 = vadd.f32 %v864, %v874
      %v877 = vadd.f32 %v865, %v874
      %v878 = vadd.f32 %v866, %v874
      %v879 = vadd.f32 %v867, %v874
      %v880 = vadd.f32 %v868, %v874
      %v881 = vadd.f32 %v869, %v874
      %v882 = vpack.c.bf16 %v877, %v876
      %v883 = vpack.c.bf16 %v879, %v878
      %v884 = vpack.c.bf16 %v881, %v880
      %v885 = vld [vmem:[%s683] sm:$0xf]
      %v886 = vld [vmem:[%s683 + $0x4] sm:$0xf]
      %v887 = vld [vmem:[%s683 + $0x8] sm:$0xf]
      %v888 = vld [vmem:[%s683 + $0xc] sm:$0xf]
      %v889 = vld [vmem:[%s686] sm:$0x1]
      %v891 = vlaneseq
      %v892 = vshrl.u32 %v891, 7
      %v893 = vsub.s32 0, %v892
      %v894 = vrot.slane %v889, %v893
      %v900 = vunpack.c.l.b16 %v885
      %v901 = vunpack.c.l.b16 %v886
      %v902 = vunpack.c.l.b16 %v887
      %v903 = vunpack.c.l.b16 %v888
      %v904 = vpack.c.b16 %v901, %v900
      %v905 = vpack.c.b16 %v903, %v902
      %v909 = vsel %vm777, %v882, 0
      %v912 = vsel %vm777, %v883, 0
      %v915 = vsel %vm777, %v884, 0
      %917 = vmatprep.subr.bf16.mxu0 0
      %918 = vmatpush1.bf16.msra.mxu0 %v904
      %919 = vmatprep.subr.bf16.mxu0 0
      %920 = vmatpush1.bf16.msra.mxu0 %v905
      %921 = vmatprep.subr.bf16.mxu0 0
      %922 = vmatpush1.bf16.msra.mxu0 0
      %923 = vmatprep.subr.bf16.mxu0 0
      %924 = vmatpush1.bf16.msra.mxu0 0
      %925 = vmatprep.subr.bf16.mxu0 0
      %926 = vmatpush1.bf16.msra.mxu0 0
      %927 = vmatprep.subr.bf16.mxu0 0
      %928 = vmatpush1.bf16.msra.mxu0 0
      %929 = vmatprep.subr.bf16.mxu0 0
      %930 = vmatpush1.bf16.msra.mxu0 0
      %931 = vmatprep.subr.bf16.mxu0 0
      %932 = vmatpush1.bf16.msra.mxu0 0
      %933 = vmatprep.subr.bf16.mxu0 0
      %934 = vmatpush1.bf16.msra.mxu0 0
      %935 = vmatprep.subr.bf16.mxu0 0
      %936 = vmatpush1.bf16.msra.mxu0 0
      %937 = vmatprep.subr.bf16.mxu0 0
      %938 = vmatpush1.bf16.msra.mxu0 0
      %939 = vmatprep.subr.bf16.mxu0 0
      %940 = vmatpush1.bf16.msra.mxu0 0
      %941 = vmatprep.subr.bf16.mxu0 0
      %942 = vmatpush1.bf16.msra.mxu0 0
      %943 = vmatprep.subr.bf16.mxu0 0
      %944 = vmatpush1.bf16.msra.mxu0 0
      %945 = vmatprep.subr.bf16.mxu0 0
      %946 = vmatpush1.bf16.msra.mxu0 0
      %947 = vmatprep.subr.bf16.mxu0 0
      %948 = vmatpush1.bf16.msra.mxu0 0
      %949 = vmatprep.mubr.bf16.mxu0 0
      %950 = vmatmul.mubr.bf16.gmra.mrb[0].mxu0 %v909
      %v951 = vpop.f32.mrb[0].mxu0
      %v952 = vadd.f32 %v894, %v951
      %v953 = vpop.f32.mrb[0].mxu0
      %v954 = vpop.f32.mrb[0].mxu0
      %v955 = vadd.f32 %v894, %v954
      %v956 = vpop.f32.mrb[0].mxu0
      %957 = vmatprep.mubr.bf16.mxu0 0
      %958 = vmatmul.mubr.bf16.gmra.mrb[0].mxu0 %v912
      %v959 = vpop.f32.mrb[0].mxu0
      %v960 = vadd.f32 %v894, %v959
      %v961 = vpop.f32.mrb[0].mxu0
      %v962 = vpop.f32.mrb[0].mxu0
      %v963 = vadd.f32 %v894, %v962
      %v964 = vpop.f32.mrb[0].mxu0
      %965 = vmatprep.mubr.bf16.mxu0 0
      %966 = vmatmul.mubr.bf16.gmra.mrb[0].mxu0 %v915
      %v967 = vpop.f32.mrb[0].mxu0
      %v968 = vadd.f32 %v894, %v967
      %v969 = vpop.f32.mrb[0].mxu0
      %v970 = vpop.f32.mrb[0].mxu0
      %v971 = vadd.f32 %v894, %v970
      %v972 = vpop.f32.mrb[0].mxu0
      %973 = vdwg.mxu0
      %v974 = vmul.f32 %v952, 0.25
      %v975 = vmul.f32 %v955, 0.25
      %v976 = vmul.f32 %v960, 0.25
      %980 = vrot.lane.b32.xlu0 %v952, 96
      %v981 = vpop.permute.xlu0 %980
      %982 = vrot.lane.b32.xlu0 %v955, 96
      %v983 = vpop.permute.xlu0 %982
      %984 = vrot.lane.b32.xlu0 %v960, 96
      %v985 = vpop.permute.xlu0 %984
      %vm986 = vcmask 130048
      %v988 = vsel %vm986, %v974, 0
      %v991 = vsel %vm986, %v975, 0
      %v994 = vsel %vm986, %v976, 0
      %v996 = vsel %vm986, %v981, 0
      %v998 = vsel %vm986, %v983, 0
      %v1000 = vsel %vm986, %v985, 0
      %1002 = vmatprep.subr.mxu0 0.0
      %1003 = vmatpush1.xpose.msra.mxu0 %v996
      %1004 = vmatprep.subr.mxu0 0.0
      %1005 = vmatpush1.xpose.msra.mxu0 %v998
      %1006 = vmatprep.subr.mxu0 0.0
      %1007 = vmatpush1.xpose.msra.mxu0 %v1000
      %1008 = vmatprep.subr.mxu0 0.0
      %1009 = vmatpush1.xpose.msra.mxu0 0.0
      %1010 = vmatprep.subr.mxu0 0.0
      %1011 = vmatpush1.xpose.msra.mxu0 0.0
      %1012 = vmatprep.subr.mxu0 0.0
      %1013 = vmatpush1.xpose.msra.mxu0 0.0
      %1014 = vmatprep.subr.mxu0 0.0
      %1015 = vmatpush1.xpose.msra.mxu0 0.0
      %1016 = vmatprep.subr.mxu0 0.0
      %1017 = vmatpush1.xpose.msra.mxu0 0.0
      %1018 = vmatprep.subr.mxu0 0.0
      %1019 = vmatpush1.xpose.msra.mxu0 0.0
      %1020 = vmatprep.subr.mxu0 0.0
      %1021 = vmatpush1.xpose.msra.mxu0 0.0
      %1022 = vmatprep.subr.mxu0 0.0
      %1023 = vmatpush1.xpose.msra.mxu0 0.0
      %1024 = vmatprep.subr.mxu0 0.0
      %1025 = vmatpush1.xpose.msra.mxu0 0.0
      %1026 = vmatprep.subr.mxu0 0.0
      %1027 = vmatpush1.xpose.msra.mxu0 0.0
      %1028 = vmatprep.subr.mxu0 0.0
      %1029 = vmatpush1.xpose.msra.mxu0 0.0
      %1030 = vmatprep.subr.mxu0 0.0
      %1031 = vmatpush1.xpose.msra.mxu0 0.0
      %1032 = vmatprep.subr.mxu0 0.0
      %1033 = vmatpush1.xpose.msra.mxu0 0.0
      %1034 = vmatprep.subr.mxu0 0.0
      %1035 = vmatpush1.xpose.msra.mxu0 0.0
      %1036 = vmatprep.subr.mxu0 0.0
      %1037 = vmatpush1.xpose.msra.mxu0 0.0
      %1038 = vmatprep.subr.mxu0 0.0
      %1039 = vmatpush1.xpose.msra.mxu0 0.0
      %1040 = vmatprep.subr.mxu0 0.0
      %1041 = vmatpush1.xpose.msra.mxu0 0.0
      %1042 = vmatprep.subr.mxu0 0.0
      %1043 = vmatpush1.xpose.msra.mxu0 0.0
      %1044 = vmatprep.subr.mxu0 0.0
      %1045 = vmatpush1.xpose.msra.mxu0 0.0
      %1046 = vmatprep.subr.mxu0 0.0
      %1047 = vmatpush1.xpose.msra.mxu0 0.0
      %1048 = vmatprep.subr.mxu0 0.0
      %1049 = vmatpush1.xpose.msra.mxu0 0.0
      %1050 = vmatprep.subr.mxu0 0.0
      %1051 = vmatpush1.xpose.msra.mxu0 0.0
      %1052 = vmatprep.subr.mxu0 0.0
      %1053 = vmatpush1.xpose.msra.mxu0 0.0
      %1054 = vmatprep.subr.mxu0 0.0
      %1055 = vmatpush1.xpose.msra.mxu0 0.0
      %1056 = vmatprep.subr.mxu0 0.0
      %1057 = vmatpush1.xpose.msra.mxu0 0.0
      %1058 = vmatprep.subr.mxu0 0.0
      %1059 = vmatpush1.xpose.msra.mxu0 0.0
      %1060 = vmatprep.subr.mxu0 0.0
      %1061 = vmatpush1.xpose.msra.mxu0 0.0
      %1062 = vmatprep.subr.mxu0 0.0
      %1063 = vmatpush1.xpose.msra.mxu0 0.0
      %1064 = vmatprep.subr.mxu0 0.0
      %1065 = vmatpush1.xpose.msra.mxu0 0.0
      %1066 = vmatprep.mubr.f32.mxu0 0.0
      %1067 = vmatmul.mubr.f32.gmra.mrb[0].mxu0 %v988
      %v1068 = vpop.f32.mrb[0].mxu0
      %v1069 = vadd.f32 0.0, %v1068
      %v1070 = vpop.f32.mrb[0].mxu0
      %1071 = vmatprep.mubr.f32.mxu0 0.0
      %1072 = vmatmul.mubr.f32.gmra.mrb[0].mxu0 %v991
      %v1073 = vpop.f32.mrb[0].mxu0
      %v1074 = vadd.f32 0.0, %v1073
      %v1075 = vpop.f32.mrb[0].mxu0
      %1076 = vmatprep.mubr.f32.mxu0 0.0
      %1077 = vmatmul.mubr.f32.gmra.mrb[0].mxu0 %v994
      %v1078 = vpop.f32.mrb[0].mxu0
      %v1079 = vadd.f32 0.0, %v1078
      %v1080 = vpop.f32.mrb[0].mxu0
      %1081 = vdwg.mxu0
      %vm1082 = vcmask 171008
      %v1083 = vsel %vm1082, %v1069, -inf
      %1084 = vmax.xlane.f32.xlu0 %v1083
      %v1085 = vpop.xlane.xlu0 %1084
      %v1086 = vsel %vm1082, %v1074, -inf
      %1087 = vmax.xlane.f32.xlu0 %v1086
      %v1088 = vpop.xlane.xlu0 %1087
      %vm1089 = vcmask 167936
      %v1090 = vsel %vm1089, %v1079, -inf
      %1091 = vmax.xlane.f32.xlu0 %v1090
      %v1092 = vpop.xlane.xlu0 %1091
      %v1093 = vsub.f32 %v1069, %v1085
      %v1094 = vsub.f32 %v1074, %v1088
      %v1095 = vsub.f32 %v1079, %v1092
      %v1096 = vmul.f32 %v1093, 1.442695
      %v1097 = vpow.pop %v1096
      %v1098 = vmul.f32 %v1094, 1.442695
      %v1099 = vpow.pop %v1098
      %v1100 = vmul.f32 %v1095, 1.442695
      %v1101 = vpow.pop %v1100
      %v1102 = vsel %vm1082, %v1097, 0.0
      %1103 = vadd.xlane.f32.xlu0 %v1102
      %v1104 = vpop.xlane.xlu0 %1103
      %v1105 = vsel %vm1082, %v1099, 0.0
      %1106 = vadd.xlane.f32.xlu0 %v1105
      %v1107 = vpop.xlane.xlu0 %1106
      %v1108 = vsel %vm1089, %v1101, 0.0
      %1109 = vadd.xlane.f32.xlu0 %v1108
      %v1110 = vpop.xlane.xlu0 %1109
      %v1111 = vrcp.pop %v1104
      %v1112 = vmul.f32 %v1097, %v1111
      %v1113 = vrcp.pop %v1107
      %v1114 = vmul.f32 %v1099, %v1113
      %v1115 = vrcp.pop %v1110
      %v1116 = vmul.f32 %v1101, %v1115
      %1117 = vrot.lane.b32.xlu0 %v952, 64
      %v1118 = vpop.permute.xlu0 %1117
      %1119 = vrot.lane.b32.xlu0 %v955, 64
      %v1120 = vpop.permute.xlu0 %1119
      %1121 = vrot.lane.b32.xlu0 %v960, 64
      %v1122 = vpop.permute.xlu0 %1121
      %v1126 = vsel %vm1082, %v1112, 0
      %v1129 = vsel %vm1082, %v1114, 0
      %v1132 = vsel %vm1082, %v1116, 0
      %vm1134 = vcmask 1044480
      %v1135 = vsel %vm1134, %v1122, 0
      %1137 = vmatprep.subr.mxu0 0.0
      %1138 = vmatpush1.msra.mxu0 %v1118
      %1139 = vmatprep.subr.mxu0 0.0
      %1140 = vmatpush1.msra.mxu0 %v1120
      %1141 = vmatprep.subr.mxu0 0.0
      %1142 = vmatpush1.msra.mxu0 %v1135
      %1143 = vmatprep.subr.mxu0 0.0
      %1144 = vmatpush1.msra.mxu0 0.0
      %1145 = vmatprep.subr.mxu0 0.0
      %1146 = vmatpush1.msra.mxu0 0.0
      %1147 = vmatprep.subr.mxu0 0.0
      %1148 = vmatpush1.msra.mxu0 0.0
      %1149 = vmatprep.subr.mxu0 0.0
      %1150 = vmatpush1.msra.mxu0 0.0
      %1151 = vmatprep.subr.mxu0 0.0
      %1152 = vmatpush1.msra.mxu0 0.0
      %1153 = vmatprep.subr.mxu0 0.0
      %1154 = vmatpush1.msra.mxu0 0.0
      %1155 = vmatprep.subr.mxu0 0.0
      %1156 = vmatpush1.msra.mxu0 0.0
      %1157 = vmatprep.subr.mxu0 0.0
      %1158 = vmatpush1.msra.mxu0 0.0
      %1159 = vmatprep.subr.mxu0 0.0
      %1160 = vmatpush1.msra.mxu0 0.0
      %1161 = vmatprep.subr.mxu0 0.0
      %1162 = vmatpush1.msra.mxu0 0.0
      %1163 = vmatprep.subr.mxu0 0.0
      %1164 = vmatpush1.msra.mxu0 0.0
      %1165 = vmatprep.subr.mxu0 0.0
      %1166 = vmatpush1.msra.mxu0 0.0
      %1167 = vmatprep.subr.mxu0 0.0
      %1168 = vmatpush1.msra.mxu0 0.0
      %1169 = vmatprep.subr.mxu0 0.0
      %1170 = vmatpush1.msra.mxu0 0.0
      %1171 = vmatprep.subr.mxu0 0.0
      %1172 = vmatpush1.msra.mxu0 0.0
      %1173 = vmatprep.subr.mxu0 0.0
      %1174 = vmatpush1.msra.mxu0 0.0
      %1175 = vmatprep.subr.mxu0 0.0
      %1176 = vmatpush1.msra.mxu0 0.0
      %1177 = vmatprep.subr.mxu0 0.0
      %1178 = vmatpush1.msra.mxu0 0.0
      %1179 = vmatprep.subr.mxu0 0.0
      %1180 = vmatpush1.msra.mxu0 0.0
      %1181 = vmatprep.subr.mxu0 0.0
      %1182 = vmatpush1.msra.mxu0 0.0
      %1183 = vmatprep.subr.mxu0 0.0
      %1184 = vmatpush1.msra.mxu0 0.0
      %1185 = vmatprep.subr.mxu0 0.0
      %1186 = vmatpush1.msra.mxu0 0.0
      %1187 = vmatprep.subr.mxu0 0.0
      %1188 = vmatpush1.msra.mxu0 0.0
      %1189 = vmatprep.subr.mxu0 0.0
      %1190 = vmatpush1.msra.mxu0 0.0
      %1191 = vmatprep.subr.mxu0 0.0
      %1192 = vmatpush1.msra.mxu0 0.0
      %1193 = vmatprep.subr.mxu0 0.0
      %1194 = vmatpush1.msra.mxu0 0.0
      %1195 = vmatprep.subr.mxu0 0.0
      %1196 = vmatpush1.msra.mxu0 0.0
      %1197 = vmatprep.subr.mxu0 0.0
      %1198 = vmatpush1.msra.mxu0 0.0
      %1199 = vmatprep.subr.mxu0 0.0
      %1200 = vmatpush1.msra.mxu0 0.0
      %1201 = vmatprep.mubr.f32.mxu0 0.0
      %1202 = vmatmul.mubr.f32.gmra.mrb[0].mxu0 %v1126
      %v1203 = vpop.f32.mrb[0].mxu0
      %v1204 = vadd.f32 0.0, %v1203
      %v1205 = vpop.f32.mrb[0].mxu0
      %1206 = vmatprep.mubr.f32.mxu0 0.0
      %1207 = vmatmul.mubr.f32.gmra.mrb[0].mxu0 %v1129
      %v1208 = vpop.f32.mrb[0].mxu0
      %v1209 = vadd.f32 0.0, %v1208
      %v1210 = vpop.f32.mrb[0].mxu0
      %1211 = vmatprep.mubr.f32.mxu0 0.0
      %1212 = vmatmul.mubr.f32.gmra.mrb[0].mxu0 %v1132
      %v1213 = vpop.f32.mrb[0].mxu0
      %v1214 = vadd.f32 0.0, %v1213
      %v1215 = vpop.f32.mrb[0].mxu0
      %1216 = vdwg.mxu0
      %1217 = vrot.lane.b32.xlu0 %v974, 112
      %v1218 = vpop.permute.xlu0 %1217
      %1219 = vrot.lane.b32.xlu0 %v975, 112
      %v1220 = vpop.permute.xlu0 %1219
      %1221 = vrot.lane.b32.xlu0 %v976, 112
      %v1222 = vpop.permute.xlu0 %1221
      %1223 = vrot.lane.b32.xlu0 %v952, 80
      %v1224 = vpop.permute.xlu0 %1223
      %1225 = vrot.lane.b32.xlu0 %v955, 80
      %v1226 = vpop.permute.xlu0 %1225
      %1227 = vrot.lane.b32.xlu0 %v960, 80
      %v1228 = vpop.permute.xlu0 %1227
      %v1229 = vsel %vm986, %v1218, 0
      %v1231 = vsel %vm986, %v1220, 0
      %v1233 = vsel %vm986, %v1222, 0
      %v1235 = vsel %vm986, %v1224, 0
      %v1237 = vsel %vm986, %v1226, 0
      %v1239 = vsel %vm986, %v1228, 0
      %1241 = vmatprep.subr.mxu0 0.0
      %1242 = vmatpush1.xpose.msra.mxu0 %v1235
      %1243 = vmatprep.subr.mxu0 0.0
      %1244 = vmatpush1.xpose.msra.mxu0 %v1237
      %1245 = vmatprep.subr.mxu0 0.0
      %1246 = vmatpush1.xpose.msra.mxu0 %v1239
      %1247 = vmatprep.subr.mxu0 0.0
      %1248 = vmatpush1.xpose.msra.mxu0 0.0
      %1249 = vmatprep.subr.mxu0 0.0
      %1250 = vmatpush1.xpose.msra.mxu0 0.0
      %1251 = vmatprep.subr.mxu0 0.0
      %1252 = vmatpush1.xpose.msra.mxu0 0.0
      %1253 = vmatprep.subr.mxu0 0.0
      %1254 = vmatpush1.xpose.msra.mxu0 0.0
      %1255 = vmatprep.subr.mxu0 0.0
      %1256 = vmatpush1.xpose.msra.mxu0 0.0
      %1257 = vmatprep.subr.mxu0 0.0
      %1258 = vmatpush1.xpose.msra.mxu0 0.0
      %1259 = vmatprep.subr.mxu0 0.0
      %1260 = vmatpush1.xpose.msra.mxu0 0.0
      %1261 = vmatprep.subr.mxu0 0.0
      %1262 = vmatpush1.xpose.msra.mxu0 0.0
      %1263 = vmatprep.subr.mxu0 0.0
      %1264 = vmatpush1.xpose.msra.mxu0 0.0
      %1265 = vmatprep.subr.mxu0 0.0
      %1266 = vmatpush1.xpose.msra.mxu0 0.0
      %1267 = vmatprep.subr.mxu0 0.0
      %1268 = vmatpush1.xpose.msra.mxu0 0.0
      %1269 = vmatprep.subr.mxu0 0.0
      %1270 = vmatpush1.xpose.msra.mxu0 0.0
      %1271 = vmatprep.subr.mxu0 0.0
      %1272 = vmatpush1.xpose.msra.mxu0 0.0
      %1273 = vmatprep.subr.mxu0 0.0
      %1274 = vmatpush1.xpose.msra.mxu0 0.0
      %1275 = vmatprep.subr.mxu0 0.0
      %1276 = vmatpush1.xpose.msra.mxu0 0.0
      %1277 = vmatprep.subr.mxu0 0.0
      %1278 = vmatpush1.xpose.msra.mxu0 0.0
      %1279 = vmatprep.subr.mxu0 0.0
      %1280 = vmatpush1.xpose.msra.mxu0 0.0
      %1281 = vmatprep.subr.mxu0 0.0
      %1282 = vmatpush1.xpose.msra.mxu0 0.0
      %1283 = vmatprep.subr.mxu0 0.0
      %1284 = vmatpush1.xpose.msra.mxu0 0.0
      %1285 = vmatprep.subr.mxu0 0.0
      %1286 = vmatpush1.xpose.msra.mxu0 0.0
      %1287 = vmatprep.subr.mxu0 0.0
      %1288 = vmatpush1.xpose.msra.mxu0 0.0
      %1289 = vmatprep.subr.mxu0 0.0
      %1290 = vmatpush1.xpose.msra.mxu0 0.0
      %1291 = vmatprep.subr.mxu0 0.0
      %1292 = vmatpush1.xpose.msra.mxu0 0.0
      %1293 = vmatprep.subr.mxu0 0.0
      %1294 = vmatpush1.xpose.msra.mxu0 0.0
      %1295 = vmatprep.subr.mxu0 0.0
      %1296 = vmatpush1.xpose.msra.mxu0 0.0
      %1297 = vmatprep.subr.mxu0 0.0
      %1298 = vmatpush1.xpose.msra.mxu0 0.0
      %1299 = vmatprep.subr.mxu0 0.0
      %1300 = vmatpush1.xpose.msra.mxu0 0.0
      %1301 = vmatprep.subr.mxu0 0.0
      %1302 = vmatpush1.xpose.msra.mxu0 0.0
      %1303 = vmatprep.subr.mxu0 0.0
      %1304 = vmatpush1.xpose.msra.mxu0 0.0
      %1305 = vmatprep.mubr.f32.mxu0 0.0
      %1306 = vmatmul.mubr.f32.gmra.mrb[0].mxu0 %v1229
      %v1307 = vpop.f32.mrb[0].mxu0
      %v1308 = vadd.f32 0.0, %v1307
      %v1309 = vpop.f32.mrb[0].mxu0
      %1310 = vmatprep.mubr.f32.mxu0 0.0
      %1311 = vmatmul.mubr.f32.gmra.mrb[0].mxu0 %v1231
      %v1312 = vpop.f32.mrb[0].mxu0
      %v1313 = vadd.f32 0.0, %v1312
      %v1314 = vpop.f32.mrb[0].mxu0
      %1315 = vmatprep.mubr.f32.mxu0 0.0
      %1316 = vmatmul.mubr.f32.gmra.mrb[0].mxu0 %v1233
      %v1317 = vpop.f32.mrb[0].mxu0
      %v1318 = vadd.f32 0.0, %v1317
      %v1319 = vpop.f32.mrb[0].mxu0
      %1320 = vdwg.mxu0
      %v1321 = vsel %vm1082, %v1308, -inf
      %1322 = vmax.xlane.f32.xlu0 %v1321
      %v1323 = vpop.xlane.xlu0 %1322
      %v1324 = vsel %vm1082, %v1313, -inf
      %1325 = vmax.xlane.f32.xlu0 %v1324
      %v1326 = vpop.xlane.xlu0 %1325
      %v1327 = vsel %vm1089, %v1318, -inf
      %1328 = vmax.xlane.f32.xlu0 %v1327
      %v1329 = vpop.xlane.xlu0 %1328
      %v1330 = vsub.f32 %v1308, %v1323
      %v1331 = vsub.f32 %v1313, %v1326
      %v1332 = vsub.f32 %v1318, %v1329
      %v1333 = vmul.f32 %v1330, 1.442695
      %v1334 = vpow.pop %v1333
      %v1335 = vmul.f32 %v1331, 1.442695
      %v1336 = vpow.pop %v1335
      %v1337 = vmul.f32 %v1332, 1.442695
      %v1338 = vpow.pop %v1337
      %v1339 = vsel %vm1082, %v1334, 0.0
      %1340 = vadd.xlane.f32.xlu0 %v1339
      %v1341 = vpop.xlane.xlu0 %1340
      %v1342 = vsel %vm1082, %v1336, 0.0
      %1343 = vadd.xlane.f32.xlu0 %v1342
      %v1344 = vpop.xlane.xlu0 %1343
      %v1345 = vsel %vm1089, %v1338, 0.0
      %1346 = vadd.xlane.f32.xlu0 %v1345
      %v1347 = vpop.xlane.xlu0 %1346
      %v1348 = vrcp.pop %v1341
      %v1349 = vmul.f32 %v1334, %v1348
      %v1350 = vrcp.pop %v1344
      %v1351 = vmul.f32 %v1336, %v1350
      %v1352 = vrcp.pop %v1347
      %v1353 = vmul.f32 %v1338, %v1352
      %1354 = vrot.lane.b32.xlu0 %v952, 48
      %v1355 = vpop.permute.xlu0 %1354
      %1356 = vrot.lane.b32.xlu0 %v955, 48
      %v1357 = vpop.permute.xlu0 %1356
      %1358 = vrot.lane.b32.xlu0 %v960, 48
      %v1359 = vpop.permute.xlu0 %1358
      %v1363 = vsel %vm1082, %v1349, 0
      %v1366 = vsel %vm1082, %v1351, 0
      %v1369 = vsel %vm1082, %v1353, 0
      %v1371 = vsel %vm1134, %v1359, 0
      %1373 = vmatprep.subr.mxu0 0.0
      %1374 = vmatpush1.msra.mxu0 %v1355
      %1375 = vmatprep.subr.mxu0 0.0
      %1376 = vmatpush1.msra.mxu0 %v1357
      %1377 = vmatprep.subr.mxu0 0.0
      %1378 = vmatpush1.msra.mxu0 %v1371
      %1379 = vmatprep.subr.mxu0 0.0
      %1380 = vmatpush1.msra.mxu0 0.0
      %1381 = vmatprep.subr.mxu0 0.0
      %1382 = vmatpush1.msra.mxu0 0.0
      %1383 = vmatprep.subr.mxu0 0.0
      %1384 = vmatpush1.msra.mxu0 0.0
      %1385 = vmatprep.subr.mxu0 0.0
      %1386 = vmatpush1.msra.mxu0 0.0
      %1387 = vmatprep.subr.mxu0 0.0
      %1388 = vmatpush1.msra.mxu0 0.0
      %1389 = vmatprep.subr.mxu0 0.0
      %1390 = vmatpush1.msra.mxu0 0.0
      %1391 = vmatprep.subr.mxu0 0.0
      %1392 = vmatpush1.msra.mxu0 0.0
      %1393 = vmatprep.subr.mxu0 0.0
      %1394 = vmatpush1.msra.mxu0 0.0
      %1395 = vmatprep.subr.mxu0 0.0
      %1396 = vmatpush1.msra.mxu0 0.0
      %1397 = vmatprep.subr.mxu0 0.0
      %1398 = vmatpush1.msra.mxu0 0.0
      %1399 = vmatprep.subr.mxu0 0.0
      %1400 = vmatpush1.msra.mxu0 0.0
      %1401 = vmatprep.subr.mxu0 0.0
      %1402 = vmatpush1.msra.mxu0 0.0
      %1403 = vmatprep.subr.mxu0 0.0
      %1404 = vmatpush1.msra.mxu0 0.0
      %1405 = vmatprep.subr.mxu0 0.0
      %1406 = vmatpush1.msra.mxu0 0.0
      %1407 = vmatprep.subr.mxu0 0.0
      %1408 = vmatpush1.msra.mxu0 0.0
      %1409 = vmatprep.subr.mxu0 0.0
      %1410 = vmatpush1.msra.mxu0 0.0
      %1411 = vmatprep.subr.mxu0 0.0
      %1412 = vmatpush1.msra.mxu0 0.0
      %1413 = vmatprep.subr.mxu0 0.0
      %1414 = vmatpush1.msra.mxu0 0.0
      %1415 = vmatprep.subr.mxu0 0.0
      %1416 = vmatpush1.msra.mxu0 0.0
      %1417 = vmatprep.subr.mxu0 0.0
      %1418 = vmatpush1.msra.mxu0 0.0
      %1419 = vmatprep.subr.mxu0 0.0
      %1420 = vmatpush1.msra.mxu0 0.0
      %1421 = vmatprep.subr.mxu0 0.0
      %1422 = vmatpush1.msra.mxu0 0.0
      %1423 = vmatprep.subr.mxu0 0.0
      %1424 = vmatpush1.msra.mxu0 0.0
      %1425 = vmatprep.subr.mxu0 0.0
      %1426 = vmatpush1.msra.mxu0 0.0
      %1427 = vmatprep.subr.mxu0 0.0
      %1428 = vmatpush1.msra.mxu0 0.0
      %1429 = vmatprep.subr.mxu0 0.0
      %1430 = vmatpush1.msra.mxu0 0.0
      %1431 = vmatprep.subr.mxu0 0.0
      %1432 = vmatpush1.msra.mxu0 0.0
      %1433 = vmatprep.subr.mxu0 0.0
      %1434 = vmatpush1.msra.mxu0 0.0
      %1435 = vmatprep.subr.mxu0 0.0
      %1436 = vmatpush1.msra.mxu0 0.0
      %1437 = vmatprep.mubr.f32.mxu0 0.0
      %1438 = vmatmul.mubr.f32.gmra.mrb[0].mxu0 %v1363
      %v1439 = vpop.f32.mrb[0].mxu0
      %v1440 = vadd.f32 0.0, %v1439
      %v1441 = vpop.f32.mrb[0].mxu0
      %1442 = vmatprep.mubr.f32.mxu0 0.0
      %1443 = vmatmul.mubr.f32.gmra.mrb[0].mxu0 %v1366
      %v1444 = vpop.f32.mrb[0].mxu0
      %v1445 = vadd.f32 0.0, %v1444
      %v1446 = vpop.f32.mrb[0].mxu0
      %1447 = vmatprep.mubr.f32.mxu0 0.0
      %1448 = vmatmul.mubr.f32.gmra.mrb[0].mxu0 %v1369
      %v1449 = vpop.f32.mrb[0].mxu0
      %v1450 = vadd.f32 0.0, %v1449
      %v1451 = vpop.f32.mrb[0].mxu0
      %1452 = vdwg.mxu0
      %1456 = vrot.lane.b32.xlu0 %v1440, 16
      %v1457 = vpop.permute.xlu0 %1456
      %1458 = vrot.lane.b32.xlu0 %v1445, 16
      %v1459 = vpop.permute.xlu0 %1458
      %1460 = vrot.lane.b32.xlu0 %v1450, 16
      %v1461 = vpop.permute.xlu0 %1460
      %v1465 = vsel %vm986, %v1204, %v1457
      %v1466 = vsel %vm986, %v1209, %v1459
      %v1467 = vsel %vm986, %v1214, %v1461
      %v1468 = vmul.f32 %v963, 0.25
      %v1469 = vmul.f32 %v968, 0.25
      %v1470 = vmul.f32 %v971, 0.25
      %vm1474 = vcmask 1042432
      %v1475 = vrot.slane %v976, 5
      %v1476 = vrot.slane %v1468, 5
      %v1477 = vsel %vm1474, %v1475, %v1476
      %v1478 = vrot.slane %v1469, 5
      %v1479 = vsel %vm1474, %v1476, %v1478
      %v1480 = vrot.slane %v1470, 5
      %v1481 = vsel %vm1474, %v1478, %v1480
      %v1485 = vrot.slane %v960, 5
      %v1486 = vrot.slane %v963, 5
      %v1487 = vsel %vm1474, %v1485, %v1486
      %v1488 = vrot.slane %v968, 5
      %v1489 = vsel %vm1474, %v1486, %v1488
      %v1490 = vrot.slane %v971, 5
      %v1491 = vsel %vm1474, %v1488, %v1490
      %1492 = vrot.lane.b32.xlu0 %v1487, 96
      %v1493 = vpop.permute.xlu0 %1492
      %1494 = vrot.lane.b32.xlu0 %v1489, 96
      %v1495 = vpop.permute.xlu0 %1494
      %1496 = vrot.lane.b32.xlu0 %v1491, 96
      %v1497 = vpop.permute.xlu0 %1496
      %v1498 = vsel %vm986, %v1477, 0
      %v1500 = vsel %vm986, %v1479, 0
      %v1502 = vsel %vm986, %v1481, 0
      %v1504 = vsel %vm986, %v1493, 0
      %v1506 = vsel %vm986, %v1495, 0
      %v1508 = vsel %vm986, %v1497, 0
      %1510 = vmatprep.subr.mxu0 0.0
      %1511 = vmatpush1.xpose.msra.mxu0 %v1504
      %1512 = vmatprep.subr.mxu0 0.0
      %1513 = vmatpush1.xpose.msra.mxu0 %v1506
      %1514 = vmatprep.subr.mxu0 0.0
      %1515 = vmatpush1.xpose.msra.mxu0 %v1508
      %1516 = vmatprep.subr.mxu0 0.0
      %1517 = vmatpush1.xpose.msra.mxu0 0.0
      %1518 = vmatprep.subr.mxu0 0.0
      %1519 = vmatpush1.xpose.msra.mxu0 0.0
      %1520 = vmatprep.subr.mxu0 0.0
      %1521 = vmatpush1.xpose.msra.mxu0 0.0
      %1522 = vmatprep.subr.mxu0 0.0
      %1523 = vmatpush1.xpose.msra.mxu0 0.0
      %1524 = vmatprep.subr.mxu0 0.0
      %1525 = vmatpush1.xpose.msra.mxu0 0.0
      %1526 = vmatprep.subr.mxu0 0.0
      %1527 = vmatpush1.xpose.msra.mxu0 0.0
      %1528 = vmatprep.subr.mxu0 0.0
      %1529 = vmatpush1.xpose.msra.mxu0 0.0
      %1530 = vmatprep.subr.mxu0 0.0
      %1531 = vmatpush1.xpose.msra.mxu0 0.0
      %1532 = vmatprep.subr.mxu0 0.0
      %1533 = vmatpush1.xpose.msra.mxu0 0.0
      %1534 = vmatprep.subr.mxu0 0.0
      %1535 = vmatpush1.xpose.msra.mxu0 0.0
      %1536 = vmatprep.subr.mxu0 0.0
      %1537 = vmatpush1.xpose.msra.mxu0 0.0
      %1538 = vmatprep.subr.mxu0 0.0
      %1539 = vmatpush1.xpose.msra.mxu0 0.0
      %1540 = vmatprep.subr.mxu0 0.0
      %1541 = vmatpush1.xpose.msra.mxu0 0.0
      %1542 = vmatprep.subr.mxu0 0.0
      %1543 = vmatpush1.xpose.msra.mxu0 0.0
      %1544 = vmatprep.subr.mxu0 0.0
      %1545 = vmatpush1.xpose.msra.mxu0 0.0
      %1546 = vmatprep.subr.mxu0 0.0
      %1547 = vmatpush1.xpose.msra.mxu0 0.0
      %1548 = vmatprep.subr.mxu0 0.0
      %1549 = vmatpush1.xpose.msra.mxu0 0.0
      %1550 = vmatprep.subr.mxu0 0.0
      %1551 = vmatpush1.xpose.msra.mxu0 0.0
      %1552 = vmatprep.subr.mxu0 0.0
      %1553 = vmatpush1.xpose.msra.mxu0 0.0
      %1554 = vmatprep.subr.mxu0 0.0
      %1555 = vmatpush1.xpose.msra.mxu0 0.0
      %1556 = vmatprep.subr.mxu0 0.0
      %1557 = vmatpush1.xpose.msra.mxu0 0.0
      %1558 = vmatprep.subr.mxu0 0.0
      %1559 = vmatpush1.xpose.msra.mxu0 0.0
      %1560 = vmatprep.subr.mxu0 0.0
      %1561 = vmatpush1.xpose.msra.mxu0 0.0
      %1562 = vmatprep.subr.mxu0 0.0
      %1563 = vmatpush1.xpose.msra.mxu0 0.0
      %1564 = vmatprep.subr.mxu0 0.0
      %1565 = vmatpush1.xpose.msra.mxu0 0.0
      %1566 = vmatprep.subr.mxu0 0.0
      %1567 = vmatpush1.xpose.msra.mxu0 0.0
      %1568 = vmatprep.subr.mxu0 0.0
      %1569 = vmatpush1.xpose.msra.mxu0 0.0
      %1570 = vmatprep.subr.mxu0 0.0
      %1571 = vmatpush1.xpose.msra.mxu0 0.0
      %1572 = vmatprep.subr.mxu0 0.0
      %1573 = vmatpush1.xpose.msra.mxu0 0.0
      %1574 = vmatprep.mubr.f32.mxu0 0.0
      %1575 = vmatmul.mubr.f32.gmra.mrb[0].mxu0 %v1498
      %v1576 = vpop.f32.mrb[0].mxu0
      %v1577 = vadd.f32 0.0, %v1576
      %v1578 = vpop.f32.mrb[0].mxu0
      %1579 = vmatprep.mubr.f32.mxu0 0.0
      %1580 = vmatmul.mubr.f32.gmra.mrb[0].mxu0 %v1500
      %v1581 = vpop.f32.mrb[0].mxu0
      %v1582 = vadd.f32 0.0, %v1581
      %v1583 = vpop.f32.mrb[0].mxu0
      %1584 = vmatprep.mubr.f32.mxu0 0.0
      %1585 = vmatmul.mubr.f32.gmra.mrb[0].mxu0 %v1502
      %v1586 = vpop.f32.mrb[0].mxu0
      %v1587 = vadd.f32 0.0, %v1586
      %v1588 = vpop.f32.mrb[0].mxu0
      %1589 = vdwg.mxu0
      %v1590 = vsel %vm1082, %v1577, -inf
      %1591 = vmax.xlane.f32.xlu0 %v1590
      %v1592 = vpop.xlane.xlu0 %1591
      %v1593 = vsel %vm1082, %v1582, -inf
      %1594 = vmax.xlane.f32.xlu0 %v1593
      %v1595 = vpop.xlane.xlu0 %1594
      %v1596 = vsel %vm1089, %v1587, -inf
      %1597 = vmax.xlane.f32.xlu0 %v1596
      %v1598 = vpop.xlane.xlu0 %1597
      %v1599 = vsub.f32 %v1577, %v1592
      %v1600 = vsub.f32 %v1582, %v1595
      %v1601 = vsub.f32 %v1587, %v1598
      %v1602 = vmul.f32 %v1599, 1.442695
      %v1603 = vpow.pop %v1602
      %v1604 = vmul.f32 %v1600, 1.442695
      %v1605 = vpow.pop %v1604
      %v1606 = vmul.f32 %v1601, 1.442695
      %v1607 = vpow.pop %v1606
      %v1608 = vsel %vm1082, %v1603, 0.0
      %1609 = vadd.xlane.f32.xlu0 %v1608
      %v1610 = vpop.xlane.xlu0 %1609
      %v1611 = vsel %vm1082, %v1605, 0.0
      %1612 = vadd.xlane.f32.xlu0 %v1611
      %v1613 = vpop.xlane.xlu0 %1612
      %v1614 = vsel %vm1089, %v1607, 0.0
      %1615 = vadd.xlane.f32.xlu0 %v1614
      %v1616 = vpop.xlane.xlu0 %1615
      %v1617 = vrcp.pop %v1610
      %v1618 = vmul.f32 %v1603, %v1617
      %v1619 = vrcp.pop %v1613
      %v1620 = vmul.f32 %v1605, %v1619
      %v1621 = vrcp.pop %v1616
      %v1622 = vmul.f32 %v1607, %v1621
      %1623 = vrot.lane.b32.xlu0 %v1487, 64
      %v1624 = vpop.permute.xlu0 %1623
      %1625 = vrot.lane.b32.xlu0 %v1489, 64
      %v1626 = vpop.permute.xlu0 %1625
      %1627 = vrot.lane.b32.xlu0 %v1491, 64
      %v1628 = vpop.permute.xlu0 %1627
      %v1632 = vsel %vm1082, %v1618, 0
      %v1635 = vsel %vm1082, %v1620, 0
      %v1638 = vsel %vm1082, %v1622, 0
      %v1640 = vsel %vm1134, %v1628, 0
      %1642 = vmatprep.subr.mxu0 0.0
      %1643 = vmatpush1.msra.mxu0 %v1624
      %1644 = vmatprep.subr.mxu0 0.0
      %1645 = vmatpush1.msra.mxu0 %v1626
      %1646 = vmatprep.subr.mxu0 0.0
      %1647 = vmatpush1.msra.mxu0 %v1640
      %1648 = vmatprep.subr.mxu0 0.0
      %1649 = vmatpush1.msra.mxu0 0.0
      %1650 = vmatprep.subr.mxu0 0.0
      %1651 = vmatpush1.msra.mxu0 0.0
      %1652 = vmatprep.subr.mxu0 0.0
      %1653 = vmatpush1.msra.mxu0 0.0
      %1654 = vmatprep.subr.mxu0 0.0
      %1655 = vmatpush1.msra.mxu0 0.0
      %1656 = vmatprep.subr.mxu0 0.0
      %1657 = vmatpush1.msra.mxu0 0.0
      %1658 = vmatprep.subr.mxu0 0.0
      %1659 = vmatpush1.msra.mxu0 0.0
      %1660 = vmatprep.subr.mxu0 0.0
      %1661 = vmatpush1.msra.mxu0 0.0
      %1662 = vmatprep.subr.mxu0 0.0
      %1663 = vmatpush1.msra.mxu0 0.0
      %1664 = vmatprep.subr.mxu0 0.0
      %1665 = vmatpush1.msra.mxu0 0.0
      %1666 = vmatprep.subr.mxu0 0.0
      %1667 = vmatpush1.msra.mxu0 0.0
      %1668 = vmatprep.subr.mxu0 0.0
      %1669 = vmatpush1.msra.mxu0 0.0
      %1670 = vmatprep.subr.mxu0 0.0
      %1671 = vmatpush1.msra.mxu0 0.0
      %1672 = vmatprep.subr.mxu0 0.0
      %1673 = vmatpush1.msra.mxu0 0.0
      %1674 = vmatprep.subr.mxu0 0.0
      %1675 = vmatpush1.msra.mxu0 0.0
      %1676 = vmatprep.subr.mxu0 0.0
      %1677 = vmatpush1.msra.mxu0 0.0
      %1678 = vmatprep.subr.mxu0 0.0
      %1679 = vmatpush1.msra.mxu0 0.0
      %1680 = vmatprep.subr.mxu0 0.0
      %1681 = vmatpush1.msra.mxu0 0.0
      %1682 = vmatprep.subr.mxu0 0.0
      %1683 = vmatpush1.msra.mxu0 0.0
      %1684 = vmatprep.subr.mxu0 0.0
      %1685 = vmatpush1.msra.mxu0 0.0
      %1686 = vmatprep.subr.mxu0 0.0
      %1687 = vmatpush1.msra.mxu0 0.0
      %1688 = vmatprep.subr.mxu0 0.0
      %1689 = vmatpush1.msra.mxu0 0.0
      %1690 = vmatprep.subr.mxu0 0.0
      %1691 = vmatpush1.msra.mxu0 0.0
      %1692 = vmatprep.subr.mxu0 0.0
      %1693 = vmatpush1.msra.mxu0 0.0
      %1694 = vmatprep.subr.mxu0 0.0
      %1695 = vmatpush1.msra.mxu0 0.0
      %1696 = vmatprep.subr.mxu0 0.0
      %1697 = vmatpush1.msra.mxu0 0.0
      %1698 = vmatprep.subr.mxu0 0.0
      %1699 = vmatpush1.msra.mxu0 0.0
      %1700 = vmatprep.subr.mxu0 0.0
      %1701 = vmatpush1.msra.mxu0 0.0
      %1702 = vmatprep.subr.mxu0 0.0
      %1703 = vmatpush1.msra.mxu0 0.0
      %1704 = vmatprep.subr.mxu0 0.0
      %1705 = vmatpush1.msra.mxu0 0.0
      %1706 = vmatprep.mubr.f32.mxu0 0.0
      %1707 = vmatmul.mubr.f32.gmra.mrb[0].mxu0 %v1632
      %v1708 = vpop.f32.mrb[0].mxu0
      %v1709 = vadd.f32 0.0, %v1708
      %v1710 = vpop.f32.mrb[0].mxu0
      %1711 = vmatprep.mubr.f32.mxu0 0.0
      %1712 = vmatmul.mubr.f32.gmra.mrb[0].mxu0 %v1635
      %v1713 = vpop.f32.mrb[0].mxu0
      %v1714 = vadd.f32 0.0, %v1713
      %v1715 = vpop.f32.mrb[0].mxu0
      %1716 = vmatprep.mubr.f32.mxu0 0.0
      %1717 = vmatmul.mubr.f32.gmra.mrb[0].mxu0 %v1638
      %v1718 = vpop.f32.mrb[0].mxu0
      %v1719 = vadd.f32 0.0, %v1718
      %v1720 = vpop.f32.mrb[0].mxu0
      %1721 = vdwg.mxu0
      %1722 = vrot.lane.b32.xlu0 %v1477, 112
      %v1723 = vpop.permute.xlu0 %1722
      %1724 = vrot.lane.b32.xlu0 %v1479, 112
      %v1725 = vpop.permute.xlu0 %1724
      %1726 = vrot.lane.b32.xlu0 %v1481, 112
      %v1727 = vpop.permute.xlu0 %1726
      %1728 = vrot.lane.b32.xlu0 %v1487, 80
      %v1729 = vpop.permute.xlu0 %1728
      %1730 = vrot.lane.b32.xlu0 %v1489, 80
      %v1731 = vpop.permute.xlu0 %1730
      %1732 = vrot.lane.b32.xlu0 %v1491, 80
      %v1733 = vpop.permute.xlu0 %1732
      %v1734 = vsel %vm986, %v1723, 0
      %v1736 = vsel %vm986, %v1725, 0
      %v1738 = vsel %vm986, %v1727, 0
      %v1740 = vsel %vm986, %v1729, 0
      %v1742 = vsel %vm986, %v1731, 0
      %v1744 = vsel %vm986, %v1733, 0
      %1746 = vmatprep.subr.mxu0 0.0
      %1747 = vmatpush1.xpose.msra.mxu0 %v1740
      %1748 = vmatprep.subr.mxu0 0.0
      %1749 = vmatpush1.xpose.msra.mxu0 %v1742
      %1750 = vmatprep.subr.mxu0 0.0
      %1751 = vmatpush1.xpose.msra.mxu0 %v1744
      %1752 = vmatprep.subr.mxu0 0.0
      %1753 = vmatpush1.xpose.msra.mxu0 0.0
      %1754 = vmatprep.subr.mxu0 0.0
      %1755 = vmatpush1.xpose.msra.mxu0 0.0
      %1756 = vmatprep.subr.mxu0 0.0
      %1757 = vmatpush1.xpose.msra.mxu0 0.0
      %1758 = vmatprep.subr.mxu0 0.0
      %1759 = vmatpush1.xpose.msra.mxu0 0.0
      %1760 = vmatprep.subr.mxu0 0.0
      %1761 = vmatpush1.xpose.msra.mxu0 0.0
      %1762 = vmatprep.subr.mxu0 0.0
      %1763 = vmatpush1.xpose.msra.mxu0 0.0
      %1764 = vmatprep.subr.mxu0 0.0
      %1765 = vmatpush1.xpose.msra.mxu0 0.0
      %1766 = vmatprep.subr.mxu0 0.0
      %1767 = vmatpush1.xpose.msra.mxu0 0.0
      %1768 = vmatprep.subr.mxu0 0.0
      %1769 = vmatpush1.xpose.msra.mxu0 0.0
      %1770 = vmatprep.subr.mxu0 0.0
      %1771 = vmatpush1.xpose.msra.mxu0 0.0
      %1772 = vmatprep.subr.mxu0 0.0
      %1773 = vmatpush1.xpose.msra.mxu0 0.0
      %1774 = vmatprep.subr.mxu0 0.0
      %1775 = vmatpush1.xpose.msra.mxu0 0.0
      %1776 = vmatprep.subr.mxu0 0.0
      %1777 = vmatpush1.xpose.msra.mxu0 0.0
      %1778 = vmatprep.subr.mxu0 0.0
      %1779 = vmatpush1.xpose.msra.mxu0 0.0
      %1780 = vmatprep.subr.mxu0 0.0
      %1781 = vmatpush1.xpose.msra.mxu0 0.0
      %1782 = vmatprep.subr.mxu0 0.0
      %1783 = vmatpush1.xpose.msra.mxu0 0.0
      %1784 = vmatprep.subr.mxu0 0.0
      %1785 = vmatpush1.xpose.msra.mxu0 0.0
      %1786 = vmatprep.subr.mxu0 0.0
      %1787 = vmatpush1.xpose.msra.mxu0 0.0
      %1788 = vmatprep.subr.mxu0 0.0
      %1789 = vmatpush1.xpose.msra.mxu0 0.0
      %1790 = vmatprep.subr.mxu0 0.0
      %1791 = vmatpush1.xpose.msra.mxu0 0.0
      %1792 = vmatprep.subr.mxu0 0.0
      %1793 = vmatpush1.xpose.msra.mxu0 0.0
      %1794 = vmatprep.subr.mxu0 0.0
      %1795 = vmatpush1.xpose.msra.mxu0 0.0
      %1796 = vmatprep.subr.mxu0 0.0
      %1797 = vmatpush1.xpose.msra.mxu0 0.0
      %1798 = vmatprep.subr.mxu0 0.0
      %1799 = vmatpush1.xpose.msra.mxu0 0.0
      %1800 = vmatprep.subr.mxu0 0.0
      %1801 = vmatpush1.xpose.msra.mxu0 0.0
      %1802 = vmatprep.subr.mxu0 0.0
      %1803 = vmatpush1.xpose.msra.mxu0 0.0
      %1804 = vmatprep.subr.mxu0 0.0
      %1805 = vmatpush1.xpose.msra.mxu0 0.0
      %1806 = vmatprep.subr.mxu0 0.0
      %1807 = vmatpush1.xpose.msra.mxu0 0.0
      %1808 = vmatprep.subr.mxu0 0.0
      %1809 = vmatpush1.xpose.msra.mxu0 0.0
      %1810 = vmatprep.mubr.f32.mxu0 0.0
      %1811 = vmatmul.mubr.f32.gmra.mrb[0].mxu0 %v1734
      %v1812 = vpop.f32.mrb[0].mxu0
      %v1813 = vadd.f32 0.0, %v1812
      %v1814 = vpop.f32.mrb[0].mxu0
      %1815 = vmatprep.mubr.f32.mxu0 0.0
      %1816 = vmatmul.mubr.f32.gmra.mrb[0].mxu0 %v1736
      %v1817 = vpop.f32.mrb[0].mxu0
      %v1818 = vadd.f32 0.0, %v1817
      %v1819 = vpop.f32.mrb[0].mxu0
      %1820 = vmatprep.mubr.f32.mxu0 0.0
      %1821 = vmatmul.mubr.f32.gmra.mrb[0].mxu0 %v1738
      %v1822 = vpop.f32.mrb[0].mxu0
      %v1823 = vadd.f32 0.0, %v1822
      %v1824 = vpop.f32.mrb[0].mxu0
      %1825 = vdwg.mxu0
      %v1826 = vsel %vm1082, %v1813, -inf
      %1827 = vmax.xlane.f32.xlu0 %v1826
      %v1828 = vpop.xlane.xlu0 %1827
      %v1829 = vsel %vm1082, %v1818, -inf
      %1830 = vmax.xlane.f32.xlu0 %v1829
      %v1831 = vpop.xlane.xlu0 %1830
      %v1832 = vsel %vm1089, %v1823, -inf
      %1833 = vmax.xlane.f32.xlu0 %v1832
      %v1834 = vpop.xlane.xlu0 %1833
      %v1835 = vsub.f32 %v1813, %v1828
      %v1836 = vsub.f32 %v1818, %v1831
      %v1837 = vsub.f32 %v1823, %v1834
      %v1838 = vmul.f32 %v1835, 1.442695
      %v1839 = vpow.pop %v1838
      %v1840 = vmul.f32 %v1836, 1.442695
      %v1841 = vpow.pop %v1840
      %v1842 = vmul.f32 %v1837, 1.442695
      %v1843 = vpow.pop %v1842
      %v1844 = vsel %vm1082, %v1839, 0.0
      %1845 = vadd.xlane.f32.xlu0 %v1844
      %v1846 = vpop.xlane.xlu0 %1845
      %v1847 = vsel %vm1082, %v1841, 0.0
      %1848 = vadd.xlane.f32.xlu0 %v1847
      %v1849 = vpop.xlane.xlu0 %1848
      %v1850 = vsel %vm1089, %v1843, 0.0
      %1851 = vadd.xlane.f32.xlu0 %v1850
      %v1852 = vpop.xlane.xlu0 %1851
      %v1853 = vrcp.pop %v1846
      %v1854 = vmul.f32 %v1839, %v1853
      %v1855 = vrcp.pop %v1849
      %v1856 = vmul.f32 %v1841, %v1855
      %v1857 = vrcp.pop %v1852
      %v1858 = vmul.f32 %v1843, %v1857
      %1859 = vrot.lane.b32.xlu0 %v1487, 48
      %v1860 = vpop.permute.xlu0 %1859
      %1861 = vrot.lane.b32.xlu0 %v1489, 48
      %v1862 = vpop.permute.xlu0 %1861
      %1863 = vrot.lane.b32.xlu0 %v1491, 48
      %v1864 = vpop.permute.xlu0 %1863
      %v1868 = vsel %vm1082, %v1854, 0
      %v1871 = vsel %vm1082, %v1856, 0
      %v1874 = vsel %vm1082, %v1858, 0
      %v1876 = vsel %vm1134, %v1864, 0
      %1878 = vmatprep.subr.mxu0 0.0
      %1879 = vmatpush1.msra.mxu0 %v1860
      %1880 = vmatprep.subr.mxu0 0.0
      %1881 = vmatpush1.msra.mxu0 %v1862
      %1882 = vmatprep.subr.mxu0 0.0
      %1883 = vmatpush1.msra.mxu0 %v1876
      %1884 = vmatprep.subr.mxu0 0.0
      %1885 = vmatpush1.msra.mxu0 0.0
      %1886 = vmatprep.subr.mxu0 0.0
      %1887 = vmatpush1.msra.mxu0 0.0
      %1888 = vmatprep.subr.mxu0 0.0
      %1889 = vmatpush1.msra.mxu0 0.0
      %1890 = vmatprep.subr.mxu0 0.0
      %1891 = vmatpush1.msra.mxu0 0.0
      %1892 = vmatprep.subr.mxu0 0.0
      %1893 = vmatpush1.msra.mxu0 0.0
      %1894 = vmatprep.subr.mxu0 0.0
      %1895 = vmatpush1.msra.mxu0 0.0
      %1896 = vmatprep.subr.mxu0 0.0
      %1897 = vmatpush1.msra.mxu0 0.0
      %1898 = vmatprep.subr.mxu0 0.0
      %1899 = vmatpush1.msra.mxu0 0.0
      %1900 = vmatprep.subr.mxu0 0.0
      %1901 = vmatpush1.msra.mxu0 0.0
      %1902 = vmatprep.subr.mxu0 0.0
      %1903 = vmatpush1.msra.mxu0 0.0
      %1904 = vmatprep.subr.mxu0 0.0
      %1905 = vmatpush1.msra.mxu0 0.0
      %1906 = vmatprep.subr.mxu0 0.0
      %1907 = vmatpush1.msra.mxu0 0.0
      %1908 = vmatprep.subr.mxu0 0.0
      %1909 = vmatpush1.msra.mxu0 0.0
      %1910 = vmatprep.subr.mxu0 0.0
      %1911 = vmatpush1.msra.mxu0 0.0
      %1912 = vmatprep.subr.mxu0 0.0
      %1913 = vmatpush1.msra.mxu0 0.0
      %1914 = vmatprep.subr.mxu0 0.0
      %1915 = vmatpush1.msra.mxu0 0.0
      %1916 = vmatprep.subr.mxu0 0.0
      %1917 = vmatpush1.msra.mxu0 0.0
      %1918 = vmatprep.subr.mxu0 0.0
      %1919 = vmatpush1.msra.mxu0 0.0
      %1920 = vmatprep.subr.mxu0 0.0
      %1921 = vmatpush1.msra.mxu0 0.0
      %1922 = vmatprep.subr.mxu0 0.0
      %1923 = vmatpush1.msra.mxu0 0.0
      %1924 = vmatprep.subr.mxu0 0.0
      %1925 = vmatpush1.msra.mxu0 0.0
      %1926 = vmatprep.subr.mxu0 0.0
      %1927 = vmatpush1.msra.mxu0 0.0
      %1928 = vmatprep.subr.mxu0 0.0
      %1929 = vmatpush1.msra.mxu0 0.0
      %1930 = vmatprep.subr.mxu0 0.0
      %1931 = vmatpush1.msra.mxu0 0.0
      %1932 = vmatprep.subr.mxu0 0.0
      %1933 = vmatpush1.msra.mxu0 0.0
      %1934 = vmatprep.subr.mxu0 0.0
      %1935 = vmatpush1.msra.mxu0 0.0
      %1936 = vmatprep.subr.mxu0 0.0
      %1937 = vmatpush1.msra.mxu0 0.0
      %1938 = vmatprep.subr.mxu0 0.0
      %1939 = vmatpush1.msra.mxu0 0.0
      %1940 = vmatprep.subr.mxu0 0.0
      %1941 = vmatpush1.msra.mxu0 0.0
      %1942 = vmatprep.mubr.f32.mxu0 0.0
      %1943 = vmatmul.mubr.f32.gmra.mrb[0].mxu0 %v1868
      %v1944 = vpop.f32.mrb[0].mxu0
      %v1945 = vadd.f32 0.0, %v1944
      %v1946 = vpop.f32.mrb[0].mxu0
      %1947 = vmatprep.mubr.f32.mxu0 0.0
      %1948 = vmatmul.mubr.f32.gmra.mrb[0].mxu0 %v1871
      %v1949 = vpop.f32.mrb[0].mxu0
      %v1950 = vadd.f32 0.0, %v1949
      %v1951 = vpop.f32.mrb[0].mxu0
      %1952 = vmatprep.mubr.f32.mxu0 0.0
      %1953 = vmatmul.mubr.f32.gmra.mrb[0].mxu0 %v1874
      %v1954 = vpop.f32.mrb[0].mxu0
      %v1955 = vadd.f32 0.0, %v1954
      %v1956 = vpop.f32.mrb[0].mxu0
      %1957 = vdwg.mxu0
      %1961 = vrot.lane.b32.xlu0 %v1945, 16
      %v1962 = vpop.permute.xlu0 %1961
      %1963 = vrot.lane.b32.xlu0 %v1950, 16
      %v1964 = vpop.permute.xlu0 %1963
      %1965 = vrot.lane.b32.xlu0 %v1955, 16
      %v1966 = vpop.permute.xlu0 %1965
      %v1970 = vsel %vm986, %v1709, %v1962
      %v1971 = vsel %vm986, %v1714, %v1964
      %v1972 = vsel %vm986, %v1719, %v1966
      %v1976 = vrot.slane %v1970, 3
      %v1977 = vrot.slane %v1971, 3
      %v1978 = vsel %vm1134, %v1976, %v1977
      %v1979 = vrot.slane %v1972, 3
      %v1980 = vsel %vm1134, %v1977, %v1979
      %v1985 = vsel %vm1134, %v1467, %v1976
      %v1986 = vpack.c.bf16 %v1466, %v1465
      %v1987 = vpack.c.bf16 %v1978, %v1985
      %v1988 = vpack.c.bf16 %v1979, %v1980
      %v1989 = vld [vmem:[%s691] sm:$0xf]
      %v1990 = vld [vmem:[%s691 + $0x4] sm:$0xf]
      %v1991 = vld [vmem:[%s691 + $0x8] sm:$0xf]
      %v1992 = vld [vmem:[%s691 + $0xc] sm:$0xf]
      %v1993 = vld [vmem:[%s694] sm:$0x1]
      %v1995 = vlaneseq
      %v1996 = vshrl.u32 %v1995, 7
      %v1997 = vsub.s32 0, %v1996
      %v1998 = vrot.slane %v1993, %v1997
      %v2004 = vunpack.c.l.b16 %v1989
      %v2005 = vunpack.c.l.b16 %v1990
      %v2006 = vunpack.c.l.b16 %v1991
      %v2007 = vunpack.c.l.b16 %v1992
      %v2008 = vpack.c.b16 %v2005, %v2004
      %v2009 = vpack.c.b16 %v2007, %v2006
      %v2013 = vsel %vm777, %v1986, 0
      %v2016 = vsel %vm777, %v1987, 0
      %v2019 = vsel %vm777, %v1988, 0
      %2021 = vmatprep.subr.bf16.mxu0 0
      %2022 = vmatpush1.bf16.msra.mxu0 %v2008
      %2023 = vmatprep.subr.bf16.mxu0 0
      %2024 = vmatpush1.bf16.msra.mxu0 %v2009
      %2025 = vmatprep.subr.bf16.mxu0 0
      %2026 = vmatpush1.bf16.msra.mxu0 0
      %2027 = vmatprep.subr.bf16.mxu0 0
      %2028 = vmatpush1.bf16.msra.mxu0 0
      %2029 = vmatprep.subr.bf16.mxu0 0
      %2030 = vmatpush1.bf16.msra.mxu0 0
      %2031 = vmatprep.subr.bf16.mxu0 0
      %2032 = vmatpush1.bf16.msra.mxu0 0
      %2033 = vmatprep.subr.bf16.mxu0 0
      %2034 = vmatpush1.bf16.msra.mxu0 0
      %2035 = vmatprep.subr.bf16.mxu0 0
      %2036 = vmatpush1.bf16.msra.mxu0 0
      %2037 = vmatprep.subr.bf16.mxu0 0
      %2038 = vmatpush1.bf16.msra.mxu0 0
      %2039 = vmatprep.subr.bf16.mxu0 0
      %2040 = vmatpush1.bf16.msra.mxu0 0
      %2041 = vmatprep.subr.bf16.mxu0 0
      %2042 = vmatpush1.bf16.msra.mxu0 0
      %2043 = vmatprep.subr.bf16.mxu0 0
      %2044 = vmatpush1.bf16.msra.mxu0 0
      %2045 = vmatprep.subr.bf16.mxu0 0
      %2046 = vmatpush1.bf16.msra.mxu0 0
      %2047 = vmatprep.subr.bf16.mxu0 0
      %2048 = vmatpush1.bf16.msra.mxu0 0
      %2049 = vmatprep.subr.bf16.mxu0 0
      %2050 = vmatpush1.bf16.msra.mxu0 0
      %2051 = vmatprep.subr.bf16.mxu0 0
      %2052 = vmatpush1.bf16.msra.mxu0 0
      %2053 = vmatprep.mubr.bf16.mxu0 0
      %2054 = vmatmul.mubr.bf16.gmra.mrb[0].mxu0 %v2013
      %v2055 = vpop.f32.mrb[0].mxu0
      %v2056 = vadd.f32 %v1998, %v2055
      %v2057 = vpop.f32.mrb[0].mxu0
      %v2058 = vpop.f32.mrb[0].mxu0
      %v2059 = vadd.f32 %v1998, %v2058
      %v2060 = vpop.f32.mrb[0].mxu0
      %2061 = vmatprep.mubr.bf16.mxu0 0
      %2062 = vmatmul.mubr.bf16.gmra.mrb[0].mxu0 %v2016
      %v2063 = vpop.f32.mrb[0].mxu0
      %v2064 = vadd.f32 %v1998, %v2063
      %v2065 = vpop.f32.mrb[0].mxu0
      %v2066 = vpop.f32.mrb[0].mxu0
      %v2067 = vadd.f32 %v1998, %v2066
      %v2068 = vpop.f32.mrb[0].mxu0
      %2069 = vmatprep.mubr.bf16.mxu0 0
      %2070 = vmatmul.mubr.bf16.gmra.mrb[0].mxu0 %v2019
      %v2071 = vpop.f32.mrb[0].mxu0
      %v2072 = vadd.f32 %v1998, %v2071
      %v2073 = vpop.f32.mrb[0].mxu0
      %v2074 = vpop.f32.mrb[0].mxu0
      %v2075 = vadd.f32 %v1998, %v2074
      %v2076 = vpop.f32.mrb[0].mxu0
      %2077 = vdwg.mxu0
      %v2078 = vld [vmem:[%s697] sm:$0x1]
      %v2080 = vlaneseq
      %v2081 = vshrl.u32 %v2080, 7
      %v2082 = vsub.s32 0, %v2081
      %v2083 = vrot.slane %v2078, %v2082
      %v2085 = vmul.f32 %v2083, %v2056
      %v2086 = vmul.f32 %v2083, %v2059
      %v2087 = vmul.f32 %v2083, %v2064
      %v2088 = vmul.f32 %v2083, %v2067
      %v2089 = vmul.f32 %v2083, %v2072
      %v2090 = vmul.f32 %v2083, %v2075
      %v2091 = vadd.f32 %v769, %v2085
      %v2092 = vadd.f32 %v770, %v2086
      %v2093 = vadd.f32 %v771, %v2087
      %v2094 = vadd.f32 %v772, %v2088
      %v2095 = vadd.f32 %v773, %v2089
      %v2096 = vadd.f32 %v774, %v2090
      %v2097 = vld [vmem:[%s700] sm:$0x1]
      %v2098 = vld [vmem:[%s703] sm:$0x1]
      %v2099 = vsel %vm777, %v2091, 0.0
      %2100 = vadd.xlane.f32.xlu0 %v2099
      %v2101 = vpop.xlane.xlu0 %2100
      %v2102 = vsel %vm777, %v2092, 0.0
      %2103 = vadd.xlane.f32.xlu0 %v2102
      %v2104 = vpop.xlane.xlu0 %2103
      %v2105 = vsel %vm777, %v2093, 0.0
      %2106 = vadd.xlane.f32.xlu0 %v2105
      %v2107 = vpop.xlane.xlu0 %2106
      %v2108 = vsel %vm777, %v2094, 0.0
      %2109 = vadd.xlane.f32.xlu0 %v2108
      %v2110 = vpop.xlane.xlu0 %2109
      %v2111 = vsel %vm777, %v2095, 0.0
      %2112 = vadd.xlane.f32.xlu0 %v2111
      %v2113 = vpop.xlane.xlu0 %2112
      %v2114 = vsel %vm793, %v2096, 0.0
      %2115 = vadd.xlane.f32.xlu0 %v2114
      %v2116 = vpop.xlane.xlu0 %2115
      %v2117 = vmul.f32 %v2101, %v797
      %v2118 = vmul.f32 %v2104, %v797
      %v2119 = vmul.f32 %v2107, %v797
      %v2120 = vmul.f32 %v2110, %v797
      %v2121 = vmul.f32 %v2113, %v797
      %v2122 = vmul.f32 %v2116, %v797
      %v2123 = vsub.f32 %v2091, %v2117
      %v2124 = vsub.f32 %v2092, %v2118
      %v2125 = vsub.f32 %v2093, %v2119
      %v2126 = vsub.f32 %v2094, %v2120
      %v2127 = vsub.f32 %v2095, %v2121
      %v2128 = vsub.f32 %v2096, %v2122
      %v2129 = vmul.f32 %v2123, %v2123
      %v2130 = vmul.f32 %v2124, %v2124
      %v2131 = vmul.f32 %v2125, %v2125
      %v2132 = vmul.f32 %v2126, %v2126
      %v2133 = vmul.f32 %v2127, %v2127
      %v2134 = vmul.f32 %v2128, %v2128
      %v2135 = vsel %vm777, %v2129, 0.0
      %2136 = vadd.xlane.f32.xlu0 %v2135
      %v2137 = vpop.xlane.xlu0 %2136
      %v2138 = vsel %vm777, %v2130, 0.0
      %2139 = vadd.xlane.f32.xlu0 %v2138
      %v2140 = vpop.xlane.xlu0 %2139
      %v2141 = vsel %vm777, %v2131, 0.0
      %2142 = vadd.xlane.f32.xlu0 %v2141
      %v2143 = vpop.xlane.xlu0 %2142
      %v2144 = vsel %vm777, %v2132, 0.0
      %2145 = vadd.xlane.f32.xlu0 %v2144
      %v2146 = vpop.xlane.xlu0 %2145
      %v2147 = vsel %vm777, %v2133, 0.0
      %2148 = vadd.xlane.f32.xlu0 %v2147
      %v2149 = vpop.xlane.xlu0 %2148
      %v2150 = vsel %vm793, %v2134, 0.0
      %2151 = vadd.xlane.f32.xlu0 %v2150
      %v2152 = vpop.xlane.xlu0 %2151
      %v2153 = vmul.f32 %v2137, %v797
      %v2154 = vmul.f32 %v2140, %v797
      %v2155 = vmul.f32 %v2143, %v797
      %v2156 = vmul.f32 %v2146, %v797
      %v2157 = vmul.f32 %v2149, %v797
      %v2158 = vmul.f32 %v2152, %v797
      %v2159 = vadd.f32 %v2153, 1e-06
      %v2160 = vadd.f32 %v2154, 1e-06
      %v2161 = vadd.f32 %v2155, 1e-06
      %v2162 = vadd.f32 %v2156, 1e-06
      %v2163 = vadd.f32 %v2157, 1e-06
      %v2164 = vadd.f32 %v2158, 1e-06
      %v2165 = vrsqrt.pop %v2159
      %v2166 = vrsqrt.pop %v2160
      %v2167 = vrsqrt.pop %v2161
      %v2168 = vrsqrt.pop %v2162
      %v2169 = vrsqrt.pop %v2163
      %v2170 = vrsqrt.pop %v2164
      %v2171 = vmul.f32 %v2123, %v2165
      %v2172 = vmul.f32 %v2124, %v2166
      %v2173 = vmul.f32 %v2125, %v2167
      %v2174 = vmul.f32 %v2126, %v2168
      %v2175 = vmul.f32 %v2127, %v2169
      %v2176 = vmul.f32 %v2128, %v2170
      %v2178 = vlaneseq
      %v2179 = vshrl.u32 %v2178, 7
      %v2180 = vsub.s32 0, %v2179
      %v2181 = vrot.slane %v2097, %v2180
      %v2183 = vmul.f32 %v2171, %v2181
      %v2184 = vmul.f32 %v2172, %v2181
      %v2185 = vmul.f32 %v2173, %v2181
      %v2186 = vmul.f32 %v2174, %v2181
      %v2187 = vmul.f32 %v2175, %v2181
      %v2188 = vmul.f32 %v2176, %v2181
      %v2190 = vlaneseq
      %v2191 = vshrl.u32 %v2190, 7
      %v2192 = vsub.s32 0, %v2191
      %v2193 = vrot.slane %v2098, %v2192
      %v2195 = vadd.f32 %v2183, %v2193
      %v2196 = vadd.f32 %v2184, %v2193
      %v2197 = vadd.f32 %v2185, %v2193
      %v2198 = vadd.f32 %v2186, %v2193
      %v2199 = vadd.f32 %v2187, %v2193
      %v2200 = vadd.f32 %v2188, %v2193
      %v2201 = vpack.c.bf16 %v2196, %v2195
      %v2202 = vpack.c.bf16 %v2198, %v2197
      %v2203 = vpack.c.bf16 %v2200, %v2199
      %v2204 = vld [vmem:[%s708] sm:$0xf]
      %v2205 = vld [vmem:[%s708 + $0x4] sm:$0xf]
      %v2206 = vld [vmem:[%s708 + $0x8] sm:$0xf]
      %v2207 = vld [vmem:[%s708 + $0xc] sm:$0xf]
      %v2208 = vld [vmem:[%s711] sm:$0x1]
      %v2210 = vlaneseq
      %v2211 = vshrl.u32 %v2210, 7
      %v2212 = vsub.s32 0, %v2211
      %v2213 = vrot.slane %v2208, %v2212
      %v2219 = vunpack.c.l.b16 %v2204
      %v2220 = vunpack.c.l.b16 %v2205
      %v2221 = vunpack.c.l.b16 %v2206
      %v2222 = vunpack.c.l.b16 %v2207
      %v2223 = vpack.c.b16 %v2220, %v2219
      %v2224 = vpack.c.b16 %v2222, %v2221
      %v2228 = vsel %vm777, %v2201, 0
      %v2231 = vsel %vm777, %v2202, 0
      %v2234 = vsel %vm777, %v2203, 0
      %2236 = vmatprep.subr.bf16.mxu0 0
      %2237 = vmatpush1.bf16.msra.mxu0 %v2223
      %2238 = vmatprep.subr.bf16.mxu0 0
      %2239 = vmatpush1.bf16.msra.mxu0 %v2224
      %2240 = vmatprep.subr.bf16.mxu0 0
      %2241 = vmatpush1.bf16.msra.mxu0 0
      %2242 = vmatprep.subr.bf16.mxu0 0
      %2243 = vmatpush1.bf16.msra.mxu0 0
      %2244 = vmatprep.subr.bf16.mxu0 0
      %2245 = vmatpush1.bf16.msra.mxu0 0
      %2246 = vmatprep.subr.bf16.mxu0 0
      %2247 = vmatpush1.bf16.msra.mxu0 0
      %2248 = vmatprep.subr.bf16.mxu0 0
      %2249 = vmatpush1.bf16.msra.mxu0 0
      %2250 = vmatprep.subr.bf16.mxu0 0
      %2251 = vmatpush1.bf16.msra.mxu0 0
      %2252 = vmatprep.subr.bf16.mxu0 0
      %2253 = vmatpush1.bf16.msra.mxu0 0
      %2254 = vmatprep.subr.bf16.mxu0 0
      %2255 = vmatpush1.bf16.msra.mxu0 0
      %2256 = vmatprep.subr.bf16.mxu0 0
      %2257 = vmatpush1.bf16.msra.mxu0 0
      %2258 = vmatprep.subr.bf16.mxu0 0
      %2259 = vmatpush1.bf16.msra.mxu0 0
      %2260 = vmatprep.subr.bf16.mxu0 0
      %2261 = vmatpush1.bf16.msra.mxu0 0
      %2262 = vmatprep.subr.bf16.mxu0 0
      %2263 = vmatpush1.bf16.msra.mxu0 0
      %2264 = vmatprep.subr.bf16.mxu0 0
      %2265 = vmatpush1.bf16.msra.mxu0 0
      %2266 = vmatprep.subr.bf16.mxu0 0
      %2267 = vmatpush1.bf16.msra.mxu0 0
      %2268 = vmatprep.mubr.bf16.mxu0 0
      %2269 = vmatmul.mubr.bf16.gmra.mrb[0].mxu0 %v2228
      %v2270 = vpop.f32.mrb[0].mxu0
      %v2271 = vadd.f32 %v2213, %v2270
      %v2272 = vpop.f32.mrb[0].mxu0
      %v2273 = vpop.f32.mrb[0].mxu0
      %v2274 = vadd.f32 %v2213, %v2273
      %v2275 = vpop.f32.mrb[0].mxu0
      %2276 = vmatprep.mubr.bf16.mxu0 0
      %2277 = vmatmul.mubr.bf16.gmra.mrb[0].mxu0 %v2231
      %v2278 = vpop.f32.mrb[0].mxu0
      %v2279 = vadd.f32 %v2213, %v2278
      %v2280 = vpop.f32.mrb[0].mxu0
      %v2281 = vpop.f32.mrb[0].mxu0
      %v2282 = vadd.f32 %v2213, %v2281
      %v2283 = vpop.f32.mrb[0].mxu0
      %2284 = vmatprep.mubr.bf16.mxu0 0
      %2285 = vmatmul.mubr.bf16.gmra.mrb[0].mxu0 %v2234
      %v2286 = vpop.f32.mrb[0].mxu0
      %v2287 = vadd.f32 %v2213, %v2286
      %v2288 = vpop.f32.mrb[0].mxu0
      %v2289 = vpop.f32.mrb[0].mxu0
      %v2290 = vadd.f32 %v2213, %v2289
      %v2291 = vpop.f32.mrb[0].mxu0
      %2292 = vdwg.mxu0
      %v2293 = vmul.f32 %v2271, 0.5
      %v2294 = vmul.f32 %v2274, 0.5
      %v2295 = vmul.f32 %v2279, 0.5
      %v2296 = vmul.f32 %v2282, 0.5
      %v2297 = vmul.f32 %v2287, 0.5
      %v2298 = vmul.f32 %v2290, 0.5
      %v2299 = vmul.f32 %v2271, 0.044715
      %v2300 = vmul.f32 %v2274, 0.044715
      %v2301 = vmul.f32 %v2279, 0.044715
      %v2302 = vmul.f32 %v2282, 0.044715
      %v2303 = vmul.f32 %v2287, 0.044715
      %v2304 = vmul.f32 %v2290, 0.044715
      %v2305 = vmul.f32 %v2299, %v2271
      %v2306 = vmul.f32 %v2300, %v2274
      %v2307 = vmul.f32 %v2301, %v2279
      %v2308 = vmul.f32 %v2302, %v2282
      %v2309 = vmul.f32 %v2303, %v2287
      %v2310 = vmul.f32 %v2304, %v2290
      %v2311 = vmul.f32 %v2305, %v2271
      %v2312 = vmul.f32 %v2306, %v2274
      %v2313 = vmul.f32 %v2307, %v2279
      %v2314 = vmul.f32 %v2308, %v2282
      %v2315 = vmul.f32 %v2309, %v2287
      %v2316 = vmul.f32 %v2310, %v2290
      %v2317 = vadd.f32 %v2271, %v2311
      %v2318 = vadd.f32 %v2274, %v2312
      %v2319 = vadd.f32 %v2279, %v2313
      %v2320 = vadd.f32 %v2282, %v2314
      %v2321 = vadd.f32 %v2287, %v2315
      %v2322 = vadd.f32 %v2290, %v2316
      %v2323 = vmul.f32 %v2317, 0.7978846
      %v2324 = vmul.f32 %v2318, 0.7978846
      %v2325 = vmul.f32 %v2319, 0.7978846
      %v2326 = vmul.f32 %v2320, 0.7978846
      %v2327 = vmul.f32 %v2321, 0.7978846
      %v2328 = vmul.f32 %v2322, 0.7978846
      %v2329 = vtanh.pop %v2323
      %v2330 = vtanh.pop %v2324
      %v2331 = vtanh.pop %v2325
      %v2332 = vtanh.pop %v2326
      %v2333 = vtanh.pop %v2327
      %v2334 = vtanh.pop %v2328
      %v2335 = vadd.f32 %v2329, 1.0
      %v2336 = vadd.f32 %v2330, 1.0
      %v2337 = vadd.f32 %v2331, 1.0
      %v2338 = vadd.f32 %v2332, 1.0
      %v2339 = vadd.f32 %v2333, 1.0
      %v2340 = vadd.f32 %v2334, 1.0
      %v2341 = vmul.f32 %v2293, %v2335
      %v2342 = vmul.f32 %v2294, %v2336
      %v2343 = vmul.f32 %v2295, %v2337
      %v2344 = vmul.f32 %v2296, %v2338
      %v2345 = vmul.f32 %v2297, %v2339
      %v2346 = vmul.f32 %v2298, %v2340
      %v2347 = vpack.c.bf16 %v2342, %v2341
      %v2348 = vpack.c.bf16 %v2344, %v2343
      %v2349 = vpack.c.bf16 %v2346, %v2345
      %v2350 = vld [vmem:[%s716] sm:$0xf]
      %v2351 = vld [vmem:[%s716 + $0x4] sm:$0xf]
      %v2352 = vld [vmem:[%s716 + $0x8] sm:$0xf]
      %v2353 = vld [vmem:[%s716 + $0xc] sm:$0xf]
      %v2354 = vld [vmem:[%s716 + $0x10] sm:$0xf]
      %v2355 = vld [vmem:[%s716 + $0x14] sm:$0xf]
      %v2356 = vld [vmem:[%s716 + $0x18] sm:$0xf]
      %v2357 = vld [vmem:[%s716 + $0x1c] sm:$0xf]
      %v2358 = vld [vmem:[%s716 + $0x20] sm:$0xf]
      %v2359 = vld [vmem:[%s716 + $0x24] sm:$0xf]
      %v2360 = vld [vmem:[%s716 + $0x28] sm:$0xf]
      %v2361 = vld [vmem:[%s716 + $0x2c] sm:$0xf]
      %v2362 = vld [vmem:[%s716 + $0x30] sm:$0xf]
      %v2363 = vld [vmem:[%s716 + $0x34] sm:$0xf]
      %v2364 = vld [vmem:[%s716 + $0x38] sm:$0xf]
      %v2365 = vld [vmem:[%s716 + $0x3c] sm:$0xf]
      %v2366 = vld [vmem:[%s719] sm:$0x1]
      %v2368 = vlaneseq
      %v2369 = vshrl.u32 %v2368, 7
      %v2370 = vsub.s32 0, %v2369
      %v2371 = vrot.slane %v2366, %v2370
      %v2389 = vunpack.c.l.b16 %v2350
      %v2390 = vunpack.c.l.b16 %v2351
      %v2391 = vunpack.c.l.b16 %v2352
      %v2392 = vunpack.c.l.b16 %v2353
      %v2393 = vunpack.c.l.b16 %v2354
      %v2394 = vunpack.c.l.b16 %v2355
      %v2395 = vunpack.c.l.b16 %v2356
      %v2396 = vunpack.c.l.b16 %v2357
      %v2397 = vunpack.c.l.b16 %v2358
      %v2398 = vunpack.c.l.b16 %v2359
      %v2399 = vunpack.c.l.b16 %v2360
      %v2400 = vunpack.c.l.b16 %v2361
      %v2401 = vunpack.c.l.b16 %v2362
      %v2402 = vunpack.c.l.b16 %v2363
      %v2403 = vunpack.c.l.b16 %v2364
      %v2404 = vunpack.c.l.b16 %v2365
      %v2405 = vpack.c.b16 %v2390, %v2389
      %v2406 = vpack.c.b16 %v2392, %v2391
      %v2407 = vpack.c.b16 %v2394, %v2393
      %v2408 = vpack.c.b16 %v2396, %v2395
      %v2409 = vpack.c.b16 %v2398, %v2397
      %v2410 = vpack.c.b16 %v2400, %v2399
      %v2411 = vpack.c.b16 %v2402, %v2401
      %v2412 = vpack.c.b16 %v2404, %v2403
      %2421 = vmatprep.subr.bf16.mxu0 0
      %2422 = vmatpush1.bf16.msra.mxu0 %v2405
      %2423 = vmatprep.subr.bf16.mxu0 0
      %2424 = vmatpush1.bf16.msra.mxu0 %v2406
      %2425 = vmatprep.subr.bf16.mxu0 0
      %2426 = vmatpush1.bf16.msra.mxu0 %v2407
      %2427 = vmatprep.subr.bf16.mxu0 0
      %2428 = vmatpush1.bf16.msra.mxu0 %v2408
      %2429 = vmatprep.subr.bf16.mxu0 0
      %2430 = vmatpush1.bf16.msra.mxu0 %v2409
      %2431 = vmatprep.subr.bf16.mxu0 0
      %2432 = vmatpush1.bf16.msra.mxu0 %v2410
      %2433 = vmatprep.subr.bf16.mxu0 0
      %2434 = vmatpush1.bf16.msra.mxu0 %v2411
      %2435 = vmatprep.subr.bf16.mxu0 0
      %2436 = vmatpush1.bf16.msra.mxu0 %v2412
      %2437 = vmatprep.subr.bf16.mxu0 0
      %2438 = vmatpush1.bf16.msra.mxu0 0
      %2439 = vmatprep.subr.bf16.mxu0 0
      %2440 = vmatpush1.bf16.msra.mxu0 0
      %2441 = vmatprep.subr.bf16.mxu0 0
      %2442 = vmatpush1.bf16.msra.mxu0 0
      %2443 = vmatprep.subr.bf16.mxu0 0
      %2444 = vmatpush1.bf16.msra.mxu0 0
      %2445 = vmatprep.subr.bf16.mxu0 0
      %2446 = vmatpush1.bf16.msra.mxu0 0
      %2447 = vmatprep.subr.bf16.mxu0 0
      %2448 = vmatpush1.bf16.msra.mxu0 0
      %2449 = vmatprep.subr.bf16.mxu0 0
      %2450 = vmatpush1.bf16.msra.mxu0 0
      %2451 = vmatprep.subr.bf16.mxu0 0
      %2452 = vmatpush1.bf16.msra.mxu0 0
      %2453 = vmatprep.mubr.bf16.mxu0 0
      %2454 = vmatmul.mubr.bf16.gmra.mrb[0].mxu0 %v2347
      %v2455 = vpop.f32.mrb[0].mxu0
      %v2456 = vadd.f32 %v2371, %v2455
      %v2457 = vpop.f32.mrb[0].mxu0
      %v2458 = vpop.f32.mrb[0].mxu0
      %v2459 = vadd.f32 %v2371, %v2458
      %v2460 = vpop.f32.mrb[0].mxu0
      %2461 = vmatprep.mubr.bf16.mxu0 0
      %2462 = vmatmul.mubr.bf16.gmra.mrb[0].mxu0 %v2348
      %v2463 = vpop.f32.mrb[0].mxu0
      %v2464 = vadd.f32 %v2371, %v2463
      %v2465 = vpop.f32.mrb[0].mxu0
      %v2466 = vpop.f32.mrb[0].mxu0
      %v2467 = vadd.f32 %v2371, %v2466
      %v2468 = vpop.f32.mrb[0].mxu0
      %2469 = vmatprep.mubr.bf16.mxu0 0
      %2470 = vmatmul.mubr.bf16.gmra.mrb[0].mxu0 %v2349
      %v2471 = vpop.f32.mrb[0].mxu0
      %v2472 = vadd.f32 %v2371, %v2471
      %v2473 = vpop.f32.mrb[0].mxu0
      %v2474 = vpop.f32.mrb[0].mxu0
      %v2475 = vadd.f32 %v2371, %v2474
      %v2476 = vpop.f32.mrb[0].mxu0
      %2477 = vdwg.mxu0
      %v2478 = vld [vmem:[%s722] sm:$0x1]
      %v2480 = vlaneseq
      %v2481 = vshrl.u32 %v2480, 7
      %v2482 = vsub.s32 0, %v2481
      %v2483 = vrot.slane %v2478, %v2482
      %v2485 = vmul.f32 %v2483, %v2456
      %v2486 = vmul.f32 %v2483, %v2459
      %v2487 = vmul.f32 %v2483, %v2464
      %v2488 = vmul.f32 %v2483, %v2467
      %v2489 = vmul.f32 %v2483, %v2472
      %v2490 = vmul.f32 %v2483, %v2475
      %v2491 = vadd.f32 %v2091, %v2485
      %v2492 = vadd.f32 %v2092, %v2486
      %v2493 = vadd.f32 %v2093, %v2487
      %v2494 = vadd.f32 %v2094, %v2488
      %v2495 = vadd.f32 %v2095, %v2489
      %v2496 = vadd.f32 %v2096, %v2490
      %2497 = vst.msk [vmem:[#allocation2] sm:$0xff] %vm777, %v2491
      %2498 = vst.msk [vmem:[#allocation2 + $0x8] sm:$0xff] %vm777, %v2492
      %2499 = vst.msk [vmem:[#allocation2 + $0x10] sm:$0xff] %vm777, %v2493
      %2500 = vst.msk [vmem:[#allocation2 + $0x18] sm:$0xff] %vm777, %v2494
      %2501 = vst.msk [vmem:[#allocation2 + $0x20] sm:$0xff] %vm777, %v2495
      %2502 = vst.msk [vmem:[#allocation2 + $0x28] sm:$0x3] %vm793, %v2496
      %v2503 = vpack.c.bf16 %v2492, %v2491
      %v2504 = vpack.c.bf16 %v2494, %v2493
      %v2505 = vpack.c.bf16 %v2496, %v2495
      %v2509 = vunpack.c.l.b16 %v2503
      %v2510 = vunpack.c.h.b16 %v2503
      %v2511 = vunpack.c.l.b16 %v2504
      %v2512 = vunpack.c.h.b16 %v2504
      %v2513 = vunpack.c.l.b16 %v2505
      %v2514 = vunpack.c.h.b16 %v2505
      %v2515 = vpack.c.b16 %v2509, %v2509
      %v2516 = vpack.c.b16 %v2510, %v2510
      %v2517 = vpack.c.b16 %v2511, %v2511
      %v2518 = vpack.c.b16 %v2512, %v2512
      %v2519 = vpack.c.b16 %v2513, %v2513
      %v2520 = vpack.c.b16 %v2514, %v2514
      %vm2527 = vcmask 257024
      %2528 = vst.msk [vmem:[%s738] sm:$0xf] %vm2527, %v2515
      %2529 = vst.msk [vmem:[%s738 + $0x4] sm:$0xf] %vm2527, %v2516
      %2530 = vst.msk [vmem:[%s738 + $0x8] sm:$0xf] %vm2527, %v2517
      %2531 = vst.msk [vmem:[%s738 + $0xc] sm:$0xf] %vm2527, %v2518
      %2532 = vst.msk [vmem:[%s738 + $0x10] sm:$0xf] %vm2527, %v2519
      %vm2533 = vcmask 253952
      %2534 = vst.msk [vmem:[%s738 + $0x14] sm:$0x1] %vm2533, %v2520
      %p2535 = scmp.gt.s32.totalorder %s26, 2
      %s2536 = scalar_select %p2535, 1, 0
      %p2537 = scmp.gt.s32.totalorder %s26, 5
      %s2538 = scalar_select %p2537, 1, 0
      %s2539 = sadd.s32 %s2536, %s2538
      %p2540 = scmp.gt.s32.totalorder %s26, 8
      %s2541 = scalar_select %p2540, 1, 0
      %s2542 = sadd.s32 %s2539, %s2541
      %p2543 = scmp.gt.s32.totalorder %s26, 11
      %s2544 = scalar_select %p2543, 1, 0
      %s2545 = sadd.s32 %s2542, %s2544
      %p2546 = scmp.lt.s32.totalorder %s2545, 3
      %s2547 = scalar_select %p2546, %s2545, 3
      %s2548 = smul.addr %s2547, 6
      %s2549 = smul.addr %s2548, 4
      %s2550 = scalar_lea.vmem %s15, %s2549
      // Predicated region
      $region85: #{projected_discriminator_forward.4} parent=79 // pred_check
        %p2551 = pneg %p451
      $region86: #{projected_discriminator_forward.4} parent=79 // pred_check_branch
        %2553 = sbr.rel (%p2551) target = $region88
      $region87: #{projected_discriminator_forward.4} parent=79 // pred_region
        %p2554 = scmp.gt.s32.totalorder %s26, 2
        %s2555 = scalar_select %p2554, 1, 0
        %p2556 = scmp.gt.s32.totalorder %s26, 5
        %s2557 = scalar_select %p2556, 1, 0
        %s2558 = sadd.s32 %s2555, %s2557
        %p2559 = scmp.gt.s32.totalorder %s26, 8
        %s2560 = scalar_select %p2559, 1, 0
        %s2561 = sadd.s32 %s2558, %s2560
        %p2562 = scmp.gt.s32.totalorder %s26, 11
        %s2563 = scalar_select %p2562, 1, 0
        %s2564 = sadd.s32 %s2561, %s2563
      $region88: #{projected_discriminator_forward.4} parent=79 // pred_fallthru
        _
    $region80: #{projected_discriminator_forward.4} parent=5 // pred_fallthru
      _
    %p2565 = scmp.le.s32.totalorder 2, %s21
    // Predicated region
    $region89: #{projected_discriminator_forward.4} parent=5 // pred_check
      %p2566 = pneg %p2565
    $region90: #{projected_discriminator_forward.4} parent=5 // pred_check_branch
      %2568 = sbr.rel (%p2566) target = $region92
    $region91: #{projected_discriminator_forward.4} parent=5 // pred_region
      %s2569 = ssub.s32 %s21, 2
      // Predicated region
      $region93: #{projected_discriminator_forward.4} parent=91 // pred_check
        %p2570 = pneg %p457
      $region94: #{projected_discriminator_forward.4} parent=91 // pred_check_branch
        %2572 = sbr.rel (%p2570) target = $region96
      $region95: #{projected_discriminator_forward.4} parent=91 // pred_region
        %p2573 = scmp.gt.s32.totalorder %s27, 2
        %s2574 = scalar_select %p2573, 1, 0
        %p2575 = scmp.gt.s32.totalorder %s27, 5
        %s2576 = scalar_select %p2575, 1, 0
        %s2577 = sadd.s32 %s2574, %s2576
        %p2578 = scmp.gt.s32.totalorder %s27, 8
        %s2579 = scalar_select %p2578, 1, 0
        %s2580 = sadd.s32 %s2577, %s2579
        %p2581 = scmp.gt.s32.totalorder %s27, 11
        %s2582 = scalar_select %p2581, 1, 0
        %s2583 = sadd.s32 %s2580, %s2582
        %p2584 = scmp.lt.s32.totalorder %s2583, 3
        %s2585 = scalar_select %p2584, %s2583, 3
        %s2586 = smul.addr %s2585, 6
        %s2587 = smul.addr %s2586, 4
        %s2588 = scalar_lea.vmem %s15, %s2587
      $region96: #{projected_discriminator_forward.4} parent=91 // pred_fallthru
        _
    $region92: #{projected_discriminator_forward.4} parent=5 // pred_fallthru
      _
  $region6: #{projected_discriminator_forward.4} parent=0 // loop_footer
    %s25 = sadd.s32 1, %s21
  $region7: #{projected_discriminator_forward.4} parent=0 // loop_footer_branch
    %20 = sbr.rel target = $region3
  $region8: #{projected_discriminator_forward.4} parent=0 // loop_exit
    _

// kernel: projected_discriminator_forward.5
$region0: #{projected_discriminator_forward.5}
  #allocation0 [shape = 'u32[]', space=smem, size = 0x4, offset = 0x4, fixed_abs, tag = 'smem constant byte address 0x4 - core index']
  #allocation1 [shape = 'u32[144,128]{1,0:T(1,128)}', space=vmem, size = 0x12000, scoped, tag = 'internal scratch']
  %s0 = inlined_call_operand.vmem [shape: bf16[5,42,32], index: 0, kind: input, shape index: {}]
  %s1 = inlined_call_operand.vmem [shape: bf16[5,32,32], index: 1, kind: input, shape index: {}]
  %s2 = inlined_call_operand.vmem [shape: f32[5,1,32], index: 2, kind: input, shape index: {}]
  %s3 = inlined_call_operand.vmem [shape: f32[5,1,32], index: 3, kind: input, shape index: {}]
  %s4 = inlined_call_operand.vmem [shape: f32[5,1,32], index: 4, kind: input, shape index: {}]
  %s5 = inlined_call_operand.vmem [shape: bf16[5,288,32], index: 5, kind: input, shape index: {}]
  %s6 = inlined_call_operand.vmem [shape: f32[5,1,32], index: 6, kind: input, shape index: {}]
  %s7 = inlined_call_operand.vmem [shape: f32[5,1,32], index: 7, kind: input, shape index: {}]
  %s8 = inlined_call_operand.vmem [shape: f32[5,1,32], index: 8, kind: input, shape index: {}]
  %s9 = inlined_call_operand.vmem [shape: f32[5,1,32], index: 9, kind: input, shape index: {}]
  %s10 = inlined_call_operand.vmem [shape: f32[5,1,1], index: 10, kind: input, shape index: {}]
  %s11 = inlined_call_operand.vmem [shape: f32[5,2,21], index: 11, kind: output, shape index: {}]
  %s12 = sld [smem:[#allocation0]]
  $region77: #{projected_discriminator_forward.5} parent=0
    _
  %s14 = ssub.s32 1, %s12
  %s15 = scalar_select 0, %s14, %s12
  loop: start=0, step=1, limit=7
  $region2: #{projected_discriminator_forward.5} parent=0 // loop_pre_header
    _
  $region3: #{projected_discriminator_forward.5} parent=0 // loop_header
    %s17 = sphi 0, %s21
    %p18 = scmp.ge.s32.totalorder %s17, 7
    %s27 = sphi 0, %s29
    %s30 = sphi 0, %s27
    %s31 = sphi 0, %s30
    %s47 = sphi 0, %s31
    %s53 = sphi 0, %s55
    %s56 = sphi 0, %s53
    %s57 = sphi 0, %s56
    %s73 = sphi 0, %s57
    %s79 = sphi 0, %s81
    %s82 = sphi 0, %s79
    %s83 = sphi 0, %s82
    %s99 = sphi 0, %s83
    %s105 = sphi 0, %s107
    %s108 = sphi 0, %s105
    %s109 = sphi 0, %s108
    %s125 = sphi 0, %s109
    %s131 = sphi 0, %s133
    %s134 = sphi 0, %s131
    %s135 = sphi 0, %s134
    %s151 = sphi 0, %s135
    %s157 = sphi 0, %s159
    %s160 = sphi 0, %s157
    %s161 = sphi 0, %s160
    %s177 = sphi 0, %s161
    %s183 = sphi 0, %s185
    %s186 = sphi 0, %s183
    %s187 = sphi 0, %s186
    %s203 = sphi 0, %s187
    %s209 = sphi 0, %s211
    %s212 = sphi 0, %s209
    %s213 = sphi 0, %s212
    %s229 = sphi 0, %s213
    %s235 = sphi 0, %s237
    %s238 = sphi 0, %s235
    %s239 = sphi 0, %s238
    %s255 = sphi 0, %s239
    %s261 = sphi 0, %s263
    %s264 = sphi 0, %s261
    %s265 = sphi 0, %s264
    %s281 = sphi 0, %s265
    %s287 = sphi 0, %s289
    %s290 = sphi 0, %s287
    %s291 = sphi 0, %s290
    %s307 = sphi 0, %s291
    %s313 = sphi 0, %s315
    %s316 = sphi 0, %s313
    %s317 = sphi 0, %s316
    %s333 = sphi 0, %s317
  $region4: #{projected_discriminator_forward.5} parent=0 // loop_header_branch
    %20 = sbr.rel (%p18) target = $region8
  $region5: #{projected_discriminator_forward.5} parent=0 // loop_body
    %s22 = ssub.s32 %s17, 1
    %s23 = ssub.s32 %s17, 2
    %s24 = sadd.s32 %s17, 1
    %s25 = ssub.s32 %s17, %s24
    %p26 = scmp.eq.s32.totalorder %s25, 0
    %s28 = sadd.s32 %s27, 1
    %s29 = scalar_select %p26, %s27, %s28
    %p32 = pneg %p26
    %p33 = scmp.eq.s32.totalorder %s17, 4
    %p34 = por %p32, %p33
    %p35 = scmp.ne.s32.totalorder %s27, %s30
    %p36 = scmp.eq.s32.totalorder %s17, 0
    %p37 = por %p35, %p36
    %p38 = scmp.ne.s32.totalorder %s27, %s30
    %p39 = scmp.eq.s32.totalorder %s22, 4
    %p40 = por %p38, %p39
    %p41 = scmp.ne.s32.totalorder %s30, %s31
    %p42 = scmp.eq.s32.totalorder %s22, 0
    %p43 = por %p41, %p42
    %p44 = scmp.ne.s32.totalorder %s30, %s31
    %p45 = scmp.eq.s32.totalorder %s23, 4
    %p46 = por %p44, %p45
    %p48 = scmp.ne.s32.totalorder %s31, %s47
    %p49 = scmp.eq.s32.totalorder %s23, 0
    %p50 = por %p48, %p49
    %s51 = ssub.s32 %s17, %s24
    %p52 = scmp.eq.s32.totalorder %s51, 0
    %s54 = sadd.s32 %s53, 1
    %s55 = scalar_select %p52, %s53, %s54
    %p58 = pneg %p52
    %p59 = scmp.eq.s32.totalorder %s17, 4
    %p60 = por %p58, %p59
    %p61 = scmp.ne.s32.totalorder %s53, %s56
    %p62 = scmp.eq.s32.totalorder %s17, 0
    %p63 = por %p61, %p62
    %p64 = scmp.ne.s32.totalorder %s53, %s56
    %p65 = scmp.eq.s32.totalorder %s22, 4
    %p66 = por %p64, %p65
    %p67 = scmp.ne.s32.totalorder %s56, %s57
    %p68 = scmp.eq.s32.totalorder %s22, 0
    %p69 = por %p67, %p68
    %p70 = scmp.ne.s32.totalorder %s56, %s57
    %p71 = scmp.eq.s32.totalorder %s23, 4
    %p72 = por %p70, %p71
    %p74 = scmp.ne.s32.totalorder %s57, %s73
    %p75 = scmp.eq.s32.totalorder %s23, 0
    %p76 = por %p74, %p75
    %s77 = ssub.s32 %s17, %s24
    %p78 = scmp.eq.s32.totalorder %s77, 0
    %s80 = sadd.s32 %s79, 1
    %s81 = scalar_select %p78, %s79, %s80
    %p84 = pneg %p78
    %p85 = scmp.eq.s32.totalorder %s17, 4
    %p86 = por %p84, %p85
    %p87 = scmp.ne.s32.totalorder %s79, %s82
    %p88 = scmp.eq.s32.totalorder %s17, 0
    %p89 = por %p87, %p88
    %p90 = scmp.ne.s32.totalorder %s79, %s82
    %p91 = scmp.eq.s32.totalorder %s22, 4
    %p92 = por %p90, %p91
    %p93 = scmp.ne.s32.totalorder %s82, %s83
    %p94 = scmp.eq.s32.totalorder %s22, 0
    %p95 = por %p93, %p94
    %p96 = scmp.ne.s32.totalorder %s82, %s83
    %p97 = scmp.eq.s32.totalorder %s23, 4
    %p98 = por %p96, %p97
    %p100 = scmp.ne.s32.totalorder %s83, %s99
    %p101 = scmp.eq.s32.totalorder %s23, 0
    %p102 = por %p100, %p101
    %s103 = ssub.s32 %s17, %s24
    %p104 = scmp.eq.s32.totalorder %s103, 0
    %s106 = sadd.s32 %s105, 1
    %s107 = scalar_select %p104, %s105, %s106
    %p110 = pneg %p104
    %p111 = scmp.eq.s32.totalorder %s17, 4
    %p112 = por %p110, %p111
    %p113 = scmp.ne.s32.totalorder %s105, %s108
    %p114 = scmp.eq.s32.totalorder %s17, 0
    %p115 = por %p113, %p114
    %p116 = scmp.ne.s32.totalorder %s105, %s108
    %p117 = scmp.eq.s32.totalorder %s22, 4
    %p118 = por %p116, %p117
    %p119 = scmp.ne.s32.totalorder %s108, %s109
    %p120 = scmp.eq.s32.totalorder %s22, 0
    %p121 = por %p119, %p120
    %p122 = scmp.ne.s32.totalorder %s108, %s109
    %p123 = scmp.eq.s32.totalorder %s23, 4
    %p124 = por %p122, %p123
    %p126 = scmp.ne.s32.totalorder %s109, %s125
    %p127 = scmp.eq.s32.totalorder %s23, 0
    %p128 = por %p126, %p127
    %s129 = ssub.s32 %s17, %s24
    %p130 = scmp.eq.s32.totalorder %s129, 0
    %s132 = sadd.s32 %s131, 1
    %s133 = scalar_select %p130, %s131, %s132
    %p136 = pneg %p130
    %p137 = scmp.eq.s32.totalorder %s17, 4
    %p138 = por %p136, %p137
    %p139 = scmp.ne.s32.totalorder %s131, %s134
    %p140 = scmp.eq.s32.totalorder %s17, 0
    %p141 = por %p139, %p140
    %p142 = scmp.ne.s32.totalorder %s131, %s134
    %p143 = scmp.eq.s32.totalorder %s22, 4
    %p144 = por %p142, %p143
    %p145 = scmp.ne.s32.totalorder %s134, %s135
    %p146 = scmp.eq.s32.totalorder %s22, 0
    %p147 = por %p145, %p146
    %p148 = scmp.ne.s32.totalorder %s134, %s135
    %p149 = scmp.eq.s32.totalorder %s23, 4
    %p150 = por %p148, %p149
    %p152 = scmp.ne.s32.totalorder %s135, %s151
    %p153 = scmp.eq.s32.totalorder %s23, 0
    %p154 = por %p152, %p153
    %s155 = ssub.s32 %s17, %s24
    %p156 = scmp.eq.s32.totalorder %s155, 0
    %s158 = sadd.s32 %s157, 1
    %s159 = scalar_select %p156, %s157, %s158
    %p162 = pneg %p156
    %p163 = scmp.eq.s32.totalorder %s17, 4
    %p164 = por %p162, %p163
    %p165 = scmp.ne.s32.totalorder %s157, %s160
    %p166 = scmp.eq.s32.totalorder %s17, 0
    %p167 = por %p165, %p166
    %p168 = scmp.ne.s32.totalorder %s157, %s160
    %p169 = scmp.eq.s32.totalorder %s22, 4
    %p170 = por %p168, %p169
    %p171 = scmp.ne.s32.totalorder %s160, %s161
    %p172 = scmp.eq.s32.totalorder %s22, 0
    %p173 = por %p171, %p172
    %p174 = scmp.ne.s32.totalorder %s160, %s161
    %p175 = scmp.eq.s32.totalorder %s23, 4
    %p176 = por %p174, %p175
    %p178 = scmp.ne.s32.totalorder %s161, %s177
    %p179 = scmp.eq.s32.totalorder %s23, 0
    %p180 = por %p178, %p179
    %s181 = ssub.s32 %s17, %s24
    %p182 = scmp.eq.s32.totalorder %s181, 0
    %s184 = sadd.s32 %s183, 1
    %s185 = scalar_select %p182, %s183, %s184
    %p188 = pneg %p182
    %p189 = scmp.eq.s32.totalorder %s17, 4
    %p190 = por %p188, %p189
    %p191 = scmp.ne.s32.totalorder %s183, %s186
    %p192 = scmp.eq.s32.totalorder %s17, 0
    %p193 = por %p191, %p192
    %p194 = scmp.ne.s32.totalorder %s183, %s186
    %p195 = scmp.eq.s32.totalorder %s22, 4
    %p196 = por %p194, %p195
    %p197 = scmp.ne.s32.totalorder %s186, %s187
    %p198 = scmp.eq.s32.totalorder %s22, 0
    %p199 = por %p197, %p198
    %p200 = scmp.ne.s32.totalorder %s186, %s187
    %p201 = scmp.eq.s32.totalorder %s23, 4
    %p202 = por %p200, %p201
    %p204 = scmp.ne.s32.totalorder %s187, %s203
    %p205 = scmp.eq.s32.totalorder %s23, 0
    %p206 = por %p204, %p205
    %s207 = ssub.s32 %s17, %s24
    %p208 = scmp.eq.s32.totalorder %s207, 0
    %s210 = sadd.s32 %s209, 1
    %s211 = scalar_select %p208, %s209, %s210
    %p214 = pneg %p208
    %p215 = scmp.eq.s32.totalorder %s17, 4
    %p216 = por %p214, %p215
    %p217 = scmp.ne.s32.totalorder %s209, %s212
    %p218 = scmp.eq.s32.totalorder %s17, 0
    %p219 = por %p217, %p218
    %p220 = scmp.ne.s32.totalorder %s209, %s212
    %p221 = scmp.eq.s32.totalorder %s22, 4
    %p222 = por %p220, %p221
    %p223 = scmp.ne.s32.totalorder %s212, %s213
    %p224 = scmp.eq.s32.totalorder %s22, 0
    %p225 = por %p223, %p224
    %p226 = scmp.ne.s32.totalorder %s212, %s213
    %p227 = scmp.eq.s32.totalorder %s23, 4
    %p228 = por %p226, %p227
    %p230 = scmp.ne.s32.totalorder %s213, %s229
    %p231 = scmp.eq.s32.totalorder %s23, 0
    %p232 = por %p230, %p231
    %s233 = ssub.s32 %s17, %s24
    %p234 = scmp.eq.s32.totalorder %s233, 0
    %s236 = sadd.s32 %s235, 1
    %s237 = scalar_select %p234, %s235, %s236
    %p240 = pneg %p234
    %p241 = scmp.eq.s32.totalorder %s17, 4
    %p242 = por %p240, %p241
    %p243 = scmp.ne.s32.totalorder %s235, %s238
    %p244 = scmp.eq.s32.totalorder %s17, 0
    %p245 = por %p243, %p244
    %p246 = scmp.ne.s32.totalorder %s235, %s238
    %p247 = scmp.eq.s32.totalorder %s22, 4
    %p248 = por %p246, %p247
    %p249 = scmp.ne.s32.totalorder %s238, %s239
    %p250 = scmp.eq.s32.totalorder %s22, 0
    %p251 = por %p249, %p250
    %p252 = scmp.ne.s32.totalorder %s238, %s239
    %p253 = scmp.eq.s32.totalorder %s23, 4
    %p254 = por %p252, %p253
    %p256 = scmp.ne.s32.totalorder %s239, %s255
    %p257 = scmp.eq.s32.totalorder %s23, 0
    %p258 = por %p256, %p257
    %s259 = ssub.s32 %s17, %s24
    %p260 = scmp.eq.s32.totalorder %s259, 0
    %s262 = sadd.s32 %s261, 1
    %s263 = scalar_select %p260, %s261, %s262
    %p266 = pneg %p260
    %p267 = scmp.eq.s32.totalorder %s17, 4
    %p268 = por %p266, %p267
    %p269 = scmp.ne.s32.totalorder %s261, %s264
    %p270 = scmp.eq.s32.totalorder %s17, 0
    %p271 = por %p269, %p270
    %p272 = scmp.ne.s32.totalorder %s261, %s264
    %p273 = scmp.eq.s32.totalorder %s22, 4
    %p274 = por %p272, %p273
    %p275 = scmp.ne.s32.totalorder %s264, %s265
    %p276 = scmp.eq.s32.totalorder %s22, 0
    %p277 = por %p275, %p276
    %p278 = scmp.ne.s32.totalorder %s264, %s265
    %p279 = scmp.eq.s32.totalorder %s23, 4
    %p280 = por %p278, %p279
    %p282 = scmp.ne.s32.totalorder %s265, %s281
    %p283 = scmp.eq.s32.totalorder %s23, 0
    %p284 = por %p282, %p283
    %s285 = ssub.s32 %s17, %s24
    %p286 = scmp.eq.s32.totalorder %s285, 0
    %s288 = sadd.s32 %s287, 1
    %s289 = scalar_select %p286, %s287, %s288
    %p292 = pneg %p286
    %p293 = scmp.eq.s32.totalorder %s17, 4
    %p294 = por %p292, %p293
    %p295 = scmp.ne.s32.totalorder %s287, %s290
    %p296 = scmp.eq.s32.totalorder %s17, 0
    %p297 = por %p295, %p296
    %p298 = scmp.ne.s32.totalorder %s287, %s290
    %p299 = scmp.eq.s32.totalorder %s22, 4
    %p300 = por %p298, %p299
    %p301 = scmp.ne.s32.totalorder %s290, %s291
    %p302 = scmp.eq.s32.totalorder %s22, 0
    %p303 = por %p301, %p302
    %p304 = scmp.ne.s32.totalorder %s290, %s291
    %p305 = scmp.eq.s32.totalorder %s23, 4
    %p306 = por %p304, %p305
    %p308 = scmp.ne.s32.totalorder %s291, %s307
    %p309 = scmp.eq.s32.totalorder %s23, 0
    %p310 = por %p308, %p309
    %s311 = ssub.s32 %s17, %s24
    %p312 = scmp.eq.s32.totalorder %s311, 0
    %s314 = sadd.s32 %s313, 1
    %s315 = scalar_select %p312, %s313, %s314
    %p318 = pneg %p312
    %p319 = scmp.eq.s32.totalorder %s17, 4
    %p320 = por %p318, %p319
    %p321 = scmp.ne.s32.totalorder %s313, %s316
    %p322 = scmp.eq.s32.totalorder %s17, 0
    %p323 = por %p321, %p322
    %p324 = scmp.ne.s32.totalorder %s313, %s316
    %p325 = scmp.eq.s32.totalorder %s22, 4
    %p326 = por %p324, %p325
    %p327 = scmp.ne.s32.totalorder %s316, %s317
    %p328 = scmp.eq.s32.totalorder %s22, 0
    %p329 = por %p327, %p328
    %p330 = scmp.ne.s32.totalorder %s316, %s317
    %p331 = scmp.eq.s32.totalorder %s23, 4
    %p332 = por %p330, %p331
    %p334 = scmp.ne.s32.totalorder %s317, %s333
    %p335 = scmp.eq.s32.totalorder %s23, 0
    %p336 = por %p334, %p335
    %p337 = scmp.le.s32.totalorder 1, %s17
    %p338 = scmp.lt.s32.totalorder %s17, 6
    %p339 = pnand %p337, %p338
    %p340 = pneg %p339
    // Predicated region
    $region9: #{projected_discriminator_forward.5} parent=5 // pred_check
      _
    $region10: #{projected_discriminator_forward.5} parent=5 // pred_check_branch
      %342 = sbr.rel (%p339) target = $region12
    $region11: #{projected_discriminator_forward.5} parent=5 // pred_region
      %s343 = ssub.s32 %s17, 1
    $region12: #{projected_discriminator_forward.5} parent=5 // pred_fallthru
      _
    %p344 = scmp.lt.s32.totalorder %s17, 5
    // Predicated region
    $region13: #{projected_discriminator_forward.5} parent=5 // pred_check
      %p345 = pneg %p344
    $region14: #{projected_discriminator_forward.5} parent=5 // pred_check_branch
      %347 = sbr.rel (%p345) target = $region16
    $region15: #{projected_discriminator_forward.5} parent=5 // pred_region
      // Predicated region
      $region17: #{projected_discriminator_forward.5} parent=15 // pred_check
        %p348 = pneg %p37
      $region18: #{projected_discriminator_forward.5} parent=15 // pred_check_branch
        %350 = sbr.rel (%p348) target = $region20
      $region19: #{projected_discriminator_forward.5} parent=15 // pred_region
        %p351 = scmp.lt.s32.totalorder %s17, 4
        %s352 = scalar_select %p351, %s17, 4
        %s353 = smul.addr %s352, 6
        %s354 = smul.addr %s353, 4
        %s355 = scalar_lea.vmem %s0, %s354
      $region20: #{projected_discriminator_forward.5} parent=15 // pred_fallthru
        _
      // Predicated region
      $region21: #{projected_discriminator_forward.5} parent=15 // pred_check
        %p356 = pneg %p63
      $region22: #{projected_discriminator_forward.5} parent=15 // pred_check_branch
        %358 = sbr.rel (%p356) target = $region24
      $region23: #{projected_discriminator_forward.5} parent=15 // pred_region
        %p359 = scmp.lt.s32.totalorder %s17, 4
        %s360 = scalar_select %p359, %s17, 4
        %s361 = smul.addr %s360, 4
        %s362 = smul.addr %s361, 4
        %s363 = scalar_lea.vmem %s1, %s362
      $region24: #{projected_discriminator_forward.5} parent=15 // pred_fallthru
        _
      // Predicated region
      $region25: #{projected_discriminator_forward.5} parent=15 // pred_check
        %p364 = pneg %p89
      $region26: #{projected_discriminator_forward.5} parent=15 // pred_check_branch
        %366 = sbr.rel (%p364) target = $region28
      $region27: #{projected_discriminator_forward.5} parent=15 // pred_region
        %p367 = scmp.lt.s32.totalorder %s17, 4
        %s368 = scalar_select %p367, %s17, 4
        %s369 = scalar_lea.vmem %s2, %s368
      $region28: #{projected_discriminator_forward.5} parent=15 // pred_fallthru
        _
      // Predicated region
      $region29: #{projected_discriminator_forward.5} parent=15 // pred_check
        %p370 = pneg %p115
      $region30: #{projected_discriminator_forward.5} parent=15 // pred_check_branch
        %372 = sbr.rel (%p370) target = $region32
      $region31: #{projected_discriminator_forward.5} parent=15 // pred_region
        %p373 = scmp.lt.s32.totalorder %s17, 4
        %s374 = scalar_select %p373, %s17, 4
        %s375 = scalar_lea.vmem %s3, %s374
      $region32: #{projected_discriminator_forward.5} parent=15 // pred_fallthru
        _
      // Predicated region
      $region33: #{projected_discriminator_forward.5} parent=15 // pred_check
        %p376 = pneg %p141
      $region34: #{projected_discriminator_forward.5} parent=15 // pred_check_branch
        %378 = sbr.rel (%p376) target = $region36
      $region35: #{projected_discriminator_forward.5} parent=15 // pred_region
        %p379 = scmp.lt.s32.totalorder %s17, 4
        %s380 = scalar_select %p379, %s17, 4
        %s381 = scalar_lea.vmem %s4, %s380
      $region36: #{projected_discriminator_forward.5} parent=15 // pred_fallthru
        _
      // Predicated region
      $region37: #{projected_discriminator_forward.5} parent=15 // pred_check
        %p382 = pneg %p167
      $region38: #{projected_discriminator_forward.5} parent=15 // pred_check_branch
        %384 = sbr.rel (%p382) target = $region40
      $region39: #{projected_discriminator_forward.5} parent=15 // pred_region
        %p385 = scmp.lt.s32.totalorder %s17, 4
        %s386 = scalar_select %p385, %s17, 4
        %s387 = smul.addr %s386, 36
        %s388 = smul.addr %s387, 4
        %s389 = scalar_lea.vmem %s5, %s388
      $region40: #{projected_discriminator_forward.5} parent=15 // pred_fallthru
        _
      // Predicated region
      $region41: #{projected_discriminator_forward.5} parent=15 // pred_check
        %p390 = pneg %p193
      $region42: #{projected_discriminator_forward.5} parent=15 // pred_check_branch
        %392 = sbr.rel (%p390) target = $region44
      $region43: #{projected_discriminator_forward.5} parent=15 // pred_region
        %p393 = scmp.lt.s32.totalorder %s17, 4
        %s394 = scalar_select %p393, %s17, 4
        %s395 = scalar_lea.vmem %s6, %s394
      $region44: #{projected_discriminator_forward.5} parent=15 // pred_fallthru
        _
      // Predicated region
      $region45: #{projected_discriminator_forward.5} parent=15 // pred_check
        %p396 = pneg %p219
      $region46: #{projected_discriminator_forward.5} parent=15 // pred_check_branch
        %398 = sbr.rel (%p396) target = $region48
      $region47: #{projected_discriminator_forward.5} parent=15 // pred_region
        %p399 = scmp.lt.s32.totalorder %s17, 4
        %s400 = scalar_select %p399, %s17, 4
        %s401 = scalar_lea.vmem %s7, %s400
      $region48: #{projected_discriminator_forward.5} parent=15 // pred_fallthru
        _
      // Predicated region
      $region49: #{projected_discriminator_forward.5} parent=15 // pred_check
        %p402 = pneg %p245
      $region50: #{projected_discriminator_forward.5} parent=15 // pred_check_branch
        %404 = sbr.rel (%p402) target = $region52
      $region51: #{projected_discriminator_forward.5} parent=15 // pred_region
        %p405 = scmp.lt.s32.totalorder %s17, 4
        %s406 = scalar_select %p405, %s17, 4
        %s407 = scalar_lea.vmem %s8, %s406
      $region52: #{projected_discriminator_forward.5} parent=15 // pred_fallthru
        _
      // Predicated region
      $region53: #{projected_discriminator_forward.5} parent=15 // pred_check
        %p408 = pneg %p271
      $region54: #{projected_discriminator_forward.5} parent=15 // pred_check_branch
        %410 = sbr.rel (%p408) target = $region56
      $region55: #{projected_discriminator_forward.5} parent=15 // pred_region
        %p411 = scmp.lt.s32.totalorder %s17, 4
        %s412 = scalar_select %p411, %s17, 4
        %s413 = scalar_lea.vmem %s9, %s412
      $region56: #{projected_discriminator_forward.5} parent=15 // pred_fallthru
        _
      // Predicated region
      $region57: #{projected_discriminator_forward.5} parent=15 // pred_check
        %p414 = pneg %p297
      $region58: #{projected_discriminator_forward.5} parent=15 // pred_check_branch
        %416 = sbr.rel (%p414) target = $region60
      $region59: #{projected_discriminator_forward.5} parent=15 // pred_region
        %p417 = scmp.lt.s32.totalorder %s17, 4
        %s418 = scalar_select %p417, %s17, 4
        %s419 = scalar_lea.vmem %s10, %s418
      $region60: #{projected_discriminator_forward.5} parent=15 // pred_fallthru
        _
    $region16: #{projected_discriminator_forward.5} parent=5 // pred_fallthru
      _
    %p420 = scmp.le.s32.totalorder 1, %s17
    %p421 = scmp.lt.s32.totalorder %s17, 6
    %p422 = pnand %p420, %p421
    %p423 = pneg %p422
    // Predicated region
    $region61: #{projected_discriminator_forward.5} parent=5 // pred_check
      _
    $region62: #{projected_discriminator_forward.5} parent=5 // pred_check_branch
      %425 = sbr.rel (%p422) target = $region64
    $region63: #{projected_discriminator_forward.5} parent=5 // pred_region
      %s426 = ssub.s32 %s17, 1
      %p427 = scmp.lt.s32.totalorder %s22, 4
      %s428 = scalar_select %p427, %s22, 4
      %s429 = smul.addr %s428, 6
      %s430 = smul.addr %s429, 4
      %s431 = scalar_lea.vmem %s0, %s430
      %p432 = pneg %p43
      %p433 = pneg %p40
      %p434 = scmp.lt.s32.totalorder %s22, 4
      %s435 = scalar_select %p434, %s22, 4
      %s436 = smul.addr %s435, 4
      %s437 = smul.addr %s436, 4
      %s438 = scalar_lea.vmem %s1, %s437
      %p439 = pneg %p69
      %p440 = pneg %p66
      %p441 = scmp.lt.s32.totalorder %s22, 4
      %s442 = scalar_select %p441, %s22, 4
      %s443 = scalar_lea.vmem %s2, %s442
      %p444 = pneg %p95
      %p445 = pneg %p92
      %p446 = scmp.lt.s32.totalorder %s22, 4
      %s447 = scalar_select %p446, %s22, 4
      %s448 = scalar_lea.vmem %s3, %s447
      %p449 = pneg %p121
      %p450 = pneg %p118
      %p451 = scmp.lt.s32.totalorder %s22, 4
      %s452 = scalar_select %p451, %s22, 4
      %s453 = scalar_lea.vmem %s4, %s452
      %p454 = pneg %p147
      %p455 = pneg %p144
      %p456 = scmp.lt.s32.totalorder %s22, 4
      %s457 = scalar_select %p456, %s22, 4
      %s458 = smul.addr %s457, 36
      %s459 = smul.addr %s458, 4
      %s460 = scalar_lea.vmem %s5, %s459
      %p461 = pneg %p173
      %p462 = pneg %p170
      %p463 = scmp.lt.s32.totalorder %s22, 4
      %s464 = scalar_select %p463, %s22, 4
      %s465 = scalar_lea.vmem %s6, %s464
      %p466 = pneg %p199
      %p467 = pneg %p196
      %p468 = scmp.lt.s32.totalorder %s22, 4
      %s469 = scalar_select %p468, %s22, 4
      %s470 = scalar_lea.vmem %s7, %s469
      %p471 = pneg %p225
      %p472 = pneg %p222
      %p473 = scmp.lt.s32.totalorder %s22, 4
      %s474 = scalar_select %p473, %s22, 4
      %s475 = scalar_lea.vmem %s8, %s474
      %p476 = pneg %p251
      %p477 = pneg %p248
      %p478 = scmp.lt.s32.totalorder %s22, 4
      %s479 = scalar_select %p478, %s22, 4
      %s480 = scalar_lea.vmem %s9, %s479
      %p481 = pneg %p277
      %p482 = pneg %p274
      %p483 = scmp.lt.s32.totalorder %s22, 4
      %s484 = scalar_select %p483, %s22, 4
      %s485 = scalar_lea.vmem %s10, %s484
      %p486 = pneg %p303
      %p487 = pneg %p300
      %p488 = pneg %p329
      %p489 = pneg %p326
      %p490 = scmp.lt.s32.totalorder %s22, 4
      %s491 = scalar_select %p490, %s22, 4
      %s492 = smul.addr %s491, 2
      %s493 = scalar_lea.vmem %s11, %s492
      %p494 = scmp.lt.s32.totalorder %s22, 4
      %s495 = scalar_select %p494, %s22, 4
      %s496 = smul.addr %s495, 6
      %s497 = smul.addr %s496, 4
      %s498 = scalar_lea.vmem %s0, %s497
      %p499 = scmp.lt.s32.totalorder %s22, 4
      %s500 = scalar_select %p499, %s22, 4
      %s501 = smul.addr %s500, 4
      %s502 = smul.addr %s501, 4
      %s503 = scalar_lea.vmem %s1, %s502
      %p504 = scmp.lt.s32.totalorder %s22, 4
      %s505 = scalar_select %p504, %s22, 4
      %s506 = scalar_lea.vmem %s2, %s505
      %p507 = scmp.lt.s32.totalorder %s22, 4
      %s508 = scalar_select %p507, %s22, 4
      %s509 = scalar_lea.vmem %s3, %s508
      %p510 = scmp.lt.s32.totalorder %s22, 4
      %s511 = scalar_select %p510, %s22, 4
      %s512 = scalar_lea.vmem %s4, %s511
      %p513 = scmp.lt.s32.totalorder %s22, 4
      %s514 = scalar_select %p513, %s22, 4
      %s515 = smul.addr %s514, 36
      %s516 = smul.addr %s515, 4
      %s517 = scalar_lea.vmem %s5, %s516
      %p518 = scmp.lt.s32.totalorder %s22, 4
      %s519 = scalar_select %p518, %s22, 4
      %s520 = scalar_lea.vmem %s6, %s519
      %p521 = scmp.lt.s32.totalorder %s22, 4
      %s522 = scalar_select %p521, %s22, 4
      %s523 = scalar_lea.vmem %s7, %s522
      %p524 = scmp.lt.s32.totalorder %s22, 4
      %s525 = scalar_select %p524, %s22, 4
      %s526 = scalar_lea.vmem %s8, %s525
      %p527 = scmp.lt.s32.totalorder %s22, 4
      %s528 = scalar_select %p527, %s22, 4
      %s529 = scalar_lea.vmem %s9, %s528
      %p530 = scmp.lt.s32.totalorder %s22, 4
      %s531 = scalar_select %p530, %s22, 4
      %s532 = scalar_lea.vmem %s10, %s531
      %p533 = scmp.lt.s32.totalorder %s22, 4
      %s534 = scalar_select %p533, %s22, 4
      %s535 = smul.addr %s534, 2
      %s536 = scalar_lea.vmem %s11, %s535
      %v538 = vld [vmem:[%s498] sm:$0xf]
      %v539 = vld [vmem:[%s498 + $0x4] sm:$0xf]
      %v540 = vld [vmem:[%s498 + $0x8] sm:$0xf]
      %v541 = vld [vmem:[%s498 + $0xc] sm:$0xf]
      %v542 = vld [vmem:[%s498 + $0x10] sm:$0xf]
      %v543 = vld [vmem:[%s498 + $0x14] sm:$0x1]
      %v544 = vld [vmem:[%s503] sm:$0xf]
      %v545 = vld [vmem:[%s503 + $0x4] sm:$0xf]
      %v546 = vld [vmem:[%s503 + $0x8] sm:$0xf]
      %v547 = vld [vmem:[%s503 + $0xc] sm:$0xf]
      %v548 = vld [vmem:[%s506] sm:$0x1]
      %v550 = vlaneseq
      %v551 = vshrl.u32 %v550, 7
      %v552 = vsub.s32 0, %v551
      %v553 = vrot.slane %v548, %v552
      %v561 = vunpack.c.l.b16 %v538
      %v562 = vunpack.c.l.b16 %v539
      %v563 = vunpack.c.l.b16 %v540
      %v564 = vunpack.c.l.b16 %v541
      %v565 = vunpack.c.l.b16 %v542
      %v566 = vunpack.c.l.b16 %v543
      %v567 = vpack.c.b16 %v562, %v561
      %v568 = vpack.c.b16 %v564, %v563
      %v569 = vpack.c.b16 %v566, %v565
      %v574 = vunpack.c.l.b16 %v544
      %v575 = vunpack.c.l.b16 %v545
      %v576 = vunpack.c.l.b16 %v546
      %v577 = vunpack.c.l.b16 %v547
      %v578 = vpack.c.b16 %v575, %v574
      %v579 = vpack.c.b16 %v577, %v576
      %vm582 = vcmask 261120
      %v584 = vsel %vm582, %v567, 0
      %v587 = vsel %vm582, %v568, 0
      %v590 = vsel %vm582, %v569, 0
      %592 = vmatprep.subr.bf16.mxu0 0
      %593 = vmatpush1.bf16.msra.mxu0 %v578
      %594 = vmatprep.subr.bf16.mxu0 0
      %595 = vmatpush1.bf16.msra.mxu0 %v579
      %596 = vmatprep.subr.bf16.mxu0 0
      %597 = vmatpush1.bf16.msra.mxu0 0
      %598 = vmatprep.subr.bf16.mxu0 0
      %599 = vmatpush1.bf16.msra.mxu0 0
      %600 = vmatprep.subr.bf16.mxu0 0
      %601 = vmatpush1.bf16.msra.mxu0 0
      %602 = vmatprep.subr.bf16.mxu0 0
      %603 = vmatpush1.bf16.msra.mxu0 0
      %604 = vmatprep.subr.bf16.mxu0 0
      %605 = vmatpush1.bf16.msra.mxu0 0
      %606 = vmatprep.subr.bf16.mxu0 0
      %607 = vmatpush1.bf16.msra.mxu0 0
      %608 = vmatprep.subr.bf16.mxu0 0
      %609 = vmatpush1.bf16.msra.mxu0 0
      %610 = vmatprep.subr.bf16.mxu0 0
      %611 = vmatpush1.bf16.msra.mxu0 0
      %612 = vmatprep.subr.bf16.mxu0 0
      %613 = vmatpush1.bf16.msra.mxu0 0
      %614 = vmatprep.subr.bf16.mxu0 0
      %615 = vmatpush1.bf16.msra.mxu0 0
      %616 = vmatprep.subr.bf16.mxu0 0
      %617 = vmatpush1.bf16.msra.mxu0 0
      %618 = vmatprep.subr.bf16.mxu0 0
      %619 = vmatpush1.bf16.msra.mxu0 0
      %620 = vmatprep.subr.bf16.mxu0 0
      %621 = vmatpush1.bf16.msra.mxu0 0
      %622 = vmatprep.subr.bf16.mxu0 0
      %623 = vmatpush1.bf16.msra.mxu0 0
      %624 = vmatprep.mubr.bf16.mxu0 0
      %625 = vmatmul.mubr.bf16.gmra.mrb[0].mxu0 %v584
      %v626 = vpop.f32.mrb[0].mxu0
      %v627 = vadd.f32 %v553, %v626
      %v628 = vpop.f32.mrb[0].mxu0
      %v629 = vpop.f32.mrb[0].mxu0
      %v630 = vadd.f32 %v553, %v629
      %v631 = vpop.f32.mrb[0].mxu0
      %632 = vmatprep.mubr.bf16.mxu0 0
      %633 = vmatmul.mubr.bf16.gmra.mrb[0].mxu0 %v587
      %v634 = vpop.f32.mrb[0].mxu0
      %v635 = vadd.f32 %v553, %v634
      %v636 = vpop.f32.mrb[0].mxu0
      %v637 = vpop.f32.mrb[0].mxu0
      %v638 = vadd.f32 %v553, %v637
      %v639 = vpop.f32.mrb[0].mxu0
      %640 = vmatprep.mubr.bf16.mxu0 0
      %641 = vmatmul.mubr.bf16.gmra.mrb[0].mxu0 %v590
      %v642 = vpop.f32.mrb[0].mxu0
      %v643 = vadd.f32 %v553, %v642
      %v644 = vpop.f32.mrb[0].mxu0
      %v645 = vpop.f32.mrb[0].mxu0
      %v646 = vadd.f32 %v553, %v645
      %v647 = vpop.f32.mrb[0].mxu0
      %648 = vdwg.mxu0
      %v649 = vsel %vm582, %v627, 0.0
      %v650 = vsel %vm582, %v630, 0.0
      %v651 = vadd.f32 %v649, %v650
      %v652 = vsel %vm582, %v635, 0.0
      %v653 = vadd.f32 %v651, %v652
      %v654 = vsel %vm582, %v638, 0.0
      %v655 = vadd.f32 %v653, %v654
      %v656 = vsel %vm582, %v643, 0.0
      %v657 = vadd.f32 %v655, %v656
      %vm658 = vcmask 254976
      %v659 = vsel %vm658, %v646, 0.0
      %v660 = vadd.f32 %v657, %v659
      %v661 = vrot.slane %v660, 4
      %v662 = vadd.f32 %v660, %v661
      %v663 = vrot.slane %v662, 2
      %v664 = vadd.f32 %v662, %v663
      %v665 = vrot.slane %v664, 1
      %v666 = vadd.f32 %v664, %v665
      %v667 = vrcp.pop 42.0
      %v668 = vmul.f32 %v666, %v667
      %v669 = vsub.f32 %v627, %v668
      %v670 = vsub.f32 %v630, %v668
      %v671 = vsub.f32 %v635, %v668
      %v672 = vsub.f32 %v638, %v668
      %v673 = vsub.f32 %v643, %v668
      %v674 = vsub.f32 %v646, %v668
      %v675 = vmul.f32 %v669, %v669
      %v676 = vmul.f32 %v670, %v670
      %v677 = vmul.f32 %v671, %v671
      %v678 = vmul.f32 %v672, %v672
      %v679 = vmul.f32 %v673, %v673
      %v680 = vmul.f32 %v674, %v674
      %v681 = vsel %vm582, %v675, 0.0
      %v682 = vsel %vm582, %v676, 0.0
      %v683 = vadd.f32 %v681, %v682
      %v684 = vsel %vm582, %v677, 0.0
      %v685 = vadd.f32 %v683, %v684
      %v686 = vsel %vm582, %v678, 0.0
      %v687 = vadd.f32 %v685, %v686
      %v688 = vsel %vm582, %v679, 0.0
      %v689 = vadd.f32 %v687, %v688
      %v690 = vsel %vm658, %v680, 0.0
      %v691 = vadd.f32 %v689, %v690
      %v692 = vrot.slane %v691, 4
      %v693 = vadd.f32 %v691, %v692
      %v694 = vrot.slane %v693, 2
      %v695 = vadd.f32 %v693, %v694
      %v696 = vrot.slane %v695, 1
      %v697 = vadd.f32 %v695, %v696
      %v698 = vmul.f32 %v697, %v667
      %v699 = vadd.f32 %v698, 1e-05
      %v700 = vrsqrt.pop %v699
      %v701 = vmul.f32 %v669, %v700
      %v702 = vmul.f32 %v670, %v700
      %v703 = vmul.f32 %v671, %v700
      %v704 = vmul.f32 %v672, %v700
      %v705 = vmul.f32 %v673, %v700
      %v706 = vmul.f32 %v674, %v700
      %v707 = vld [vmem:[%s509] sm:$0x1]
      %v709 = vlaneseq
      %v710 = vshrl.u32 %v709, 7
      %v711 = vsub.s32 0, %v710
      %v712 = vrot.slane %v707, %v711
      %v714 = vmul.f32 %v701, %v712
      %v715 = vmul.f32 %v702, %v712
      %v716 = vmul.f32 %v703, %v712
      %v717 = vmul.f32 %v704, %v712
      %v718 = vmul.f32 %v705, %v712
      %v719 = vmul.f32 %v706, %v712
      %v720 = vld [vmem:[%s512] sm:$0x1]
      %v722 = vlaneseq
      %v723 = vshrl.u32 %v722, 7
      %v724 = vsub.s32 0, %v723
      %v725 = vrot.slane %v720, %v724
      %v727 = vadd.f32 %v714, %v725
      %v728 = vadd.f32 %v715, %v725
      %v729 = vadd.f32 %v716, %v725
      %v730 = vadd.f32 %v717, %v725
      %v731 = vadd.f32 %v718, %v725
      %v732 = vadd.f32 %v719, %v725
      %vm733 = vcmp.ge.f32.partialorder %v727, 0.0
      %vm734 = vcmp.ge.f32.partialorder %v728, 0.0
      %vm735 = vcmp.ge.f32.partialorder %v729, 0.0
      %vm736 = vcmp.ge.f32.partialorder %v730, 0.0
      %vm737 = vcmp.ge.f32.partialorder %v731, 0.0
      %vm738 = vcmp.ge.f32.partialorder %v732, 0.0
      %v739 = vmul.f32 %v727, 0.2
      %v740 = vmul.f32 %v728, 0.2
      %v741 = vmul.f32 %v729, 0.2
      %v742 = vmul.f32 %v730, 0.2
      %v743 = vmul.f32 %v731, 0.2
      %v744 = vmul.f32 %v732, 0.2
      %v745 = vsel %vm733, %v727, %v739
      %v746 = vsel %vm734, %v728, %v740
      %v747 = vsel %vm735, %v729, %v741
      %v748 = vsel %vm736, %v730, %v742
      %v749 = vsel %vm737, %v731, %v743
      %v750 = vsel %vm738, %v732, %v744
      %v757 = vcombine.high %v745, %v745
      %v759 = vunpack.c.l.s4 1966171168
      %v760 = vunpack.c.0.s8 %v759
      %v761 = vlaneseq
      %v762 = vshrl.u32 %v761, 7
      %v763 = vsub.s32 %v760, %v762
      %v764 = vrot.slane %v745, %v763
      %v766 = vunpack.c.l.s4 1966171168
      %v767 = vunpack.c.0.s8 %v766
      %v768 = vlaneseq
      %v769 = vshrl.u32 %v768, 7
      %v770 = vsub.s32 %v767, %v769
      %v771 = vrot.slane %v757, %v770
      %v772 = vcombine.high %v764, %v764
      %v773 = vcombine.high %v771, %v771
      %v775 = vunpack.c.l.s4 1966171168
      %v776 = vunpack.c.0.s8 %v775
      %v777 = vlaneseq
      %v778 = vshrl.u32 %v777, 7
      %v779 = vsub.s32 %v776, %v778
      %v780 = vrot.slane %v764, %v779
      %v782 = vunpack.c.l.s4 1966171168
      %v783 = vunpack.c.0.s8 %v782
      %v784 = vlaneseq
      %v785 = vshrl.u32 %v784, 7
      %v786 = vsub.s32 %v783, %v785
      %v787 = vrot.slane %v771, %v786
      %v789 = vunpack.c.l.s4 1966171168
      %v790 = vunpack.c.0.s8 %v789
      %v791 = vlaneseq
      %v792 = vshrl.u32 %v791, 7
      %v793 = vsub.s32 %v790, %v792
      %v794 = vrot.slane %v772, %v793
      %v796 = vunpack.c.l.s4 1966171168
      %v797 = vunpack.c.0.s8 %v796
      %v798 = vlaneseq
      %v799 = vshrl.u32 %v798, 7
      %v800 = vsub.s32 %v797, %v799
      %v801 = vrot.slane %v773, %v800
      %v802 = vcombine.high %v780, %v780
      %v803 = vcombine.high %v787, %v787
      %v804 = vcombine.high %v794, %v794
      %v805 = vcombine.high %v801, %v801
      %v806 = vcombine.high %v746, %v746
      %v808 = vunpack.c.l.s4 1966171168
      %v809 = vunpack.c.0.s8 %v808
      %v810 = vlaneseq
      %v811 = vshrl.u32 %v810, 7
      %v812 = vsub.s32 %v809, %v811
      %v813 = vrot.slane %v746, %v812
      %v815 = vunpack.c.l.s4 1966171168
      %v816 = vunpack.c.0.s8 %v815
      %v817 = vlaneseq
      %v818 = vshrl.u32 %v817, 7
      %v819 = vsub.s32 %v816, %v818
      %v820 = vrot.slane %v806, %v819
      %v821 = vcombine.high %v813, %v813
      %v822 = vcombine.high %v820, %v820
      %v824 = vunpack.c.l.s4 1966171168
      %v825 = vunpack.c.0.s8 %v824
      %v826 = vlaneseq
      %v827 = vshrl.u32 %v826, 7
      %v828 = vsub.s32 %v825, %v827
      %v829 = vrot.slane %v813, %v828
      %v831 = vunpack.c.l.s4 1966171168
      %v832 = vunpack.c.0.s8 %v831
      %v833 = vlaneseq
      %v834 = vshrl.u32 %v833, 7
      %v835 = vsub.s32 %v832, %v834
      %v836 = vrot.slane %v820, %v835
      %v838 = vunpack.c.l.s4 1966171168
      %v839 = vunpack.c.0.s8 %v838
      %v840 = vlaneseq
      %v841 = vshrl.u32 %v840, 7
      %v842 = vsub.s32 %v839, %v841
      %v843 = vrot.slane %v821, %v842
      %v845 = vunpack.c.l.s4 1966171168
      %v846 = vunpack.c.0.s8 %v845
      %v847 = vlaneseq
      %v848 = vshrl.u32 %v847, 7
      %v849 = vsub.s32 %v846, %v848
      %v850 = vrot.slane %v822, %v849
      %v851 = vcombine.high %v829, %v829
      %v852 = vcombine.high %v836, %v836
      %v853 = vcombine.high %v843, %v843
      %v854 = vcombine.high %v850, %v850
      %v855 = vcombine.high %v747, %v747
      %v857 = vunpack.c.l.s4 1966171168
      %v858 = vunpack.c.0.s8 %v857
      %v859 = vlaneseq
      %v860 = vshrl.u32 %v859, 7
      %v861 = vsub.s32 %v858, %v860
      %v862 = vrot.slane %v747, %v861
      %v864 = vunpack.c.l.s4 1966171168
      %v865 = vunpack.c.0.s8 %v864
      %v866 = vlaneseq
      %v867 = vshrl.u32 %v866, 7
      %v868 = vsub.s32 %v865, %v867
      %v869 = vrot.slane %v855, %v868
      %v870 = vcombine.high %v862, %v862
      %v871 = vcombine.high %v869, %v869
      %v873 = vunpack.c.l.s4 1966171168
      %v874 = vunpack.c.0.s8 %v873
      %v875 = vlaneseq
      %v876 = vshrl.u32 %v875, 7
      %v877 = vsub.s32 %v874, %v876
      %v878 = vrot.slane %v862, %v877
      %v880 = vunpack.c.l.s4 1966171168
      %v881 = vunpack.c.0.s8 %v880
      %v882 = vlaneseq
      %v883 = vshrl.u32 %v882, 7
      %v884 = vsub.s32 %v881, %v883
      %v885 = vrot.slane %v869, %v884
      %v887 = vunpack.c.l.s4 1966171168
      %v888 = vunpack.c.0.s8 %v887
      %v889 = vlaneseq
      %v890 = vshrl.u32 %v889, 7
      %v891 = vsub.s32 %v888, %v890
      %v892 = vrot.slane %v870, %v891
      %v894 = vunpack.c.l.s4 1966171168
      %v895 = vunpack.c.0.s8 %v894
      %v896 = vlaneseq
      %v897 = vshrl.u32 %v896, 7
      %v898 = vsub.s32 %v895, %v897
      %v899 = vrot.slane %v871, %v898
      %v900 = vcombine.high %v878, %v878
      %v901 = vcombine.high %v885, %v885
      %v902 = vcombine.high %v892, %v892
      %v903 = vcombine.high %v899, %v899
      %v904 = vcombine.high %v748, %v748
      %v906 = vunpack.c.l.s4 1966171168
      %v907 = vunpack.c.0.s8 %v906
      %v908 = vlaneseq
      %v909 = vshrl.u32 %v908, 7
      %v910 = vsub.s32 %v907, %v909
      %v911 = vrot.slane %v748, %v910
      %v913 = vunpack.c.l.s4 1966171168
      %v914 = vunpack.c.0.s8 %v913
      %v915 = vlaneseq
      %v916 = vshrl.u32 %v915, 7
      %v917 = vsub.s32 %v914, %v916
      %v918 = vrot.slane %v904, %v917
      %v919 = vcombine.high %v911, %v911
      %v920 = vcombine.high %v918, %v918
      %v922 = vunpack.c.l.s4 1966171168
      %v923 = vunpack.c.0.s8 %v922
      %v924 = vlaneseq
      %v925 = vshrl.u32 %v924, 7
      %v926 = vsub.s32 %v923, %v925
      %v927 = vrot.slane %v911, %v926
      %v929 = vunpack.c.l.s4 1966171168
      %v930 = vunpack.c.0.s8 %v929
      %v931 = vlaneseq
      %v932 = vshrl.u32 %v931, 7
      %v933 = vsub.s32 %v930, %v932
      %v934 = vrot.slane %v918, %v933
      %v936 = vunpack.c.l.s4 1966171168
      %v937 = vunpack.c.0.s8 %v936
      %v938 = vlaneseq
      %v939 = vshrl.u32 %v938, 7
      %v940 = vsub.s32 %v937, %v939
      %v941 = vrot.slane %v919, %v940
      %v943 = vunpack.c.l.s4 1966171168
      %v944 = vunpack.c.0.s8 %v943
      %v945 = vlaneseq
      %v946 = vshrl.u32 %v945, 7
      %v947 = vsub.s32 %v944, %v946
      %v948 = vrot.slane %v920, %v947
      %v949 = vcombine.high %v927, %v927
      %v950 = vcombine.high %v934, %v934
      %v951 = vcombine.high %v941, %v941
      %v952 = vcombine.high %v948, %v948
      %v953 = vcombine.high %v749, %v749
      %v955 = vunpack.c.l.s4 1966171168
      %v956 = vunpack.c.0.s8 %v955
      %v957 = vlaneseq
      %v958 = vshrl.u32 %v957, 7
      %v959 = vsub.s32 %v956, %v958
      %v960 = vrot.slane %v749, %v959
      %v962 = vunpack.c.l.s4 1966171168
      %v963 = vunpack.c.0.s8 %v962
      %v964 = vlaneseq
      %v965 = vshrl.u32 %v964, 7
      %v966 = vsub.s32 %v963, %v965
      %v967 = vrot.slane %v953, %v966
      %v968 = vcombine.high %v960, %v960
      %v969 = vcombine.high %v967, %v967
      %v971 = vunpack.c.l.s4 1966171168
      %v972 = vunpack.c.0.s8 %v971
      %v973 = vlaneseq
      %v974 = vshrl.u32 %v973, 7
      %v975 = vsub.s32 %v972, %v974
      %v976 = vrot.slane %v960, %v975
      %v978 = vunpack.c.l.s4 1966171168
      %v979 = vunpack.c.0.s8 %v978
      %v980 = vlaneseq
      %v981 = vshrl.u32 %v980, 7
      %v982 = vsub.s32 %v979, %v981
      %v983 = vrot.slane %v967, %v982
      %v985 = vunpack.c.l.s4 1966171168
      %v986 = vunpack.c.0.s8 %v985
      %v987 = vlaneseq
      %v988 = vshrl.u32 %v987, 7
      %v989 = vsub.s32 %v986, %v988
      %v990 = vrot.slane %v968, %v989
      %v992 = vunpack.c.l.s4 1966171168
      %v993 = vunpack.c.0.s8 %v992
      %v994 = vlaneseq
      %v995 = vshrl.u32 %v994, 7
      %v996 = vsub.s32 %v993, %v995
      %v997 = vrot.slane %v969, %v996
      %v998 = vcombine.high %v976, %v976
      %v999 = vcombine.high %v983, %v983
      %v1000 = vcombine.high %v990, %v990
      %v1001 = vcombine.high %v997, %v997
      %v1003 = vunpack.c.l.s4 1966171168
      %v1004 = vunpack.c.0.s8 %v1003
      %v1005 = vlaneseq
      %v1006 = vshrl.u32 %v1005, 7
      %v1007 = vsub.s32 %v1004, %v1006
      %v1008 = vrot.slane %v750, %v1007
      %v1009 = vcombine.high %v1008, %v1008
      %v1011 = vunpack.c.l.s4 1966171168
      %v1012 = vunpack.c.0.s8 %v1011
      %v1013 = vlaneseq
      %v1014 = vshrl.u32 %v1013, 7
      %v1015 = vsub.s32 %v1012, %v1014
      %v1016 = vrot.slane %v1008, %v1015
      %v1018 = vunpack.c.l.s4 1966171168
      %v1019 = vunpack.c.0.s8 %v1018
      %v1020 = vlaneseq
      %v1021 = vshrl.u32 %v1020, 7
      %v1022 = vsub.s32 %v1019, %v1021
      %v1023 = vrot.slane %v1009, %v1022
      %v1024 = vcombine.low %v892, %v900
      %v1025 = vcombine.low %v902, %v885
      %v1027 = vunpack.c.l.s4 1966171168
      %v1028 = vunpack.c.0.s8 %v1027
      %v1029 = vlaneseq
      %v1030 = vshrl.u32 %v1029, 7
      %v1031 = vsub.s32 %v1028, %v1030
      %v1032 = vrot.slane %v1024, %v1031
      %v1034 = vunpack.c.l.s4 1966171168
      %v1035 = vunpack.c.0.s8 %v1034
      %v1036 = vlaneseq
      %v1037 = vshrl.u32 %v1036, 7
      %v1038 = vsub.s32 %v1035, %v1037
      %v1039 = vrot.slane %v1025, %v1038
      %v1040 = vcombine.low %v1032, %v1039
      %v1042 = vunpack.c.l.s4 1966171168
      %v1043 = vunpack.c.0.s8 %v1042
      %v1044 = vlaneseq
      %v1045 = vshrl.u32 %v1044, 7
      %v1046 = vsub.s32 %v1043, %v1045
      %v1047 = vrot.slane %v1040, %v1046
      %v1048 = vcombine.low %v999, %v1001
      %v1049 = vcombine.low %v1016, %v1023
      %v1051 = vunpack.c.l.s4 1966171168
      %v1052 = vunpack.c.0.s8 %v1051
      %v1053 = vlaneseq
      %v1054 = vshrl.u32 %v1053, 7
      %v1055 = vsub.s32 %v1052, %v1054
      %v1056 = vrot.slane %v1048, %v1055
      %v1058 = vunpack.c.l.s4 1966171168
      %v1059 = vunpack.c.0.s8 %v1058
      %v1060 = vlaneseq
      %v1061 = vshrl.u32 %v1060, 7
      %v1062 = vsub.s32 %v1059, %v1061
      %v1063 = vrot.slane %v1049, %v1062
      %v1064 = vcombine.low %v1056, %v1063
      %v1066 = vunpack.c.l.s4 1966171168
      %v1067 = vunpack.c.0.s8 %v1066
      %v1068 = vlaneseq
      %v1069 = vshrl.u32 %v1068, 7
      %v1070 = vsub.s32 %v1067, %v1069
      %v1071 = vrot.slane %v1064, %v1070
      %v1074 = vcombine.low %v780, %v794
      %v1075 = vcombine.low %v802, %v804
      %v1077 = vunpack.c.l.s4 1966171168
      %v1078 = vunpack.c.0.s8 %v1077
      %v1079 = vlaneseq
      %v1080 = vshrl.u32 %v1079, 7
      %v1081 = vsub.s32 %v1078, %v1080
      %v1082 = vrot.slane %v1074, %v1081
      %v1084 = vunpack.c.l.s4 1966171168
      %v1085 = vunpack.c.0.s8 %v1084
      %v1086 = vlaneseq
      %v1087 = vshrl.u32 %v1086, 7
      %v1088 = vsub.s32 %v1085, %v1087
      %v1089 = vrot.slane %v1075, %v1088
      %v1090 = vcombine.low %v1082, %v1089
      %v1092 = vunpack.c.l.s4 1966171168
      %v1093 = vunpack.c.0.s8 %v1092
      %v1094 = vlaneseq
      %v1095 = vshrl.u32 %v1094, 7
      %v1096 = vsub.s32 %v1093, %v1095
      %v1097 = vrot.slane %v1090, %v1096
      %v1098 = vcombine.low %v1097, %v1097
      %v1099 = vcombine.low %v787, %v801
      %v1100 = vcombine.low %v803, %v805
      %v1101 = vcombine.low %v829, %v843
      %v1102 = vcombine.low %v851, %v853
      %v1104 = vunpack.c.l.s4 1966171168
      %v1105 = vunpack.c.0.s8 %v1104
      %v1106 = vlaneseq
      %v1107 = vshrl.u32 %v1106, 7
      %v1108 = vsub.s32 %v1105, %v1107
      %v1109 = vrot.slane %v1099, %v1108
      %v1111 = vunpack.c.l.s4 1966171168
      %v1112 = vunpack.c.0.s8 %v1111
      %v1113 = vlaneseq
      %v1114 = vshrl.u32 %v1113, 7
      %v1115 = vsub.s32 %v1112, %v1114
      %v1116 = vrot.slane %v1100, %v1115
      %v1118 = vunpack.c.l.s4 1966171168
      %v1119 = vunpack.c.0.s8 %v1118
      %v1120 = vlaneseq
      %v1121 = vshrl.u32 %v1120, 7
      %v1122 = vsub.s32 %v1119, %v1121
      %v1123 = vrot.slane %v1101, %v1122
      %v1125 = vunpack.c.l.s4 1966171168
      %v1126 = vunpack.c.0.s8 %v1125
      %v1127 = vlaneseq
      %v1128 = vshrl.u32 %v1127, 7
      %v1129 = vsub.s32 %v1126, %v1128
      %v1130 = vrot.slane %v1102, %v1129
      %v1131 = vcombine.low %v1109, %v1116
      %v1132 = vcombine.low %v1123, %v1130
      %v1134 = vunpack.c.l.s4 1966171168
      %v1135 = vunpack.c.0.s8 %v1134
      %v1136 = vlaneseq
      %v1137 = vshrl.u32 %v1136, 7
      %v1138 = vsub.s32 %v1135, %v1137
      %v1139 = vrot.slane %v1131, %v1138
      %v1141 = vunpack.c.l.s4 1966171168
      %v1142 = vunpack.c.0.s8 %v1141
      %v1143 = vlaneseq
      %v1144 = vshrl.u32 %v1143, 7
      %v1145 = vsub.s32 %v1142, %v1144
      %v1146 = vrot.slane %v1132, %v1145
      %v1147 = vcombine.low %v1139, %v1146
      %v1148 = vcombine.low %v836, %v850
      %v1149 = vcombine.low %v852, %v854
      %v1150 = vcombine.low %v878, %v892
      %v1151 = vcombine.low %v900, %v902
      %v1153 = vunpack.c.l.s4 1966171168
      %v1154 = vunpack.c.0.s8 %v1153
      %v1155 = vlaneseq
      %v1156 = vshrl.u32 %v1155, 7
      %v1157 = vsub.s32 %v1154, %v1156
      %v1158 = vrot.slane %v1148, %v1157
      %v1160 = vunpack.c.l.s4 1966171168
      %v1161 = vunpack.c.0.s8 %v1160
      %v1162 = vlaneseq
      %v1163 = vshrl.u32 %v1162, 7
      %v1164 = vsub.s32 %v1161, %v1163
      %v1165 = vrot.slane %v1149, %v1164
      %v1167 = vunpack.c.l.s4 1966171168
      %v1168 = vunpack.c.0.s8 %v1167
      %v1169 = vlaneseq
      %v1170 = vshrl.u32 %v1169, 7
      %v1171 = vsub.s32 %v1168, %v1170
      %v1172 = vrot.slane %v1150, %v1171
      %v1174 = vunpack.c.l.s4 1966171168
      %v1175 = vunpack.c.0.s8 %v1174
      %v1176 = vlaneseq
      %v1177 = vshrl.u32 %v1176, 7
      %v1178 = vsub.s32 %v1175, %v1177
      %v1179 = vrot.slane %v1151, %v1178
      %v1180 = vcombine.low %v1158, %v1165
      %v1181 = vcombine.low %v1172, %v1179
      %v1183 = vunpack.c.l.s4 1966171168
      %v1184 = vunpack.c.0.s8 %v1183
      %v1185 = vlaneseq
      %v1186 = vshrl.u32 %v1185, 7
      %v1187 = vsub.s32 %v1184, %v1186
      %v1188 = vrot.slane %v1180, %v1187
      %v1190 = vunpack.c.l.s4 1966171168
      %v1191 = vunpack.c.0.s8 %v1190
      %v1192 = vlaneseq
      %v1193 = vshrl.u32 %v1192, 7
      %v1194 = vsub.s32 %v1191, %v1193
      %v1195 = vrot.slane %v1181, %v1194
      %v1196 = vcombine.low %v1188, %v1195
      %v1198 = vunpack.c.l.s4 1966171168
      %v1199 = vunpack.c.0.s8 %v1198
      %v1200 = vlaneseq
      %v1201 = vshrl.u32 %v1200, 7
      %v1202 = vsub.s32 %v1199, %v1201
      %v1203 = vrot.slane %v885, %v1202
      %v1205 = vunpack.c.l.s4 1966171168
      %v1206 = vunpack.c.0.s8 %v1205
      %v1207 = vlaneseq
      %v1208 = vshrl.u32 %v1207, 7
      %v1209 = vsub.s32 %v1206, %v1208
      %v1210 = vrot.slane %v1203, %v1209
      %v1211 = vcombine.low %v899, %v901
      %v1212 = vcombine.low %v903, %v927
      %v1214 = vunpack.c.l.s4 1966171168
      %v1215 = vunpack.c.0.s8 %v1214
      %v1216 = vlaneseq
      %v1217 = vshrl.u32 %v1216, 7
      %v1218 = vsub.s32 %v1215, %v1217
      %v1219 = vrot.slane %v1211, %v1218
      %v1221 = vunpack.c.l.s4 1966171168
      %v1222 = vunpack.c.0.s8 %v1221
      %v1223 = vlaneseq
      %v1224 = vshrl.u32 %v1223, 7
      %v1225 = vsub.s32 %v1222, %v1224
      %v1226 = vrot.slane %v1212, %v1225
      %v1227 = vcombine.low %v1219, %v1226
      %v1229 = vunpack.c.l.s4 1966171168
      %v1230 = vunpack.c.0.s8 %v1229
      %v1231 = vlaneseq
      %v1232 = vshrl.u32 %v1231, 7
      %v1233 = vsub.s32 %v1230, %v1232
      %v1234 = vrot.slane %v1227, %v1233
      %v1235 = vcombine.low %v1234, %v1234
      %v1236 = vcombine.low %v941, %v949
      %v1237 = vcombine.low %v951, %v934
      %v1238 = vcombine.low %v948, %v950
      %v1239 = vcombine.low %v952, %v976
      %v1241 = vunpack.c.l.s4 1966171168
      %v1242 = vunpack.c.0.s8 %v1241
      %v1243 = vlaneseq
      %v1244 = vshrl.u32 %v1243, 7
      %v1245 = vsub.s32 %v1242, %v1244
      %v1246 = vrot.slane %v1236, %v1245
      %v1248 = vunpack.c.l.s4 1966171168
      %v1249 = vunpack.c.0.s8 %v1248
      %v1250 = vlaneseq
      %v1251 = vshrl.u32 %v1250, 7
      %v1252 = vsub.s32 %v1249, %v1251
      %v1253 = vrot.slane %v1237, %v1252
      %v1255 = vunpack.c.l.s4 1966171168
      %v1256 = vunpack.c.0.s8 %v1255
      %v1257 = vlaneseq
      %v1258 = vshrl.u32 %v1257, 7
      %v1259 = vsub.s32 %v1256, %v1258
      %v1260 = vrot.slane %v1238, %v1259
      %v1262 = vunpack.c.l.s4 1966171168
      %v1263 = vunpack.c.0.s8 %v1262
      %v1264 = vlaneseq
      %v1265 = vshrl.u32 %v1264, 7
      %v1266 = vsub.s32 %v1263, %v1265
      %v1267 = vrot.slane %v1239, %v1266
      %v1268 = vcombine.low %v1246, %v1253
      %v1269 = vcombine.low %v1260, %v1267
      %v1271 = vunpack.c.l.s4 1966171168
      %v1272 = vunpack.c.0.s8 %v1271
      %v1273 = vlaneseq
      %v1274 = vshrl.u32 %v1273, 7
      %v1275 = vsub.s32 %v1272, %v1274
      %v1276 = vrot.slane %v1268, %v1275
      %v1278 = vunpack.c.l.s4 1966171168
      %v1279 = vunpack.c.0.s8 %v1278
      %v1280 = vlaneseq
      %v1281 = vshrl.u32 %v1280, 7
      %v1282 = vsub.s32 %v1279, %v1281
      %v1283 = vrot.slane %v1269, %v1282
      %v1284 = vcombine.low %v1276, %v1283
      %v1285 = vcombine.low %v990, %v998
      %v1286 = vcombine.low %v1000, %v983
      %v1287 = vcombine.low %v997, %v999
      %v1288 = vcombine.low %v1001, %v1016
      %v1290 = vunpack.c.l.s4 1966171168
      %v1291 = vunpack.c.0.s8 %v1290
      %v1292 = vlaneseq
      %v1293 = vshrl.u32 %v1292, 7
      %v1294 = vsub.s32 %v1291, %v1293
      %v1295 = vrot.slane %v1285, %v1294
      %v1297 = vunpack.c.l.s4 1966171168
      %v1298 = vunpack.c.0.s8 %v1297
      %v1299 = vlaneseq
      %v1300 = vshrl.u32 %v1299, 7
      %v1301 = vsub.s32 %v1298, %v1300
      %v1302 = vrot.slane %v1286, %v1301
      %v1304 = vunpack.c.l.s4 1966171168
      %v1305 = vunpack.c.0.s8 %v1304
      %v1306 = vlaneseq
      %v1307 = vshrl.u32 %v1306, 7
      %v1308 = vsub.s32 %v1305, %v1307
      %v1309 = vrot.slane %v1287, %v1308
      %v1311 = vunpack.c.l.s4 1966171168
      %v1312 = vunpack.c.0.s8 %v1311
      %v1313 = vlaneseq
      %v1314 = vshrl.u32 %v1313, 7
      %v1315 = vsub.s32 %v1312, %v1314
      %v1316 = vrot.slane %v1288, %v1315
      %v1317 = vcombine.low %v1295, %v1302
      %v1318 = vcombine.low %v1309, %v1316
      %v1320 = vunpack.c.l.s4 1966171168
      %v1321 = vunpack.c.0.s8 %v1320
      %v1322 = vlaneseq
      %v1323 = vshrl.u32 %v1322, 7
      %v1324 = vsub.s32 %v1321, %v1323
      %v1325 = vrot.slane %v1317, %v1324
      %v1327 = vunpack.c.l.s4 1966171168
      %v1328 = vunpack.c.0.s8 %v1327
      %v1329 = vlaneseq
      %v1330 = vshrl.u32 %v1329, 7
      %v1331 = vsub.s32 %v1328, %v1330
      %v1332 = vrot.slane %v1318, %v1331
      %v1333 = vcombine.low %v1325, %v1332
      %v1335 = vunpack.c.l.s4 1966171168
      %v1336 = vunpack.c.0.s8 %v1335
      %v1337 = vlaneseq
      %v1338 = vshrl.u32 %v1337, 7
      %v1339 = vsub.s32 %v1336, %v1338
      %v1340 = vrot.slane %v1023, %v1339
      %v1342 = vunpack.c.l.s4 1966171168
      %v1343 = vunpack.c.0.s8 %v1342
      %v1344 = vlaneseq
      %v1345 = vshrl.u32 %v1344, 7
      %v1346 = vsub.s32 %v1343, %v1345
      %v1347 = vrot.slane %v1340, %v1346
      %v1356 = vcombine.low %v780, %v780
      %v1357 = vcombine.low %v794, %v802
      %v1359 = vunpack.c.l.s4 1966171168
      %v1360 = vunpack.c.0.s8 %v1359
      %v1361 = vlaneseq
      %v1362 = vshrl.u32 %v1361, 7
      %v1363 = vsub.s32 %v1360, %v1362
      %v1364 = vrot.slane %v1356, %v1363
      %v1366 = vunpack.c.l.s4 1966171168
      %v1367 = vunpack.c.0.s8 %v1366
      %v1368 = vlaneseq
      %v1369 = vshrl.u32 %v1368, 7
      %v1370 = vsub.s32 %v1367, %v1369
      %v1371 = vrot.slane %v1357, %v1370
      %v1373 = vunpack.c.l.s4 1966171168
      %v1374 = vunpack.c.0.s8 %v1373
      %v1375 = vlaneseq
      %v1376 = vshrl.u32 %v1375, 7
      %v1377 = vsub.s32 %v1374, %v1376
      %v1378 = vrot.slane %v804, %v1377
      %v1379 = vcombine.low %v1364, %v1371
      %v1381 = vunpack.c.l.s4 1966171168
      %v1382 = vunpack.c.0.s8 %v1381
      %v1383 = vlaneseq
      %v1384 = vshrl.u32 %v1383, 7
      %v1385 = vsub.s32 %v1382, %v1384
      %v1386 = vrot.slane %v1379, %v1385
      %v1388 = vunpack.c.l.s4 1966171168
      %v1389 = vunpack.c.0.s8 %v1388
      %v1390 = vlaneseq
      %v1391 = vshrl.u32 %v1390, 7
      %v1392 = vsub.s32 %v1389, %v1391
      %v1393 = vrot.slane %v1378, %v1392
      %v1394 = vcombine.low %v1386, %v1393
      %v1395 = vcombine.low %v899, %v899
      %v1396 = vcombine.low %v901, %v903
      %v1398 = vunpack.c.l.s4 1966171168
      %v1399 = vunpack.c.0.s8 %v1398
      %v1400 = vlaneseq
      %v1401 = vshrl.u32 %v1400, 7
      %v1402 = vsub.s32 %v1399, %v1401
      %v1403 = vrot.slane %v1395, %v1402
      %v1405 = vunpack.c.l.s4 1966171168
      %v1406 = vunpack.c.0.s8 %v1405
      %v1407 = vlaneseq
      %v1408 = vshrl.u32 %v1407, 7
      %v1409 = vsub.s32 %v1406, %v1408
      %v1410 = vrot.slane %v1396, %v1409
      %v1412 = vunpack.c.l.s4 1966171168
      %v1413 = vunpack.c.0.s8 %v1412
      %v1414 = vlaneseq
      %v1415 = vshrl.u32 %v1414, 7
      %v1416 = vsub.s32 %v1413, %v1415
      %v1417 = vrot.slane %v927, %v1416
      %v1418 = vcombine.low %v1403, %v1410
      %v1420 = vunpack.c.l.s4 1966171168
      %v1421 = vunpack.c.0.s8 %v1420
      %v1422 = vlaneseq
      %v1423 = vshrl.u32 %v1422, 7
      %v1424 = vsub.s32 %v1421, %v1423
      %v1425 = vrot.slane %v1418, %v1424
      %v1427 = vunpack.c.l.s4 1966171168
      %v1428 = vunpack.c.0.s8 %v1427
      %v1429 = vlaneseq
      %v1430 = vshrl.u32 %v1429, 7
      %v1431 = vsub.s32 %v1428, %v1430
      %v1432 = vrot.slane %v1417, %v1431
      %v1433 = vcombine.low %v1425, %v1432
      %vm1436 = vcmask 1043456
      %v1437 = vsel %vm1436, %v1047, %v1098
      %v1438 = vsel %vm1436, %v1071, %v1235
      %vm1439 = vcmask 1040384
      %v1440 = vsel %vm1439, %v1210, %v1394
      %v1441 = vsel %vm1439, %v1347, %v1433
      %vm1444 = vcmask 1046528
      %v1445 = vrot.slane %v1437, 1
      %v1446 = vrot.slane %v1147, 1
      %v1447 = vsel %vm1444, %v1445, %v1446
      %v1448 = vrot.slane %v1196, 1
      %v1449 = vsel %vm1444, %v1446, %v1448
      %v1450 = vrot.slane %v1438, 1
      %v1451 = vrot.slane %v1284, 1
      %v1452 = vsel %vm1444, %v1450, %v1451
      %v1453 = vrot.slane %v1333, 1
      %v1454 = vsel %vm1444, %v1451, %v1453
      %1455 = vrot.lane.b32.xlu0 %v1447, 32
      %v1456 = vpop.permute.xlu0 %1455
      %1457 = vrot.lane.b32.xlu0 %v1449, 32
      %v1458 = vpop.permute.xlu0 %1457
      %1459 = vrot.lane.b32.xlu0 %v1448, 32
      %v1460 = vpop.permute.xlu0 %1459
      %1461 = vrot.lane.b32.xlu0 %v1452, 32
      %v1462 = vpop.permute.xlu0 %1461
      %1463 = vrot.lane.b32.xlu0 %v1454, 32
      %v1464 = vpop.permute.xlu0 %1463
      %1465 = vrot.lane.b32.xlu0 %v1453, 32
      %v1466 = vpop.permute.xlu0 %1465
      %vm1473 = vcmask 1045504
      %v1474 = vrot.slane %v1437, 2
      %v1475 = vrot.slane %v1147, 2
      %v1476 = vsel %vm1473, %v1474, %v1475
      %v1477 = vrot.slane %v1196, 2
      %v1478 = vsel %vm1473, %v1475, %v1477
      %v1479 = vrot.slane %v1438, 2
      %v1480 = vrot.slane %v1284, 2
      %v1481 = vsel %vm1473, %v1479, %v1480
      %v1482 = vrot.slane %v1333, 2
      %v1483 = vsel %vm1473, %v1480, %v1482
      %1484 = vrot.lane.b32.xlu0 %v1476, 64
      %v1485 = vpop.permute.xlu0 %1484
      %1486 = vrot.lane.b32.xlu0 %v1478, 64
      %v1487 = vpop.permute.xlu0 %1486
      %1488 = vrot.lane.b32.xlu0 %v1477, 64
      %v1489 = vpop.permute.xlu0 %1488
      %1490 = vrot.lane.b32.xlu0 %v1481, 64
      %v1491 = vpop.permute.xlu0 %1490
      %1492 = vrot.lane.b32.xlu0 %v1483, 64
      %v1493 = vpop.permute.xlu0 %1492
      %1494 = vrot.lane.b32.xlu0 %v1482, 64
      %v1495 = vpop.permute.xlu0 %1494
      %vm1502 = vcmask 1044480
      %v1503 = vrot.slane %v1437, 3
      %v1504 = vrot.slane %v1147, 3
      %v1505 = vsel %vm1502, %v1503, %v1504
      %v1506 = vrot.slane %v1196, 3
      %v1507 = vsel %vm1502, %v1504, %v1506
      %v1508 = vrot.slane %v1438, 3
      %v1509 = vrot.slane %v1284, 3
      %v1510 = vsel %vm1502, %v1508, %v1509
      %v1511 = vrot.slane %v1333, 3
      %v1512 = vsel %vm1502, %v1509, %v1511
      %1513 = vrot.lane.b32.xlu0 %v1505, 96
      %v1514 = vpop.permute.xlu0 %1513
      %1515 = vrot.lane.b32.xlu0 %v1507, 96
      %v1516 = vpop.permute.xlu0 %1515
      %1517 = vrot.lane.b32.xlu0 %v1506, 96
      %v1518 = vpop.permute.xlu0 %1517
      %1519 = vrot.lane.b32.xlu0 %v1510, 96
      %v1520 = vpop.permute.xlu0 %1519
      %1521 = vrot.lane.b32.xlu0 %v1512, 96
      %v1522 = vpop.permute.xlu0 %1521
      %1523 = vrot.lane.b32.xlu0 %v1511, 96
      %v1524 = vpop.permute.xlu0 %1523
      %v1533 = vrot.slane %v1437, 4
      %v1534 = vrot.slane %v1147, 4
      %v1535 = vsel %vm1436, %v1533, %v1534
      %v1536 = vrot.slane %v1196, 4
      %v1537 = vsel %vm1436, %v1534, %v1536
      %v1538 = vrot.slane %v1440, 4
      %v1539 = vsel %vm1436, %v1536, %v1538
      %v1540 = vrot.slane %v1438, 4
      %v1541 = vrot.slane %v1284, 4
      %v1542 = vsel %vm1436, %v1540, %v1541
      %v1543 = vrot.slane %v1333, 4
      %v1544 = vsel %vm1436, %v1541, %v1543
      %v1545 = vrot.slane %v1441, 4
      %v1546 = vsel %vm1436, %v1543, %v1545
      %vm1553 = vcmask 1042432
      %v1554 = vrot.slane %v1437, 5
      %v1555 = vrot.slane %v1147, 5
      %v1556 = vsel %vm1553, %v1554, %v1555
      %v1557 = vrot.slane %v1196, 5
      %v1558 = vsel %vm1553, %v1555, %v1557
      %v1559 = vrot.slane %v1440, 5
      %v1560 = vsel %vm1553, %v1557, %v1559
      %v1561 = vrot.slane %v1438, 5
      %v1562 = vrot.slane %v1284, 5
      %v1563 = vsel %vm1553, %v1561, %v1562
      %v1564 = vrot.slane %v1333, 5
      %v1565 = vsel %vm1553, %v1562, %v1564
      %v1566 = vrot.slane %v1441, 5
      %v1567 = vsel %vm1553, %v1564, %v1566
      %1568 = vrot.lane.b32.xlu0 %v1556, 32
      %v1569 = vpop.permute.xlu0 %1568
      %1570 = vrot.lane.b32.xlu0 %v1558, 32
      %v1571 = vpop.permute.xlu0 %1570
      %1572 = vrot.lane.b32.xlu0 %v1560, 32
      %v1573 = vpop.permute.xlu0 %1572
      %1574 = vrot.lane.b32.xlu0 %v1563, 32
      %v1575 = vpop.permute.xlu0 %1574
      %1576 = vrot.lane.b32.xlu0 %v1565, 32
      %v1577 = vpop.permute.xlu0 %1576
      %1578 = vrot.lane.b32.xlu0 %v1567, 32
      %v1579 = vpop.permute.xlu0 %1578
      %vm1586 = vcmask 1041408
      %v1587 = vrot.slane %v1437, 6
      %v1588 = vrot.slane %v1147, 6
      %v1589 = vsel %vm1586, %v1587, %v1588
      %v1590 = vrot.slane %v1196, 6
      %v1591 = vsel %vm1586, %v1588, %v1590
      %v1592 = vrot.slane %v1440, 6
      %v1593 = vsel %vm1586, %v1590, %v1592
      %v1594 = vrot.slane %v1438, 6
      %v1595 = vrot.slane %v1284, 6
      %v1596 = vsel %vm1586, %v1594, %v1595
      %v1597 = vrot.slane %v1333, 6
      %v1598 = vsel %vm1586, %v1595, %v1597
      %v1599 = vrot.slane %v1441, 6
      %v1600 = vsel %vm1586, %v1597, %v1599
      %1601 = vrot.lane.b32.xlu0 %v1589, 64
      %v1602 = vpop.permute.xlu0 %1601
      %1603 = vrot.lane.b32.xlu0 %v1591, 64
      %v1604 = vpop.permute.xlu0 %1603
      %1605 = vrot.lane.b32.xlu0 %v1593, 64
      %v1606 = vpop.permute.xlu0 %1605
      %1607 = vrot.lane.b32.xlu0 %v1596, 64
      %v1608 = vpop.permute.xlu0 %1607
      %1609 = vrot.lane.b32.xlu0 %v1598, 64
      %v1610 = vpop.permute.xlu0 %1609
      %1611 = vrot.lane.b32.xlu0 %v1600, 64
      %v1612 = vpop.permute.xlu0 %1611
      %v1619 = vrot.slane %v1437, 7
      %v1620 = vrot.slane %v1147, 7
      %v1621 = vsel %vm1439, %v1619, %v1620
      %v1622 = vrot.slane %v1196, 7
      %v1623 = vsel %vm1439, %v1620, %v1622
      %v1624 = vrot.slane %v1440, 7
      %v1625 = vsel %vm1439, %v1622, %v1624
      %v1626 = vrot.slane %v1438, 7
      %v1627 = vrot.slane %v1284, 7
      %v1628 = vsel %vm1439, %v1626, %v1627
      %v1629 = vrot.slane %v1333, 7
      %v1630 = vsel %vm1439, %v1627, %v1629
      %v1631 = vrot.slane %v1441, 7
      %v1632 = vsel %vm1439, %v1629, %v1631
      %1633 = vrot.lane.b32.xlu0 %v1621, 96
      %v1634 = vpop.permute.xlu0 %1633
      %1635 = vrot.lane.b32.xlu0 %v1623, 96
      %v1636 = vpop.permute.xlu0 %1635
      %1637 = vrot.lane.b32.xlu0 %v1625, 96
      %v1638 = vpop.permute.xlu0 %1637
      %1639 = vrot.lane.b32.xlu0 %v1628, 96
      %v1640 = vpop.permute.xlu0 %1639
      %1641 = vrot.lane.b32.xlu0 %v1630, 96
      %v1642 = vpop.permute.xlu0 %1641
      %1643 = vrot.lane.b32.xlu0 %v1632, 96
      %v1644 = vpop.permute.xlu0 %1643
      %v1651 = vsel %vm582, %v1437, %v1456
      %v1652 = vsel %vm582, %v1147, %v1458
      %v1653 = vsel %vm582, %v1196, %v1460
      %v1654 = vsel %vm582, %v1438, %v1462
      %v1655 = vsel %vm582, %v1284, %v1464
      %v1656 = vsel %vm582, %v1333, %v1466
      %vm1657 = vcmask 523264
      %v1658 = vsel %vm1657, %v1651, %v1485
      %v1659 = vsel %vm1657, %v1652, %v1487
      %v1660 = vsel %vm1657, %v1653, %v1489
      %v1661 = vsel %vm1657, %v1654, %v1491
      %v1662 = vsel %vm1657, %v1655, %v1493
      %v1663 = vsel %vm1657, %v1656, %v1495
      %vm1664 = vcmask 785408
      %v1665 = vsel %vm1664, %v1658, %v1514
      %v1666 = vsel %vm1664, %v1659, %v1516
      %v1667 = vsel %vm1664, %v1660, %v1518
      %v1668 = vsel %vm1664, %v1661, %v1520
      %v1669 = vsel %vm1664, %v1662, %v1522
      %v1670 = vsel %vm1664, %v1663, %v1524
      %v1671 = vsel %vm582, %v1535, %v1569
      %v1672 = vsel %vm582, %v1537, %v1571
      %v1673 = vsel %vm582, %v1539, %v1573
      %v1674 = vsel %vm582, %v1542, %v1575
      %v1675 = vsel %vm582, %v1544, %v1577
      %v1676 = vsel %vm582, %v1546, %v1579
      %v1677 = vsel %vm1657, %v1671, %v1602
      %v1678 = vsel %vm1657, %v1672, %v1604
      %v1679 = vsel %vm1657, %v1673, %v1606
      %v1680 = vsel %vm1657, %v1674, %v1608
      %v1681 = vsel %vm1657, %v1675, %v1610
      %v1682 = vsel %vm1657, %v1676, %v1612
      %v1683 = vsel %vm1664, %v1677, %v1634
      %v1684 = vsel %vm1664, %v1678, %v1636
      %v1685 = vsel %vm1664, %v1679, %v1638
      %v1686 = vsel %vm1664, %v1680, %v1640
      %v1687 = vsel %vm1664, %v1681, %v1642
      %v1688 = vsel %vm1664, %v1682, %v1644
      %v1701 = vcombine.low %v1665, %v1683
      %v1702 = vcombine.high %v1665, %v1683
      %v1703 = vcombine.high %v1147, %v1147
      %v1705 = vunpack.c.l.s4 1966171168
      %v1706 = vunpack.c.0.s8 %v1705
      %v1707 = vlaneseq
      %v1708 = vshrl.u32 %v1707, 7
      %v1709 = vsub.s32 %v1706, %v1708
      %v1710 = vrot.slane %v1701, %v1709
      %v1712 = vunpack.c.l.s4 1966171168
      %v1713 = vunpack.c.0.s8 %v1712
      %v1714 = vlaneseq
      %v1715 = vshrl.u32 %v1714, 7
      %v1716 = vsub.s32 %v1713, %v1715
      %v1717 = vrot.slane %v1702, %v1716
      %v1719 = vunpack.c.l.s4 1966171168
      %v1720 = vunpack.c.0.s8 %v1719
      %v1721 = vlaneseq
      %v1722 = vshrl.u32 %v1721, 7
      %v1723 = vsub.s32 %v1720, %v1722
      %v1724 = vrot.slane %v1147, %v1723
      %v1726 = vunpack.c.l.s4 1966171168
      %v1727 = vunpack.c.0.s8 %v1726
      %v1728 = vlaneseq
      %v1729 = vshrl.u32 %v1728, 7
      %v1730 = vsub.s32 %v1727, %v1729
      %v1731 = vrot.slane %v1703, %v1730
      %v1732 = vcombine.low %v1710, %v1724
      %v1733 = vcombine.high %v1710, %v1724
      %v1734 = vcombine.low %v1717, %v1731
      %v1735 = vcombine.high %v1717, %v1731
      %v1737 = vunpack.c.l.s4 1966171168
      %v1738 = vunpack.c.0.s8 %v1737
      %v1739 = vlaneseq
      %v1740 = vshrl.u32 %v1739, 7
      %v1741 = vsub.s32 %v1738, %v1740
      %v1742 = vrot.slane %v1732, %v1741
      %v1744 = vunpack.c.l.s4 1966171168
      %v1745 = vunpack.c.0.s8 %v1744
      %v1746 = vlaneseq
      %v1747 = vshrl.u32 %v1746, 7
      %v1748 = vsub.s32 %v1745, %v1747
      %v1749 = vrot.slane %v1734, %v1748
      %v1751 = vunpack.c.l.s4 1966171168
      %v1752 = vunpack.c.0.s8 %v1751
      %v1753 = vlaneseq
      %v1754 = vshrl.u32 %v1753, 7
      %v1755 = vsub.s32 %v1752, %v1754
      %v1756 = vrot.slane %v1733, %v1755
      %v1758 = vunpack.c.l.s4 1966171168
      %v1759 = vunpack.c.0.s8 %v1758
      %v1760 = vlaneseq
      %v1761 = vshrl.u32 %v1760, 7
      %v1762 = vsub.s32 %v1759, %v1761
      %v1763 = vrot.slane %v1735, %v1762
      %v1764 = vcombine.high %v1742, %v1742
      %v1765 = vcombine.high %v1749, %v1749
      %v1766 = vcombine.high %v1756, %v1756
      %v1767 = vcombine.high %v1763, %v1763
      %v1768 = vcombine.low %v1666, %v1684
      %v1769 = vcombine.high %v1666, %v1684
      %v1770 = vcombine.high %v1196, %v1196
      %v1772 = vunpack.c.l.s4 1966171168
      %v1773 = vunpack.c.0.s8 %v1772
      %v1774 = vlaneseq
      %v1775 = vshrl.u32 %v1774, 7
      %v1776 = vsub.s32 %v1773, %v1775
      %v1777 = vrot.slane %v1768, %v1776
      %v1779 = vunpack.c.l.s4 1966171168
      %v1780 = vunpack.c.0.s8 %v1779
      %v1781 = vlaneseq
      %v1782 = vshrl.u32 %v1781, 7
      %v1783 = vsub.s32 %v1780, %v1782
      %v1784 = vrot.slane %v1769, %v1783
      %v1786 = vunpack.c.l.s4 1966171168
      %v1787 = vunpack.c.0.s8 %v1786
      %v1788 = vlaneseq
      %v1789 = vshrl.u32 %v1788, 7
      %v1790 = vsub.s32 %v1787, %v1789
      %v1791 = vrot.slane %v1196, %v1790
      %v1793 = vunpack.c.l.s4 1966171168
      %v1794 = vunpack.c.0.s8 %v1793
      %v1795 = vlaneseq
      %v1796 = vshrl.u32 %v1795, 7
      %v1797 = vsub.s32 %v1794, %v1796
      %v1798 = vrot.slane %v1770, %v1797
      %v1799 = vcombine.low %v1777, %v1791
      %v1800 = vcombine.high %v1777, %v1791
      %v1801 = vcombine.low %v1784, %v1798
      %v1802 = vcombine.high %v1784, %v1798
      %v1804 = vunpack.c.l.s4 1966171168
      %v1805 = vunpack.c.0.s8 %v1804
      %v1806 = vlaneseq
      %v1807 = vshrl.u32 %v1806, 7
      %v1808 = vsub.s32 %v1805, %v1807
      %v1809 = vrot.slane %v1799, %v1808
      %v1811 = vunpack.c.l.s4 1966171168
      %v1812 = vunpack.c.0.s8 %v1811
      %v1813 = vlaneseq
      %v1814 = vshrl.u32 %v1813, 7
      %v1815 = vsub.s32 %v1812, %v1814
      %v1816 = vrot.slane %v1801, %v1815
      %v1818 = vunpack.c.l.s4 1966171168
      %v1819 = vunpack.c.0.s8 %v1818
      %v1820 = vlaneseq
      %v1821 = vshrl.u32 %v1820, 7
      %v1822 = vsub.s32 %v1819, %v1821
      %v1823 = vrot.slane %v1800, %v1822
      %v1825 = vunpack.c.l.s4 1966171168
      %v1826 = vunpack.c.0.s8 %v1825
      %v1827 = vlaneseq
      %v1828 = vshrl.u32 %v1827, 7
      %v1829 = vsub.s32 %v1826, %v1828
      %v1830 = vrot.slane %v1802, %v1829
      %v1831 = vcombine.high %v1809, %v1809
      %v1832 = vcombine.high %v1816, %v1816
      %v1833 = vcombine.high %v1823, %v1823
      %v1834 = vcombine.high %v1830, %v1830
      %v1835 = vcombine.low %v1667, %v1685
      %v1836 = vcombine.high %v1667, %v1685
      %v1837 = vcombine.high %v1440, %v1440
      %v1839 = vunpack.c.l.s4 1966171168
      %v1840 = vunpack.c.0.s8 %v1839
      %v1841 = vlaneseq
      %v1842 = vshrl.u32 %v1841, 7
      %v1843 = vsub.s32 %v1840, %v1842
      %v1844 = vrot.slane %v1835, %v1843
      %v1846 = vunpack.c.l.s4 1966171168
      %v1847 = vunpack.c.0.s8 %v1846
      %v1848 = vlaneseq
      %v1849 = vshrl.u32 %v1848, 7
      %v1850 = vsub.s32 %v1847, %v1849
      %v1851 = vrot.slane %v1836, %v1850
      %v1853 = vunpack.c.l.s4 1966171168
      %v1854 = vunpack.c.0.s8 %v1853
      %v1855 = vlaneseq
      %v1856 = vshrl.u32 %v1855, 7
      %v1857 = vsub.s32 %v1854, %v1856
      %v1858 = vrot.slane %v1440, %v1857
      %v1860 = vunpack.c.l.s4 1966171168
      %v1861 = vunpack.c.0.s8 %v1860
      %v1862 = vlaneseq
      %v1863 = vshrl.u32 %v1862, 7
      %v1864 = vsub.s32 %v1861, %v1863
      %v1865 = vrot.slane %v1837, %v1864
      %v1866 = vcombine.low %v1844, %v1858
      %v1867 = vcombine.high %v1844, %v1858
      %v1868 = vcombine.low %v1851, %v1865
      %v1870 = vunpack.c.l.s4 1966171168
      %v1871 = vunpack.c.0.s8 %v1870
      %v1872 = vlaneseq
      %v1873 = vshrl.u32 %v1872, 7
      %v1874 = vsub.s32 %v1871, %v1873
      %v1875 = vrot.slane %v1866, %v1874
      %v1877 = vunpack.c.l.s4 1966171168
      %v1878 = vunpack.c.0.s8 %v1877
      %v1879 = vlaneseq
      %v1880 = vshrl.u32 %v1879, 7
      %v1881 = vsub.s32 %v1878, %v1880
      %v1882 = vrot.slane %v1868, %v1881
      %v1884 = vunpack.c.l.s4 1966171168
      %v1885 = vunpack.c.0.s8 %v1884
      %v1886 = vlaneseq
      %v1887 = vshrl.u32 %v1886, 7
      %v1888 = vsub.s32 %v1885, %v1887
      %v1889 = vrot.slane %v1867, %v1888
      %v1890 = vcombine.high %v1875, %v1875
      %v1891 = vcombine.high %v1889, %v1889
      %v1892 = vcombine.low %v1668, %v1686
      %v1893 = vcombine.high %v1668, %v1686
      %v1894 = vcombine.high %v1284, %v1284
      %v1896 = vunpack.c.l.s4 1966171168
      %v1897 = vunpack.c.0.s8 %v1896
      %v1898 = vlaneseq
      %v1899 = vshrl.u32 %v1898, 7
      %v1900 = vsub.s32 %v1897, %v1899
      %v1901 = vrot.slane %v1892, %v1900
      %v1903 = vunpack.c.l.s4 1966171168
      %v1904 = vunpack.c.0.s8 %v1903
      %v1905 = vlaneseq
      %v1906 = vshrl.u32 %v1905, 7
      %v1907 = vsub.s32 %v1904, %v1906
      %v1908 = vrot.slane %v1893, %v1907
      %v1910 = vunpack.c.l.s4 1966171168
      %v1911 = vunpack.c.0.s8 %v1910
      %v1912 = vlaneseq
      %v1913 = vshrl.u32 %v1912, 7
      %v1914 = vsub.s32 %v1911, %v1913
      %v1915 = vrot.slane %v1284, %v1914
      %v1917 = vunpack.c.l.s4 1966171168
      %v1918 = vunpack.c.0.s8 %v1917
      %v1919 = vlaneseq
      %v1920 = vshrl.u32 %v1919, 7
      %v1921 = vsub.s32 %v1918, %v1920
      %v1922 = vrot.slane %v1894, %v1921
      %v1923 = vcombine.low %v1901, %v1915
      %v1924 = vcombine.high %v1901, %v1915
      %v1925 = vcombine.low %v1908, %v1922
      %v1926 = vcombine.high %v1908, %v1922
      %v1928 = vunpack.c.l.s4 1966171168
      %v1929 = vunpack.c.0.s8 %v1928
      %v1930 = vlaneseq
      %v1931 = vshrl.u32 %v1930, 7
      %v1932 = vsub.s32 %v1929, %v1931
      %v1933 = vrot.slane %v1923, %v1932
      %v1935 = vunpack.c.l.s4 1966171168
      %v1936 = vunpack.c.0.s8 %v1935
      %v1937 = vlaneseq
      %v1938 = vshrl.u32 %v1937, 7
      %v1939 = vsub.s32 %v1936, %v1938
      %v1940 = vrot.slane %v1925, %v1939
      %v1942 = vunpack.c.l.s4 1966171168
      %v1943 = vunpack.c.0.s8 %v1942
      %v1944 = vlaneseq
      %v1945 = vshrl.u32 %v1944, 7
      %v1946 = vsub.s32 %v1943, %v1945
      %v1947 = vrot.slane %v1924, %v1946
      %v1949 = vunpack.c.l.s4 1966171168
      %v1950 = vunpack.c.0.s8 %v1949
      %v1951 = vlaneseq
      %v1952 = vshrl.u32 %v1951, 7
      %v1953 = vsub.s32 %v1950, %v1952
      %v1954 = vrot.slane %v1926, %v1953
      %v1955 = vcombine.high %v1933, %v1933
      %v1956 = vcombine.high %v1940, %v1940
      %v1957 = vcombine.high %v1947, %v1947
      %v1958 = vcombine.high %v1954, %v1954
      %v1959 = vcombine.low %v1669, %v1687
      %v1960 = vcombine.high %v1669, %v1687
      %v1961 = vcombine.high %v1333, %v1333
      %v1963 = vunpack.c.l.s4 1966171168
      %v1964 = vunpack.c.0.s8 %v1963
      %v1965 = vlaneseq
      %v1966 = vshrl.u32 %v1965, 7
      %v1967 = vsub.s32 %v1964, %v1966
      %v1968 = vrot.slane %v1959, %v1967
      %v1970 = vunpack.c.l.s4 1966171168
      %v1971 = vunpack.c.0.s8 %v1970
      %v1972 = vlaneseq
      %v1973 = vshrl.u32 %v1972, 7
      %v1974 = vsub.s32 %v1971, %v1973
      %v1975 = vrot.slane %v1960, %v1974
      %v1977 = vunpack.c.l.s4 1966171168
      %v1978 = vunpack.c.0.s8 %v1977
      %v1979 = vlaneseq
      %v1980 = vshrl.u32 %v1979, 7
      %v1981 = vsub.s32 %v1978, %v1980
      %v1982 = vrot.slane %v1333, %v1981
      %v1984 = vunpack.c.l.s4 1966171168
      %v1985 = vunpack.c.0.s8 %v1984
      %v1986 = vlaneseq
      %v1987 = vshrl.u32 %v1986, 7
      %v1988 = vsub.s32 %v1985, %v1987
      %v1989 = vrot.slane %v1961, %v1988
      %v1990 = vcombine.low %v1968, %v1982
      %v1991 = vcombine.high %v1968, %v1982
      %v1992 = vcombine.low %v1975, %v1989
      %v1993 = vcombine.high %v1975, %v1989
      %v1995 = vunpack.c.l.s4 1966171168
      %v1996 = vunpack.c.0.s8 %v1995
      %v1997 = vlaneseq
      %v1998 = vshrl.u32 %v1997, 7
      %v1999 = vsub.s32 %v1996, %v1998
      %v2000 = vrot.slane %v1990, %v1999
      %v2002 = vunpack.c.l.s4 1966171168
      %v2003 = vunpack.c.0.s8 %v2002
      %v2004 = vlaneseq
      %v2005 = vshrl.u32 %v2004, 7
      %v2006 = vsub.s32 %v2003, %v2005
      %v2007 = vrot.slane %v1992, %v2006
      %v2009 = vunpack.c.l.s4 1966171168
      %v2010 = vunpack.c.0.s8 %v2009
      %v2011 = vlaneseq
      %v2012 = vshrl.u32 %v2011, 7
      %v2013 = vsub.s32 %v2010, %v2012
      %v2014 = vrot.slane %v1991, %v2013
      %v2016 = vunpack.c.l.s4 1966171168
      %v2017 = vunpack.c.0.s8 %v2016
      %v2018 = vlaneseq
      %v2019 = vshrl.u32 %v2018, 7
      %v2020 = vsub.s32 %v2017, %v2019
      %v2021 = vrot.slane %v1993, %v2020
      %v2022 = vcombine.high %v2000, %v2000
      %v2023 = vcombine.high %v2007, %v2007
      %v2024 = vcombine.high %v2014, %v2014
      %v2025 = vcombine.high %v2021, %v2021
      %v2026 = vcombine.low %v1670, %v1688
      %v2027 = vcombine.high %v1670, %v1688
      %v2028 = vcombine.high %v1441, %v1441
      %v2030 = vunpack.c.l.s4 1966171168
      %v2031 = vunpack.c.0.s8 %v2030
      %v2032 = vlaneseq
      %v2033 = vshrl.u32 %v2032, 7
      %v2034 = vsub.s32 %v2031, %v2033
      %v2035 = vrot.slane %v2026, %v2034
      %v2037 = vunpack.c.l.s4 1966171168
      %v2038 = vunpack.c.0.s8 %v2037
      %v2039 = vlaneseq
      %v2040 = vshrl.u32 %v2039, 7
      %v2041 = vsub.s32 %v2038, %v2040
      %v2042 = vrot.slane %v2027, %v2041
      %v2044 = vunpack.c.l.s4 1966171168
      %v2045 = vunpack.c.0.s8 %v2044
      %v2046 = vlaneseq
      %v2047 = vshrl.u32 %v2046, 7
      %v2048 = vsub.s32 %v2045, %v2047
      %v2049 = vrot.slane %v1441, %v2048
      %v2051 = vunpack.c.l.s4 1966171168
      %v2052 = vunpack.c.0.s8 %v2051
      %v2053 = vlaneseq
      %v2054 = vshrl.u32 %v2053, 7
      %v2055 = vsub.s32 %v2052, %v2054
      %v2056 = vrot.slane %v2028, %v2055
      %v2057 = vcombine.low %v2035, %v2049
      %v2058 = vcombine.high %v2035, %v2049
      %v2059 = vcombine.low %v2042, %v2056
      %v2061 = vunpack.c.l.s4 1966171168
      %v2062 = vunpack.c.0.s8 %v2061
      %v2063 = vlaneseq
      %v2064 = vshrl.u32 %v2063, 7
      %v2065 = vsub.s32 %v2062, %v2064
      %v2066 = vrot.slane %v2057, %v2065
      %v2068 = vunpack.c.l.s4 1966171168
      %v2069 = vunpack.c.0.s8 %v2068
      %v2070 = vlaneseq
      %v2071 = vshrl.u32 %v2070, 7
      %v2072 = vsub.s32 %v2069, %v2071
      %v2073 = vrot.slane %v2059, %v2072
      %v2075 = vunpack.c.l.s4 1966171168
      %v2076 = vunpack.c.0.s8 %v2075
      %v2077 = vlaneseq
      %v2078 = vshrl.u32 %v2077, 7
      %v2079 = vsub.s32 %v2076, %v2078
      %v2080 = vrot.slane %v2058, %v2079
      %v2081 = vcombine.high %v2066, %v2066
      %v2082 = vcombine.high %v2080, %v2080
      %v2083 = vcombine.low %v1742, %v1756
      %v2084 = vcombine.low %v1764, %v1766
      %v2085 = vcombine.low %v1749, %v1763
      %v2086 = vcombine.low %v1765, %v1767
      %v2088 = vunpack.c.l.s4 1966171168
      %v2089 = vunpack.c.0.s8 %v2088
      %v2090 = vlaneseq
      %v2091 = vshrl.u32 %v2090, 7
      %v2092 = vsub.s32 %v2089, %v2091
      %v2093 = vrot.slane %v2083, %v2092
      %v2095 = vunpack.c.l.s4 1966171168
      %v2096 = vunpack.c.0.s8 %v2095
      %v2097 = vlaneseq
      %v2098 = vshrl.u32 %v2097, 7
      %v2099 = vsub.s32 %v2096, %v2098
      %v2100 = vrot.slane %v2084, %v2099
      %v2102 = vunpack.c.l.s4 1966171168
      %v2103 = vunpack.c.0.s8 %v2102
      %v2104 = vlaneseq
      %v2105 = vshrl.u32 %v2104, 7
      %v2106 = vsub.s32 %v2103, %v2105
      %v2107 = vrot.slane %v2085, %v2106
      %v2109 = vunpack.c.l.s4 1966171168
      %v2110 = vunpack.c.0.s8 %v2109
      %v2111 = vlaneseq
      %v2112 = vshrl.u32 %v2111, 7
      %v2113 = vsub.s32 %v2110, %v2112
      %v2114 = vrot.slane %v2086, %v2113
      %v2115 = vcombine.low %v2093, %v2100
      %v2116 = vcombine.high %v2093, %v2100
      %v2117 = vcombine.low %v2107, %v2114
      %v2118 = vcombine.high %v2107, %v2114
      %v2120 = vunpack.c.l.s4 1966171168
      %v2121 = vunpack.c.0.s8 %v2120
      %v2122 = vlaneseq
      %v2123 = vshrl.u32 %v2122, 7
      %v2124 = vsub.s32 %v2121, %v2123
      %v2125 = vrot.slane %v2115, %v2124
      %v2127 = vunpack.c.l.s4 1966171168
      %v2128 = vunpack.c.0.s8 %v2127
      %v2129 = vlaneseq
      %v2130 = vshrl.u32 %v2129, 7
      %v2131 = vsub.s32 %v2128, %v2130
      %v2132 = vrot.slane %v2116, %v2131
      %v2134 = vunpack.c.l.s4 1966171168
      %v2135 = vunpack.c.0.s8 %v2134
      %v2136 = vlaneseq
      %v2137 = vshrl.u32 %v2136, 7
      %v2138 = vsub.s32 %v2135, %v2137
      %v2139 = vrot.slane %v2117, %v2138
      %v2141 = vunpack.c.l.s4 1966171168
      %v2142 = vunpack.c.0.s8 %v2141
      %v2143 = vlaneseq
      %v2144 = vshrl.u32 %v2143, 7
      %v2145 = vsub.s32 %v2142, %v2144
      %v2146 = vrot.slane %v2118, %v2145
      %v2147 = vcombine.low %v2125, %v2139
      %v2148 = vcombine.high %v2125, %v2139
      %v2149 = vcombine.low %v2132, %v2146
      %v2150 = vcombine.low %v1809, %v1823
      %v2151 = vcombine.low %v1831, %v1833
      %v2152 = vcombine.low %v1816, %v1830
      %v2153 = vcombine.low %v1832, %v1834
      %v2155 = vunpack.c.l.s4 1966171168
      %v2156 = vunpack.c.0.s8 %v2155
      %v2157 = vlaneseq
      %v2158 = vshrl.u32 %v2157, 7
      %v2159 = vsub.s32 %v2156, %v2158
      %v2160 = vrot.slane %v2150, %v2159
      %v2162 = vunpack.c.l.s4 1966171168
      %v2163 = vunpack.c.0.s8 %v2162
      %v2164 = vlaneseq
      %v2165 = vshrl.u32 %v2164, 7
      %v2166 = vsub.s32 %v2163, %v2165
      %v2167 = vrot.slane %v2151, %v2166
      %v2169 = vunpack.c.l.s4 1966171168
      %v2170 = vunpack.c.0.s8 %v2169
      %v2171 = vlaneseq
      %v2172 = vshrl.u32 %v2171, 7
      %v2173 = vsub.s32 %v2170, %v2172
      %v2174 = vrot.slane %v2152, %v2173
      %v2176 = vunpack.c.l.s4 1966171168
      %v2177 = vunpack.c.0.s8 %v2176
      %v2178 = vlaneseq
      %v2179 = vshrl.u32 %v2178, 7
      %v2180 = vsub.s32 %v2177, %v2179
      %v2181 = vrot.slane %v2153, %v2180
      %v2182 = vcombine.low %v2160, %v2167
      %v2183 = vcombine.high %v2160, %v2167
      %v2184 = vcombine.low %v2174, %v2181
      %v2185 = vcombine.high %v2174, %v2181
      %v2187 = vunpack.c.l.s4 1966171168
      %v2188 = vunpack.c.0.s8 %v2187
      %v2189 = vlaneseq
      %v2190 = vshrl.u32 %v2189, 7
      %v2191 = vsub.s32 %v2188, %v2190
      %v2192 = vrot.slane %v2182, %v2191
      %v2194 = vunpack.c.l.s4 1966171168
      %v2195 = vunpack.c.0.s8 %v2194
      %v2196 = vlaneseq
      %v2197 = vshrl.u32 %v2196, 7
      %v2198 = vsub.s32 %v2195, %v2197
      %v2199 = vrot.slane %v2183, %v2198
      %v2201 = vunpack.c.l.s4 1966171168
      %v2202 = vunpack.c.0.s8 %v2201
      %v2203 = vlaneseq
      %v2204 = vshrl.u32 %v2203, 7
      %v2205 = vsub.s32 %v2202, %v2204
      %v2206 = vrot.slane %v2184, %v2205
      %v2208 = vunpack.c.l.s4 1966171168
      %v2209 = vunpack.c.0.s8 %v2208
      %v2210 = vlaneseq
      %v2211 = vshrl.u32 %v2210, 7
      %v2212 = vsub.s32 %v2209, %v2211
      %v2213 = vrot.slane %v2185, %v2212
      %v2214 = vcombine.low %v2192, %v2206
      %v2215 = vcombine.high %v2192, %v2206
      %v2216 = vcombine.low %v2199, %v2213
      %v2217 = vcombine.low %v1875, %v1889
      %v2218 = vcombine.low %v1890, %v1891
      %v2219 = vcombine.low %v1882, %v1933
      %v2220 = vcombine.low %v1947, %v1955
      %v2222 = vunpack.c.l.s4 1966171168
      %v2223 = vunpack.c.0.s8 %v2222
      %v2224 = vlaneseq
      %v2225 = vshrl.u32 %v2224, 7
      %v2226 = vsub.s32 %v2223, %v2225
      %v2227 = vrot.slane %v2217, %v2226
      %v2229 = vunpack.c.l.s4 1966171168
      %v2230 = vunpack.c.0.s8 %v2229
      %v2231 = vlaneseq
      %v2232 = vshrl.u32 %v2231, 7
      %v2233 = vsub.s32 %v2230, %v2232
      %v2234 = vrot.slane %v2218, %v2233
      %v2236 = vunpack.c.l.s4 1966171168
      %v2237 = vunpack.c.0.s8 %v2236
      %v2238 = vlaneseq
      %v2239 = vshrl.u32 %v2238, 7
      %v2240 = vsub.s32 %v2237, %v2239
      %v2241 = vrot.slane %v2219, %v2240
      %v2243 = vunpack.c.l.s4 1966171168
      %v2244 = vunpack.c.0.s8 %v2243
      %v2245 = vlaneseq
      %v2246 = vshrl.u32 %v2245, 7
      %v2247 = vsub.s32 %v2244, %v2246
      %v2248 = vrot.slane %v2220, %v2247
      %v2249 = vcombine.low %v2227, %v2234
      %v2250 = vcombine.high %v2227, %v2234
      %v2251 = vcombine.low %v2241, %v2248
      %v2252 = vcombine.high %v2241, %v2248
      %v2254 = vunpack.c.l.s4 1966171168
      %v2255 = vunpack.c.0.s8 %v2254
      %v2256 = vlaneseq
      %v2257 = vshrl.u32 %v2256, 7
      %v2258 = vsub.s32 %v2255, %v2257
      %v2259 = vrot.slane %v2249, %v2258
      %v2261 = vunpack.c.l.s4 1966171168
      %v2262 = vunpack.c.0.s8 %v2261
      %v2263 = vlaneseq
      %v2264 = vshrl.u32 %v2263, 7
      %v2265 = vsub.s32 %v2262, %v2264
      %v2266 = vrot.slane %v2250, %v2265
      %v2268 = vunpack.c.l.s4 1966171168
      %v2269 = vunpack.c.0.s8 %v2268
      %v2270 = vlaneseq
      %v2271 = vshrl.u32 %v2270, 7
      %v2272 = vsub.s32 %v2269, %v2271
      %v2273 = vrot.slane %v2251, %v2272
      %v2275 = vunpack.c.l.s4 1966171168
      %v2276 = vunpack.c.0.s8 %v2275
      %v2277 = vlaneseq
      %v2278 = vshrl.u32 %v2277, 7
      %v2279 = vsub.s32 %v2276, %v2278
      %v2280 = vrot.slane %v2252, %v2279
      %v2281 = vcombine.low %v2259, %v2273
      %v2282 = vcombine.high %v2259, %v2273
      %v2283 = vcombine.low %v2266, %v2280
      %v2284 = vcombine.low %v1957, %v1940
      %v2285 = vcombine.low %v1954, %v1956
      %v2286 = vcombine.low %v1958, %v2000
      %v2287 = vcombine.low %v2014, %v2022
      %v2289 = vunpack.c.l.s4 1966171168
      %v2290 = vunpack.c.0.s8 %v2289
      %v2291 = vlaneseq
      %v2292 = vshrl.u32 %v2291, 7
      %v2293 = vsub.s32 %v2290, %v2292
      %v2294 = vrot.slane %v2284, %v2293
      %v2296 = vunpack.c.l.s4 1966171168
      %v2297 = vunpack.c.0.s8 %v2296
      %v2298 = vlaneseq
      %v2299 = vshrl.u32 %v2298, 7
      %v2300 = vsub.s32 %v2297, %v2299
      %v2301 = vrot.slane %v2285, %v2300
      %v2303 = vunpack.c.l.s4 1966171168
      %v2304 = vunpack.c.0.s8 %v2303
      %v2305 = vlaneseq
      %v2306 = vshrl.u32 %v2305, 7
      %v2307 = vsub.s32 %v2304, %v2306
      %v2308 = vrot.slane %v2286, %v2307
      %v2310 = vunpack.c.l.s4 1966171168
      %v2311 = vunpack.c.0.s8 %v2310
      %v2312 = vlaneseq
      %v2313 = vshrl.u32 %v2312, 7
      %v2314 = vsub.s32 %v2311, %v2313
      %v2315 = vrot.slane %v2287, %v2314
      %v2316 = vcombine.low %v2294, %v2301
      %v2317 = vcombine.high %v2294, %v2301
      %v2318 = vcombine.low %v2308, %v2315
      %v2319 = vcombine.high %v2308, %v2315
      %v2321 = vunpack.c.l.s4 1966171168
      %v2322 = vunpack.c.0.s8 %v2321
      %v2323 = vlaneseq
      %v2324 = vshrl.u32 %v2323, 7
      %v2325 = vsub.s32 %v2322, %v2324
      %v2326 = vrot.slane %v2316, %v2325
      %v2328 = vunpack.c.l.s4 1966171168
      %v2329 = vunpack.c.0.s8 %v2328
      %v2330 = vlaneseq
      %v2331 = vshrl.u32 %v2330, 7
      %v2332 = vsub.s32 %v2329, %v2331
      %v2333 = vrot.slane %v2317, %v2332
      %v2335 = vunpack.c.l.s4 1966171168
      %v2336 = vunpack.c.0.s8 %v2335
      %v2337 = vlaneseq
      %v2338 = vshrl.u32 %v2337, 7
      %v2339 = vsub.s32 %v2336, %v2338
      %v2340 = vrot.slane %v2318, %v2339
      %v2342 = vunpack.c.l.s4 1966171168
      %v2343 = vunpack.c.0.s8 %v2342
      %v2344 = vlaneseq
      %v2345 = vshrl.u32 %v2344, 7
      %v2346 = vsub.s32 %v2343, %v2345
      %v2347 = vrot.slane %v2319, %v2346
      %v2348 = vcombine.low %v2326, %v2340
      %v2349 = vcombine.high %v2326, %v2340
      %v2350 = vcombine.low %v2333, %v2347
      %v2351 = vcombine.low %v2024, %v2007
      %v2352 = vcombine.low %v2021, %v2023
      %v2353 = vcombine.low %v2025, %v2066
      %v2354 = vcombine.low %v2080, %v2081
      %v2356 = vunpack.c.l.s4 1966171168
      %v2357 = vunpack.c.0.s8 %v2356
      %v2358 = vlaneseq
      %v2359 = vshrl.u32 %v2358, 7
      %v2360 = vsub.s32 %v2357, %v2359
      %v2361 = vrot.slane %v2351, %v2360
      %v2363 = vunpack.c.l.s4 1966171168
      %v2364 = vunpack.c.0.s8 %v2363
      %v2365 = vlaneseq
      %v2366 = vshrl.u32 %v2365, 7
      %v2367 = vsub.s32 %v2364, %v2366
      %v2368 = vrot.slane %v2352, %v2367
      %v2370 = vunpack.c.l.s4 1966171168
      %v2371 = vunpack.c.0.s8 %v2370
      %v2372 = vlaneseq
      %v2373 = vshrl.u32 %v2372, 7
      %v2374 = vsub.s32 %v2371, %v2373
      %v2375 = vrot.slane %v2353, %v2374
      %v2377 = vunpack.c.l.s4 1966171168
      %v2378 = vunpack.c.0.s8 %v2377
      %v2379 = vlaneseq
      %v2380 = vshrl.u32 %v2379, 7
      %v2381 = vsub.s32 %v2378, %v2380
      %v2382 = vrot.slane %v2354, %v2381
      %v2383 = vcombine.low %v2361, %v2368
      %v2384 = vcombine.high %v2361, %v2368
      %v2385 = vcombine.low %v2375, %v2382
      %v2386 = vcombine.high %v2375, %v2382
      %v2388 = vunpack.c.l.s4 1966171168
      %v2389 = vunpack.c.0.s8 %v2388
      %v2390 = vlaneseq
      %v2391 = vshrl.u32 %v2390, 7
      %v2392 = vsub.s32 %v2389, %v2391
      %v2393 = vrot.slane %v2383, %v2392
      %v2395 = vunpack.c.l.s4 1966171168
      %v2396 = vunpack.c.0.s8 %v2395
      %v2397 = vlaneseq
      %v2398 = vshrl.u32 %v2397, 7
      %v2399 = vsub.s32 %v2396, %v2398
      %v2400 = vrot.slane %v2384, %v2399
      %v2402 = vunpack.c.l.s4 1966171168
      %v2403 = vunpack.c.0.s8 %v2402
      %v2404 = vlaneseq
      %v2405 = vshrl.u32 %v2404, 7
      %v2406 = vsub.s32 %v2403, %v2405
      %v2407 = vrot.slane %v2385, %v2406
      %v2409 = vunpack.c.l.s4 1966171168
      %v2410 = vunpack.c.0.s8 %v2409
      %v2411 = vlaneseq
      %v2412 = vshrl.u32 %v2411, 7
      %v2413 = vsub.s32 %v2410, %v2412
      %v2414 = vrot.slane %v2386, %v2413
      %v2415 = vcombine.low %v2393, %v2407
      %v2416 = vcombine.high %v2393, %v2407
      %v2417 = vcombine.low %v2400, %v2414
      %v2418 = vcombine.low %v2082, %v2073
      %v2420 = vunpack.c.l.s4 1966171168
      %v2421 = vunpack.c.0.s8 %v2420
      %v2422 = vlaneseq
      %v2423 = vshrl.u32 %v2422, 7
      %v2424 = vsub.s32 %v2421, %v2423
      %v2425 = vrot.slane %v2418, %v2424
      %v2426 = vcombine.high %v2425, %v2425
      %v2428 = vunpack.c.l.s4 1966171168
      %v2429 = vunpack.c.0.s8 %v2428
      %v2430 = vlaneseq
      %v2431 = vshrl.u32 %v2430, 7
      %v2432 = vsub.s32 %v2429, %v2431
      %v2433 = vrot.slane %v2425, %v2432
      %v2435 = vunpack.c.l.s4 1966171168
      %v2436 = vunpack.c.0.s8 %v2435
      %v2437 = vlaneseq
      %v2438 = vshrl.u32 %v2437, 7
      %v2439 = vsub.s32 %v2436, %v2438
      %v2440 = vrot.slane %v2426, %v2439
      %v2441 = vcombine.high %v2433, %v2433
      %v2460 = vpack.c.bf16 %v2214, %v2147
      %v2461 = vpack.c.bf16 %v2216, %v2149
      %v2462 = vpack.c.bf16 %v2215, %v2148
      %v2463 = vpack.c.bf16 %v2348, %v2281
      %v2464 = vpack.c.bf16 %v2350, %v2283
      %v2465 = vpack.c.bf16 %v2349, %v2282
      %v2466 = vpack.c.bf16 %v2433, %v2415
      %v2467 = vpack.c.bf16 %v2440, %v2417
      %v2468 = vpack.c.bf16 %v2441, %v2416
      %v2469 = vld [vmem:[%s517] sm:$0xf]
      %v2470 = vld [vmem:[%s517 + $0x4] sm:$0xf]
      %v2471 = vld [vmem:[%s517 + $0x8] sm:$0xf]
      %v2472 = vld [vmem:[%s517 + $0xc] sm:$0xf]
      %v2473 = vld [vmem:[%s517 + $0x10] sm:$0xf]
      %v2474 = vld [vmem:[%s517 + $0x14] sm:$0xf]
      %v2475 = vld [vmem:[%s517 + $0x18] sm:$0xf]
      %v2476 = vld [vmem:[%s517 + $0x1c] sm:$0xf]
      %v2477 = vld [vmem:[%s517 + $0x20] sm:$0xf]
      %v2478 = vld [vmem:[%s517 + $0x24] sm:$0xf]
      %v2479 = vld [vmem:[%s517 + $0x28] sm:$0xf]
      %v2480 = vld [vmem:[%s517 + $0x2c] sm:$0xf]
      %v2481 = vld [vmem:[%s517 + $0x30] sm:$0xf]
      %v2482 = vld [vmem:[%s517 + $0x34] sm:$0xf]
      %v2483 = vld [vmem:[%s517 + $0x38] sm:$0xf]
      %v2484 = vld [vmem:[%s517 + $0x3c] sm:$0xf]
      %v2485 = vld [vmem:[%s517 + $0x40] sm:$0xf]
      %v2486 = vld [vmem:[%s517 + $0x44] sm:$0xf]
      %v2487 = vld [vmem:[%s517 + $0x48] sm:$0xf]
      %v2488 = vld [vmem:[%s517 + $0x4c] sm:$0xf]
      %v2489 = vld [vmem:[%s517 + $0x50] sm:$0xf]
      %v2490 = vld [vmem:[%s517 + $0x54] sm:$0xf]
      %v2491 = vld [vmem:[%s517 + $0x58] sm:$0xf]
      %v2492 = vld [vmem:[%s517 + $0x5c] sm:$0xf]
      %v2493 = vld [vmem:[%s517 + $0x60] sm:$0xf]
      %v2494 = vld [vmem:[%s517 + $0x64] sm:$0xf]
      %v2495 = vld [vmem:[%s517 + $0x68] sm:$0xf]
      %v2496 = vld [vmem:[%s517 + $0x6c] sm:$0xf]
      %v2497 = vld [vmem:[%s517 + $0x70] sm:$0xf]
      %v2498 = vld [vmem:[%s517 + $0x74] sm:$0xf]
      %v2499 = vld [vmem:[%s517 + $0x78] sm:$0xf]
      %v2500 = vld [vmem:[%s517 + $0x7c] sm:$0xf]
      %v2501 = vld [vmem:[%s517 + $0x80] sm:$0xf]
      %v2502 = vld [vmem:[%s517 + $0x84] sm:$0xf]
      %v2503 = vld [vmem:[%s517 + $0x88] sm:$0xf]
      %v2504 = vld [vmem:[%s517 + $0x8c] sm:$0xf]
      %v2505 = vld [vmem:[%s520] sm:$0x1]
      %v2507 = vlaneseq
      %v2508 = vshrl.u32 %v2507, 7
      %v2509 = vsub.s32 0, %v2508
      %v2510 = vrot.slane %v2505, %v2509
      %v2548 = vunpack.c.l.b16 %v2469
      %v2549 = vunpack.c.l.b16 %v2470
      %v2550 = vunpack.c.l.b16 %v2471
      %v2551 = vunpack.c.l.b16 %v2472
      %v2552 = vunpack.c.l.b16 %v2473
      %v2553 = vunpack.c.l.b16 %v2474
      %v2554 = vunpack.c.l.b16 %v2475
      %v2555 = vunpack.c.l.b16 %v2476
      %v2556 = vunpack.c.l.b16 %v2477
      %v2557 = vunpack.c.l.b16 %v2478
      %v2558 = vunpack.c.l.b16 %v2479
      %v2559 = vunpack.c.l.b16 %v2480
      %v2560 = vunpack.c.l.b16 %v2481
      %v2561 = vunpack.c.l.b16 %v2482
      %v2562 = vunpack.c.l.b16 %v2483
      %v2563 = vunpack.c.l.b16 %v2484
      %v2564 = vunpack.c.l.b16 %v2485
      %v2565 = vunpack.c.l.b16 %v2486
      %v2566 = vunpack.c.l.b16 %v2487
      %v2567 = vunpack.c.l.b16 %v2488
      %v2568 = vunpack.c.l.b16 %v2489
      %v2569 = vunpack.c.l.b16 %v2490
      %v2570 = vunpack.c.l.b16 %v2491
      %v2571 = vunpack.c.l.b16 %v2492
      %v2572 = vunpack.c.l.b16 %v2493
      %v2573 = vunpack.c.l.b16 %v2494
      %v2574 = vunpack.c.l.b16 %v2495
      %v2575 = vunpack.c.l.b16 %v2496
      %v2576 = vunpack.c.l.b16 %v2497
      %v2577 = vunpack.c.l.b16 %v2498
      %v2578 = vunpack.c.l.b16 %v2499
      %v2579 = vunpack.c.l.b16 %v2500
      %v2580 = vunpack.c.l.b16 %v2501
      %v2581 = vunpack.c.l.b16 %v2502
      %v2582 = vunpack.c.l.b16 %v2503
      %v2583 = vunpack.c.l.b16 %v2504
      %v2584 = vpack.c.b16 %v2549, %v2548
      %v2585 = vpack.c.b16 %v2551, %v2550
      %v2586 = vpack.c.b16 %v2553, %v2552
      %v2587 = vpack.c.b16 %v2555, %v2554
      %v2588 = vpack.c.b16 %v2557, %v2556
      %v2589 = vpack.c.b16 %v2559, %v2558
      %v2590 = vpack.c.b16 %v2561, %v2560
      %v2591 = vpack.c.b16 %v2563, %v2562
      %v2592 = vpack.c.b16 %v2565, %v2564
      %v2593 = vpack.c.b16 %v2567, %v2566
      %v2594 = vpack.c.b16 %v2569, %v2568
      %v2595 = vpack.c.b16 %v2571, %v2570
      %v2596 = vpack.c.b16 %v2573, %v2572
      %v2597 = vpack.c.b16 %v2575, %v2574
      %v2598 = vpack.c.b16 %v2577, %v2576
      %v2599 = vpack.c.b16 %v2579, %v2578
      %v2600 = vpack.c.b16 %v2581, %v2580
      %v2601 = vpack.c.b16 %v2583, %v2582
      %v2621 = vsel %vm582, %v2462, 0
      %v2624 = vsel %vm582, %v2465, 0
      %v2627 = vsel %vm582, %v2468, 0
      %2629 = vmatprep.subr.bf16.mxu0 0
      %2630 = vmatpush1.bf16.msra.mxu0 %v2584
      %2631 = vmatprep.subr.bf16.mxu0 0
      %2632 = vmatpush1.bf16.msra.mxu0 %v2585
      %2633 = vmatprep.subr.bf16.mxu0 0
      %2634 = vmatpush1.bf16.msra.mxu0 %v2586
      %2635 = vmatprep.subr.bf16.mxu0 0
      %2636 = vmatpush1.bf16.msra.mxu0 %v2587
      %2637 = vmatprep.subr.bf16.mxu0 0
      %2638 = vmatpush1.bf16.msra.mxu0 %v2588
      %2639 = vmatprep.subr.bf16.mxu0 0
      %2640 = vmatpush1.bf16.msra.mxu0 %v2589
      %2641 = vmatprep.subr.bf16.mxu0 0
      %2642 = vmatpush1.bf16.msra.mxu0 %v2590
      %2643 = vmatprep.subr.bf16.mxu0 0
      %2644 = vmatpush1.bf16.msra.mxu0 %v2591
      %2645 = vmatprep.subr.bf16.mxu0 0
      %2646 = vmatpush1.bf16.msra.mxu0 %v2592
      %2647 = vmatprep.subr.bf16.mxu0 0
      %2648 = vmatpush1.bf16.msra.mxu0 %v2593
      %2649 = vmatprep.subr.bf16.mxu0 0
      %2650 = vmatpush1.bf16.msra.mxu0 %v2594
      %2651 = vmatprep.subr.bf16.mxu0 0
      %2652 = vmatpush1.bf16.msra.mxu0 %v2595
      %2653 = vmatprep.subr.bf16.mxu0 0
      %2654 = vmatpush1.bf16.msra.mxu0 %v2596
      %2655 = vmatprep.subr.bf16.mxu0 0
      %2656 = vmatpush1.bf16.msra.mxu0 %v2597
      %2657 = vmatprep.subr.bf16.mxu0 0
      %2658 = vmatpush1.bf16.msra.mxu0 %v2598
      %2659 = vmatprep.subr.bf16.mxu0 0
      %2660 = vmatpush1.bf16.msra.mxu0 %v2599
      %2661 = vmatprep.mubr.bf16.mxu0 %v2461
      %2662 = vmatmul.mubr.bf16.gmra.mrb[0].mxu0 %v2460
      %v2663 = vpop.f32.mrb[0].mxu0
      %v2664 = vadd.f32 %v2510, %v2663
      %v2665 = vpop.f32.mrb[0].mxu0
      %v2666 = vpop.f32.mrb[0].mxu0
      %v2667 = vadd.f32 %v2510, %v2666
      %v2668 = vpop.f32.mrb[0].mxu0
      %2669 = vmatprep.mubr.bf16.mxu0 %v2464
      %2670 = vmatmul.mubr.bf16.gmra.mrb[0].mxu0 %v2463
      %v2671 = vpop.f32.mrb[0].mxu0
      %v2672 = vadd.f32 %v2510, %v2671
      %v2673 = vpop.f32.mrb[0].mxu0
      %v2674 = vpop.f32.mrb[0].mxu0
      %v2675 = vadd.f32 %v2510, %v2674
      %v2676 = vpop.f32.mrb[0].mxu0
      %2677 = vmatprep.mubr.bf16.mxu0 %v2467
      %2678 = vmatmul.mubr.bf16.gmra.mrb[0].mxu0 %v2466
      %v2679 = vpop.f32.mrb[0].mxu0
      %v2680 = vadd.f32 %v2510, %v2679
      %v2681 = vpop.f32.mrb[0].mxu0
      %v2682 = vpop.f32.mrb[0].mxu0
      %v2683 = vadd.f32 %v2510, %v2682
      %v2684 = vpop.f32.mrb[0].mxu0
      %2685 = vdwg.mxu0
      %2686 = vmatprep.subr.bf16.mxu0 0
      %2687 = vmatpush1.bf16.msra.mxu0 %v2600
      %2688 = vmatprep.subr.bf16.mxu0 0
      %2689 = vmatpush1.bf16.msra.mxu0 %v2601
      %2690 = vmatprep.subr.bf16.mxu0 0
      %2691 = vmatpush1.bf16.msra.mxu0 0
      %2692 = vmatprep.subr.bf16.mxu0 0
      %2693 = vmatpush1.bf16.msra.mxu0 0
      %2694 = vmatprep.subr.bf16.mxu0 0
      %2695 = vmatpush1.bf16.msra.mxu0 0
      %2696 = vmatprep.subr.bf16.mxu0 0
      %2697 = vmatpush1.bf16.msra.mxu0 0
      %2698 = vmatprep.subr.bf16.mxu0 0
      %2699 = vmatpush1.bf16.msra.mxu0 0
      %2700 = vmatprep.subr.bf16.mxu0 0
      %2701 = vmatpush1.bf16.msra.mxu0 0
      %2702 = vmatprep.subr.bf16.mxu0 0
      %2703 = vmatpush1.bf16.msra.mxu0 0
      %2704 = vmatprep.subr.bf16.mxu0 0
      %2705 = vmatpush1.bf16.msra.mxu0 0
      %2706 = vmatprep.subr.bf16.mxu0 0
      %2707 = vmatpush1.bf16.msra.mxu0 0
      %2708 = vmatprep.subr.bf16.mxu0 0
      %2709 = vmatpush1.bf16.msra.mxu0 0
      %2710 = vmatprep.subr.bf16.mxu0 0
      %2711 = vmatpush1.bf16.msra.mxu0 0
      %2712 = vmatprep.subr.bf16.mxu0 0
      %2713 = vmatpush1.bf16.msra.mxu0 0
      %2714 = vmatprep.subr.bf16.mxu0 0
      %2715 = vmatpush1.bf16.msra.mxu0 0
      %2716 = vmatprep.subr.bf16.mxu0 0
      %2717 = vmatpush1.bf16.msra.mxu0 0
      %2718 = vmatprep.mubr.bf16.mxu0 0
      %2719 = vmatmul.mubr.bf16.gmra.mrb[0].mxu0 %v2621
      %v2720 = vpop.f32.mrb[0].mxu0
      %v2721 = vadd.f32 %v2664, %v2720
      %v2722 = vpop.f32.mrb[0].mxu0
      %v2723 = vpop.f32.mrb[0].mxu0
      %v2724 = vadd.f32 %v2667, %v2723
      %v2725 = vpop.f32.mrb[0].mxu0
      %2726 = vmatprep.mubr.bf16.mxu0 0
      %2727 = vmatmul.mubr.bf16.gmra.mrb[0].mxu0 %v2624
      %v2728 = vpop.f32.mrb[0].mxu0
      %v2729 = vadd.f32 %v2672, %v2728
      %v2730 = vpop.f32.mrb[0].mxu0
      %v2731 = vpop.f32.mrb[0].mxu0
      %v2732 = vadd.f32 %v2675, %v2731
      %v2733 = vpop.f32.mrb[0].mxu0
      %2734 = vmatprep.mubr.bf16.mxu0 0
      %2735 = vmatmul.mubr.bf16.gmra.mrb[0].mxu0 %v2627
      %v2736 = vpop.f32.mrb[0].mxu0
      %v2737 = vadd.f32 %v2680, %v2736
      %v2738 = vpop.f32.mrb[0].mxu0
      %v2739 = vpop.f32.mrb[0].mxu0
      %v2740 = vadd.f32 %v2683, %v2739
      %v2741 = vpop.f32.mrb[0].mxu0
      %2742 = vdwg.mxu0
      %v2743 = vsel %vm582, %v2721, 0.0
      %v2744 = vsel %vm582, %v2724, 0.0
      %v2745 = vadd.f32 %v2743, %v2744
      %v2746 = vsel %vm582, %v2729, 0.0
      %v2747 = vadd.f32 %v2745, %v2746
      %v2748 = vsel %vm582, %v2732, 0.0
      %v2749 = vadd.f32 %v2747, %v2748
      %v2750 = vsel %vm582, %v2737, 0.0
      %v2751 = vadd.f32 %v2749, %v2750
      %v2752 = vsel %vm658, %v2740, 0.0
      %v2753 = vadd.f32 %v2751, %v2752
      %v2754 = vrot.slane %v2753, 4
      %v2755 = vadd.f32 %v2753, %v2754
      %v2756 = vrot.slane %v2755, 2
      %v2757 = vadd.f32 %v2755, %v2756
      %v2758 = vrot.slane %v2757, 1
      %v2759 = vadd.f32 %v2757, %v2758
      %v2760 = vmul.f32 %v2759, %v667
      %v2761 = vsub.f32 %v2721, %v2760
      %v2762 = vsub.f32 %v2724, %v2760
      %v2763 = vsub.f32 %v2729, %v2760
      %v2764 = vsub.f32 %v2732, %v2760
      %v2765 = vsub.f32 %v2737, %v2760
      %v2766 = vsub.f32 %v2740, %v2760
      %v2767 = vmul.f32 %v2761, %v2761
      %v2768 = vmul.f32 %v2762, %v2762
      %v2769 = vmul.f32 %v2763, %v2763
      %v2770 = vmul.f32 %v2764, %v2764
      %v2771 = vmul.f32 %v2765, %v2765
      %v2772 = vmul.f32 %v2766, %v2766
      %v2773 = vsel %vm582, %v2767, 0.0
      %v2774 = vsel %vm582, %v2768, 0.0
      %v2775 = vadd.f32 %v2773, %v2774
      %v2776 = vsel %vm582, %v2769, 0.0
      %v2777 = vadd.f32 %v2775, %v2776
      %v2778 = vsel %vm582, %v2770, 0.0
      %v2779 = vadd.f32 %v2777, %v2778
      %v2780 = vsel %vm582, %v2771, 0.0
      %v2781 = vadd.f32 %v2779, %v2780
      %v2782 = vsel %vm658, %v2772, 0.0
      %v2783 = vadd.f32 %v2781, %v2782
      %v2784 = vrot.slane %v2783, 4
      %v2785 = vadd.f32 %v2783, %v2784
      %v2786 = vrot.slane %v2785, 2
      %v2787 = vadd.f32 %v2785, %v2786
      %v2788 = vrot.slane %v2787, 1
      %v2789 = vadd.f32 %v2787, %v2788
      %v2790 = vmul.f32 %v2789, %v667
      %v2791 = vadd.f32 %v2790, 1e-05
      %v2792 = vrsqrt.pop %v2791
      %v2793 = vmul.f32 %v2761, %v2792
      %v2794 = vmul.f32 %v2762, %v2792
      %v2795 = vmul.f32 %v2763, %v2792
      %v2796 = vmul.f32 %v2764, %v2792
      %v2797 = vmul.f32 %v2765, %v2792
      %v2798 = vmul.f32 %v2766, %v2792
      %v2799 = vld [vmem:[%s523] sm:$0x1]
      %v2801 = vlaneseq
      %v2802 = vshrl.u32 %v2801, 7
      %v2803 = vsub.s32 0, %v2802
      %v2804 = vrot.slane %v2799, %v2803
      %v2806 = vmul.f32 %v2793, %v2804
      %v2807 = vmul.f32 %v2794, %v2804
      %v2808 = vmul.f32 %v2795, %v2804
      %v2809 = vmul.f32 %v2796, %v2804
      %v2810 = vmul.f32 %v2797, %v2804
      %v2811 = vmul.f32 %v2798, %v2804
      %v2812 = vld [vmem:[%s526] sm:$0x1]
      %v2814 = vlaneseq
      %v2815 = vshrl.u32 %v2814, 7
      %v2816 = vsub.s32 0, %v2815
      %v2817 = vrot.slane %v2812, %v2816
      %v2819 = vadd.f32 %v2806, %v2817
      %v2820 = vadd.f32 %v2807, %v2817
      %v2821 = vadd.f32 %v2808, %v2817
      %v2822 = vadd.f32 %v2809, %v2817
      %v2823 = vadd.f32 %v2810, %v2817
      %v2824 = vadd.f32 %v2811, %v2817
      %vm2825 = vcmp.ge.f32.partialorder %v2819, 0.0
      %vm2826 = vcmp.ge.f32.partialorder %v2820, 0.0
      %vm2827 = vcmp.ge.f32.partialorder %v2821, 0.0
      %vm2828 = vcmp.ge.f32.partialorder %v2822, 0.0
      %vm2829 = vcmp.ge.f32.partialorder %v2823, 0.0
      %vm2830 = vcmp.ge.f32.partialorder %v2824, 0.0
      %v2831 = vmul.f32 %v2819, 0.2
      %v2832 = vmul.f32 %v2820, 0.2
      %v2833 = vmul.f32 %v2821, 0.2
      %v2834 = vmul.f32 %v2822, 0.2
      %v2835 = vmul.f32 %v2823, 0.2
      %v2836 = vmul.f32 %v2824, 0.2
      %v2837 = vsel %vm2825, %v2819, %v2831
      %v2838 = vsel %vm2826, %v2820, %v2832
      %v2839 = vsel %vm2827, %v2821, %v2833
      %v2840 = vsel %vm2828, %v2822, %v2834
      %v2841 = vsel %vm2829, %v2823, %v2835
      %v2842 = vsel %vm2830, %v2824, %v2836
      %v2843 = vadd.f32 %v2837, %v745
      %v2844 = vadd.f32 %v2838, %v746
      %v2845 = vadd.f32 %v2839, %v747
      %v2846 = vadd.f32 %v2840, %v748
      %v2847 = vadd.f32 %v2841, %v749
      %v2848 = vadd.f32 %v2842, %v750
      %v2849 = vmul.f32 %v2843, 0.70710677
      %v2850 = vmul.f32 %v2844, 0.70710677
      %v2851 = vmul.f32 %v2845, 0.70710677
      %v2852 = vmul.f32 %v2846, 0.70710677
      %v2853 = vmul.f32 %v2847, 0.70710677
      %v2854 = vmul.f32 %v2848, 0.70710677
      %v2861 = vcombine.high %v2849, %v2849
      %v2863 = vunpack.c.l.s4 1966171168
      %v2864 = vunpack.c.0.s8 %v2863
      %v2865 = vlaneseq
      %v2866 = vshrl.u32 %v2865, 7
      %v2867 = vsub.s32 %v2864, %v2866
      %v2868 = vrot.slane %v2849, %v2867
      %v2870 = vunpack.c.l.s4 1966171168
      %v2871 = vunpack.c.0.s8 %v2870
      %v2872 = vlaneseq
      %v2873 = vshrl.u32 %v2872, 7
      %v2874 = vsub.s32 %v2871, %v2873
      %v2875 = vrot.slane %v2861, %v2874
      %v2876 = vcombine.high %v2868, %v2868
      %v2877 = vcombine.high %v2875, %v2875
      %v2879 = vunpack.c.l.s4 1966171168
      %v2880 = vunpack.c.0.s8 %v2879
      %v2881 = vlaneseq
      %v2882 = vshrl.u32 %v2881, 7
      %v2883 = vsub.s32 %v2880, %v2882
      %v2884 = vrot.slane %v2868, %v2883
      %v2886 = vunpack.c.l.s4 1966171168
      %v2887 = vunpack.c.0.s8 %v2886
      %v2888 = vlaneseq
      %v2889 = vshrl.u32 %v2888, 7
      %v2890 = vsub.s32 %v2887, %v2889
      %v2891 = vrot.slane %v2875, %v2890
      %v2893 = vunpack.c.l.s4 1966171168
      %v2894 = vunpack.c.0.s8 %v2893
      %v2895 = vlaneseq
      %v2896 = vshrl.u32 %v2895, 7
      %v2897 = vsub.s32 %v2894, %v2896
      %v2898 = vrot.slane %v2876, %v2897
      %v2900 = vunpack.c.l.s4 1966171168
      %v2901 = vunpack.c.0.s8 %v2900
      %v2902 = vlaneseq
      %v2903 = vshrl.u32 %v2902, 7
      %v2904 = vsub.s32 %v2901, %v2903
      %v2905 = vrot.slane %v2877, %v2904
      %v2906 = vcombine.high %v2884, %v2884
      %v2907 = vcombine.high %v2891, %v2891
      %v2908 = vcombine.high %v2898, %v2898
      %v2909 = vcombine.high %v2905, %v2905
      %v2910 = vcombine.high %v2850, %v2850
      %v2912 = vunpack.c.l.s4 1966171168
      %v2913 = vunpack.c.0.s8 %v2912
      %v2914 = vlaneseq
      %v2915 = vshrl.u32 %v2914, 7
      %v2916 = vsub.s32 %v2913, %v2915
      %v2917 = vrot.slane %v2850, %v2916
      %v2919 = vunpack.c.l.s4 1966171168
      %v2920 = vunpack.c.0.s8 %v2919
      %v2921 = vlaneseq
      %v2922 = vshrl.u32 %v2921, 7
      %v2923 = vsub.s32 %v2920, %v2922
      %v2924 = vrot.slane %v2910, %v2923
      %v2925 = vcombine.high %v2917, %v2917
      %v2926 = vcombine.high %v2924, %v2924
      %v2928 = vunpack.c.l.s4 1966171168
      %v2929 = vunpack.c.0.s8 %v2928
      %v2930 = vlaneseq
      %v2931 = vshrl.u32 %v2930, 7
      %v2932 = vsub.s32 %v2929, %v2931
      %v2933 = vrot.slane %v2917, %v2932
      %v2935 = vunpack.c.l.s4 1966171168
      %v2936 = vunpack.c.0.s8 %v2935
      %v2937 = vlaneseq
      %v2938 = vshrl.u32 %v2937, 7
      %v2939 = vsub.s32 %v2936, %v2938
      %v2940 = vrot.slane %v2924, %v2939
      %v2942 = vunpack.c.l.s4 1966171168
      %v2943 = vunpack.c.0.s8 %v2942
      %v2944 = vlaneseq
      %v2945 = vshrl.u32 %v2944, 7
      %v2946 = vsub.s32 %v2943, %v2945
      %v2947 = vrot.slane %v2925, %v2946
      %v2949 = vunpack.c.l.s4 1966171168
      %v2950 = vunpack.c.0.s8 %v2949
      %v2951 = vlaneseq
      %v2952 = vshrl.u32 %v2951, 7
      %v2953 = vsub.s32 %v2950, %v2952
      %v2954 = vrot.slane %v2926, %v2953
      %v2955 = vcombine.high %v2933, %v2933
      %v2956 = vcombine.high %v2940, %v2940
      %v2957 = vcombine.high %v2947, %v2947
      %v2958 = vcombine.high %v2954, %v2954
      %v2959 = vcombine.high %v2851, %v2851
      %v2961 = vunpack.c.l.s4 1966171168
      %v2962 = vunpack.c.0.s8 %v2961
      %v2963 = vlaneseq
      %v2964 = vshrl.u32 %v2963, 7
      %v2965 = vsub.s32 %v2962, %v2964
      %v2966 = vrot.slane %v2851, %v2965
      %v2968 = vunpack.c.l.s4 1966171168
      %v2969 = vunpack.c.0.s8 %v2968
      %v2970 = vlaneseq
      %v2971 = vshrl.u32 %v2970, 7
      %v2972 = vsub.s32 %v2969, %v2971
      %v2973 = vrot.slane %v2959, %v2972
      %v2974 = vcombine.high %v2966, %v2966
      %v2975 = vcombine.high %v2973, %v2973
      %v2977 = vunpack.c.l.s4 1966171168
      %v2978 = vunpack.c.0.s8 %v2977
      %v2979 = vlaneseq
      %v2980 = vshrl.u32 %v2979, 7
      %v2981 = vsub.s32 %v2978, %v2980
      %v2982 = vrot.slane %v2966, %v2981
      %v2984 = vunpack.c.l.s4 1966171168
      %v2985 = vunpack.c.0.s8 %v2984
      %v2986 = vlaneseq
      %v2987 = vshrl.u32 %v2986, 7
      %v2988 = vsub.s32 %v2985, %v2987
      %v2989 = vrot.slane %v2973, %v2988
      %v2991 = vunpack.c.l.s4 1966171168
      %v2992 = vunpack.c.0.s8 %v2991
      %v2993 = vlaneseq
      %v2994 = vshrl.u32 %v2993, 7
      %v2995 = vsub.s32 %v2992, %v2994
      %v2996 = vrot.slane %v2974, %v2995
      %v2998 = vunpack.c.l.s4 1966171168
      %v2999 = vunpack.c.0.s8 %v2998
      %v3000 = vlaneseq
      %v3001 = vshrl.u32 %v3000, 7
      %v3002 = vsub.s32 %v2999, %v3001
      %v3003 = vrot.slane %v2975, %v3002
      %v3004 = vcombine.high %v2982, %v2982
      %v3005 = vcombine.high %v2989, %v2989
      %v3006 = vcombine.high %v2996, %v2996
      %v3007 = vcombine.high %v3003, %v3003
      %v3008 = vcombine.high %v2852, %v2852
      %v3010 = vunpack.c.l.s4 1966171168
      %v3011 = vunpack.c.0.s8 %v3010
      %v3012 = vlaneseq
      %v3013 = vshrl.u32 %v3012, 7
      %v3014 = vsub.s32 %v3011, %v3013
      %v3015 = vrot.slane %v2852, %v3014
      %v3017 = vunpack.c.l.s4 1966171168
      %v3018 = vunpack.c.0.s8 %v3017
      %v3019 = vlaneseq
      %v3020 = vshrl.u32 %v3019, 7
      %v3021 = vsub.s32 %v3018, %v3020
      %v3022 = vrot.slane %v3008, %v3021
      %v3023 = vcombine.high %v3015, %v3015
      %v3024 = vcombine.high %v3022, %v3022
      %v3026 = vunpack.c.l.s4 1966171168
      %v3027 = vunpack.c.0.s8 %v3026
      %v3028 = vlaneseq
      %v3029 = vshrl.u32 %v3028, 7
      %v3030 = vsub.s32 %v3027, %v3029
      %v3031 = vrot.slane %v3015, %v3030
      %v3033 = vunpack.c.l.s4 1966171168
      %v3034 = vunpack.c.0.s8 %v3033
      %v3035 = vlaneseq
      %v3036 = vshrl.u32 %v3035, 7
      %v3037 = vsub.s32 %v3034, %v3036
      %v3038 = vrot.slane %v3022, %v3037
      %v3040 = vunpack.c.l.s4 1966171168
      %v3041 = vunpack.c.0.s8 %v3040
      %v3042 = vlaneseq
      %v3043 = vshrl.u32 %v3042, 7
      %v3044 = vsub.s32 %v3041, %v3043
      %v3045 = vrot.slane %v3023, %v3044
      %v3047 = vunpack.c.l.s4 1966171168
      %v3048 = vunpack.c.0.s8 %v3047
      %v3049 = vlaneseq
      %v3050 = vshrl.u32 %v3049, 7
      %v3051 = vsub.s32 %v3048, %v3050
      %v3052 = vrot.slane %v3024, %v3051
      %v3053 = vcombine.high %v3031, %v3031
      %v3054 = vcombine.high %v3038, %v3038
      %v3055 = vcombine.high %v3045, %v3045
      %v3056 = vcombine.high %v3052, %v3052
      %v3057 = vcombine.high %v2853, %v2853
      %v3059 = vunpack.c.l.s4 1966171168
      %v3060 = vunpack.c.0.s8 %v3059
      %v3061 = vlaneseq
      %v3062 = vshrl.u32 %v3061, 7
      %v3063 = vsub.s32 %v3060, %v3062
      %v3064 = vrot.slane %v2853, %v3063
      %v3066 = vunpack.c.l.s4 1966171168
      %v3067 = vunpack.c.0.s8 %v3066
      %v3068 = vlaneseq
      %v3069 = vshrl.u32 %v3068, 7
      %v3070 = vsub.s32 %v3067, %v3069
      %v3071 = vrot.slane %v3057, %v3070
      %v3072 = vcombine.high %v3064, %v3064
      %v3073 = vcombine.high %v3071, %v3071
      %v3075 = vunpack.c.l.s4 1966171168
      %v3076 = vunpack.c.0.s8 %v3075
      %v3077 = vlaneseq
      %v3078 = vshrl.u32 %v3077, 7
      %v3079 = vsub.s32 %v3076, %v3078
      %v3080 = vrot.slane %v3064, %v3079
      %v3082 = vunpack.c.l.s4 1966171168
      %v3083 = vunpack.c.0.s8 %v3082
      %v3084 = vlaneseq
      %v3085 = vshrl.u32 %v3084, 7
      %v3086 = vsub.s32 %v3083, %v3085
      %v3087 = vrot.slane %v3071, %v3086
      %v3089 = vunpack.c.l.s4 1966171168
      %v3090 = vunpack.c.0.s8 %v3089
      %v3091 = vlaneseq
      %v3092 = vshrl.u32 %v3091, 7
      %v3093 = vsub.s32 %v3090, %v3092
      %v3094 = vrot.slane %v3072, %v3093
      %v3096 = vunpack.c.l.s4 1966171168
      %v3097 = vunpack.c.0.s8 %v3096
      %v3098 = vlaneseq
      %v3099 = vshrl.u32 %v3098, 7
      %v3100 = vsub.s32 %v3097, %v3099
      %v3101 = vrot.slane %v3073, %v3100
      %v3102 = vcombine.high %v3080, %v3080
      %v3103 = vcombine.high %v3087, %v3087
      %v3104 = vcombine.high %v3094, %v3094
      %v3105 = vcombine.high %v3101, %v3101
      %v3107 = vunpack.c.l.s4 1966171168
      %v3108 = vunpack.c.0.s8 %v3107
      %v3109 = vlaneseq
      %v3110 = vshrl.u32 %v3109, 7
      %v3111 = vsub.s32 %v3108, %v3110
      %v3112 = vrot.slane %v2854, %v3111
      %v3113 = vcombine.high %v3112, %v3112
      %v3115 = vunpack.c.l.s4 1966171168
      %v3116 = vunpack.c.0.s8 %v3115
      %v3117 = vlaneseq
      %v3118 = vshrl.u32 %v3117, 7
      %v3119 = vsub.s32 %v3116, %v3118
      %v3120 = vrot.slane %v3112, %v3119
      %v3122 = vunpack.c.l.s4 1966171168
      %v3123 = vunpack.c.0.s8 %v3122
      %v3124 = vlaneseq
      %v3125 = vshrl.u32 %v3124, 7
      %v3126 = vsub.s32 %v3123, %v3125
      %v3127 = vrot.slane %v3113, %v3126
      %v3170 = vld [vmem:[%s529] sm:$0x1]
      %v3172 = vlaneseq
      %v3173 = vshrl.u32 %v3172, 7
      %v3174 = vsub.s32 0, %v3173
      %v3175 = vrot.slane %v3170, %v3174
      %v3176 = vcombine.high %v3175, %v3175
      %v3178 = vunpack.c.l.s4 1966171168
      %v3179 = vunpack.c.0.s8 %v3178
      %v3180 = vlaneseq
      %v3181 = vshrl.u32 %v3180, 7
      %v3182 = vsub.s32 %v3179, %v3181
      %v3183 = vrot.slane %v3175, %v3182
      %v3185 = vunpack.c.l.s4 1966171168
      %v3186 = vunpack.c.0.s8 %v3185
      %v3187 = vlaneseq
      %v3188 = vshrl.u32 %v3187, 7
      %v3189 = vsub.s32 %v3186, %v3188
      %v3190 = vrot.slane %v3176, %v3189
      %v3191 = vcombine.high %v3183, %v3183
      %v3192 = vcombine.high %v3190, %v3190
      %v3194 = vunpack.c.l.s4 1966171168
      %v3195 = vunpack.c.0.s8 %v3194
      %v3196 = vlaneseq
      %v3197 = vshrl.u32 %v3196, 7
      %v3198 = vsub.s32 %v3195, %v3197
      %v3199 = vrot.slane %v3183, %v3198
      %v3201 = vunpack.c.l.s4 1966171168
      %v3202 = vunpack.c.0.s8 %v3201
      %v3203 = vlaneseq
      %v3204 = vshrl.u32 %v3203, 7
      %v3205 = vsub.s32 %v3202, %v3204
      %v3206 = vrot.slane %v3190, %v3205
      %v3208 = vunpack.c.l.s4 1966171168
      %v3209 = vunpack.c.0.s8 %v3208
      %v3210 = vlaneseq
      %v3211 = vshrl.u32 %v3210, 7
      %v3212 = vsub.s32 %v3209, %v3211
      %v3213 = vrot.slane %v3191, %v3212
      %v3215 = vunpack.c.l.s4 1966171168
      %v3216 = vunpack.c.0.s8 %v3215
      %v3217 = vlaneseq
      %v3218 = vshrl.u32 %v3217, 7
      %v3219 = vsub.s32 %v3216, %v3218
      %v3220 = vrot.slane %v3192, %v3219
      %v3221 = vcombine.high %v3199, %v3199
      %v3222 = vcombine.high %v3206, %v3206
      %v3223 = vcombine.high %v3213, %v3213
      %v3224 = vcombine.high %v3220, %v3220
      %v3233 = vmul.f32 %v2884, %v3199
      %v3234 = vmul.f32 %v2898, %v3213
      %v3235 = vmul.f32 %v2906, %v3221
      %v3236 = vmul.f32 %v2908, %v3223
      %v3237 = vmul.f32 %v2891, %v3206
      %v3238 = vmul.f32 %v2905, %v3220
      %v3239 = vmul.f32 %v2907, %v3222
      %v3240 = vmul.f32 %v2909, %v3224
      %v3241 = vmul.f32 %v2933, %v3199
      %v3242 = vmul.f32 %v2947, %v3213
      %v3243 = vmul.f32 %v2955, %v3221
      %v3244 = vmul.f32 %v2957, %v3223
      %v3245 = vmul.f32 %v2940, %v3206
      %v3246 = vmul.f32 %v2954, %v3220
      %v3247 = vmul.f32 %v2956, %v3222
      %v3248 = vmul.f32 %v2958, %v3224
      %v3249 = vmul.f32 %v2982, %v3199
      %v3250 = vmul.f32 %v2996, %v3213
      %v3251 = vmul.f32 %v3004, %v3221
      %v3252 = vmul.f32 %v3006, %v3223
      %v3253 = vmul.f32 %v2989, %v3206
      %v3254 = vmul.f32 %v3003, %v3199
      %v3255 = vmul.f32 %v3005, %v3213
      %v3256 = vmul.f32 %v3007, %v3221
      %v3257 = vmul.f32 %v3031, %v3223
      %v3258 = vmul.f32 %v3045, %v3206
      %v3259 = vmul.f32 %v3053, %v3220
      %v3260 = vmul.f32 %v3055, %v3222
      %v3261 = vmul.f32 %v3038, %v3224
      %v3262 = vmul.f32 %v3052, %v3199
      %v3263 = vmul.f32 %v3054, %v3213
      %v3264 = vmul.f32 %v3056, %v3221
      %v3265 = vmul.f32 %v3080, %v3223
      %v3266 = vmul.f32 %v3094, %v3206
      %v3267 = vmul.f32 %v3102, %v3220
      %v3268 = vmul.f32 %v3104, %v3222
      %v3269 = vmul.f32 %v3087, %v3224
      %v3270 = vmul.f32 %v3101, %v3199
      %v3271 = vmul.f32 %v3103, %v3213
      %v3272 = vmul.f32 %v3105, %v3221
      %v3273 = vmul.f32 %v3120, %v3223
      %v3274 = vmul.f32 %v3127, %v3206
      %v3317 = vcombine.low %v3233, %v3234
      %v3318 = vcombine.low %v3235, %v3236
      %v3319 = vcombine.low %v3237, %v3238
      %v3320 = vcombine.low %v3239, %v3240
      %v3322 = vunpack.c.l.s4 1966171168
      %v3323 = vunpack.c.0.s8 %v3322
      %v3324 = vlaneseq
      %v3325 = vshrl.u32 %v3324, 7
      %v3326 = vsub.s32 %v3323, %v3325
      %v3327 = vrot.slane %v3317, %v3326
      %v3329 = vunpack.c.l.s4 1966171168
      %v3330 = vunpack.c.0.s8 %v3329
      %v3331 = vlaneseq
      %v3332 = vshrl.u32 %v3331, 7
      %v3333 = vsub.s32 %v3330, %v3332
      %v3334 = vrot.slane %v3318, %v3333
      %v3336 = vunpack.c.l.s4 1966171168
      %v3337 = vunpack.c.0.s8 %v3336
      %v3338 = vlaneseq
      %v3339 = vshrl.u32 %v3338, 7
      %v3340 = vsub.s32 %v3337, %v3339
      %v3341 = vrot.slane %v3319, %v3340
      %v3343 = vunpack.c.l.s4 1966171168
      %v3344 = vunpack.c.0.s8 %v3343
      %v3345 = vlaneseq
      %v3346 = vshrl.u32 %v3345, 7
      %v3347 = vsub.s32 %v3344, %v3346
      %v3348 = vrot.slane %v3320, %v3347
      %v3349 = vcombine.low %v3327, %v3334
      %v3350 = vcombine.low %v3341, %v3348
      %v3352 = vunpack.c.l.s4 1966171168
      %v3353 = vunpack.c.0.s8 %v3352
      %v3354 = vlaneseq
      %v3355 = vshrl.u32 %v3354, 7
      %v3356 = vsub.s32 %v3353, %v3355
      %v3357 = vrot.slane %v3349, %v3356
      %v3359 = vunpack.c.l.s4 1966171168
      %v3360 = vunpack.c.0.s8 %v3359
      %v3361 = vlaneseq
      %v3362 = vshrl.u32 %v3361, 7
      %v3363 = vsub.s32 %v3360, %v3362
      %v3364 = vrot.slane %v3350, %v3363
      %v3365 = vcombine.low %v3357, %v3364
      %v3366 = vcombine.low %v3241, %v3242
      %v3367 = vcombine.low %v3243, %v3244
      %v3368 = vcombine.low %v3245, %v3246
      %v3369 = vcombine.low %v3247, %v3248
      %v3371 = vunpack.c.l.s4 1966171168
      %v3372 = vunpack.c.0.s8 %v3371
      %v3373 = vlaneseq
      %v3374 = vshrl.u32 %v3373, 7
      %v3375 = vsub.s32 %v3372, %v3374
      %v3376 = vrot.slane %v3366, %v3375
      %v3378 = vunpack.c.l.s4 1966171168
      %v3379 = vunpack.c.0.s8 %v3378
      %v3380 = vlaneseq
      %v3381 = vshrl.u32 %v3380, 7
      %v3382 = vsub.s32 %v3379, %v3381
      %v3383 = vrot.slane %v3367, %v3382
      %v3385 = vunpack.c.l.s4 1966171168
      %v3386 = vunpack.c.0.s8 %v3385
      %v3387 = vlaneseq
      %v3388 = vshrl.u32 %v3387, 7
      %v3389 = vsub.s32 %v3386, %v3388
      %v3390 = vrot.slane %v3368, %v3389
      %v3392 = vunpack.c.l.s4 1966171168
      %v3393 = vunpack.c.0.s8 %v3392
      %v3394 = vlaneseq
      %v3395 = vshrl.u32 %v3394, 7
      %v3396 = vsub.s32 %v3393, %v3395
      %v3397 = vrot.slane %v3369, %v3396
      %v3398 = vcombine.low %v3376, %v3383
      %v3399 = vcombine.low %v3390, %v3397
      %v3401 = vunpack.c.l.s4 1966171168
      %v3402 = vunpack.c.0.s8 %v3401
      %v3403 = vlaneseq
      %v3404 = vshrl.u32 %v3403, 7
      %v3405 = vsub.s32 %v3402, %v3404
      %v3406 = vrot.slane %v3398, %v3405
      %v3408 = vunpack.c.l.s4 1966171168
      %v3409 = vunpack.c.0.s8 %v3408
      %v3410 = vlaneseq
      %v3411 = vshrl.u32 %v3410, 7
      %v3412 = vsub.s32 %v3409, %v3411
      %v3413 = vrot.slane %v3399, %v3412
      %v3414 = vcombine.low %v3406, %v3413
      %v3415 = vcombine.low %v3249, %v3250
      %v3416 = vcombine.low %v3251, %v3252
      %v3418 = vunpack.c.l.s4 1966171168
      %v3419 = vunpack.c.0.s8 %v3418
      %v3420 = vlaneseq
      %v3421 = vshrl.u32 %v3420, 7
      %v3422 = vsub.s32 %v3419, %v3421
      %v3423 = vrot.slane %v3415, %v3422
      %v3425 = vunpack.c.l.s4 1966171168
      %v3426 = vunpack.c.0.s8 %v3425
      %v3427 = vlaneseq
      %v3428 = vshrl.u32 %v3427, 7
      %v3429 = vsub.s32 %v3426, %v3428
      %v3430 = vrot.slane %v3416, %v3429
      %v3432 = vunpack.c.l.s4 1966171168
      %v3433 = vunpack.c.0.s8 %v3432
      %v3434 = vlaneseq
      %v3435 = vshrl.u32 %v3434, 7
      %v3436 = vsub.s32 %v3433, %v3435
      %v3437 = vrot.slane %v3253, %v3436
      %v3438 = vcombine.low %v3423, %v3430
      %v3440 = vunpack.c.l.s4 1966171168
      %v3441 = vunpack.c.0.s8 %v3440
      %v3442 = vlaneseq
      %v3443 = vshrl.u32 %v3442, 7
      %v3444 = vsub.s32 %v3441, %v3443
      %v3445 = vrot.slane %v3438, %v3444
      %v3447 = vunpack.c.l.s4 1966171168
      %v3448 = vunpack.c.0.s8 %v3447
      %v3449 = vlaneseq
      %v3450 = vshrl.u32 %v3449, 7
      %v3451 = vsub.s32 %v3448, %v3450
      %v3452 = vrot.slane %v3437, %v3451
      %v3453 = vcombine.low %v3445, %v3452
      %v3454 = vcombine.low %v3254, %v3255
      %v3455 = vcombine.low %v3256, %v3257
      %v3456 = vcombine.low %v3258, %v3259
      %v3457 = vcombine.low %v3260, %v3261
      %v3459 = vunpack.c.l.s4 1966171168
      %v3460 = vunpack.c.0.s8 %v3459
      %v3461 = vlaneseq
      %v3462 = vshrl.u32 %v3461, 7
      %v3463 = vsub.s32 %v3460, %v3462
      %v3464 = vrot.slane %v3454, %v3463
      %v3466 = vunpack.c.l.s4 1966171168
      %v3467 = vunpack.c.0.s8 %v3466
      %v3468 = vlaneseq
      %v3469 = vshrl.u32 %v3468, 7
      %v3470 = vsub.s32 %v3467, %v3469
      %v3471 = vrot.slane %v3455, %v3470
      %v3473 = vunpack.c.l.s4 1966171168
      %v3474 = vunpack.c.0.s8 %v3473
      %v3475 = vlaneseq
      %v3476 = vshrl.u32 %v3475, 7
      %v3477 = vsub.s32 %v3474, %v3476
      %v3478 = vrot.slane %v3456, %v3477
      %v3480 = vunpack.c.l.s4 1966171168
      %v3481 = vunpack.c.0.s8 %v3480
      %v3482 = vlaneseq
      %v3483 = vshrl.u32 %v3482, 7
      %v3484 = vsub.s32 %v3481, %v3483
      %v3485 = vrot.slane %v3457, %v3484
      %v3486 = vcombine.low %v3464, %v3471
      %v3487 = vcombine.low %v3478, %v3485
      %v3489 = vunpack.c.l.s4 1966171168
      %v3490 = vunpack.c.0.s8 %v3489
      %v3491 = vlaneseq
      %v3492 = vshrl.u32 %v3491, 7
      %v3493 = vsub.s32 %v3490, %v3492
      %v3494 = vrot.slane %v3486, %v3493
      %v3496 = vunpack.c.l.s4 1966171168
      %v3497 = vunpack.c.0.s8 %v3496
      %v3498 = vlaneseq
      %v3499 = vshrl.u32 %v3498, 7
      %v3500 = vsub.s32 %v3497, %v3499
      %v3501 = vrot.slane %v3487, %v3500
      %v3502 = vcombine.low %v3494, %v3501
      %v3503 = vcombine.low %v3262, %v3263
      %v3504 = vcombine.low %v3264, %v3265
      %v3505 = vcombine.low %v3266, %v3267
      %v3506 = vcombine.low %v3268, %v3269
      %v3508 = vunpack.c.l.s4 1966171168
      %v3509 = vunpack.c.0.s8 %v3508
      %v3510 = vlaneseq
      %v3511 = vshrl.u32 %v3510, 7
      %v3512 = vsub.s32 %v3509, %v3511
      %v3513 = vrot.slane %v3503, %v3512
      %v3515 = vunpack.c.l.s4 1966171168
      %v3516 = vunpack.c.0.s8 %v3515
      %v3517 = vlaneseq
      %v3518 = vshrl.u32 %v3517, 7
      %v3519 = vsub.s32 %v3516, %v3518
      %v3520 = vrot.slane %v3504, %v3519
      %v3522 = vunpack.c.l.s4 1966171168
      %v3523 = vunpack.c.0.s8 %v3522
      %v3524 = vlaneseq
      %v3525 = vshrl.u32 %v3524, 7
      %v3526 = vsub.s32 %v3523, %v3525
      %v3527 = vrot.slane %v3505, %v3526
      %v3529 = vunpack.c.l.s4 1966171168
      %v3530 = vunpack.c.0.s8 %v3529
      %v3531 = vlaneseq
      %v3532 = vshrl.u32 %v3531, 7
      %v3533 = vsub.s32 %v3530, %v3532
      %v3534 = vrot.slane %v3506, %v3533
      %v3535 = vcombine.low %v3513, %v3520
      %v3536 = vcombine.low %v3527, %v3534
      %v3538 = vunpack.c.l.s4 1966171168
      %v3539 = vunpack.c.0.s8 %v3538
      %v3540 = vlaneseq
      %v3541 = vshrl.u32 %v3540, 7
      %v3542 = vsub.s32 %v3539, %v3541
      %v3543 = vrot.slane %v3535, %v3542
      %v3545 = vunpack.c.l.s4 1966171168
      %v3546 = vunpack.c.0.s8 %v3545
      %v3547 = vlaneseq
      %v3548 = vshrl.u32 %v3547, 7
      %v3549 = vsub.s32 %v3546, %v3548
      %v3550 = vrot.slane %v3536, %v3549
      %v3551 = vcombine.low %v3543, %v3550
      %v3552 = vcombine.low %v3270, %v3271
      %v3553 = vcombine.low %v3272, %v3273
      %v3555 = vunpack.c.l.s4 1966171168
      %v3556 = vunpack.c.0.s8 %v3555
      %v3557 = vlaneseq
      %v3558 = vshrl.u32 %v3557, 7
      %v3559 = vsub.s32 %v3556, %v3558
      %v3560 = vrot.slane %v3552, %v3559
      %v3562 = vunpack.c.l.s4 1966171168
      %v3563 = vunpack.c.0.s8 %v3562
      %v3564 = vlaneseq
      %v3565 = vshrl.u32 %v3564, 7
      %v3566 = vsub.s32 %v3563, %v3565
      %v3567 = vrot.slane %v3553, %v3566
      %v3569 = vunpack.c.l.s4 1966171168
      %v3570 = vunpack.c.0.s8 %v3569
      %v3571 = vlaneseq
      %v3572 = vshrl.u32 %v3571, 7
      %v3573 = vsub.s32 %v3570, %v3572
      %v3574 = vrot.slane %v3274, %v3573
      %v3575 = vcombine.low %v3560, %v3567
      %v3577 = vunpack.c.l.s4 1966171168
      %v3578 = vunpack.c.0.s8 %v3577
      %v3579 = vlaneseq
      %v3580 = vshrl.u32 %v3579, 7
      %v3581 = vsub.s32 %v3578, %v3580
      %v3582 = vrot.slane %v3575, %v3581
      %v3584 = vunpack.c.l.s4 1966171168
      %v3585 = vunpack.c.0.s8 %v3584
      %v3586 = vlaneseq
      %v3587 = vshrl.u32 %v3586, 7
      %v3588 = vsub.s32 %v3585, %v3587
      %v3589 = vrot.slane %v3574, %v3588
      %v3590 = vcombine.low %v3582, %v3589
      %v3597 = vsel %vm582, %v3365, 0.0
      %3598 = vadd.xlane.f32.xlu0 %v3597
      %v3599 = vpop.xlane.xlu0 %3598
      %v3600 = vsel %vm582, %v3414, 0.0
      %3601 = vadd.xlane.f32.xlu0 %v3600
      %v3602 = vpop.xlane.xlu0 %3601
      %vm3603 = vcmask 258048
      %v3604 = vsel %vm3603, %v3453, 0.0
      %3605 = vadd.xlane.f32.xlu0 %v3604
      %v3606 = vpop.xlane.xlu0 %3605
      %v3607 = vsel %vm582, %v3502, 0.0
      %3608 = vadd.xlane.f32.xlu0 %v3607
      %v3609 = vpop.xlane.xlu0 %3608
      %v3610 = vsel %vm582, %v3551, 0.0
      %3611 = vadd.xlane.f32.xlu0 %v3610
      %v3612 = vpop.xlane.xlu0 %3611
      %v3613 = vsel %vm3603, %v3590, 0.0
      %3614 = vadd.xlane.f32.xlu0 %v3613
      %v3615 = vpop.xlane.xlu0 %3614
      %v3616 = vld [vmem:[%s532] sm:$0x1]
      %v3618 = vlaneseq
      %v3619 = vshrl.u32 %v3618, 7
      %v3620 = vsub.s32 0, %v3619
      %v3621 = vrot.slane %v3616, %v3620
      %3622 = vset.pattern.permute.xlu0 0
      %3623 = vperm.xlu0 %3622, %v3621
      %v3624 = vpop.permute.xlu0 %3623
      %v3626 = vadd.f32 %v3599, %v3624
      %v3627 = vadd.f32 %v3602, %v3624
      %v3628 = vadd.f32 %v3606, %v3624
      %v3629 = vadd.f32 %v3609, %v3624
      %v3630 = vadd.f32 %v3612, %v3624
      %v3631 = vadd.f32 %v3615, %v3624
      %v3638 = vlaneseq
      %v3639 = vand.u32 %v3638, 127
      %v3640 = vlaneseq
      %v3641 = vshrl.u32 %v3640, 7
      %v3642 = vsub.s32 %v3639, %v3641
      %v3643 = vrot.slane %v3626, %v3642
      %v3644 = vadd.s32 %v3639, 4294967288
      %v3645 = vlaneseq
      %v3646 = vshrl.u32 %v3645, 7
      %v3647 = vsub.s32 %v3644, %v3646
      %v3648 = vrot.slane %v3627, %v3647
      %vm3649 = vcmask 130112
      %v3650 = vsel %vm3649, %v3648, %v3643
      %v3651 = vadd.s32 %v3639, 4294967280
      %v3652 = vlaneseq
      %v3653 = vshrl.u32 %v3652, 7
      %v3654 = vsub.s32 %v3651, %v3653
      %v3655 = vrot.slane %v3628, %v3654
      %vm3656 = vcmask 195712
      %v3657 = vsel %vm3656, %v3655, %v3650
      %v3658 = vlaneseq
      %v3659 = vshrl.u32 %v3658, 7
      %v3660 = vsub.s32 %v3639, %v3659
      %v3661 = vrot.slane %v3629, %v3660
      %v3662 = vlaneseq
      %v3663 = vshrl.u32 %v3662, 7
      %v3664 = vsub.s32 %v3644, %v3663
      %v3665 = vrot.slane %v3630, %v3664
      %v3666 = vsel %vm3649, %v3665, %v3661
      %v3667 = vlaneseq
      %v3668 = vshrl.u32 %v3667, 7
      %v3669 = vsub.s32 %v3651, %v3668
      %v3670 = vrot.slane %v3631, %v3669
      %v3671 = vsel %vm3656, %v3670, %v3666
      %vm3672 = vcmask 1041409
      %v3673 = vsel %vm3672, %v3671, %v3657
      %vm3675 = vcmask 164864
      %3676 = vst.msk [vmem:[%s536] sm:$0x3] %vm3675, %v3673
      %p3677 = scmp.lt.s32.totalorder %s22, 4
      %s3678 = scalar_select %p3677, %s22, 4
      %s3679 = smul.addr %s3678, 2
      %s3680 = scalar_lea.vmem %s11, %s3679
      // Predicated region
      $region65: #{projected_discriminator_forward.5} parent=63 // pred_check
        %p3681 = pneg %p326
      $region66: #{projected_discriminator_forward.5} parent=63 // pred_check_branch
        %3683 = sbr.rel (%p3681) target = $region68
      $region67: #{projected_discriminator_forward.5} parent=63 // pred_region
        _
      $region68: #{projected_discriminator_forward.5} parent=63 // pred_fallthru
        _
    $region64: #{projected_discriminator_forward.5} parent=5 // pred_fallthru
      _
    %p3684 = scmp.le.s32.totalorder 2, %s17
    // Predicated region
    $region69: #{projected_discriminator_forward.5} parent=5 // pred_check
      %p3685 = pneg %p3684
    $region70: #{projected_discriminator_forward.5} parent=5 // pred_check_branch
      %3687 = sbr.rel (%p3685) target = $region72
    $region71: #{projected_discriminator_forward.5} parent=5 // pred_region
      %s3688 = ssub.s32 %s17, 2
      // Predicated region
      $region73: #{projected_discriminator_forward.5} parent=71 // pred_check
        %p3689 = pneg %p332
      $region74: #{projected_discriminator_forward.5} parent=71 // pred_check_branch
        %3691 = sbr.rel (%p3689) target = $region76
      $region75: #{projected_discriminator_forward.5} parent=71 // pred_region
        %p3692 = scmp.lt.s32.totalorder %s23, 4
        %s3693 = scalar_select %p3692, %s23, 4
        %s3694 = smul.addr %s3693, 2
        %s3695 = scalar_lea.vmem %s11, %s3694
      $region76: #{projected_discriminator_forward.5} parent=71 // pred_fallthru
        _
    $region72: #{projected_discriminator_forward.5} parent=5 // pred_fallthru
      _
  $region6: #{projected_discriminator_forward.5} parent=0 // loop_footer
    %s21 = sadd.s32 1, %s17
  $region7: #{projected_discriminator_forward.5} parent=0 // loop_footer_branch
    %16 = sbr.rel target = $region3
  $region8: #{projected_discriminator_forward.5} parent=0 // loop_exit
    _

</llo_original>
